<compile_context>
chip_gen: v7x
topology: tpu7x:2x2x1
jax: 0.10.0
libtpu: 0.0.40
codegen_flags: <defaults>
</compile_context>

<pallas_src>
import functools

import jax
import jax.numpy as jnp
from jax import lax
from jax.experimental import pallas as pl
from jax.experimental.pallas import tpu as pltpu
import numpy as np

NB = 8  # batch rows per grid step (f32 sublane tile -> all in-kernel slices are aligned)


# ----------------------------------------------------------------------------
# Helpers
# ----------------------------------------------------------------------------
def conv3d_output_size(img_size, padding, kernel_size, stride):
    return tuple(
        int(np.floor((img_size[i] + 2 * padding[i] - (kernel_size[i] - 1) - 1)
                     / stride[i] + 1))
        for i in range(3))


def bn_fold(gamma, beta, running_mean, running_var, eps=1e-5):
    scale = gamma / jnp.sqrt(running_var + eps)
    shift = beta - running_mean * scale
    return scale, shift


def _pad_axis(x, target, axis):
    pad = target - x.shape[axis]
    if pad <= 0:
        return x
    widths = [(0, 0)] * x.ndim
    widths[axis] = (0, pad)
    return jnp.pad(x, widths)


# ----------------------------------------------------------------------------
# One-time parameter prep: fold BN, regroup weights per conv2-tap / fc1-spatial
# position, pad only where needed (conv1 K 125->128, final Cout -> 128), bf16.
# ----------------------------------------------------------------------------
def prepare_params(params, conv2_outshape):
    ch1 = params["conv1_w"].shape[0]
    ch2 = params["conv2_w"].shape[0]
    fc_h1 = params["fc1_w"].shape[0]
    fc_h2 = params["fc2_w"].shape[0]
    D2, H2, W2 = conv2_outshape
    nsp2 = D2 * H2 * W2

    s1, t1 = bn_fold(params["bn1_g"], params["bn1_b"],
                     params["bn1_rm"], params["bn1_rv"])
    s2, t2 = bn_fold(params["bn2_g"], params["bn2_b"],
                     params["bn2_rm"], params["bn2_rv"])

    # conv1: (ch1, 1, 5,5,5) -> (125, ch1), BN scale folded, K padded 125 -> 128.
    k1taps = int(np.prod(params["conv1_w"].shape[1:]))
    k1pad = int(np.ceil(k1taps / 128)) * 128
    w1 = params["conv1_w"].reshape(ch1, k1taps).T * s1[None, :]
    w1 = _pad_axis(w1, k1pad, 0)
    sh1 = (params["conv1_b"] * s1 + t1).reshape(1, ch1)

    # conv2: (ch2, ch1, 3,3,3) -> per-tap weights (27, ch1, ch2); no channel pad.
    k2taps = int(np.prod(params["conv2_w"].shape[2:]))
    w2 = params["conv2_w"].reshape(ch2, ch1, k2taps).transpose(2, 1, 0)
    w2 = w2 * s2[None, None, :]
    sh2 = (params["conv2_b"] * s2 + t2).reshape(1, ch2)

    # fc1: torch flatten is channel-major (col = c2*nsp2 + spatial);
    # regroup to per-spatial-position weights (nsp2, ch2, fc_h1); no channel pad.
    wf1 = params["fc1_w"].reshape(fc_h1, ch2, nsp2).transpose(2, 1, 0)
    shf1 = params["fc1_b"].reshape(1, fc_h1)

    # fc2: (K, C) with C padded to 128 for a lane-dense final store.
    cout = int(np.ceil(fc_h2 / 128)) * 128
    wf2 = _pad_axis(params["fc2_w"].T, cout, 1)
    shf2 = _pad_axis(params["fc2_b"], cout, 0).reshape(1, cout)

    return {
        "w1": w1.astype(jnp.bfloat16), "sh1": sh1.astype(jnp.float32),
        "w2": w2.astype(jnp.bfloat16), "sh2": sh2.astype(jnp.float32),
        "wf1": wf1.astype(jnp.bfloat16), "shf1": shf1.astype(jnp.float32),
        "wf2": wf2.astype(jnp.bfloat16), "shf2": shf2.astype(jnp.float32),
    }


# ----------------------------------------------------------------------------
# Single fused kernel: conv1 -> bn1 -> relu -> conv2 -> bn2 -> relu -> fc1 ->
# relu -> fc2 -> relu for one batch group of NB samples.
#
# p1_ref rows are pre-ordered (conv2-tap, conv2-spatial, batch-in-group), so:
#   * conv1 output rows for tap t are the contiguous slice [t*rows_t, (t+1)*rows_t)
#   * conv2 is a 27-step accumulation of (rows_t, ch1) @ (ch1, ch2) matmuls
#   * fc1 is an nsp2-step accumulation over aligned (NB, ch2) slices of z
# Only full-ref loads, aligned static slices, jnp.dot and elementwise ops are
# used — everything stays in VMEM/vregs.
# ----------------------------------------------------------------------------
def cnn3d_fused_kernel(p1_ref, w1_ref, sh1_ref, w2_ref, sh2_ref,
                       wf1_ref, shf1_ref, wf2_ref, shf2_ref, o_ref,
                       *, k2taps, nsp2, nb):
    ch1 = w1_ref.shape[1]
    ch2 = w2_ref.shape[2]
    fc_h1 = wf1_ref.shape[2]
    rows_t = nsp2 * nb                                    # rows per conv2 tap

    w1 = w1_ref[...]                                      # (K1pad, ch1) bf16
    sh1 = jnp.broadcast_to(sh1_ref[...], (rows_t, ch1))   # hoisted broadcast

    # conv1(+bn1+relu) fused with the conv2 tap accumulation (f32 accumulator).
    acc2 = jnp.zeros((rows_t, ch2), jnp.float32)
    for t in range(k2taps):
        p1_t = p1_ref[t * rows_t:(t + 1) * rows_t, :]     # (rows_t, K1pad) bf16
        y1 = jnp.dot(p1_t, w1, preferred_element_type=jnp.float32) + sh1
        y1 = jnp.maximum(y1, 0.0).astype(jnp.bfloat16)    # (rows_t, ch1)
        acc2 = acc2 + jnp.dot(y1, w2_ref[t],
                              preferred_element_type=jnp.float32)

    z = jnp.maximum(acc2 + sh2_ref[...], 0.0)             # (rows_t, ch2) f32

    # fc1: contraction over (spatial position, ch2); weights pre-regrouped.
    acc3 = jnp.zeros((nb, fc_h1), jnp.float32)
    for s in range(nsp2):
        zs = z[s * nb:(s + 1) * nb, :].astype(jnp.bfloat16)   # (nb, ch2)
        acc3 = acc3 + jnp.dot(zs, wf1_ref[s],
                              preferred_element_type=jnp.float32)
    h = jnp.maximum(acc3 + shf1_ref[...], 0.0).astype(jnp.bfloat16)  # (nb, fc_h1)

    # fc2 + final ReLU, lane-dense (nb, 128) f32 store.
    out = jnp.dot(h, wf2_ref[...], preferred_element_type=jnp.float32) + shf2_ref[...]
    o_ref[...] = jnp.maximum(out, 0.0).astype(o_ref.dtype)


# ----------------------------------------------------------------------------
# Forward: host side only stages the conv1 patch matrix (a gather on the
# 1-channel input, fused by XLA) in the row order the kernel expects, then runs
# one pallas_call for the whole network.
# ----------------------------------------------------------------------------
def cnn3d_forward(x, prep, *, num_out,
                  kern1=(5, 5, 5), stride1=(2, 2, 2),
                  kern2=(3, 3, 3), stride2=(2, 2, 2)):
    N = x.shape[0]
    Din, Hin, Win = x.shape[2], x.shape[3], x.shape[4]
    D1, H1, W1 = conv3d_output_size((Din, Hin, Win), (0, 0, 0), kern1, stride1)
    D2, H2, W2 = conv3d_output_size((D1, H1, W1), (0, 0, 0), kern2, stride2)
    nsp2 = D2 * H2 * W2
    k2taps = kern2[0] * kern2[1] * kern2[2]

    NP = ((N + NB - 1) // NB) * NB
    G = NP // NB

    xs = x.reshape(N, Din, Hin, Win)                       # in_channels == 1
    if NP != N:
        xs = jnp.pad(xs, ((0, NP - N), (0, 0), (0, 0), (0, 0)))

    # conv1 im2col at conv1-output positions (XLA-side data staging only).
    taps = []
    for dz in range(kern1[0]):
        for dy in range(kern1[1]):
            for dx in range(kern1[2]):
                taps.append(xs[:, dz:dz + stride1[0] * D1:stride1[0],
                               dy:dy + stride1[1] * H1:stride1[1],
                               dx:dx + stride1[2] * W1:stride1[2]])
    col1 = jnp.stack(taps, axis=-1)                        # (NP, D1, H1, W1, 125)

    # Gather conv1 positions in (conv2-tap, conv2-spatial) order so conv2's
    # im2col is implicit inside the kernel (contiguous row slices per tap).
    sp = np.stack(np.meshgrid(np.arange(D2), np.arange(H2), np.arange(W2),
                              indexing="ij"), 0).reshape(3, -1)          # (3, nsp2)
    tp = np.stack(np.meshgrid(np.arange(kern2[0]), np.arange(kern2[1]),
                              np.arange(kern2[2]), indexing="ij"), 0).reshape(3, -1)
    DI = stride2[0] * sp[0][None, :] + tp[0][:, None]       # (k2taps, nsp2)
    HI = stride2[1] * sp[1][None, :] + tp[1][:, None]
    WI = stride2[2] * sp[2][None, :] + tp[2][:, None]
    p1 = col1[:, DI, HI, WI, :]                             # (NP, 27, nsp2, 125)
    k1taps = p1.shape[-1]

    # Rows ordered (batch_group, tap, spatial, in-group batch).
    p1 = p1.reshape(G, NB, k2taps, nsp2, k1taps).transpose(0, 2, 3, 1, 4)
    p1 = p1.reshape(G * k2taps * nsp2 * NB, k1taps)
    k1pad = prep["w1"].shape[0]
    p1 = _pad_axis(p1, k1pad, 1).astype(jnp.bfloat16)       # K: 125 -> 128

    rows_blk = k2taps * nsp2 * NB
    ch1 = prep["w1"].shape[1]
    ch2 = prep["w2"].shape[2]
    fc_h1 = prep["wf1"].shape[2]
    cout = prep["wf2"].shape[1]

    # VMEM budget guard (double-buffered inputs + output must fit the limit).
    weight_bytes = sum(int(np.prod(prep[k].shape)) * prep[k].dtype.itemsize
                       for k in prep)
    vmem_limit = 32 * 1024 * 1024
    vmem_bytes = 2 * (rows_blk * k1pad * 2 + NB * cout * 4) + 2 * weight_bytes
    assert vmem_bytes < vmem_limit, vmem_bytes

    flops = int(2 * G * (rows_blk * k1pad * ch1
                         + k2taps * nsp2 * NB * ch1 * ch2
                         + nsp2 * NB * ch2 * fc_h1
                         + NB * fc_h1 * cout))
    bytes_accessed = int(p1.size * 2 + NP * cout * 4 + weight_bytes)

    out = pl.pallas_call(
        functools.partial(cnn3d_fused_kernel, k2taps=k2taps, nsp2=nsp2, nb=NB),
        out_shape=jax.ShapeDtypeStruct((NP, cout), jnp.float32),
        grid=(G,),
        in_specs=[
            pl.BlockSpec((rows_blk, k1pad), lambda g: (g, 0)),
            pl.BlockSpec(prep["w1"].shape, lambda g: (0, 0)),
            pl.BlockSpec(prep["sh1"].shape, lambda g: (0, 0)),
            pl.BlockSpec(prep["w2"].shape, lambda g: (0, 0, 0)),
            pl.BlockSpec(prep["sh2"].shape, lambda g: (0, 0)),
            pl.BlockSpec(prep["wf1"].shape, lambda g: (0, 0, 0)),
            pl.BlockSpec(prep["shf1"].shape, lambda g: (0, 0)),
            pl.BlockSpec(prep["wf2"].shape, lambda g: (0, 0)),
            pl.BlockSpec(prep["shf2"].shape, lambda g: (0, 0)),
        ],
        out_specs=pl.BlockSpec((NB, cout), lambda g: (g, 0)),
        compiler_params=pltpu.CompilerParams(
            dimension_semantics=("parallel",),
            vmem_limit_bytes=vmem_limit),
        cost_estimate=pl.CostEstimate(flops=flops, transcendentals=0,
                                      bytes_accessed=bytes_accessed),
    )(p1, prep["w1"], prep["sh1"], prep["w2"], prep["sh2"],
      prep["wf1"], prep["shf1"], prep["wf2"], prep["shf2"])

    return out[:N, :num_out]


# ----------------------------------------------------------------------------
# Pure-JAX reference (lax.conv) for correctness check
# ----------------------------------------------------------------------------
def cnn3d_reference(x, params, eps=1e-5):
    dn = ("NCDHW", "OIDHW", "NCDHW")
    y = lax.conv_general_dilated(x, params["conv1_w"], (2, 2, 2), "VALID",
                                 dimension_numbers=dn)
    y = y + params["conv1_b"].reshape(1, -1, 1, 1, 1)
    y = ((y - params["bn1_rm"].reshape(1, -1, 1, 1, 1))
         / jnp.sqrt(params["bn1_rv"].reshape(1, -1, 1, 1, 1) + eps)
         * params["bn1_g"].reshape(1, -1, 1, 1, 1)
         + params["bn1_b"].reshape(1, -1, 1, 1, 1))
    y = jnp.maximum(y, 0.0)

    z = lax.conv_general_dilated(y, params["conv2_w"], (2, 2, 2), "VALID",
                                 dimension_numbers=dn)
    z = z + params["conv2_b"].reshape(1, -1, 1, 1, 1)
    z = ((z - params["bn2_rm"].reshape(1, -1, 1, 1, 1))
         / jnp.sqrt(params["bn2_rv"].reshape(1, -1, 1, 1, 1) + eps)
         * params["bn2_g"].reshape(1, -1, 1, 1, 1)
         + params["bn2_b"].reshape(1, -1, 1, 1, 1))
    z = jnp.maximum(z, 0.0)

    flat = z.reshape(z.shape[0], -1)
    h = jnp.maximum(flat @ params["fc1_w"].T + params["fc1_b"], 0.0)
    out = jnp.maximum(h @ params["fc2_w"].T + params["fc2_b"], 0.0)
    return out


if __name__ == "__main__":
    # Small configuration consistent with the module's constructor math:
    #   t_dim = img_x = img_y = 16, stride-2 5^3 conv -> 6^3, stride-2 3^3 conv -> 2^3
    N = 2
    t_dim = img_x = img_y = 16
    ch1, ch2 = 32, 48
    fc_hidden1, fc_hidden2 = 32, 16

    c1_out = conv3d_output_size((t_dim, img_x, img_y), (0, 0, 0), (5, 5, 5), (2, 2, 2))
    c2_out = conv3d_output_size(c1_out, (0, 0, 0), (3, 3, 3), (2, 2, 2))
    fc1_in = ch2 * c2_out[0] * c2_out[1] * c2_out[2]

    key = jax.random.PRNGKey(0)
    ks = jax.random.split(key, 16)
    params = {
        "conv1_w": 0.05 * jax.random.normal(ks[0], (ch1, 1, 5, 5, 5), jnp.float32),
        "conv1_b": 0.05 * jax.random.normal(ks[1], (ch1,), jnp.float32),
        "bn1_g":   1.0 + 0.1 * jax.random.normal(ks[2], (ch1,), jnp.float32),
        "bn1_b":   0.1 * jax.random.normal(ks[3], (ch1,), jnp.float32),
        "bn1_rm":  0.1 * jax.random.normal(ks[4], (ch1,), jnp.float32),
        "bn1_rv":  jax.random.uniform(ks[5], (ch1,), jnp.float32, 0.5, 1.5),
        "conv2_w": 0.05 * jax.random.normal(ks[6], (ch2, ch1, 3, 3, 3), jnp.float32),
        "conv2_b": 0.05 * jax.random.normal(ks[7], (ch2,), jnp.float32),
        "bn2_g":   1.0 + 0.1 * jax.random.normal(ks[8], (ch2,), jnp.float32),
        "bn2_b":   0.1 * jax.random.normal(ks[9], (ch2,), jnp.float32),
        "bn2_rm":  0.1 * jax.random.normal(ks[10], (ch2,), jnp.float32),
        "bn2_rv":  jax.random.uniform(ks[11], (ch2,), jnp.float32, 0.5, 1.5),
        "fc1_w":   0.05 * jax.random.normal(ks[12], (fc_hidden1, fc1_in), jnp.float32),
        "fc1_b":   0.05 * jax.random.normal(ks[13], (fc_hidden1,), jnp.float32),
        "fc2_w":   0.05 * jax.random.normal(ks[14], (fc_hidden2, fc_hidden1), jnp.float32),
        "fc2_b":   0.05 * jax.random.normal(ks[15], (fc_hidden2,), jnp.float32),
    }

    x = jax.random.normal(jax.random.PRNGKey(42), (N, 1, t_dim, img_x, img_y),
                          jnp.float32)

    # One-time parameter folding / layout prep (not per forward pass).
    prep = jax.tree_util.tree_map(jax.block_until_ready,
                                  prepare_params(params, c2_out))

    fwd = jax.jit(functools.partial(cnn3d_forward, num_out=fc_hidden2))
    out = jax.block_until_ready(fwd(x, prep))
    ref = jax.block_until_ready(cnn3d_reference(x, params))

    assert out.shape == (N, fc_hidden2), out.shape
    # bf16 MXU operands (f32 accumulation) -> looser tolerance than pure-f32.
    np.testing.assert_allclose(np.asarray(out), np.asarray(ref),
                               rtol=3e-2, atol=3e-2)
    print("KERNEL_OK")
</pallas_src>

<mosaic_0001>
module attributes {stable_mosaic.version = 11 : i64} {
  func.func @cnn3d_fused_kernel(%arg0: i32, %arg1: memref<1728x128xbf16, #tpu.memory_space<vmem>>, %arg2: memref<128x32xbf16, #tpu.memory_space<vmem>>, %arg3: memref<1x32xf32, #tpu.memory_space<vmem>>, %arg4: memref<27x32x48xbf16, #tpu.memory_space<vmem>>, %arg5: memref<1x48xf32, #tpu.memory_space<vmem>>, %arg6: memref<8x48x32xbf16, #tpu.memory_space<vmem>>, %arg7: memref<1x32xf32, #tpu.memory_space<vmem>>, %arg8: memref<32x128xbf16, #tpu.memory_space<vmem>>, %arg9: memref<1x128xf32, #tpu.memory_space<vmem>>, %arg10: memref<8x128xf32, #tpu.memory_space<vmem>>) attributes {dimension_semantics = [#tpu.dimension_semantics<parallel>], iteration_bounds = array<i64: 1>, scalar_prefetch = 0 : i64, scratch_operands = 0 : i64, tpu.core_type = #tpu.core_type<tc>, window_params = [{transform_indices = @transform_0, window_bounds = array<i64: 1728, 128>}, {pipeline_mode = #tpu.pipeline_mode<synchronous>, transform_indices = @transform_1, window_bounds = array<i64: 128, 32>}, {pipeline_mode = #tpu.pipeline_mode<synchronous>, transform_indices = @transform_2, window_bounds = array<i64: 1, 32>}, {pipeline_mode = #tpu.pipeline_mode<synchronous>, transform_indices = @transform_3, window_bounds = array<i64: 27, 32, 48>}, {pipeline_mode = #tpu.pipeline_mode<synchronous>, transform_indices = @transform_4, window_bounds = array<i64: 1, 48>}, {pipeline_mode = #tpu.pipeline_mode<synchronous>, transform_indices = @transform_5, window_bounds = array<i64: 8, 48, 32>}, {pipeline_mode = #tpu.pipeline_mode<synchronous>, transform_indices = @transform_6, window_bounds = array<i64: 1, 32>}, {pipeline_mode = #tpu.pipeline_mode<synchronous>, transform_indices = @transform_7, window_bounds = array<i64: 32, 128>}, {pipeline_mode = #tpu.pipeline_mode<synchronous>, transform_indices = @transform_8, window_bounds = array<i64: 1, 128>}, {transform_indices = @transform_9, window_bounds = array<i64: 8, 128>}]} {
    %c0 = arith.constant 0 : index
    %c0_0 = arith.constant 0 : index
    %0 = vector.load %arg2[%c0, %c0_0] : memref<128x32xbf16, #tpu.memory_space<vmem>>, vector<128x32xbf16>
    %c0_1 = arith.constant 0 : index
    %c0_2 = arith.constant 0 : index
    %1 = vector.load %arg3[%c0_1, %c0_2] : memref<1x32xf32, #tpu.memory_space<vmem>>, vector<1x32xf32>
    %2 = vector.shape_cast %1 : vector<1x32xf32> to vector<1x32xf32>
    %3 = vector.broadcast %2 : vector<1x32xf32> to vector<64x32xf32>
    %cst = arith.constant 0.000000e+00 : f32
    %4 = vector.broadcast %cst : f32 to vector<64x48xf32>
    %c0_3 = arith.constant 0 : index
    %c0_4 = arith.constant 0 : index
    %5 = vector.load %arg1[%c0_3, %c0_4] : memref<1728x128xbf16, #tpu.memory_space<vmem>>, vector<64x128xbf16>
    %cst_5 = arith.constant dense<0.000000e+00> : vector<64x32xf32>
    %6 = tpu.matmul %5, %0, %cst_5 {dimension_numbers = #tpu.dot_dimension_numbers<[1], [0], [0], [1], [0, 0, 1, 1], [], []>} : vector<64x128xbf16>, vector<128x32xbf16>, vector<64x32xf32> -> vector<64x32xf32>
    %7 = arith.addf %6, %3 : vector<64x32xf32>
    %cst_6 = arith.constant 0.000000e+00 : f32
    %8 = vector.broadcast %cst_6 : f32 to vector<64x32xf32>
    %9 = arith.maximumf %7, %8 : vector<64x32xf32>
    %10 = arith.truncf %9 : vector<64x32xf32> to vector<64x32xbf16>
    %c0_7 = arith.constant 0 : index
    %c0_8 = arith.constant 0 : index
    %c0_9 = arith.constant 0 : index
    %11 = vector.load %arg4[%c0_7, %c0_8, %c0_9] : memref<27x32x48xbf16, #tpu.memory_space<vmem>>, vector<1x32x48xbf16>
    %12 = vector.shape_cast %11 : vector<1x32x48xbf16> to vector<32x48xbf16>
    %cst_10 = arith.constant dense<0.000000e+00> : vector<64x48xf32>
    %13 = tpu.matmul %10, %12, %cst_10 {dimension_numbers = #tpu.dot_dimension_numbers<[1], [0], [0], [1], [0, 0, 1, 1], [], []>} : vector<64x32xbf16>, vector<32x48xbf16>, vector<64x48xf32> -> vector<64x48xf32>
    %14 = arith.addf %4, %13 : vector<64x48xf32>
    %c64 = arith.constant 64 : index
    %c0_11 = arith.constant 0 : index
    %15 = vector.load %arg1[%c64, %c0_11] : memref<1728x128xbf16, #tpu.memory_space<vmem>>, vector<64x128xbf16>
    %cst_12 = arith.constant dense<0.000000e+00> : vector<64x32xf32>
    %16 = tpu.matmul %15, %0, %cst_12 {dimension_numbers = #tpu.dot_dimension_numbers<[1], [0], [0], [1], [0, 0, 1, 1], [], []>} : vector<64x128xbf16>, vector<128x32xbf16>, vector<64x32xf32> -> vector<64x32xf32>
    %17 = arith.addf %16, %3 : vector<64x32xf32>
    %cst_13 = arith.constant 0.000000e+00 : f32
    %18 = vector.broadcast %cst_13 : f32 to vector<64x32xf32>
    %19 = arith.maximumf %17, %18 : vector<64x32xf32>
    %20 = arith.truncf %19 : vector<64x32xf32> to vector<64x32xbf16>
    %c1 = arith.constant 1 : index
    %c0_14 = arith.constant 0 : index
    %c0_15 = arith.constant 0 : index
    %21 = vector.load %arg4[%c1, %c0_14, %c0_15] : memref<27x32x48xbf16, #tpu.memory_space<vmem>>, vector<1x32x48xbf16>
    %22 = vector.shape_cast %21 : vector<1x32x48xbf16> to vector<32x48xbf16>
    %cst_16 = arith.constant dense<0.000000e+00> : vector<64x48xf32>
    %23 = tpu.matmul %20, %22, %cst_16 {dimension_numbers = #tpu.dot_dimension_numbers<[1], [0], [0], [1], [0, 0, 1, 1], [], []>} : vector<64x32xbf16>, vector<32x48xbf16>, vector<64x48xf32> -> vector<64x48xf32>
    %24 = arith.addf %14, %23 : vector<64x48xf32>
    %c128 = arith.constant 128 : index
    %c0_17 = arith.constant 0 : index
    %25 = vector.load %arg1[%c128, %c0_17] : memref<1728x128xbf16, #tpu.memory_space<vmem>>, vector<64x128xbf16>
    %cst_18 = arith.constant dense<0.000000e+00> : vector<64x32xf32>
    %26 = tpu.matmul %25, %0, %cst_18 {dimension_numbers = #tpu.dot_dimension_numbers<[1], [0], [0], [1], [0, 0, 1, 1], [], []>} : vector<64x128xbf16>, vector<128x32xbf16>, vector<64x32xf32> -> vector<64x32xf32>
    %27 = arith.addf %26, %3 : vector<64x32xf32>
    %cst_19 = arith.constant 0.000000e+00 : f32
    %28 = vector.broadcast %cst_19 : f32 to vector<64x32xf32>
    %29 = arith.maximumf %27, %28 : vector<64x32xf32>
    %30 = arith.truncf %29 : vector<64x32xf32> to vector<64x32xbf16>
    %c2 = arith.constant 2 : index
    %c0_20 = arith.constant 0 : index
    %c0_21 = arith.constant 0 : index
    %31 = vector.load %arg4[%c2, %c0_20, %c0_21] : memref<27x32x48xbf16, #tpu.memory_space<vmem>>, vector<1x32x48xbf16>
    %32 = vector.shape_cast %31 : vector<1x32x48xbf16> to vector<32x48xbf16>
    %cst_22 = arith.constant dense<0.000000e+00> : vector<64x48xf32>
    %33 = tpu.matmul %30, %32, %cst_22 {dimension_numbers = #tpu.dot_dimension_numbers<[1], [0], [0], [1], [0, 0, 1, 1], [], []>} : vector<64x32xbf16>, vector<32x48xbf16>, vector<64x48xf32> -> vector<64x48xf32>
    %34 = arith.addf %24, %33 : vector<64x48xf32>
    %c192 = arith.constant 192 : index
    %c0_23 = arith.constant 0 : index
    %35 = vector.load %arg1[%c192, %c0_23] : memref<1728x128xbf16, #tpu.memory_space<vmem>>, vector<64x128xbf16>
    %cst_24 = arith.constant dense<0.000000e+00> : vector<64x32xf32>
    %36 = tpu.matmul %35, %0, %cst_24 {dimension_numbers = #tpu.dot_dimension_numbers<[1], [0], [0], [1], [0, 0, 1, 1], [], []>} : vector<64x128xbf16>, vector<128x32xbf16>, vector<64x32xf32> -> vector<64x32xf32>
    %37 = arith.addf %36, %3 : vector<64x32xf32>
    %cst_25 = arith.constant 0.000000e+00 : f32
    %38 = vector.broadcast %cst_25 : f32 to vector<64x32xf32>
    %39 = arith.maximumf %37, %38 : vector<64x32xf32>
    %40 = arith.truncf %39 : vector<64x32xf32> to vector<64x32xbf16>
    %c3 = arith.constant 3 : index
    %c0_26 = arith.constant 0 : index
    %c0_27 = arith.constant 0 : index
    %41 = vector.load %arg4[%c3, %c0_26, %c0_27] : memref<27x32x48xbf16, #tpu.memory_space<vmem>>, vector<1x32x48xbf16>
    %42 = vector.shape_cast %41 : vector<1x32x48xbf16> to vector<32x48xbf16>
    %cst_28 = arith.constant dense<0.000000e+00> : vector<64x48xf32>
    %43 = tpu.matmul %40, %42, %cst_28 {dimension_numbers = #tpu.dot_dimension_numbers<[1], [0], [0], [1], [0, 0, 1, 1], [], []>} : vector<64x32xbf16>, vector<32x48xbf16>, vector<64x48xf32> -> vector<64x48xf32>
    %44 = arith.addf %34, %43 : vector<64x48xf32>
    %c256 = arith.constant 256 : index
    %c0_29 = arith.constant 0 : index
    %45 = vector.load %arg1[%c256, %c0_29] : memref<1728x128xbf16, #tpu.memory_space<vmem>>, vector<64x128xbf16>
    %cst_30 = arith.constant dense<0.000000e+00> : vector<64x32xf32>
    %46 = tpu.matmul %45, %0, %cst_30 {dimension_numbers = #tpu.dot_dimension_numbers<[1], [0], [0], [1], [0, 0, 1, 1], [], []>} : vector<64x128xbf16>, vector<128x32xbf16>, vector<64x32xf32> -> vector<64x32xf32>
    %47 = arith.addf %46, %3 : vector<64x32xf32>
    %cst_31 = arith.constant 0.000000e+00 : f32
    %48 = vector.broadcast %cst_31 : f32 to vector<64x32xf32>
    %49 = arith.maximumf %47, %48 : vector<64x32xf32>
    %50 = arith.truncf %49 : vector<64x32xf32> to vector<64x32xbf16>
    %c4 = arith.constant 4 : index
    %c0_32 = arith.constant 0 : index
    %c0_33 = arith.constant 0 : index
    %51 = vector.load %arg4[%c4, %c0_32, %c0_33] : memref<27x32x48xbf16, #tpu.memory_space<vmem>>, vector<1x32x48xbf16>
    %52 = vector.shape_cast %51 : vector<1x32x48xbf16> to vector<32x48xbf16>
    %cst_34 = arith.constant dense<0.000000e+00> : vector<64x48xf32>
    %53 = tpu.matmul %50, %52, %cst_34 {dimension_numbers = #tpu.dot_dimension_numbers<[1], [0], [0], [1], [0, 0, 1, 1], [], []>} : vector<64x32xbf16>, vector<32x48xbf16>, vector<64x48xf32> -> vector<64x48xf32>
    %54 = arith.addf %44, %53 : vector<64x48xf32>
    %c320 = arith.constant 320 : index
    %c0_35 = arith.constant 0 : index
    %55 = vector.load %arg1[%c320, %c0_35] : memref<1728x128xbf16, #tpu.memory_space<vmem>>, vector<64x128xbf16>
    %cst_36 = arith.constant dense<0.000000e+00> : vector<64x32xf32>
    %56 = tpu.matmul %55, %0, %cst_36 {dimension_numbers = #tpu.dot_dimension_numbers<[1], [0], [0], [1], [0, 0, 1, 1], [], []>} : vector<64x128xbf16>, vector<128x32xbf16>, vector<64x32xf32> -> vector<64x32xf32>
    %57 = arith.addf %56, %3 : vector<64x32xf32>
    %cst_37 = arith.constant 0.000000e+00 : f32
    %58 = vector.broadcast %cst_37 : f32 to vector<64x32xf32>
    %59 = arith.maximumf %57, %58 : vector<64x32xf32>
    %60 = arith.truncf %59 : vector<64x32xf32> to vector<64x32xbf16>
    %c5 = arith.constant 5 : index
    %c0_38 = arith.constant 0 : index
    %c0_39 = arith.constant 0 : index
    %61 = vector.load %arg4[%c5, %c0_38, %c0_39] : memref<27x32x48xbf16, #tpu.memory_space<vmem>>, vector<1x32x48xbf16>
    %62 = vector.shape_cast %61 : vector<1x32x48xbf16> to vector<32x48xbf16>
    %cst_40 = arith.constant dense<0.000000e+00> : vector<64x48xf32>
    %63 = tpu.matmul %60, %62, %cst_40 {dimension_numbers = #tpu.dot_dimension_numbers<[1], [0], [0], [1], [0, 0, 1, 1], [], []>} : vector<64x32xbf16>, vector<32x48xbf16>, vector<64x48xf32> -> vector<64x48xf32>
    %64 = arith.addf %54, %63 : vector<64x48xf32>
    %c384 = arith.constant 384 : index
    %c0_41 = arith.constant 0 : index
    %65 = vector.load %arg1[%c384, %c0_41] : memref<1728x128xbf16, #tpu.memory_space<vmem>>, vector<64x128xbf16>
    %cst_42 = arith.constant dense<0.000000e+00> : vector<64x32xf32>
    %66 = tpu.matmul %65, %0, %cst_42 {dimension_numbers = #tpu.dot_dimension_numbers<[1], [0], [0], [1], [0, 0, 1, 1], [], []>} : vector<64x128xbf16>, vector<128x32xbf16>, vector<64x32xf32> -> vector<64x32xf32>
    %67 = arith.addf %66, %3 : vector<64x32xf32>
    %cst_43 = arith.constant 0.000000e+00 : f32
    %68 = vector.broadcast %cst_43 : f32 to vector<64x32xf32>
    %69 = arith.maximumf %67, %68 : vector<64x32xf32>
    %70 = arith.truncf %69 : vector<64x32xf32> to vector<64x32xbf16>
    %c6 = arith.constant 6 : index
    %c0_44 = arith.constant 0 : index
    %c0_45 = arith.constant 0 : index
    %71 = vector.load %arg4[%c6, %c0_44, %c0_45] : memref<27x32x48xbf16, #tpu.memory_space<vmem>>, vector<1x32x48xbf16>
    %72 = vector.shape_cast %71 : vector<1x32x48xbf16> to vector<32x48xbf16>
    %cst_46 = arith.constant dense<0.000000e+00> : vector<64x48xf32>
    %73 = tpu.matmul %70, %72, %cst_46 {dimension_numbers = #tpu.dot_dimension_numbers<[1], [0], [0], [1], [0, 0, 1, 1], [], []>} : vector<64x32xbf16>, vector<32x48xbf16>, vector<64x48xf32> -> vector<64x48xf32>
    %74 = arith.addf %64, %73 : vector<64x48xf32>
    %c448 = arith.constant 448 : index
    %c0_47 = arith.constant 0 : index
    %75 = vector.load %arg1[%c448, %c0_47] : memref<1728x128xbf16, #tpu.memory_space<vmem>>, vector<64x128xbf16>
    %cst_48 = arith.constant dense<0.000000e+00> : vector<64x32xf32>
    %76 = tpu.matmul %75, %0, %cst_48 {dimension_numbers = #tpu.dot_dimension_numbers<[1], [0], [0], [1], [0, 0, 1, 1], [], []>} : vector<64x128xbf16>, vector<128x32xbf16>, vector<64x32xf32> -> vector<64x32xf32>
    %77 = arith.addf %76, %3 : vector<64x32xf32>
    %cst_49 = arith.constant 0.000000e+00 : f32
    %78 = vector.broadcast %cst_49 : f32 to vector<64x32xf32>
    %79 = arith.maximumf %77, %78 : vector<64x32xf32>
    %80 = arith.truncf %79 : vector<64x32xf32> to vector<64x32xbf16>
    %c7 = arith.constant 7 : index
    %c0_50 = arith.constant 0 : index
    %c0_51 = arith.constant 0 : index
    %81 = vector.load %arg4[%c7, %c0_50, %c0_51] : memref<27x32x48xbf16, #tpu.memory_space<vmem>>, vector<1x32x48xbf16>
    %82 = vector.shape_cast %81 : vector<1x32x48xbf16> to vector<32x48xbf16>
    %cst_52 = arith.constant dense<0.000000e+00> : vector<64x48xf32>
    %83 = tpu.matmul %80, %82, %cst_52 {dimension_numbers = #tpu.dot_dimension_numbers<[1], [0], [0], [1], [0, 0, 1, 1], [], []>} : vector<64x32xbf16>, vector<32x48xbf16>, vector<64x48xf32> -> vector<64x48xf32>
    %84 = arith.addf %74, %83 : vector<64x48xf32>
    %c512 = arith.constant 512 : index
    %c0_53 = arith.constant 0 : index
    %85 = vector.load %arg1[%c512, %c0_53] : memref<1728x128xbf16, #tpu.memory_space<vmem>>, vector<64x128xbf16>
    %cst_54 = arith.constant dense<0.000000e+00> : vector<64x32xf32>
    %86 = tpu.matmul %85, %0, %cst_54 {dimension_numbers = #tpu.dot_dimension_numbers<[1], [0], [0], [1], [0, 0, 1, 1], [], []>} : vector<64x128xbf16>, vector<128x32xbf16>, vector<64x32xf32> -> vector<64x32xf32>
    %87 = arith.addf %86, %3 : vector<64x32xf32>
    %cst_55 = arith.constant 0.000000e+00 : f32
    %88 = vector.broadcast %cst_55 : f32 to vector<64x32xf32>
    %89 = arith.maximumf %87, %88 : vector<64x32xf32>
    %90 = arith.truncf %89 : vector<64x32xf32> to vector<64x32xbf16>
    %c8 = arith.constant 8 : index
    %c0_56 = arith.constant 0 : index
    %c0_57 = arith.constant 0 : index
    %91 = vector.load %arg4[%c8, %c0_56, %c0_57] : memref<27x32x48xbf16, #tpu.memory_space<vmem>>, vector<1x32x48xbf16>
    %92 = vector.shape_cast %91 : vector<1x32x48xbf16> to vector<32x48xbf16>
    %cst_58 = arith.constant dense<0.000000e+00> : vector<64x48xf32>
    %93 = tpu.matmul %90, %92, %cst_58 {dimension_numbers = #tpu.dot_dimension_numbers<[1], [0], [0], [1], [0, 0, 1, 1], [], []>} : vector<64x32xbf16>, vector<32x48xbf16>, vector<64x48xf32> -> vector<64x48xf32>
    %94 = arith.addf %84, %93 : vector<64x48xf32>
    %c576 = arith.constant 576 : index
    %c0_59 = arith.constant 0 : index
    %95 = vector.load %arg1[%c576, %c0_59] : memref<1728x128xbf16, #tpu.memory_space<vmem>>, vector<64x128xbf16>
    %cst_60 = arith.constant dense<0.000000e+00> : vector<64x32xf32>
    %96 = tpu.matmul %95, %0, %cst_60 {dimension_numbers = #tpu.dot_dimension_numbers<[1], [0], [0], [1], [0, 0, 1, 1], [], []>} : vector<64x128xbf16>, vector<128x32xbf16>, vector<64x32xf32> -> vector<64x32xf32>
    %97 = arith.addf %96, %3 : vector<64x32xf32>
    %cst_61 = arith.constant 0.000000e+00 : f32
    %98 = vector.broadcast %cst_61 : f32 to vector<64x32xf32>
    %99 = arith.maximumf %97, %98 : vector<64x32xf32>
    %100 = arith.truncf %99 : vector<64x32xf32> to vector<64x32xbf16>
    %c9 = arith.constant 9 : index
    %c0_62 = arith.constant 0 : index
    %c0_63 = arith.constant 0 : index
    %101 = vector.load %arg4[%c9, %c0_62, %c0_63] : memref<27x32x48xbf16, #tpu.memory_space<vmem>>, vector<1x32x48xbf16>
    %102 = vector.shape_cast %101 : vector<1x32x48xbf16> to vector<32x48xbf16>
    %cst_64 = arith.constant dense<0.000000e+00> : vector<64x48xf32>
    %103 = tpu.matmul %100, %102, %cst_64 {dimension_numbers = #tpu.dot_dimension_numbers<[1], [0], [0], [1], [0, 0, 1, 1], [], []>} : vector<64x32xbf16>, vector<32x48xbf16>, vector<64x48xf32> -> vector<64x48xf32>
    %104 = arith.addf %94, %103 : vector<64x48xf32>
    %c640 = arith.constant 640 : index
    %c0_65 = arith.constant 0 : index
    %105 = vector.load %arg1[%c640, %c0_65] : memref<1728x128xbf16, #tpu.memory_space<vmem>>, vector<64x128xbf16>
    %cst_66 = arith.constant dense<0.000000e+00> : vector<64x32xf32>
    %106 = tpu.matmul %105, %0, %cst_66 {dimension_numbers = #tpu.dot_dimension_numbers<[1], [0], [0], [1], [0, 0, 1, 1], [], []>} : vector<64x128xbf16>, vector<128x32xbf16>, vector<64x32xf32> -> vector<64x32xf32>
    %107 = arith.addf %106, %3 : vector<64x32xf32>
    %cst_67 = arith.constant 0.000000e+00 : f32
    %108 = vector.broadcast %cst_67 : f32 to vector<64x32xf32>
    %109 = arith.maximumf %107, %108 : vector<64x32xf32>
    %110 = arith.truncf %109 : vector<64x32xf32> to vector<64x32xbf16>
    %c10 = arith.constant 10 : index
    %c0_68 = arith.constant 0 : index
    %c0_69 = arith.constant 0 : index
    %111 = vector.load %arg4[%c10, %c0_68, %c0_69] : memref<27x32x48xbf16, #tpu.memory_space<vmem>>, vector<1x32x48xbf16>
    %112 = vector.shape_cast %111 : vector<1x32x48xbf16> to vector<32x48xbf16>
    %cst_70 = arith.constant dense<0.000000e+00> : vector<64x48xf32>
    %113 = tpu.matmul %110, %112, %cst_70 {dimension_numbers = #tpu.dot_dimension_numbers<[1], [0], [0], [1], [0, 0, 1, 1], [], []>} : vector<64x32xbf16>, vector<32x48xbf16>, vector<64x48xf32> -> vector<64x48xf32>
    %114 = arith.addf %104, %113 : vector<64x48xf32>
    %c704 = arith.constant 704 : index
    %c0_71 = arith.constant 0 : index
    %115 = vector.load %arg1[%c704, %c0_71] : memref<1728x128xbf16, #tpu.memory_space<vmem>>, vector<64x128xbf16>
    %cst_72 = arith.constant dense<0.000000e+00> : vector<64x32xf32>
    %116 = tpu.matmul %115, %0, %cst_72 {dimension_numbers = #tpu.dot_dimension_numbers<[1], [0], [0], [1], [0, 0, 1, 1], [], []>} : vector<64x128xbf16>, vector<128x32xbf16>, vector<64x32xf32> -> vector<64x32xf32>
    %117 = arith.addf %116, %3 : vector<64x32xf32>
    %cst_73 = arith.constant 0.000000e+00 : f32
    %118 = vector.broadcast %cst_73 : f32 to vector<64x32xf32>
    %119 = arith.maximumf %117, %118 : vector<64x32xf32>
    %120 = arith.truncf %119 : vector<64x32xf32> to vector<64x32xbf16>
    %c11 = arith.constant 11 : index
    %c0_74 = arith.constant 0 : index
    %c0_75 = arith.constant 0 : index
    %121 = vector.load %arg4[%c11, %c0_74, %c0_75] : memref<27x32x48xbf16, #tpu.memory_space<vmem>>, vector<1x32x48xbf16>
    %122 = vector.shape_cast %121 : vector<1x32x48xbf16> to vector<32x48xbf16>
    %cst_76 = arith.constant dense<0.000000e+00> : vector<64x48xf32>
    %123 = tpu.matmul %120, %122, %cst_76 {dimension_numbers = #tpu.dot_dimension_numbers<[1], [0], [0], [1], [0, 0, 1, 1], [], []>} : vector<64x32xbf16>, vector<32x48xbf16>, vector<64x48xf32> -> vector<64x48xf32>
    %124 = arith.addf %114, %123 : vector<64x48xf32>
    %c768 = arith.constant 768 : index
    %c0_77 = arith.constant 0 : index
    %125 = vector.load %arg1[%c768, %c0_77] : memref<1728x128xbf16, #tpu.memory_space<vmem>>, vector<64x128xbf16>
    %cst_78 = arith.constant dense<0.000000e+00> : vector<64x32xf32>
    %126 = tpu.matmul %125, %0, %cst_78 {dimension_numbers = #tpu.dot_dimension_numbers<[1], [0], [0], [1], [0, 0, 1, 1], [], []>} : vector<64x128xbf16>, vector<128x32xbf16>, vector<64x32xf32> -> vector<64x32xf32>
    %127 = arith.addf %126, %3 : vector<64x32xf32>
    %cst_79 = arith.constant 0.000000e+00 : f32
    %128 = vector.broadcast %cst_79 : f32 to vector<64x32xf32>
    %129 = arith.maximumf %127, %128 : vector<64x32xf32>
    %130 = arith.truncf %129 : vector<64x32xf32> to vector<64x32xbf16>
    %c12 = arith.constant 12 : index
    %c0_80 = arith.constant 0 : index
    %c0_81 = arith.constant 0 : index
    %131 = vector.load %arg4[%c12, %c0_80, %c0_81] : memref<27x32x48xbf16, #tpu.memory_space<vmem>>, vector<1x32x48xbf16>
    %132 = vector.shape_cast %131 : vector<1x32x48xbf16> to vector<32x48xbf16>
    %cst_82 = arith.constant dense<0.000000e+00> : vector<64x48xf32>
    %133 = tpu.matmul %130, %132, %cst_82 {dimension_numbers = #tpu.dot_dimension_numbers<[1], [0], [0], [1], [0, 0, 1, 1], [], []>} : vector<64x32xbf16>, vector<32x48xbf16>, vector<64x48xf32> -> vector<64x48xf32>
    %134 = arith.addf %124, %133 : vector<64x48xf32>
    %c832 = arith.constant 832 : index
    %c0_83 = arith.constant 0 : index
    %135 = vector.load %arg1[%c832, %c0_83] : memref<1728x128xbf16, #tpu.memory_space<vmem>>, vector<64x128xbf16>
    %cst_84 = arith.constant dense<0.000000e+00> : vector<64x32xf32>
    %136 = tpu.matmul %135, %0, %cst_84 {dimension_numbers = #tpu.dot_dimension_numbers<[1], [0], [0], [1], [0, 0, 1, 1], [], []>} : vector<64x128xbf16>, vector<128x32xbf16>, vector<64x32xf32> -> vector<64x32xf32>
    %137 = arith.addf %136, %3 : vector<64x32xf32>
    %cst_85 = arith.constant 0.000000e+00 : f32
    %138 = vector.broadcast %cst_85 : f32 to vector<64x32xf32>
    %139 = arith.maximumf %137, %138 : vector<64x32xf32>
    %140 = arith.truncf %139 : vector<64x32xf32> to vector<64x32xbf16>
    %c13 = arith.constant 13 : index
    %c0_86 = arith.constant 0 : index
    %c0_87 = arith.constant 0 : index
    %141 = vector.load %arg4[%c13, %c0_86, %c0_87] : memref<27x32x48xbf16, #tpu.memory_space<vmem>>, vector<1x32x48xbf16>
    %142 = vector.shape_cast %141 : vector<1x32x48xbf16> to vector<32x48xbf16>
    %cst_88 = arith.constant dense<0.000000e+00> : vector<64x48xf32>
    %143 = tpu.matmul %140, %142, %cst_88 {dimension_numbers = #tpu.dot_dimension_numbers<[1], [0], [0], [1], [0, 0, 1, 1], [], []>} : vector<64x32xbf16>, vector<32x48xbf16>, vector<64x48xf32> -> vector<64x48xf32>
    %144 = arith.addf %134, %143 : vector<64x48xf32>
    %c896 = arith.constant 896 : index
    %c0_89 = arith.constant 0 : index
    %145 = vector.load %arg1[%c896, %c0_89] : memref<1728x128xbf16, #tpu.memory_space<vmem>>, vector<64x128xbf16>
    %cst_90 = arith.constant dense<0.000000e+00> : vector<64x32xf32>
    %146 = tpu.matmul %145, %0, %cst_90 {dimension_numbers = #tpu.dot_dimension_numbers<[1], [0], [0], [1], [0, 0, 1, 1], [], []>} : vector<64x128xbf16>, vector<128x32xbf16>, vector<64x32xf32> -> vector<64x32xf32>
    %147 = arith.addf %146, %3 : vector<64x32xf32>
    %cst_91 = arith.constant 0.000000e+00 : f32
    %148 = vector.broadcast %cst_91 : f32 to vector<64x32xf32>
    %149 = arith.maximumf %147, %148 : vector<64x32xf32>
    %150 = arith.truncf %149 : vector<64x32xf32> to vector<64x32xbf16>
    %c14 = arith.constant 14 : index
    %c0_92 = arith.constant 0 : index
    %c0_93 = arith.constant 0 : index
    %151 = vector.load %arg4[%c14, %c0_92, %c0_93] : memref<27x32x48xbf16, #tpu.memory_space<vmem>>, vector<1x32x48xbf16>
    %152 = vector.shape_cast %151 : vector<1x32x48xbf16> to vector<32x48xbf16>
    %cst_94 = arith.constant dense<0.000000e+00> : vector<64x48xf32>
    %153 = tpu.matmul %150, %152, %cst_94 {dimension_numbers = #tpu.dot_dimension_numbers<[1], [0], [0], [1], [0, 0, 1, 1], [], []>} : vector<64x32xbf16>, vector<32x48xbf16>, vector<64x48xf32> -> vector<64x48xf32>
    %154 = arith.addf %144, %153 : vector<64x48xf32>
    %c960 = arith.constant 960 : index
    %c0_95 = arith.constant 0 : index
    %155 = vector.load %arg1[%c960, %c0_95] : memref<1728x128xbf16, #tpu.memory_space<vmem>>, vector<64x128xbf16>
    %cst_96 = arith.constant dense<0.000000e+00> : vector<64x32xf32>
    %156 = tpu.matmul %155, %0, %cst_96 {dimension_numbers = #tpu.dot_dimension_numbers<[1], [0], [0], [1], [0, 0, 1, 1], [], []>} : vector<64x128xbf16>, vector<128x32xbf16>, vector<64x32xf32> -> vector<64x32xf32>
    %157 = arith.addf %156, %3 : vector<64x32xf32>
    %cst_97 = arith.constant 0.000000e+00 : f32
    %158 = vector.broadcast %cst_97 : f32 to vector<64x32xf32>
    %159 = arith.maximumf %157, %158 : vector<64x32xf32>
    %160 = arith.truncf %159 : vector<64x32xf32> to vector<64x32xbf16>
    %c15 = arith.constant 15 : index
    %c0_98 = arith.constant 0 : index
    %c0_99 = arith.constant 0 : index
    %161 = vector.load %arg4[%c15, %c0_98, %c0_99] : memref<27x32x48xbf16, #tpu.memory_space<vmem>>, vector<1x32x48xbf16>
    %162 = vector.shape_cast %161 : vector<1x32x48xbf16> to vector<32x48xbf16>
    %cst_100 = arith.constant dense<0.000000e+00> : vector<64x48xf32>
    %163 = tpu.matmul %160, %162, %cst_100 {dimension_numbers = #tpu.dot_dimension_numbers<[1], [0], [0], [1], [0, 0, 1, 1], [], []>} : vector<64x32xbf16>, vector<32x48xbf16>, vector<64x48xf32> -> vector<64x48xf32>
    %164 = arith.addf %154, %163 : vector<64x48xf32>
    %c1024 = arith.constant 1024 : index
    %c0_101 = arith.constant 0 : index
    %165 = vector.load %arg1[%c1024, %c0_101] : memref<1728x128xbf16, #tpu.memory_space<vmem>>, vector<64x128xbf16>
    %cst_102 = arith.constant dense<0.000000e+00> : vector<64x32xf32>
    %166 = tpu.matmul %165, %0, %cst_102 {dimension_numbers = #tpu.dot_dimension_numbers<[1], [0], [0], [1], [0, 0, 1, 1], [], []>} : vector<64x128xbf16>, vector<128x32xbf16>, vector<64x32xf32> -> vector<64x32xf32>
    %167 = arith.addf %166, %3 : vector<64x32xf32>
    %cst_103 = arith.constant 0.000000e+00 : f32
    %168 = vector.broadcast %cst_103 : f32 to vector<64x32xf32>
    %169 = arith.maximumf %167, %168 : vector<64x32xf32>
    %170 = arith.truncf %169 : vector<64x32xf32> to vector<64x32xbf16>
    %c16 = arith.constant 16 : index
    %c0_104 = arith.constant 0 : index
    %c0_105 = arith.constant 0 : index
    %171 = vector.load %arg4[%c16, %c0_104, %c0_105] : memref<27x32x48xbf16, #tpu.memory_space<vmem>>, vector<1x32x48xbf16>
    %172 = vector.shape_cast %171 : vector<1x32x48xbf16> to vector<32x48xbf16>
    %cst_106 = arith.constant dense<0.000000e+00> : vector<64x48xf32>
    %173 = tpu.matmul %170, %172, %cst_106 {dimension_numbers = #tpu.dot_dimension_numbers<[1], [0], [0], [1], [0, 0, 1, 1], [], []>} : vector<64x32xbf16>, vector<32x48xbf16>, vector<64x48xf32> -> vector<64x48xf32>
    %174 = arith.addf %164, %173 : vector<64x48xf32>
    %c1088 = arith.constant 1088 : index
    %c0_107 = arith.constant 0 : index
    %175 = vector.load %arg1[%c1088, %c0_107] : memref<1728x128xbf16, #tpu.memory_space<vmem>>, vector<64x128xbf16>
    %cst_108 = arith.constant dense<0.000000e+00> : vector<64x32xf32>
    %176 = tpu.matmul %175, %0, %cst_108 {dimension_numbers = #tpu.dot_dimension_numbers<[1], [0], [0], [1], [0, 0, 1, 1], [], []>} : vector<64x128xbf16>, vector<128x32xbf16>, vector<64x32xf32> -> vector<64x32xf32>
    %177 = arith.addf %176, %3 : vector<64x32xf32>
    %cst_109 = arith.constant 0.000000e+00 : f32
    %178 = vector.broadcast %cst_109 : f32 to vector<64x32xf32>
    %179 = arith.maximumf %177, %178 : vector<64x32xf32>
    %180 = arith.truncf %179 : vector<64x32xf32> to vector<64x32xbf16>
    %c17 = arith.constant 17 : index
    %c0_110 = arith.constant 0 : index
    %c0_111 = arith.constant 0 : index
    %181 = vector.load %arg4[%c17, %c0_110, %c0_111] : memref<27x32x48xbf16, #tpu.memory_space<vmem>>, vector<1x32x48xbf16>
    %182 = vector.shape_cast %181 : vector<1x32x48xbf16> to vector<32x48xbf16>
    %cst_112 = arith.constant dense<0.000000e+00> : vector<64x48xf32>
    %183 = tpu.matmul %180, %182, %cst_112 {dimension_numbers = #tpu.dot_dimension_numbers<[1], [0], [0], [1], [0, 0, 1, 1], [], []>} : vector<64x32xbf16>, vector<32x48xbf16>, vector<64x48xf32> -> vector<64x48xf32>
    %184 = arith.addf %174, %183 : vector<64x48xf32>
    %c1152 = arith.constant 1152 : index
    %c0_113 = arith.constant 0 : index
    %185 = vector.load %arg1[%c1152, %c0_113] : memref<1728x128xbf16, #tpu.memory_space<vmem>>, vector<64x128xbf16>
    %cst_114 = arith.constant dense<0.000000e+00> : vector<64x32xf32>
    %186 = tpu.matmul %185, %0, %cst_114 {dimension_numbers = #tpu.dot_dimension_numbers<[1], [0], [0], [1], [0, 0, 1, 1], [], []>} : vector<64x128xbf16>, vector<128x32xbf16>, vector<64x32xf32> -> vector<64x32xf32>
    %187 = arith.addf %186, %3 : vector<64x32xf32>
    %cst_115 = arith.constant 0.000000e+00 : f32
    %188 = vector.broadcast %cst_115 : f32 to vector<64x32xf32>
    %189 = arith.maximumf %187, %188 : vector<64x32xf32>
    %190 = arith.truncf %189 : vector<64x32xf32> to vector<64x32xbf16>
    %c18 = arith.constant 18 : index
    %c0_116 = arith.constant 0 : index
    %c0_117 = arith.constant 0 : index
    %191 = vector.load %arg4[%c18, %c0_116, %c0_117] : memref<27x32x48xbf16, #tpu.memory_space<vmem>>, vector<1x32x48xbf16>
    %192 = vector.shape_cast %191 : vector<1x32x48xbf16> to vector<32x48xbf16>
    %cst_118 = arith.constant dense<0.000000e+00> : vector<64x48xf32>
    %193 = tpu.matmul %190, %192, %cst_118 {dimension_numbers = #tpu.dot_dimension_numbers<[1], [0], [0], [1], [0, 0, 1, 1], [], []>} : vector<64x32xbf16>, vector<32x48xbf16>, vector<64x48xf32> -> vector<64x48xf32>
    %194 = arith.addf %184, %193 : vector<64x48xf32>
    %c1216 = arith.constant 1216 : index
    %c0_119 = arith.constant 0 : index
    %195 = vector.load %arg1[%c1216, %c0_119] : memref<1728x128xbf16, #tpu.memory_space<vmem>>, vector<64x128xbf16>
    %cst_120 = arith.constant dense<0.000000e+00> : vector<64x32xf32>
    %196 = tpu.matmul %195, %0, %cst_120 {dimension_numbers = #tpu.dot_dimension_numbers<[1], [0], [0], [1], [0, 0, 1, 1], [], []>} : vector<64x128xbf16>, vector<128x32xbf16>, vector<64x32xf32> -> vector<64x32xf32>
    %197 = arith.addf %196, %3 : vector<64x32xf32>
    %cst_121 = arith.constant 0.000000e+00 : f32
    %198 = vector.broadcast %cst_121 : f32 to vector<64x32xf32>
    %199 = arith.maximumf %197, %198 : vector<64x32xf32>
    %200 = arith.truncf %199 : vector<64x32xf32> to vector<64x32xbf16>
    %c19 = arith.constant 19 : index
    %c0_122 = arith.constant 0 : index
    %c0_123 = arith.constant 0 : index
    %201 = vector.load %arg4[%c19, %c0_122, %c0_123] : memref<27x32x48xbf16, #tpu.memory_space<vmem>>, vector<1x32x48xbf16>
    %202 = vector.shape_cast %201 : vector<1x32x48xbf16> to vector<32x48xbf16>
    %cst_124 = arith.constant dense<0.000000e+00> : vector<64x48xf32>
    %203 = tpu.matmul %200, %202, %cst_124 {dimension_numbers = #tpu.dot_dimension_numbers<[1], [0], [0], [1], [0, 0, 1, 1], [], []>} : vector<64x32xbf16>, vector<32x48xbf16>, vector<64x48xf32> -> vector<64x48xf32>
    %204 = arith.addf %194, %203 : vector<64x48xf32>
    %c1280 = arith.constant 1280 : index
    %c0_125 = arith.constant 0 : index
    %205 = vector.load %arg1[%c1280, %c0_125] : memref<1728x128xbf16, #tpu.memory_space<vmem>>, vector<64x128xbf16>
    %cst_126 = arith.constant dense<0.000000e+00> : vector<64x32xf32>
    %206 = tpu.matmul %205, %0, %cst_126 {dimension_numbers = #tpu.dot_dimension_numbers<[1], [0], [0], [1], [0, 0, 1, 1], [], []>} : vector<64x128xbf16>, vector<128x32xbf16>, vector<64x32xf32> -> vector<64x32xf32>
    %207 = arith.addf %206, %3 : vector<64x32xf32>
    %cst_127 = arith.constant 0.000000e+00 : f32
    %208 = vector.broadcast %cst_127 : f32 to vector<64x32xf32>
    %209 = arith.maximumf %207, %208 : vector<64x32xf32>
    %210 = arith.truncf %209 : vector<64x32xf32> to vector<64x32xbf16>
    %c20 = arith.constant 20 : index
    %c0_128 = arith.constant 0 : index
    %c0_129 = arith.constant 0 : index
    %211 = vector.load %arg4[%c20, %c0_128, %c0_129] : memref<27x32x48xbf16, #tpu.memory_space<vmem>>, vector<1x32x48xbf16>
    %212 = vector.shape_cast %211 : vector<1x32x48xbf16> to vector<32x48xbf16>
    %cst_130 = arith.constant dense<0.000000e+00> : vector<64x48xf32>
    %213 = tpu.matmul %210, %212, %cst_130 {dimension_numbers = #tpu.dot_dimension_numbers<[1], [0], [0], [1], [0, 0, 1, 1], [], []>} : vector<64x32xbf16>, vector<32x48xbf16>, vector<64x48xf32> -> vector<64x48xf32>
    %214 = arith.addf %204, %213 : vector<64x48xf32>
    %c1344 = arith.constant 1344 : index
    %c0_131 = arith.constant 0 : index
    %215 = vector.load %arg1[%c1344, %c0_131] : memref<1728x128xbf16, #tpu.memory_space<vmem>>, vector<64x128xbf16>
    %cst_132 = arith.constant dense<0.000000e+00> : vector<64x32xf32>
    %216 = tpu.matmul %215, %0, %cst_132 {dimension_numbers = #tpu.dot_dimension_numbers<[1], [0], [0], [1], [0, 0, 1, 1], [], []>} : vector<64x128xbf16>, vector<128x32xbf16>, vector<64x32xf32> -> vector<64x32xf32>
    %217 = arith.addf %216, %3 : vector<64x32xf32>
    %cst_133 = arith.constant 0.000000e+00 : f32
    %218 = vector.broadcast %cst_133 : f32 to vector<64x32xf32>
    %219 = arith.maximumf %217, %218 : vector<64x32xf32>
    %220 = arith.truncf %219 : vector<64x32xf32> to vector<64x32xbf16>
    %c21 = arith.constant 21 : index
    %c0_134 = arith.constant 0 : index
    %c0_135 = arith.constant 0 : index
    %221 = vector.load %arg4[%c21, %c0_134, %c0_135] : memref<27x32x48xbf16, #tpu.memory_space<vmem>>, vector<1x32x48xbf16>
    %222 = vector.shape_cast %221 : vector<1x32x48xbf16> to vector<32x48xbf16>
    %cst_136 = arith.constant dense<0.000000e+00> : vector<64x48xf32>
    %223 = tpu.matmul %220, %222, %cst_136 {dimension_numbers = #tpu.dot_dimension_numbers<[1], [0], [0], [1], [0, 0, 1, 1], [], []>} : vector<64x32xbf16>, vector<32x48xbf16>, vector<64x48xf32> -> vector<64x48xf32>
    %224 = arith.addf %214, %223 : vector<64x48xf32>
    %c1408 = arith.constant 1408 : index
    %c0_137 = arith.constant 0 : index
    %225 = vector.load %arg1[%c1408, %c0_137] : memref<1728x128xbf16, #tpu.memory_space<vmem>>, vector<64x128xbf16>
    %cst_138 = arith.constant dense<0.000000e+00> : vector<64x32xf32>
    %226 = tpu.matmul %225, %0, %cst_138 {dimension_numbers = #tpu.dot_dimension_numbers<[1], [0], [0], [1], [0, 0, 1, 1], [], []>} : vector<64x128xbf16>, vector<128x32xbf16>, vector<64x32xf32> -> vector<64x32xf32>
    %227 = arith.addf %226, %3 : vector<64x32xf32>
    %cst_139 = arith.constant 0.000000e+00 : f32
    %228 = vector.broadcast %cst_139 : f32 to vector<64x32xf32>
    %229 = arith.maximumf %227, %228 : vector<64x32xf32>
    %230 = arith.truncf %229 : vector<64x32xf32> to vector<64x32xbf16>
    %c22 = arith.constant 22 : index
    %c0_140 = arith.constant 0 : index
    %c0_141 = arith.constant 0 : index
    %231 = vector.load %arg4[%c22, %c0_140, %c0_141] : memref<27x32x48xbf16, #tpu.memory_space<vmem>>, vector<1x32x48xbf16>
    %232 = vector.shape_cast %231 : vector<1x32x48xbf16> to vector<32x48xbf16>
    %cst_142 = arith.constant dense<0.000000e+00> : vector<64x48xf32>
    %233 = tpu.matmul %230, %232, %cst_142 {dimension_numbers = #tpu.dot_dimension_numbers<[1], [0], [0], [1], [0, 0, 1, 1], [], []>} : vector<64x32xbf16>, vector<32x48xbf16>, vector<64x48xf32> -> vector<64x48xf32>
    %234 = arith.addf %224, %233 : vector<64x48xf32>
    %c1472 = arith.constant 1472 : index
    %c0_143 = arith.constant 0 : index
    %235 = vector.load %arg1[%c1472, %c0_143] : memref<1728x128xbf16, #tpu.memory_space<vmem>>, vector<64x128xbf16>
    %cst_144 = arith.constant dense<0.000000e+00> : vector<64x32xf32>
    %236 = tpu.matmul %235, %0, %cst_144 {dimension_numbers = #tpu.dot_dimension_numbers<[1], [0], [0], [1], [0, 0, 1, 1], [], []>} : vector<64x128xbf16>, vector<128x32xbf16>, vector<64x32xf32> -> vector<64x32xf32>
    %237 = arith.addf %236, %3 : vector<64x32xf32>
    %cst_145 = arith.constant 0.000000e+00 : f32
    %238 = vector.broadcast %cst_145 : f32 to vector<64x32xf32>
    %239 = arith.maximumf %237, %238 : vector<64x32xf32>
    %240 = arith.truncf %239 : vector<64x32xf32> to vector<64x32xbf16>
    %c23 = arith.constant 23 : index
    %c0_146 = arith.constant 0 : index
    %c0_147 = arith.constant 0 : index
    %241 = vector.load %arg4[%c23, %c0_146, %c0_147] : memref<27x32x48xbf16, #tpu.memory_space<vmem>>, vector<1x32x48xbf16>
    %242 = vector.shape_cast %241 : vector<1x32x48xbf16> to vector<32x48xbf16>
    %cst_148 = arith.constant dense<0.000000e+00> : vector<64x48xf32>
    %243 = tpu.matmul %240, %242, %cst_148 {dimension_numbers = #tpu.dot_dimension_numbers<[1], [0], [0], [1], [0, 0, 1, 1], [], []>} : vector<64x32xbf16>, vector<32x48xbf16>, vector<64x48xf32> -> vector<64x48xf32>
    %244 = arith.addf %234, %243 : vector<64x48xf32>
    %c1536 = arith.constant 1536 : index
    %c0_149 = arith.constant 0 : index
    %245 = vector.load %arg1[%c1536, %c0_149] : memref<1728x128xbf16, #tpu.memory_space<vmem>>, vector<64x128xbf16>
    %cst_150 = arith.constant dense<0.000000e+00> : vector<64x32xf32>
    %246 = tpu.matmul %245, %0, %cst_150 {dimension_numbers = #tpu.dot_dimension_numbers<[1], [0], [0], [1], [0, 0, 1, 1], [], []>} : vector<64x128xbf16>, vector<128x32xbf16>, vector<64x32xf32> -> vector<64x32xf32>
    %247 = arith.addf %246, %3 : vector<64x32xf32>
    %cst_151 = arith.constant 0.000000e+00 : f32
    %248 = vector.broadcast %cst_151 : f32 to vector<64x32xf32>
    %249 = arith.maximumf %247, %248 : vector<64x32xf32>
    %250 = arith.truncf %249 : vector<64x32xf32> to vector<64x32xbf16>
    %c24 = arith.constant 24 : index
    %c0_152 = arith.constant 0 : index
    %c0_153 = arith.constant 0 : index
    %251 = vector.load %arg4[%c24, %c0_152, %c0_153] : memref<27x32x48xbf16, #tpu.memory_space<vmem>>, vector<1x32x48xbf16>
    %252 = vector.shape_cast %251 : vector<1x32x48xbf16> to vector<32x48xbf16>
    %cst_154 = arith.constant dense<0.000000e+00> : vector<64x48xf32>
    %253 = tpu.matmul %250, %252, %cst_154 {dimension_numbers = #tpu.dot_dimension_numbers<[1], [0], [0], [1], [0, 0, 1, 1], [], []>} : vector<64x32xbf16>, vector<32x48xbf16>, vector<64x48xf32> -> vector<64x48xf32>
    %254 = arith.addf %244, %253 : vector<64x48xf32>
    %c1600 = arith.constant 1600 : index
    %c0_155 = arith.constant 0 : index
    %255 = vector.load %arg1[%c1600, %c0_155] : memref<1728x128xbf16, #tpu.memory_space<vmem>>, vector<64x128xbf16>
    %cst_156 = arith.constant dense<0.000000e+00> : vector<64x32xf32>
    %256 = tpu.matmul %255, %0, %cst_156 {dimension_numbers = #tpu.dot_dimension_numbers<[1], [0], [0], [1], [0, 0, 1, 1], [], []>} : vector<64x128xbf16>, vector<128x32xbf16>, vector<64x32xf32> -> vector<64x32xf32>
    %257 = arith.addf %256, %3 : vector<64x32xf32>
    %cst_157 = arith.constant 0.000000e+00 : f32
    %258 = vector.broadcast %cst_157 : f32 to vector<64x32xf32>
    %259 = arith.maximumf %257, %258 : vector<64x32xf32>
    %260 = arith.truncf %259 : vector<64x32xf32> to vector<64x32xbf16>
    %c25 = arith.constant 25 : index
    %c0_158 = arith.constant 0 : index
    %c0_159 = arith.constant 0 : index
    %261 = vector.load %arg4[%c25, %c0_158, %c0_159] : memref<27x32x48xbf16, #tpu.memory_space<vmem>>, vector<1x32x48xbf16>
    %262 = vector.shape_cast %261 : vector<1x32x48xbf16> to vector<32x48xbf16>
    %cst_160 = arith.constant dense<0.000000e+00> : vector<64x48xf32>
    %263 = tpu.matmul %260, %262, %cst_160 {dimension_numbers = #tpu.dot_dimension_numbers<[1], [0], [0], [1], [0, 0, 1, 1], [], []>} : vector<64x32xbf16>, vector<32x48xbf16>, vector<64x48xf32> -> vector<64x48xf32>
    %264 = arith.addf %254, %263 : vector<64x48xf32>
    %c1664 = arith.constant 1664 : index
    %c0_161 = arith.constant 0 : index
    %265 = vector.load %arg1[%c1664, %c0_161] : memref<1728x128xbf16, #tpu.memory_space<vmem>>, vector<64x128xbf16>
    %cst_162 = arith.constant dense<0.000000e+00> : vector<64x32xf32>
    %266 = tpu.matmul %265, %0, %cst_162 {dimension_numbers = #tpu.dot_dimension_numbers<[1], [0], [0], [1], [0, 0, 1, 1], [], []>} : vector<64x128xbf16>, vector<128x32xbf16>, vector<64x32xf32> -> vector<64x32xf32>
    %267 = arith.addf %266, %3 : vector<64x32xf32>
    %cst_163 = arith.constant 0.000000e+00 : f32
    %268 = vector.broadcast %cst_163 : f32 to vector<64x32xf32>
    %269 = arith.maximumf %267, %268 : vector<64x32xf32>
    %270 = arith.truncf %269 : vector<64x32xf32> to vector<64x32xbf16>
    %c26 = arith.constant 26 : index
    %c0_164 = arith.constant 0 : index
    %c0_165 = arith.constant 0 : index
    %271 = vector.load %arg4[%c26, %c0_164, %c0_165] : memref<27x32x48xbf16, #tpu.memory_space<vmem>>, vector<1x32x48xbf16>
    %272 = vector.shape_cast %271 : vector<1x32x48xbf16> to vector<32x48xbf16>
    %cst_166 = arith.constant dense<0.000000e+00> : vector<64x48xf32>
    %273 = tpu.matmul %270, %272, %cst_166 {dimension_numbers = #tpu.dot_dimension_numbers<[1], [0], [0], [1], [0, 0, 1, 1], [], []>} : vector<64x32xbf16>, vector<32x48xbf16>, vector<64x48xf32> -> vector<64x48xf32>
    %274 = arith.addf %264, %273 : vector<64x48xf32>
    %c0_167 = arith.constant 0 : index
    %c0_168 = arith.constant 0 : index
    %275 = vector.load %arg5[%c0_167, %c0_168] : memref<1x48xf32, #tpu.memory_space<vmem>>, vector<1x48xf32>
    %276 = vector.broadcast %275 : vector<1x48xf32> to vector<64x48xf32>
    %277 = arith.addf %274, %276 : vector<64x48xf32>
    %cst_169 = arith.constant 0.000000e+00 : f32
    %278 = vector.broadcast %cst_169 : f32 to vector<64x48xf32>
    %279 = arith.maximumf %277, %278 : vector<64x48xf32>
    %cst_170 = arith.constant 0.000000e+00 : f32
    %280 = vector.broadcast %cst_170 : f32 to vector<8x32xf32>
    %281 = vector.extract_strided_slice %279 {offsets = [0, 0], sizes = [8, 48], strides = [1, 1]} : vector<64x48xf32> to vector<8x48xf32>
    %282 = arith.truncf %281 : vector<8x48xf32> to vector<8x48xbf16>
    %c0_171 = arith.constant 0 : index
    %c0_172 = arith.constant 0 : index
    %c0_173 = arith.constant 0 : index
    %283 = vector.load %arg6[%c0_171, %c0_172, %c0_173] : memref<8x48x32xbf16, #tpu.memory_space<vmem>>, vector<1x48x32xbf16>
    %284 = vector.shape_cast %283 : vector<1x48x32xbf16> to vector<48x32xbf16>
    %cst_174 = arith.constant dense<0.000000e+00> : vector<8x32xf32>
    %285 = tpu.matmul %282, %284, %cst_174 {dimension_numbers = #tpu.dot_dimension_numbers<[1], [0], [0], [1], [0, 0, 1, 1], [], []>} : vector<8x48xbf16>, vector<48x32xbf16>, vector<8x32xf32> -> vector<8x32xf32>
    %286 = arith.addf %280, %285 : vector<8x32xf32>
    %287 = vector.extract_strided_slice %279 {offsets = [8, 0], sizes = [8, 48], strides = [1, 1]} : vector<64x48xf32> to vector<8x48xf32>
    %288 = arith.truncf %287 : vector<8x48xf32> to vector<8x48xbf16>
    %c1_175 = arith.constant 1 : index
    %c0_176 = arith.constant 0 : index
    %c0_177 = arith.constant 0 : index
    %289 = vector.load %arg6[%c1_175, %c0_176, %c0_177] : memref<8x48x32xbf16, #tpu.memory_space<vmem>>, vector<1x48x32xbf16>
    %290 = vector.shape_cast %289 : vector<1x48x32xbf16> to vector<48x32xbf16>
    %cst_178 = arith.constant dense<0.000000e+00> : vector<8x32xf32>
    %291 = tpu.matmul %288, %290, %cst_178 {dimension_numbers = #tpu.dot_dimension_numbers<[1], [0], [0], [1], [0, 0, 1, 1], [], []>} : vector<8x48xbf16>, vector<48x32xbf16>, vector<8x32xf32> -> vector<8x32xf32>
    %292 = arith.addf %286, %291 : vector<8x32xf32>
    %293 = vector.extract_strided_slice %279 {offsets = [16, 0], sizes = [8, 48], strides = [1, 1]} : vector<64x48xf32> to vector<8x48xf32>
    %294 = arith.truncf %293 : vector<8x48xf32> to vector<8x48xbf16>
    %c2_179 = arith.constant 2 : index
    %c0_180 = arith.constant 0 : index
    %c0_181 = arith.constant 0 : index
    %295 = vector.load %arg6[%c2_179, %c0_180, %c0_181] : memref<8x48x32xbf16, #tpu.memory_space<vmem>>, vector<1x48x32xbf16>
    %296 = vector.shape_cast %295 : vector<1x48x32xbf16> to vector<48x32xbf16>
    %cst_182 = arith.constant dense<0.000000e+00> : vector<8x32xf32>
    %297 = tpu.matmul %294, %296, %cst_182 {dimension_numbers = #tpu.dot_dimension_numbers<[1], [0], [0], [1], [0, 0, 1, 1], [], []>} : vector<8x48xbf16>, vector<48x32xbf16>, vector<8x32xf32> -> vector<8x32xf32>
    %298 = arith.addf %292, %297 : vector<8x32xf32>
    %299 = vector.extract_strided_slice %279 {offsets = [24, 0], sizes = [8, 48], strides = [1, 1]} : vector<64x48xf32> to vector<8x48xf32>
    %300 = arith.truncf %299 : vector<8x48xf32> to vector<8x48xbf16>
    %c3_183 = arith.constant 3 : index
    %c0_184 = arith.constant 0 : index
    %c0_185 = arith.constant 0 : index
    %301 = vector.load %arg6[%c3_183, %c0_184, %c0_185] : memref<8x48x32xbf16, #tpu.memory_space<vmem>>, vector<1x48x32xbf16>
    %302 = vector.shape_cast %301 : vector<1x48x32xbf16> to vector<48x32xbf16>
    %cst_186 = arith.constant dense<0.000000e+00> : vector<8x32xf32>
    %303 = tpu.matmul %300, %302, %cst_186 {dimension_numbers = #tpu.dot_dimension_numbers<[1], [0], [0], [1], [0, 0, 1, 1], [], []>} : vector<8x48xbf16>, vector<48x32xbf16>, vector<8x32xf32> -> vector<8x32xf32>
    %304 = arith.addf %298, %303 : vector<8x32xf32>
    %305 = vector.extract_strided_slice %279 {offsets = [32, 0], sizes = [8, 48], strides = [1, 1]} : vector<64x48xf32> to vector<8x48xf32>
    %306 = arith.truncf %305 : vector<8x48xf32> to vector<8x48xbf16>
    %c4_187 = arith.constant 4 : index
    %c0_188 = arith.constant 0 : index
    %c0_189 = arith.constant 0 : index
    %307 = vector.load %arg6[%c4_187, %c0_188, %c0_189] : memref<8x48x32xbf16, #tpu.memory_space<vmem>>, vector<1x48x32xbf16>
    %308 = vector.shape_cast %307 : vector<1x48x32xbf16> to vector<48x32xbf16>
    %cst_190 = arith.constant dense<0.000000e+00> : vector<8x32xf32>
    %309 = tpu.matmul %306, %308, %cst_190 {dimension_numbers = #tpu.dot_dimension_numbers<[1], [0], [0], [1], [0, 0, 1, 1], [], []>} : vector<8x48xbf16>, vector<48x32xbf16>, vector<8x32xf32> -> vector<8x32xf32>
    %310 = arith.addf %304, %309 : vector<8x32xf32>
    %311 = vector.extract_strided_slice %279 {offsets = [40, 0], sizes = [8, 48], strides = [1, 1]} : vector<64x48xf32> to vector<8x48xf32>
    %312 = arith.truncf %311 : vector<8x48xf32> to vector<8x48xbf16>
    %c5_191 = arith.constant 5 : index
    %c0_192 = arith.constant 0 : index
    %c0_193 = arith.constant 0 : index
    %313 = vector.load %arg6[%c5_191, %c0_192, %c0_193] : memref<8x48x32xbf16, #tpu.memory_space<vmem>>, vector<1x48x32xbf16>
    %314 = vector.shape_cast %313 : vector<1x48x32xbf16> to vector<48x32xbf16>
    %cst_194 = arith.constant dense<0.000000e+00> : vector<8x32xf32>
    %315 = tpu.matmul %312, %314, %cst_194 {dimension_numbers = #tpu.dot_dimension_numbers<[1], [0], [0], [1], [0, 0, 1, 1], [], []>} : vector<8x48xbf16>, vector<48x32xbf16>, vector<8x32xf32> -> vector<8x32xf32>
    %316 = arith.addf %310, %315 : vector<8x32xf32>
    %317 = vector.extract_strided_slice %279 {offsets = [48, 0], sizes = [8, 48], strides = [1, 1]} : vector<64x48xf32> to vector<8x48xf32>
    %318 = arith.truncf %317 : vector<8x48xf32> to vector<8x48xbf16>
    %c6_195 = arith.constant 6 : index
    %c0_196 = arith.constant 0 : index
    %c0_197 = arith.constant 0 : index
    %319 = vector.load %arg6[%c6_195, %c0_196, %c0_197] : memref<8x48x32xbf16, #tpu.memory_space<vmem>>, vector<1x48x32xbf16>
    %320 = vector.shape_cast %319 : vector<1x48x32xbf16> to vector<48x32xbf16>
    %cst_198 = arith.constant dense<0.000000e+00> : vector<8x32xf32>
    %321 = tpu.matmul %318, %320, %cst_198 {dimension_numbers = #tpu.dot_dimension_numbers<[1], [0], [0], [1], [0, 0, 1, 1], [], []>} : vector<8x48xbf16>, vector<48x32xbf16>, vector<8x32xf32> -> vector<8x32xf32>
    %322 = arith.addf %316, %321 : vector<8x32xf32>
    %323 = vector.extract_strided_slice %279 {offsets = [56, 0], sizes = [8, 48], strides = [1, 1]} : vector<64x48xf32> to vector<8x48xf32>
    %324 = arith.truncf %323 : vector<8x48xf32> to vector<8x48xbf16>
    %c7_199 = arith.constant 7 : index
    %c0_200 = arith.constant 0 : index
    %c0_201 = arith.constant 0 : index
    %325 = vector.load %arg6[%c7_199, %c0_200, %c0_201] : memref<8x48x32xbf16, #tpu.memory_space<vmem>>, vector<1x48x32xbf16>
    %326 = vector.shape_cast %325 : vector<1x48x32xbf16> to vector<48x32xbf16>
    %cst_202 = arith.constant dense<0.000000e+00> : vector<8x32xf32>
    %327 = tpu.matmul %324, %326, %cst_202 {dimension_numbers = #tpu.dot_dimension_numbers<[1], [0], [0], [1], [0, 0, 1, 1], [], []>} : vector<8x48xbf16>, vector<48x32xbf16>, vector<8x32xf32> -> vector<8x32xf32>
    %328 = arith.addf %322, %327 : vector<8x32xf32>
    %c0_203 = arith.constant 0 : index
    %c0_204 = arith.constant 0 : index
    %329 = vector.load %arg7[%c0_203, %c0_204] : memref<1x32xf32, #tpu.memory_space<vmem>>, vector<1x32xf32>
    %330 = vector.broadcast %329 : vector<1x32xf32> to vector<8x32xf32>
    %331 = arith.addf %328, %330 : vector<8x32xf32>
    %cst_205 = arith.constant 0.000000e+00 : f32
    %332 = vector.broadcast %cst_205 : f32 to vector<8x32xf32>
    %333 = arith.maximumf %331, %332 : vector<8x32xf32>
    %334 = arith.truncf %333 : vector<8x32xf32> to vector<8x32xbf16>
    %c0_206 = arith.constant 0 : index
    %c0_207 = arith.constant 0 : index
    %335 = vector.load %arg8[%c0_206, %c0_207] : memref<32x128xbf16, #tpu.memory_space<vmem>>, vector<32x128xbf16>
    %cst_208 = arith.constant dense<0.000000e+00> : vector<8x128xf32>
    %336 = tpu.matmul %334, %335, %cst_208 {dimension_numbers = #tpu.dot_dimension_numbers<[1], [0], [0], [1], [0, 0, 1, 1], [], []>} : vector<8x32xbf16>, vector<32x128xbf16>, vector<8x128xf32> -> vector<8x128xf32>
    %c0_209 = arith.constant 0 : index
    %c0_210 = arith.constant 0 : index
    %337 = vector.load %arg9[%c0_209, %c0_210] : memref<1x128xf32, #tpu.memory_space<vmem>>, vector<1x128xf32>
    %338 = vector.broadcast %337 : vector<1x128xf32> to vector<8x128xf32>
    %339 = arith.addf %336, %338 : vector<8x128xf32>
    %cst_211 = arith.constant 0.000000e+00 : f32
    %340 = vector.broadcast %cst_211 : f32 to vector<8x128xf32>
    %341 = arith.maximumf %339, %340 : vector<8x128xf32>
    %c0_212 = arith.constant 0 : index
    %c0_213 = arith.constant 0 : index
    %342 = vector.load %arg10[%c0_212, %c0_213] : memref<8x128xf32, #tpu.memory_space<vmem>>, vector<8x128xf32>
    tpu.vector_store %arg10[%c0_212, %c0_213], %341 {strides = array<i32>} : memref<8x128xf32, #tpu.memory_space<vmem>>, vector<8x128xf32>,
    return
  }
  func.func @transform_0(%arg0: i32) -> (i32, i32) {
    %c0_i32 = arith.constant 0 : i32
    %c0_i32_0 = arith.constant 0 : i32
    return %arg0, %c0_i32 : i32, i32
  }
  func.func @transform_1(%arg0: i32) -> (i32, i32) {
    %c0_i32 = arith.constant 0 : i32
    %c0_i32_0 = arith.constant 0 : i32
    %c0_i32_1 = arith.constant 0 : i32
    return %c0_i32, %c0_i32_0 : i32, i32
  }
  func.func @transform_2(%arg0: i32) -> (i32, i32) {
    %c0_i32 = arith.constant 0 : i32
    %c0_i32_0 = arith.constant 0 : i32
    %c0_i32_1 = arith.constant 0 : i32
    return %c0_i32, %c0_i32_0 : i32, i32
  }
  func.func @transform_3(%arg0: i32) -> (i32, i32, i32) {
    %c0_i32 = arith.constant 0 : i32
    %c0_i32_0 = arith.constant 0 : i32
    %c0_i32_1 = arith.constant 0 : i32
    %c0_i32_2 = arith.constant 0 : i32
    return %c0_i32, %c0_i32_0, %c0_i32_1 : i32, i32, i32
  }
  func.func @transform_4(%arg0: i32) -> (i32, i32) {
    %c0_i32 = arith.constant 0 : i32
    %c0_i32_0 = arith.constant 0 : i32
    %c0_i32_1 = arith.constant 0 : i32
    return %c0_i32, %c0_i32_0 : i32, i32
  }
  func.func @transform_5(%arg0: i32) -> (i32, i32, i32) {
    %c0_i32 = arith.constant 0 : i32
    %c0_i32_0 = arith.constant 0 : i32
    %c0_i32_1 = arith.constant 0 : i32
    %c0_i32_2 = arith.constant 0 : i32
    return %c0_i32, %c0_i32_0, %c0_i32_1 : i32, i32, i32
  }
  func.func @transform_6(%arg0: i32) -> (i32, i32) {
    %c0_i32 = arith.constant 0 : i32
    %c0_i32_0 = arith.constant 0 : i32
    %c0_i32_1 = arith.constant 0 : i32
    return %c0_i32, %c0_i32_0 : i32, i32
  }
  func.func @transform_7(%arg0: i32) -> (i32, i32) {
    %c0_i32 = arith.constant 0 : i32
    %c0_i32_0 = arith.constant 0 : i32
    %c0_i32_1 = arith.constant 0 : i32
    return %c0_i32, %c0_i32_0 : i32, i32
  }
  func.func @transform_8(%arg0: i32) -> (i32, i32) {
    %c0_i32 = arith.constant 0 : i32
    %c0_i32_0 = arith.constant 0 : i32
    %c0_i32_1 = arith.constant 0 : i32
    return %c0_i32, %c0_i32_0 : i32, i32
  }
  func.func @transform_9(%arg0: i32) -> (i32, i32) {
    %c0_i32 = arith.constant 0 : i32
    %c0_i32_0 = arith.constant 0 : i32
    return %arg0, %c0_i32 : i32, i32
  }
}

</mosaic_0001>

<llo_original>
// kernel: cnn3d_forward.1
$region0: #{cnn3d_forward.1}
  #allocation0 [shape = 'u32[]', space=smem, size = 0x4, offset = 0x4, fixed_abs, tag = 'smem constant byte address 0x4 - core index']
  #allocation1 [shape = 'u32[144,128]{1,0:T(1,128)}', space=vmem, size = 0x12000, scoped, tag = 'internal scratch']
  %s0 = inlined_call_operand.vmem [shape: bf16[1728,128], index: 0, kind: input, shape index: {}]
  %s1 = inlined_call_operand.vmem [shape: bf16[128,32], index: 1, kind: input, shape index: {}]
  %s2 = inlined_call_operand.vmem [shape: f32[1,32], index: 2, kind: input, shape index: {}]
  %s3 = inlined_call_operand.vmem [shape: bf16[27,32,48], index: 3, kind: input, shape index: {}]
  %s4 = inlined_call_operand.vmem [shape: f32[1,48], index: 4, kind: input, shape index: {}]
  %s5 = inlined_call_operand.vmem [shape: bf16[8,48,32], index: 5, kind: input, shape index: {}]
  %s6 = inlined_call_operand.vmem [shape: f32[1,32], index: 6, kind: input, shape index: {}]
  %s7 = inlined_call_operand.vmem [shape: bf16[32,128], index: 7, kind: input, shape index: {}]
  %s8 = inlined_call_operand.vmem [shape: f32[1,128], index: 8, kind: input, shape index: {}]
  %s9 = inlined_call_operand.vmem [shape: f32[8,128], index: 9, kind: output, shape index: {}]
  %s10 = sld [smem:[#allocation0]]
  $region46: #{cnn3d_forward.1} parent=0
    _
  %s12 = ssub.s32 1, %s10
  %s13 = scalar_select 0, %s12, %s10
  // Predicated region
  $region2: #{cnn3d_forward.1} parent=0 // pred_check
    _
  $region3: #{cnn3d_forward.1} parent=0 // pred_check_branch
    %15 = sbr.rel (0) target = $region5
  $region4: #{cnn3d_forward.1} parent=0 // pred_region
    _
  $region5: #{cnn3d_forward.1} parent=0 // pred_fallthru
    _
  // Predicated region
  $region6: #{cnn3d_forward.1} parent=0 // pred_check
    _
  $region7: #{cnn3d_forward.1} parent=0 // pred_check_branch
    %17 = sbr.rel (0) target = $region9
  $region8: #{cnn3d_forward.1} parent=0 // pred_region
    _
  $region9: #{cnn3d_forward.1} parent=0 // pred_fallthru
    _
  // Predicated region
  $region10: #{cnn3d_forward.1} parent=0 // pred_check
    _
  $region11: #{cnn3d_forward.1} parent=0 // pred_check_branch
    %19 = sbr.rel (0) target = $region13
  $region12: #{cnn3d_forward.1} parent=0 // pred_region
    _
  $region13: #{cnn3d_forward.1} parent=0 // pred_fallthru
    _
  // Predicated region
  $region14: #{cnn3d_forward.1} parent=0 // pred_check
    _
  $region15: #{cnn3d_forward.1} parent=0 // pred_check_branch
    %21 = sbr.rel (0) target = $region17
  $region16: #{cnn3d_forward.1} parent=0 // pred_region
    _
  $region17: #{cnn3d_forward.1} parent=0 // pred_fallthru
    _
  // Predicated region
  $region18: #{cnn3d_forward.1} parent=0 // pred_check
    _
  $region19: #{cnn3d_forward.1} parent=0 // pred_check_branch
    %23 = sbr.rel (0) target = $region21
  $region20: #{cnn3d_forward.1} parent=0 // pred_region
    _
  $region21: #{cnn3d_forward.1} parent=0 // pred_fallthru
    _
  // Predicated region
  $region22: #{cnn3d_forward.1} parent=0 // pred_check
    _
  $region23: #{cnn3d_forward.1} parent=0 // pred_check_branch
    %25 = sbr.rel (0) target = $region25
  $region24: #{cnn3d_forward.1} parent=0 // pred_region
    _
  $region25: #{cnn3d_forward.1} parent=0 // pred_fallthru
    _
  // Predicated region
  $region26: #{cnn3d_forward.1} parent=0 // pred_check
    _
  $region27: #{cnn3d_forward.1} parent=0 // pred_check_branch
    %27 = sbr.rel (0) target = $region29
  $region28: #{cnn3d_forward.1} parent=0 // pred_region
    _
  $region29: #{cnn3d_forward.1} parent=0 // pred_fallthru
    _
  // Predicated region
  $region30: #{cnn3d_forward.1} parent=0 // pred_check
    _
  $region31: #{cnn3d_forward.1} parent=0 // pred_check_branch
    %29 = sbr.rel (0) target = $region33
  $region32: #{cnn3d_forward.1} parent=0 // pred_region
    _
  $region33: #{cnn3d_forward.1} parent=0 // pred_fallthru
    _
  // Predicated region
  $region34: #{cnn3d_forward.1} parent=0 // pred_check
    _
  $region35: #{cnn3d_forward.1} parent=0 // pred_check_branch
    %31 = sbr.rel (0) target = $region37
  $region36: #{cnn3d_forward.1} parent=0 // pred_region
    _
  $region37: #{cnn3d_forward.1} parent=0 // pred_fallthru
    _
  %v33 = vld [vmem:[%s1] sm:$0xf]
  %v34 = vld [vmem:[%s1 + $0x4] sm:$0xf]
  %v35 = vld [vmem:[%s1 + $0x8] sm:$0xf]
  %v36 = vld [vmem:[%s1 + $0xc] sm:$0xf]
  %v37 = vld [vmem:[%s1 + $0x10] sm:$0xf]
  %v38 = vld [vmem:[%s1 + $0x14] sm:$0xf]
  %v39 = vld [vmem:[%s1 + $0x18] sm:$0xf]
  %v40 = vld [vmem:[%s1 + $0x1c] sm:$0xf]
  %v41 = vld [vmem:[%s1 + $0x20] sm:$0xf]
  %v42 = vld [vmem:[%s1 + $0x24] sm:$0xf]
  %v43 = vld [vmem:[%s1 + $0x28] sm:$0xf]
  %v44 = vld [vmem:[%s1 + $0x2c] sm:$0xf]
  %v45 = vld [vmem:[%s1 + $0x30] sm:$0xf]
  %v46 = vld [vmem:[%s1 + $0x34] sm:$0xf]
  %v47 = vld [vmem:[%s1 + $0x38] sm:$0xf]
  %v48 = vld [vmem:[%s1 + $0x3c] sm:$0xf]
  %v49 = vld [vmem:[%s2] sm:$0x1]
  %v51 = vlaneseq
  %v52 = vshrl.u32 %v51, 7
  %v53 = vsub.s32 0, %v52
  %v54 = vrot.slane %v49, %v53
  %v56 = vld [vmem:[%s0] sm:$0xf]
  %v57 = vld [vmem:[%s0 + $0x4] sm:$0xf]
  %v58 = vld [vmem:[%s0 + $0x8] sm:$0xf]
  %v59 = vld [vmem:[%s0 + $0xc] sm:$0xf]
  %v60 = vld [vmem:[%s0 + $0x10] sm:$0xf]
  %v61 = vld [vmem:[%s0 + $0x14] sm:$0xf]
  %v62 = vld [vmem:[%s0 + $0x18] sm:$0xf]
  %v63 = vld [vmem:[%s0 + $0x1c] sm:$0xf]
  %v72 = vunpack.c.l.b16 %v56
  %v73 = vunpack.c.l.b16 %v57
  %v74 = vunpack.c.l.b16 %v58
  %v75 = vunpack.c.l.b16 %v59
  %v76 = vunpack.c.l.b16 %v60
  %v77 = vunpack.c.l.b16 %v61
  %v78 = vunpack.c.l.b16 %v62
  %v79 = vunpack.c.l.b16 %v63
  %v80 = vpack.c.b16 %v73, %v72
  %v81 = vpack.c.b16 %v75, %v74
  %v82 = vpack.c.b16 %v77, %v76
  %v83 = vpack.c.b16 %v79, %v78
  %v104 = vunpack.c.l.b16 %v33
  %v105 = vunpack.c.l.b16 %v34
  %v106 = vunpack.c.l.b16 %v35
  %v107 = vunpack.c.l.b16 %v36
  %v108 = vunpack.c.l.b16 %v37
  %v109 = vunpack.c.l.b16 %v38
  %v110 = vunpack.c.l.b16 %v39
  %v111 = vunpack.c.l.b16 %v40
  %v112 = vunpack.c.l.b16 %v41
  %v113 = vunpack.c.l.b16 %v42
  %v114 = vunpack.c.l.b16 %v43
  %v115 = vunpack.c.l.b16 %v44
  %v116 = vunpack.c.l.b16 %v45
  %v117 = vunpack.c.l.b16 %v46
  %v118 = vunpack.c.l.b16 %v47
  %v119 = vunpack.c.l.b16 %v48
  %v120 = vpack.c.b16 %v105, %v104
  %v121 = vpack.c.b16 %v107, %v106
  %v122 = vpack.c.b16 %v109, %v108
  %v123 = vpack.c.b16 %v111, %v110
  %v124 = vpack.c.b16 %v113, %v112
  %v125 = vpack.c.b16 %v115, %v114
  %v126 = vpack.c.b16 %v117, %v116
  %v127 = vpack.c.b16 %v119, %v118
  %136 = vmatprep.subr.bf16.mxu0 0
  %137 = vmatpush1.bf16.msra.mxu0 %v120
  %138 = vmatprep.subr.bf16.mxu0 0
  %139 = vmatpush1.bf16.msra.mxu0 %v121
  %140 = vmatprep.subr.bf16.mxu0 0
  %141 = vmatpush1.bf16.msra.mxu0 %v122
  %142 = vmatprep.subr.bf16.mxu0 0
  %143 = vmatpush1.bf16.msra.mxu0 %v123
  %144 = vmatprep.subr.bf16.mxu0 0
  %145 = vmatpush1.bf16.msra.mxu0 %v124
  %146 = vmatprep.subr.bf16.mxu0 0
  %147 = vmatpush1.bf16.msra.mxu0 %v125
  %148 = vmatprep.subr.bf16.mxu0 0
  %149 = vmatpush1.bf16.msra.mxu0 %v126
  %150 = vmatprep.subr.bf16.mxu0 0
  %151 = vmatpush1.bf16.msra.mxu0 %v127
  %152 = vmatprep.subr.bf16.mxu0 0
  %153 = vmatpush1.bf16.msra.mxu0 0
  %154 = vmatprep.subr.bf16.mxu0 0
  %155 = vmatpush1.bf16.msra.mxu0 0
  %156 = vmatprep.subr.bf16.mxu0 0
  %157 = vmatpush1.bf16.msra.mxu0 0
  %158 = vmatprep.subr.bf16.mxu0 0
  %159 = vmatpush1.bf16.msra.mxu0 0
  %160 = vmatprep.subr.bf16.mxu0 0
  %161 = vmatpush1.bf16.msra.mxu0 0
  %162 = vmatprep.subr.bf16.mxu0 0
  %163 = vmatpush1.bf16.msra.mxu0 0
  %164 = vmatprep.subr.bf16.mxu0 0
  %165 = vmatpush1.bf16.msra.mxu0 0
  %166 = vmatprep.subr.bf16.mxu0 0
  %167 = vmatpush1.bf16.msra.mxu0 0
  %168 = vmatprep.mubr.bf16.mxu0 0
  %169 = vmatmul.mubr.bf16.gmra.mrb[0].mxu0 %v80
  %v170 = vpop.f32.mrb[0].mxu0
  %v171 = vadd.f32 %v54, %v170
  %v172 = vpop.f32.mrb[0].mxu0
  %v173 = vpop.f32.mrb[0].mxu0
  %v174 = vadd.f32 %v54, %v173
  %v175 = vpop.f32.mrb[0].mxu0
  %176 = vmatprep.mubr.bf16.mxu0 0
  %177 = vmatmul.mubr.bf16.gmra.mrb[0].mxu0 %v81
  %v178 = vpop.f32.mrb[0].mxu0
  %v179 = vadd.f32 %v54, %v178
  %v180 = vpop.f32.mrb[0].mxu0
  %v181 = vpop.f32.mrb[0].mxu0
  %v182 = vadd.f32 %v54, %v181
  %v183 = vpop.f32.mrb[0].mxu0
  %184 = vmatprep.mubr.bf16.mxu0 0
  %185 = vmatmul.mubr.bf16.gmra.mrb[0].mxu0 %v82
  %v186 = vpop.f32.mrb[0].mxu0
  %v187 = vadd.f32 %v54, %v186
  %v188 = vpop.f32.mrb[0].mxu0
  %v189 = vpop.f32.mrb[0].mxu0
  %v190 = vadd.f32 %v54, %v189
  %v191 = vpop.f32.mrb[0].mxu0
  %192 = vmatprep.mubr.bf16.mxu0 0
  %193 = vmatmul.mubr.bf16.gmra.mrb[0].mxu0 %v83
  %v194 = vpop.f32.mrb[0].mxu0
  %v195 = vadd.f32 %v54, %v194
  %v196 = vpop.f32.mrb[0].mxu0
  %v197 = vpop.f32.mrb[0].mxu0
  %v198 = vadd.f32 %v54, %v197
  %v199 = vpop.f32.mrb[0].mxu0
  %200 = vdwg.mxu0
  %v201 = vmax.f32 %v171, 0.0
  %v202 = vmax.f32 %v174, 0.0
  %v203 = vmax.f32 %v179, 0.0
  %v204 = vmax.f32 %v182, 0.0
  %v205 = vmax.f32 %v187, 0.0
  %v206 = vmax.f32 %v190, 0.0
  %v207 = vmax.f32 %v195, 0.0
  %v208 = vmax.f32 %v198, 0.0
  %v209 = vpack.c.bf16 %v202, %v201
  %v210 = vpack.c.bf16 %v204, %v203
  %v211 = vpack.c.bf16 %v206, %v205
  %v212 = vpack.c.bf16 %v208, %v207
  %v213 = vld [vmem:[%s3] sm:$0xf]
  %v214 = vld [vmem:[%s3 + $0x4] sm:$0xf]
  %v215 = vld [vmem:[%s3 + $0x8] sm:$0xf]
  %v216 = vld [vmem:[%s3 + $0xc] sm:$0xf]
  %v217 = vld [vmem:[%s0 + $0x20] sm:$0xf]
  %v218 = vld [vmem:[%s0 + $0x24] sm:$0xf]
  %v219 = vld [vmem:[%s0 + $0x28] sm:$0xf]
  %v220 = vld [vmem:[%s0 + $0x2c] sm:$0xf]
  %v221 = vld [vmem:[%s0 + $0x30] sm:$0xf]
  %v222 = vld [vmem:[%s0 + $0x34] sm:$0xf]
  %v223 = vld [vmem:[%s0 + $0x38] sm:$0xf]
  %v224 = vld [vmem:[%s0 + $0x3c] sm:$0xf]
  %v233 = vunpack.c.l.b16 %v217
  %v234 = vunpack.c.l.b16 %v218
  %v235 = vunpack.c.l.b16 %v219
  %v236 = vunpack.c.l.b16 %v220
  %v237 = vunpack.c.l.b16 %v221
  %v238 = vunpack.c.l.b16 %v222
  %v239 = vunpack.c.l.b16 %v223
  %v240 = vunpack.c.l.b16 %v224
  %v241 = vpack.c.b16 %v234, %v233
  %v242 = vpack.c.b16 %v236, %v235
  %v243 = vpack.c.b16 %v238, %v237
  %v244 = vpack.c.b16 %v240, %v239
  %249 = vmatprep.subr.bf16.mxu0 0
  %250 = vmatpush1.bf16.msra.mxu0 %v120
  %251 = vmatprep.subr.bf16.mxu0 0
  %252 = vmatpush1.bf16.msra.mxu0 %v121
  %253 = vmatprep.subr.bf16.mxu0 0
  %254 = vmatpush1.bf16.msra.mxu0 %v122
  %255 = vmatprep.subr.bf16.mxu0 0
  %256 = vmatpush1.bf16.msra.mxu0 %v123
  %257 = vmatprep.subr.bf16.mxu0 0
  %258 = vmatpush1.bf16.msra.mxu0 %v124
  %259 = vmatprep.subr.bf16.mxu0 0
  %260 = vmatpush1.bf16.msra.mxu0 %v125
  %261 = vmatprep.subr.bf16.mxu0 0
  %262 = vmatpush1.bf16.msra.mxu0 %v126
  %263 = vmatprep.subr.bf16.mxu0 0
  %264 = vmatpush1.bf16.msra.mxu0 %v127
  %265 = vmatprep.subr.bf16.mxu0 0
  %266 = vmatpush1.bf16.msra.mxu0 0
  %267 = vmatprep.subr.bf16.mxu0 0
  %268 = vmatpush1.bf16.msra.mxu0 0
  %269 = vmatprep.subr.bf16.mxu0 0
  %270 = vmatpush1.bf16.msra.mxu0 0
  %271 = vmatprep.subr.bf16.mxu0 0
  %272 = vmatpush1.bf16.msra.mxu0 0
  %273 = vmatprep.subr.bf16.mxu0 0
  %274 = vmatpush1.bf16.msra.mxu0 0
  %275 = vmatprep.subr.bf16.mxu0 0
  %276 = vmatpush1.bf16.msra.mxu0 0
  %277 = vmatprep.subr.bf16.mxu0 0
  %278 = vmatpush1.bf16.msra.mxu0 0
  %279 = vmatprep.subr.bf16.mxu0 0
  %280 = vmatpush1.bf16.msra.mxu0 0
  %281 = vmatprep.mubr.bf16.mxu0 0
  %282 = vmatmul.mubr.bf16.gmra.mrb[0].mxu0 %v241
  %v283 = vpop.f32.mrb[0].mxu0
  %v284 = vadd.f32 %v54, %v283
  %v285 = vpop.f32.mrb[0].mxu0
  %v286 = vpop.f32.mrb[0].mxu0
  %v287 = vadd.f32 %v54, %v286
  %v288 = vpop.f32.mrb[0].mxu0
  %289 = vmatprep.mubr.bf16.mxu0 0
  %290 = vmatmul.mubr.bf16.gmra.mrb[0].mxu0 %v242
  %v291 = vpop.f32.mrb[0].mxu0
  %v292 = vadd.f32 %v54, %v291
  %v293 = vpop.f32.mrb[0].mxu0
  %v294 = vpop.f32.mrb[0].mxu0
  %v295 = vadd.f32 %v54, %v294
  %v296 = vpop.f32.mrb[0].mxu0
  %297 = vmatprep.mubr.bf16.mxu0 0
  %298 = vmatmul.mubr.bf16.gmra.mrb[0].mxu0 %v243
  %v299 = vpop.f32.mrb[0].mxu0
  %v300 = vadd.f32 %v54, %v299
  %v301 = vpop.f32.mrb[0].mxu0
  %v302 = vpop.f32.mrb[0].mxu0
  %v303 = vadd.f32 %v54, %v302
  %v304 = vpop.f32.mrb[0].mxu0
  %305 = vmatprep.mubr.bf16.mxu0 0
  %306 = vmatmul.mubr.bf16.gmra.mrb[0].mxu0 %v244
  %v307 = vpop.f32.mrb[0].mxu0
  %v308 = vadd.f32 %v54, %v307
  %v309 = vpop.f32.mrb[0].mxu0
  %v310 = vpop.f32.mrb[0].mxu0
  %v311 = vadd.f32 %v54, %v310
  %v312 = vpop.f32.mrb[0].mxu0
  %313 = vdwg.mxu0
  %v314 = vmax.f32 %v284, 0.0
  %v315 = vmax.f32 %v287, 0.0
  %v316 = vmax.f32 %v292, 0.0
  %v317 = vmax.f32 %v295, 0.0
  %v318 = vmax.f32 %v300, 0.0
  %v319 = vmax.f32 %v303, 0.0
  %v320 = vmax.f32 %v308, 0.0
  %v321 = vmax.f32 %v311, 0.0
  %v322 = vpack.c.bf16 %v315, %v314
  %v323 = vpack.c.bf16 %v317, %v316
  %v324 = vpack.c.bf16 %v319, %v318
  %v325 = vpack.c.bf16 %v321, %v320
  %s326 = scalar_lea.vmem %s3, 16
  %v327 = vld [vmem:[%s326] sm:$0xf]
  %v328 = vld [vmem:[%s326 + $0x4] sm:$0xf]
  %v329 = vld [vmem:[%s326 + $0x8] sm:$0xf]
  %v330 = vld [vmem:[%s326 + $0xc] sm:$0xf]
  %v335 = vunpack.c.l.b16 %v327
  %v336 = vunpack.c.l.b16 %v328
  %v337 = vunpack.c.l.b16 %v329
  %v338 = vunpack.c.l.b16 %v330
  %v339 = vpack.c.b16 %v336, %v335
  %v340 = vpack.c.b16 %v338, %v337
  %vm343 = vcmask 261120
  %v345 = vsel %vm343, %v322, 0
  %v348 = vsel %vm343, %v323, 0
  %v351 = vsel %vm343, %v324, 0
  %v354 = vsel %vm343, %v325, 0
  %356 = vmatprep.subr.bf16.mxu0 0
  %357 = vmatpush1.bf16.msra.mxu0 %v339
  %358 = vmatprep.subr.bf16.mxu0 0
  %359 = vmatpush1.bf16.msra.mxu0 %v340
  %360 = vmatprep.subr.bf16.mxu0 0
  %361 = vmatpush1.bf16.msra.mxu0 0
  %362 = vmatprep.subr.bf16.mxu0 0
  %363 = vmatpush1.bf16.msra.mxu0 0
  %364 = vmatprep.subr.bf16.mxu0 0
  %365 = vmatpush1.bf16.msra.mxu0 0
  %366 = vmatprep.subr.bf16.mxu0 0
  %367 = vmatpush1.bf16.msra.mxu0 0
  %368 = vmatprep.subr.bf16.mxu0 0
  %369 = vmatpush1.bf16.msra.mxu0 0
  %370 = vmatprep.subr.bf16.mxu0 0
  %371 = vmatpush1.bf16.msra.mxu0 0
  %372 = vmatprep.subr.bf16.mxu0 0
  %373 = vmatpush1.bf16.msra.mxu0 0
  %374 = vmatprep.subr.bf16.mxu0 0
  %375 = vmatpush1.bf16.msra.mxu0 0
  %376 = vmatprep.subr.bf16.mxu0 0
  %377 = vmatpush1.bf16.msra.mxu0 0
  %378 = vmatprep.subr.bf16.mxu0 0
  %379 = vmatpush1.bf16.msra.mxu0 0
  %380 = vmatprep.subr.bf16.mxu0 0
  %381 = vmatpush1.bf16.msra.mxu0 0
  %382 = vmatprep.subr.bf16.mxu0 0
  %383 = vmatpush1.bf16.msra.mxu0 0
  %384 = vmatprep.subr.bf16.mxu0 0
  %385 = vmatpush1.bf16.msra.mxu0 0
  %386 = vmatprep.subr.bf16.mxu0 0
  %387 = vmatpush1.bf16.msra.mxu0 0
  %388 = vmatprep.mubr.bf16.mxu0 0
  %389 = vmatmul.mubr.bf16.gmra.mrb[0].mxu0 %v345
  %v390 = vpop.f32.mrb[0].mxu0
  %v391 = vadd.f32 0.0, %v390
  %v392 = vpop.f32.mrb[0].mxu0
  %v393 = vpop.f32.mrb[0].mxu0
  %v394 = vadd.f32 0.0, %v393
  %v395 = vpop.f32.mrb[0].mxu0
  %396 = vmatprep.mubr.bf16.mxu0 0
  %397 = vmatmul.mubr.bf16.gmra.mrb[0].mxu0 %v348
  %v398 = vpop.f32.mrb[0].mxu0
  %v399 = vadd.f32 0.0, %v398
  %v400 = vpop.f32.mrb[0].mxu0
  %v401 = vpop.f32.mrb[0].mxu0
  %v402 = vadd.f32 0.0, %v401
  %v403 = vpop.f32.mrb[0].mxu0
  %404 = vmatprep.mubr.bf16.mxu0 0
  %405 = vmatmul.mubr.bf16.gmra.mrb[0].mxu0 %v351
  %v406 = vpop.f32.mrb[0].mxu0
  %v407 = vadd.f32 0.0, %v406
  %v408 = vpop.f32.mrb[0].mxu0
  %v409 = vpop.f32.mrb[0].mxu0
  %v410 = vadd.f32 0.0, %v409
  %v411 = vpop.f32.mrb[0].mxu0
  %412 = vmatprep.mubr.bf16.mxu0 0
  %413 = vmatmul.mubr.bf16.gmra.mrb[0].mxu0 %v354
  %v414 = vpop.f32.mrb[0].mxu0
  %v415 = vadd.f32 0.0, %v414
  %v416 = vpop.f32.mrb[0].mxu0
  %v417 = vpop.f32.mrb[0].mxu0
  %v418 = vadd.f32 0.0, %v417
  %v419 = vpop.f32.mrb[0].mxu0
  %420 = vdwg.mxu0
  %v425 = vunpack.c.l.b16 %v213
  %v426 = vunpack.c.l.b16 %v214
  %v427 = vunpack.c.l.b16 %v215
  %v428 = vunpack.c.l.b16 %v216
  %v429 = vpack.c.b16 %v426, %v425
  %v430 = vpack.c.b16 %v428, %v427
  %v434 = vsel %vm343, %v209, 0
  %v437 = vsel %vm343, %v210, 0
  %v440 = vsel %vm343, %v211, 0
  %v443 = vsel %vm343, %v212, 0
  %445 = vmatprep.subr.bf16.mxu0 0
  %446 = vmatpush1.bf16.msra.mxu0 %v429
  %447 = vmatprep.subr.bf16.mxu0 0
  %448 = vmatpush1.bf16.msra.mxu0 %v430
  %449 = vmatprep.subr.bf16.mxu0 0
  %450 = vmatpush1.bf16.msra.mxu0 0
  %451 = vmatprep.subr.bf16.mxu0 0
  %452 = vmatpush1.bf16.msra.mxu0 0
  %453 = vmatprep.subr.bf16.mxu0 0
  %454 = vmatpush1.bf16.msra.mxu0 0
  %455 = vmatprep.subr.bf16.mxu0 0
  %456 = vmatpush1.bf16.msra.mxu0 0
  %457 = vmatprep.subr.bf16.mxu0 0
  %458 = vmatpush1.bf16.msra.mxu0 0
  %459 = vmatprep.subr.bf16.mxu0 0
  %460 = vmatpush1.bf16.msra.mxu0 0
  %461 = vmatprep.subr.bf16.mxu0 0
  %462 = vmatpush1.bf16.msra.mxu0 0
  %463 = vmatprep.subr.bf16.mxu0 0
  %464 = vmatpush1.bf16.msra.mxu0 0
  %465 = vmatprep.subr.bf16.mxu0 0
  %466 = vmatpush1.bf16.msra.mxu0 0
  %467 = vmatprep.subr.bf16.mxu0 0
  %468 = vmatpush1.bf16.msra.mxu0 0
  %469 = vmatprep.subr.bf16.mxu0 0
  %470 = vmatpush1.bf16.msra.mxu0 0
  %471 = vmatprep.subr.bf16.mxu0 0
  %472 = vmatpush1.bf16.msra.mxu0 0
  %473 = vmatprep.subr.bf16.mxu0 0
  %474 = vmatpush1.bf16.msra.mxu0 0
  %475 = vmatprep.subr.bf16.mxu0 0
  %476 = vmatpush1.bf16.msra.mxu0 0
  %477 = vmatprep.mubr.bf16.mxu0 0
  %478 = vmatmul.mubr.bf16.gmra.mrb[0].mxu0 %v434
  %v479 = vpop.f32.mrb[0].mxu0
  %v480 = vadd.f32 %v391, %v479
  %v481 = vpop.f32.mrb[0].mxu0
  %v482 = vpop.f32.mrb[0].mxu0
  %v483 = vadd.f32 %v394, %v482
  %v484 = vpop.f32.mrb[0].mxu0
  %485 = vmatprep.mubr.bf16.mxu0 0
  %486 = vmatmul.mubr.bf16.gmra.mrb[0].mxu0 %v437
  %v487 = vpop.f32.mrb[0].mxu0
  %v488 = vadd.f32 %v399, %v487
  %v489 = vpop.f32.mrb[0].mxu0
  %v490 = vpop.f32.mrb[0].mxu0
  %v491 = vadd.f32 %v402, %v490
  %v492 = vpop.f32.mrb[0].mxu0
  %493 = vmatprep.mubr.bf16.mxu0 0
  %494 = vmatmul.mubr.bf16.gmra.mrb[0].mxu0 %v440
  %v495 = vpop.f32.mrb[0].mxu0
  %v496 = vadd.f32 %v407, %v495
  %v497 = vpop.f32.mrb[0].mxu0
  %v498 = vpop.f32.mrb[0].mxu0
  %v499 = vadd.f32 %v410, %v498
  %v500 = vpop.f32.mrb[0].mxu0
  %501 = vmatprep.mubr.bf16.mxu0 0
  %502 = vmatmul.mubr.bf16.gmra.mrb[0].mxu0 %v443
  %v503 = vpop.f32.mrb[0].mxu0
  %v504 = vadd.f32 %v415, %v503
  %v505 = vpop.f32.mrb[0].mxu0
  %v506 = vpop.f32.mrb[0].mxu0
  %v507 = vadd.f32 %v418, %v506
  %v508 = vpop.f32.mrb[0].mxu0
  %509 = vdwg.mxu0
  %v510 = vld [vmem:[%s0 + $0x40] sm:$0xf]
  %v511 = vld [vmem:[%s0 + $0x44] sm:$0xf]
  %v512 = vld [vmem:[%s0 + $0x48] sm:$0xf]
  %v513 = vld [vmem:[%s0 + $0x4c] sm:$0xf]
  %v514 = vld [vmem:[%s0 + $0x50] sm:$0xf]
  %v515 = vld [vmem:[%s0 + $0x54] sm:$0xf]
  %v516 = vld [vmem:[%s0 + $0x58] sm:$0xf]
  %v517 = vld [vmem:[%s0 + $0x5c] sm:$0xf]
  %v526 = vunpack.c.l.b16 %v510
  %v527 = vunpack.c.l.b16 %v511
  %v528 = vunpack.c.l.b16 %v512
  %v529 = vunpack.c.l.b16 %v513
  %v530 = vunpack.c.l.b16 %v514
  %v531 = vunpack.c.l.b16 %v515
  %v532 = vunpack.c.l.b16 %v516
  %v533 = vunpack.c.l.b16 %v517
  %v534 = vpack.c.b16 %v527, %v526
  %v535 = vpack.c.b16 %v529, %v528
  %v536 = vpack.c.b16 %v531, %v530
  %v537 = vpack.c.b16 %v533, %v532
  %542 = vmatprep.subr.bf16.mxu0 0
  %543 = vmatpush1.bf16.msra.mxu0 %v120
  %544 = vmatprep.subr.bf16.mxu0 0
  %545 = vmatpush1.bf16.msra.mxu0 %v121
  %546 = vmatprep.subr.bf16.mxu0 0
  %547 = vmatpush1.bf16.msra.mxu0 %v122
  %548 = vmatprep.subr.bf16.mxu0 0
  %549 = vmatpush1.bf16.msra.mxu0 %v123
  %550 = vmatprep.subr.bf16.mxu0 0
  %551 = vmatpush1.bf16.msra.mxu0 %v124
  %552 = vmatprep.subr.bf16.mxu0 0
  %553 = vmatpush1.bf16.msra.mxu0 %v125
  %554 = vmatprep.subr.bf16.mxu0 0
  %555 = vmatpush1.bf16.msra.mxu0 %v126
  %556 = vmatprep.subr.bf16.mxu0 0
  %557 = vmatpush1.bf16.msra.mxu0 %v127
  %558 = vmatprep.subr.bf16.mxu0 0
  %559 = vmatpush1.bf16.msra.mxu0 0
  %560 = vmatprep.subr.bf16.mxu0 0
  %561 = vmatpush1.bf16.msra.mxu0 0
  %562 = vmatprep.subr.bf16.mxu0 0
  %563 = vmatpush1.bf16.msra.mxu0 0
  %564 = vmatprep.subr.bf16.mxu0 0
  %565 = vmatpush1.bf16.msra.mxu0 0
  %566 = vmatprep.subr.bf16.mxu0 0
  %567 = vmatpush1.bf16.msra.mxu0 0
  %568 = vmatprep.subr.bf16.mxu0 0
  %569 = vmatpush1.bf16.msra.mxu0 0
  %570 = vmatprep.subr.bf16.mxu0 0
  %571 = vmatpush1.bf16.msra.mxu0 0
  %572 = vmatprep.subr.bf16.mxu0 0
  %573 = vmatpush1.bf16.msra.mxu0 0
  %574 = vmatprep.mubr.bf16.mxu0 0
  %575 = vmatmul.mubr.bf16.gmra.mrb[0].mxu0 %v534
  %v576 = vpop.f32.mrb[0].mxu0
  %v577 = vadd.f32 %v54, %v576
  %v578 = vpop.f32.mrb[0].mxu0
  %v579 = vpop.f32.mrb[0].mxu0
  %v580 = vadd.f32 %v54, %v579
  %v581 = vpop.f32.mrb[0].mxu0
  %582 = vmatprep.mubr.bf16.mxu0 0
  %583 = vmatmul.mubr.bf16.gmra.mrb[0].mxu0 %v535
  %v584 = vpop.f32.mrb[0].mxu0
  %v585 = vadd.f32 %v54, %v584
  %v586 = vpop.f32.mrb[0].mxu0
  %v587 = vpop.f32.mrb[0].mxu0
  %v588 = vadd.f32 %v54, %v587
  %v589 = vpop.f32.mrb[0].mxu0
  %590 = vmatprep.mubr.bf16.mxu0 0
  %591 = vmatmul.mubr.bf16.gmra.mrb[0].mxu0 %v536
  %v592 = vpop.f32.mrb[0].mxu0
  %v593 = vadd.f32 %v54, %v592
  %v594 = vpop.f32.mrb[0].mxu0
  %v595 = vpop.f32.mrb[0].mxu0
  %v596 = vadd.f32 %v54, %v595
  %v597 = vpop.f32.mrb[0].mxu0
  %598 = vmatprep.mubr.bf16.mxu0 0
  %599 = vmatmul.mubr.bf16.gmra.mrb[0].mxu0 %v537
  %v600 = vpop.f32.mrb[0].mxu0
  %v601 = vadd.f32 %v54, %v600
  %v602 = vpop.f32.mrb[0].mxu0
  %v603 = vpop.f32.mrb[0].mxu0
  %v604 = vadd.f32 %v54, %v603
  %v605 = vpop.f32.mrb[0].mxu0
  %606 = vdwg.mxu0
  %v607 = vmax.f32 %v577, 0.0
  %v608 = vmax.f32 %v580, 0.0
  %v609 = vmax.f32 %v585, 0.0
  %v610 = vmax.f32 %v588, 0.0
  %v611 = vmax.f32 %v593, 0.0
  %v612 = vmax.f32 %v596, 0.0
  %v613 = vmax.f32 %v601, 0.0
  %v614 = vmax.f32 %v604, 0.0
  %v615 = vpack.c.bf16 %v608, %v607
  %v616 = vpack.c.bf16 %v610, %v609
  %v617 = vpack.c.bf16 %v612, %v611
  %v618 = vpack.c.bf16 %v614, %v613
  %s619 = scalar_lea.vmem %s3, 32
  %v620 = vld [vmem:[%s619] sm:$0xf]
  %v621 = vld [vmem:[%s619 + $0x4] sm:$0xf]
  %v622 = vld [vmem:[%s619 + $0x8] sm:$0xf]
  %v623 = vld [vmem:[%s619 + $0xc] sm:$0xf]
  %v628 = vunpack.c.l.b16 %v620
  %v629 = vunpack.c.l.b16 %v621
  %v630 = vunpack.c.l.b16 %v622
  %v631 = vunpack.c.l.b16 %v623
  %v632 = vpack.c.b16 %v629, %v628
  %v633 = vpack.c.b16 %v631, %v630
  %v637 = vsel %vm343, %v615, 0
  %v640 = vsel %vm343, %v616, 0
  %v643 = vsel %vm343, %v617, 0
  %v646 = vsel %vm343, %v618, 0
  %648 = vmatprep.subr.bf16.mxu0 0
  %649 = vmatpush1.bf16.msra.mxu0 %v632
  %650 = vmatprep.subr.bf16.mxu0 0
  %651 = vmatpush1.bf16.msra.mxu0 %v633
  %652 = vmatprep.subr.bf16.mxu0 0
  %653 = vmatpush1.bf16.msra.mxu0 0
  %654 = vmatprep.subr.bf16.mxu0 0
  %655 = vmatpush1.bf16.msra.mxu0 0
  %656 = vmatprep.subr.bf16.mxu0 0
  %657 = vmatpush1.bf16.msra.mxu0 0
  %658 = vmatprep.subr.bf16.mxu0 0
  %659 = vmatpush1.bf16.msra.mxu0 0
  %660 = vmatprep.subr.bf16.mxu0 0
  %661 = vmatpush1.bf16.msra.mxu0 0
  %662 = vmatprep.subr.bf16.mxu0 0
  %663 = vmatpush1.bf16.msra.mxu0 0
  %664 = vmatprep.subr.bf16.mxu0 0
  %665 = vmatpush1.bf16.msra.mxu0 0
  %666 = vmatprep.subr.bf16.mxu0 0
  %667 = vmatpush1.bf16.msra.mxu0 0
  %668 = vmatprep.subr.bf16.mxu0 0
  %669 = vmatpush1.bf16.msra.mxu0 0
  %670 = vmatprep.subr.bf16.mxu0 0
  %671 = vmatpush1.bf16.msra.mxu0 0
  %672 = vmatprep.subr.bf16.mxu0 0
  %673 = vmatpush1.bf16.msra.mxu0 0
  %674 = vmatprep.subr.bf16.mxu0 0
  %675 = vmatpush1.bf16.msra.mxu0 0
  %676 = vmatprep.subr.bf16.mxu0 0
  %677 = vmatpush1.bf16.msra.mxu0 0
  %678 = vmatprep.subr.bf16.mxu0 0
  %679 = vmatpush1.bf16.msra.mxu0 0
  %680 = vmatprep.mubr.bf16.mxu0 0
  %681 = vmatmul.mubr.bf16.gmra.mrb[0].mxu0 %v637
  %v682 = vpop.f32.mrb[0].mxu0
  %v683 = vadd.f32 0.0, %v682
  %v684 = vpop.f32.mrb[0].mxu0
  %v685 = vpop.f32.mrb[0].mxu0
  %v686 = vadd.f32 0.0, %v685
  %v687 = vpop.f32.mrb[0].mxu0
  %688 = vmatprep.mubr.bf16.mxu0 0
  %689 = vmatmul.mubr.bf16.gmra.mrb[0].mxu0 %v640
  %v690 = vpop.f32.mrb[0].mxu0
  %v691 = vadd.f32 0.0, %v690
  %v692 = vpop.f32.mrb[0].mxu0
  %v693 = vpop.f32.mrb[0].mxu0
  %v694 = vadd.f32 0.0, %v693
  %v695 = vpop.f32.mrb[0].mxu0
  %696 = vmatprep.mubr.bf16.mxu0 0
  %697 = vmatmul.mubr.bf16.gmra.mrb[0].mxu0 %v643
  %v698 = vpop.f32.mrb[0].mxu0
  %v699 = vadd.f32 0.0, %v698
  %v700 = vpop.f32.mrb[0].mxu0
  %v701 = vpop.f32.mrb[0].mxu0
  %v702 = vadd.f32 0.0, %v701
  %v703 = vpop.f32.mrb[0].mxu0
  %704 = vmatprep.mubr.bf16.mxu0 0
  %705 = vmatmul.mubr.bf16.gmra.mrb[0].mxu0 %v646
  %v706 = vpop.f32.mrb[0].mxu0
  %v707 = vadd.f32 0.0, %v706
  %v708 = vpop.f32.mrb[0].mxu0
  %v709 = vpop.f32.mrb[0].mxu0
  %v710 = vadd.f32 0.0, %v709
  %v711 = vpop.f32.mrb[0].mxu0
  %712 = vdwg.mxu0
  %v713 = vadd.f32 %v480, %v683
  %v714 = vadd.f32 %v483, %v686
  %v715 = vadd.f32 %v488, %v691
  %v716 = vadd.f32 %v491, %v694
  %v717 = vadd.f32 %v496, %v699
  %v718 = vadd.f32 %v499, %v702
  %v719 = vadd.f32 %v504, %v707
  %v720 = vadd.f32 %v507, %v710
  %v721 = vld [vmem:[%s0 + $0x60] sm:$0xf]
  %v722 = vld [vmem:[%s0 + $0x64] sm:$0xf]
  %v723 = vld [vmem:[%s0 + $0x68] sm:$0xf]
  %v724 = vld [vmem:[%s0 + $0x6c] sm:$0xf]
  %v725 = vld [vmem:[%s0 + $0x70] sm:$0xf]
  %v726 = vld [vmem:[%s0 + $0x74] sm:$0xf]
  %v727 = vld [vmem:[%s0 + $0x78] sm:$0xf]
  %v728 = vld [vmem:[%s0 + $0x7c] sm:$0xf]
  %v737 = vunpack.c.l.b16 %v721
  %v738 = vunpack.c.l.b16 %v722
  %v739 = vunpack.c.l.b16 %v723
  %v740 = vunpack.c.l.b16 %v724
  %v741 = vunpack.c.l.b16 %v725
  %v742 = vunpack.c.l.b16 %v726
  %v743 = vunpack.c.l.b16 %v727
  %v744 = vunpack.c.l.b16 %v728
  %v745 = vpack.c.b16 %v738, %v737
  %v746 = vpack.c.b16 %v740, %v739
  %v747 = vpack.c.b16 %v742, %v741
  %v748 = vpack.c.b16 %v744, %v743
  %753 = vmatprep.subr.bf16.mxu0 0
  %754 = vmatpush1.bf16.msra.mxu0 %v120
  %755 = vmatprep.subr.bf16.mxu0 0
  %756 = vmatpush1.bf16.msra.mxu0 %v121
  %757 = vmatprep.subr.bf16.mxu0 0
  %758 = vmatpush1.bf16.msra.mxu0 %v122
  %759 = vmatprep.subr.bf16.mxu0 0
  %760 = vmatpush1.bf16.msra.mxu0 %v123
  %761 = vmatprep.subr.bf16.mxu0 0
  %762 = vmatpush1.bf16.msra.mxu0 %v124
  %763 = vmatprep.subr.bf16.mxu0 0
  %764 = vmatpush1.bf16.msra.mxu0 %v125
  %765 = vmatprep.subr.bf16.mxu0 0
  %766 = vmatpush1.bf16.msra.mxu0 %v126
  %767 = vmatprep.subr.bf16.mxu0 0
  %768 = vmatpush1.bf16.msra.mxu0 %v127
  %769 = vmatprep.subr.bf16.mxu0 0
  %770 = vmatpush1.bf16.msra.mxu0 0
  %771 = vmatprep.subr.bf16.mxu0 0
  %772 = vmatpush1.bf16.msra.mxu0 0
  %773 = vmatprep.subr.bf16.mxu0 0
  %774 = vmatpush1.bf16.msra.mxu0 0
  %775 = vmatprep.subr.bf16.mxu0 0
  %776 = vmatpush1.bf16.msra.mxu0 0
  %777 = vmatprep.subr.bf16.mxu0 0
  %778 = vmatpush1.bf16.msra.mxu0 0
  %779 = vmatprep.subr.bf16.mxu0 0
  %780 = vmatpush1.bf16.msra.mxu0 0
  %781 = vmatprep.subr.bf16.mxu0 0
  %782 = vmatpush1.bf16.msra.mxu0 0
  %783 = vmatprep.subr.bf16.mxu0 0
  %784 = vmatpush1.bf16.msra.mxu0 0
  %785 = vmatprep.mubr.bf16.mxu0 0
  %786 = vmatmul.mubr.bf16.gmra.mrb[0].mxu0 %v745
  %v787 = vpop.f32.mrb[0].mxu0
  %v788 = vadd.f32 %v54, %v787
  %v789 = vpop.f32.mrb[0].mxu0
  %v790 = vpop.f32.mrb[0].mxu0
  %v791 = vadd.f32 %v54, %v790
  %v792 = vpop.f32.mrb[0].mxu0
  %793 = vmatprep.mubr.bf16.mxu0 0
  %794 = vmatmul.mubr.bf16.gmra.mrb[0].mxu0 %v746
  %v795 = vpop.f32.mrb[0].mxu0
  %v796 = vadd.f32 %v54, %v795
  %v797 = vpop.f32.mrb[0].mxu0
  %v798 = vpop.f32.mrb[0].mxu0
  %v799 = vadd.f32 %v54, %v798
  %v800 = vpop.f32.mrb[0].mxu0
  %801 = vmatprep.mubr.bf16.mxu0 0
  %802 = vmatmul.mubr.bf16.gmra.mrb[0].mxu0 %v747
  %v803 = vpop.f32.mrb[0].mxu0
  %v804 = vadd.f32 %v54, %v803
  %v805 = vpop.f32.mrb[0].mxu0
  %v806 = vpop.f32.mrb[0].mxu0
  %v807 = vadd.f32 %v54, %v806
  %v808 = vpop.f32.mrb[0].mxu0
  %809 = vmatprep.mubr.bf16.mxu0 0
  %810 = vmatmul.mubr.bf16.gmra.mrb[0].mxu0 %v748
  %v811 = vpop.f32.mrb[0].mxu0
  %v812 = vadd.f32 %v54, %v811
  %v813 = vpop.f32.mrb[0].mxu0
  %v814 = vpop.f32.mrb[0].mxu0
  %v815 = vadd.f32 %v54, %v814
  %v816 = vpop.f32.mrb[0].mxu0
  %817 = vdwg.mxu0
  %v818 = vmax.f32 %v788, 0.0
  %v819 = vmax.f32 %v791, 0.0
  %v820 = vmax.f32 %v796, 0.0
  %v821 = vmax.f32 %v799, 0.0
  %v822 = vmax.f32 %v804, 0.0
  %v823 = vmax.f32 %v807, 0.0
  %v824 = vmax.f32 %v812, 0.0
  %v825 = vmax.f32 %v815, 0.0
  %v826 = vpack.c.bf16 %v819, %v818
  %v827 = vpack.c.bf16 %v821, %v820
  %v828 = vpack.c.bf16 %v823, %v822
  %v829 = vpack.c.bf16 %v825, %v824
  %s830 = scalar_lea.vmem %s3, 48
  %v831 = vld [vmem:[%s830] sm:$0xf]
  %v832 = vld [vmem:[%s830 + $0x4] sm:$0xf]
  %v833 = vld [vmem:[%s830 + $0x8] sm:$0xf]
  %v834 = vld [vmem:[%s830 + $0xc] sm:$0xf]
  %v839 = vunpack.c.l.b16 %v831
  %v840 = vunpack.c.l.b16 %v832
  %v841 = vunpack.c.l.b16 %v833
  %v842 = vunpack.c.l.b16 %v834
  %v843 = vpack.c.b16 %v840, %v839
  %v844 = vpack.c.b16 %v842, %v841
  %v848 = vsel %vm343, %v826, 0
  %v851 = vsel %vm343, %v827, 0
  %v854 = vsel %vm343, %v828, 0
  %v857 = vsel %vm343, %v829, 0
  %859 = vmatprep.subr.bf16.mxu0 0
  %860 = vmatpush1.bf16.msra.mxu0 %v843
  %861 = vmatprep.subr.bf16.mxu0 0
  %862 = vmatpush1.bf16.msra.mxu0 %v844
  %863 = vmatprep.subr.bf16.mxu0 0
  %864 = vmatpush1.bf16.msra.mxu0 0
  %865 = vmatprep.subr.bf16.mxu0 0
  %866 = vmatpush1.bf16.msra.mxu0 0
  %867 = vmatprep.subr.bf16.mxu0 0
  %868 = vmatpush1.bf16.msra.mxu0 0
  %869 = vmatprep.subr.bf16.mxu0 0
  %870 = vmatpush1.bf16.msra.mxu0 0
  %871 = vmatprep.subr.bf16.mxu0 0
  %872 = vmatpush1.bf16.msra.mxu0 0
  %873 = vmatprep.subr.bf16.mxu0 0
  %874 = vmatpush1.bf16.msra.mxu0 0
  %875 = vmatprep.subr.bf16.mxu0 0
  %876 = vmatpush1.bf16.msra.mxu0 0
  %877 = vmatprep.subr.bf16.mxu0 0
  %878 = vmatpush1.bf16.msra.mxu0 0
  %879 = vmatprep.subr.bf16.mxu0 0
  %880 = vmatpush1.bf16.msra.mxu0 0
  %881 = vmatprep.subr.bf16.mxu0 0
  %882 = vmatpush1.bf16.msra.mxu0 0
  %883 = vmatprep.subr.bf16.mxu0 0
  %884 = vmatpush1.bf16.msra.mxu0 0
  %885 = vmatprep.subr.bf16.mxu0 0
  %886 = vmatpush1.bf16.msra.mxu0 0
  %887 = vmatprep.subr.bf16.mxu0 0
  %888 = vmatpush1.bf16.msra.mxu0 0
  %889 = vmatprep.subr.bf16.mxu0 0
  %890 = vmatpush1.bf16.msra.mxu0 0
  %891 = vmatprep.mubr.bf16.mxu0 0
  %892 = vmatmul.mubr.bf16.gmra.mrb[0].mxu0 %v848
  %v893 = vpop.f32.mrb[0].mxu0
  %v894 = vadd.f32 0.0, %v893
  %v895 = vpop.f32.mrb[0].mxu0
  %v896 = vpop.f32.mrb[0].mxu0
  %v897 = vadd.f32 0.0, %v896
  %v898 = vpop.f32.mrb[0].mxu0
  %899 = vmatprep.mubr.bf16.mxu0 0
  %900 = vmatmul.mubr.bf16.gmra.mrb[0].mxu0 %v851
  %v901 = vpop.f32.mrb[0].mxu0
  %v902 = vadd.f32 0.0, %v901
  %v903 = vpop.f32.mrb[0].mxu0
  %v904 = vpop.f32.mrb[0].mxu0
  %v905 = vadd.f32 0.0, %v904
  %v906 = vpop.f32.mrb[0].mxu0
  %907 = vmatprep.mubr.bf16.mxu0 0
  %908 = vmatmul.mubr.bf16.gmra.mrb[0].mxu0 %v854
  %v909 = vpop.f32.mrb[0].mxu0
  %v910 = vadd.f32 0.0, %v909
  %v911 = vpop.f32.mrb[0].mxu0
  %v912 = vpop.f32.mrb[0].mxu0
  %v913 = vadd.f32 0.0, %v912
  %v914 = vpop.f32.mrb[0].mxu0
  %915 = vmatprep.mubr.bf16.mxu0 0
  %916 = vmatmul.mubr.bf16.gmra.mrb[0].mxu0 %v857
  %v917 = vpop.f32.mrb[0].mxu0
  %v918 = vadd.f32 0.0, %v917
  %v919 = vpop.f32.mrb[0].mxu0
  %v920 = vpop.f32.mrb[0].mxu0
  %v921 = vadd.f32 0.0, %v920
  %v922 = vpop.f32.mrb[0].mxu0
  %923 = vdwg.mxu0
  %v924 = vadd.f32 %v713, %v894
  %v925 = vadd.f32 %v714, %v897
  %v926 = vadd.f32 %v715, %v902
  %v927 = vadd.f32 %v716, %v905
  %v928 = vadd.f32 %v717, %v910
  %v929 = vadd.f32 %v718, %v913
  %v930 = vadd.f32 %v719, %v918
  %v931 = vadd.f32 %v720, %v921
  %v932 = vld [vmem:[%s0 + $0x80] sm:$0xf]
  %v933 = vld [vmem:[%s0 + $0x84] sm:$0xf]
  %v934 = vld [vmem:[%s0 + $0x88] sm:$0xf]
  %v935 = vld [vmem:[%s0 + $0x8c] sm:$0xf]
  %v936 = vld [vmem:[%s0 + $0x90] sm:$0xf]
  %v937 = vld [vmem:[%s0 + $0x94] sm:$0xf]
  %v938 = vld [vmem:[%s0 + $0x98] sm:$0xf]
  %v939 = vld [vmem:[%s0 + $0x9c] sm:$0xf]
  %v948 = vunpack.c.l.b16 %v932
  %v949 = vunpack.c.l.b16 %v933
  %v950 = vunpack.c.l.b16 %v934
  %v951 = vunpack.c.l.b16 %v935
  %v952 = vunpack.c.l.b16 %v936
  %v953 = vunpack.c.l.b16 %v937
  %v954 = vunpack.c.l.b16 %v938
  %v955 = vunpack.c.l.b16 %v939
  %v956 = vpack.c.b16 %v949, %v948
  %v957 = vpack.c.b16 %v951, %v950
  %v958 = vpack.c.b16 %v953, %v952
  %v959 = vpack.c.b16 %v955, %v954
  %964 = vmatprep.subr.bf16.mxu0 0
  %965 = vmatpush1.bf16.msra.mxu0 %v120
  %966 = vmatprep.subr.bf16.mxu0 0
  %967 = vmatpush1.bf16.msra.mxu0 %v121
  %968 = vmatprep.subr.bf16.mxu0 0
  %969 = vmatpush1.bf16.msra.mxu0 %v122
  %970 = vmatprep.subr.bf16.mxu0 0
  %971 = vmatpush1.bf16.msra.mxu0 %v123
  %972 = vmatprep.subr.bf16.mxu0 0
  %973 = vmatpush1.bf16.msra.mxu0 %v124
  %974 = vmatprep.subr.bf16.mxu0 0
  %975 = vmatpush1.bf16.msra.mxu0 %v125
  %976 = vmatprep.subr.bf16.mxu0 0
  %977 = vmatpush1.bf16.msra.mxu0 %v126
  %978 = vmatprep.subr.bf16.mxu0 0
  %979 = vmatpush1.bf16.msra.mxu0 %v127
  %980 = vmatprep.subr.bf16.mxu0 0
  %981 = vmatpush1.bf16.msra.mxu0 0
  %982 = vmatprep.subr.bf16.mxu0 0
  %983 = vmatpush1.bf16.msra.mxu0 0
  %984 = vmatprep.subr.bf16.mxu0 0
  %985 = vmatpush1.bf16.msra.mxu0 0
  %986 = vmatprep.subr.bf16.mxu0 0
  %987 = vmatpush1.bf16.msra.mxu0 0
  %988 = vmatprep.subr.bf16.mxu0 0
  %989 = vmatpush1.bf16.msra.mxu0 0
  %990 = vmatprep.subr.bf16.mxu0 0
  %991 = vmatpush1.bf16.msra.mxu0 0
  %992 = vmatprep.subr.bf16.mxu0 0
  %993 = vmatpush1.bf16.msra.mxu0 0
  %994 = vmatprep.subr.bf16.mxu0 0
  %995 = vmatpush1.bf16.msra.mxu0 0
  %996 = vmatprep.mubr.bf16.mxu0 0
  %997 = vmatmul.mubr.bf16.gmra.mrb[0].mxu0 %v956
  %v998 = vpop.f32.mrb[0].mxu0
  %v999 = vadd.f32 %v54, %v998
  %v1000 = vpop.f32.mrb[0].mxu0
  %v1001 = vpop.f32.mrb[0].mxu0
  %v1002 = vadd.f32 %v54, %v1001
  %v1003 = vpop.f32.mrb[0].mxu0
  %1004 = vmatprep.mubr.bf16.mxu0 0
  %1005 = vmatmul.mubr.bf16.gmra.mrb[0].mxu0 %v957
  %v1006 = vpop.f32.mrb[0].mxu0
  %v1007 = vadd.f32 %v54, %v1006
  %v1008 = vpop.f32.mrb[0].mxu0
  %v1009 = vpop.f32.mrb[0].mxu0
  %v1010 = vadd.f32 %v54, %v1009
  %v1011 = vpop.f32.mrb[0].mxu0
  %1012 = vmatprep.mubr.bf16.mxu0 0
  %1013 = vmatmul.mubr.bf16.gmra.mrb[0].mxu0 %v958
  %v1014 = vpop.f32.mrb[0].mxu0
  %v1015 = vadd.f32 %v54, %v1014
  %v1016 = vpop.f32.mrb[0].mxu0
  %v1017 = vpop.f32.mrb[0].mxu0
  %v1018 = vadd.f32 %v54, %v1017
  %v1019 = vpop.f32.mrb[0].mxu0
  %1020 = vmatprep.mubr.bf16.mxu0 0
  %1021 = vmatmul.mubr.bf16.gmra.mrb[0].mxu0 %v959
  %v1022 = vpop.f32.mrb[0].mxu0
  %v1023 = vadd.f32 %v54, %v1022
  %v1024 = vpop.f32.mrb[0].mxu0
  %v1025 = vpop.f32.mrb[0].mxu0
  %v1026 = vadd.f32 %v54, %v1025
  %v1027 = vpop.f32.mrb[0].mxu0
  %1028 = vdwg.mxu0
  %v1029 = vmax.f32 %v999, 0.0
  %v1030 = vmax.f32 %v1002, 0.0
  %v1031 = vmax.f32 %v1007, 0.0
  %v1032 = vmax.f32 %v1010, 0.0
  %v1033 = vmax.f32 %v1015, 0.0
  %v1034 = vmax.f32 %v1018, 0.0
  %v1035 = vmax.f32 %v1023, 0.0
  %v1036 = vmax.f32 %v1026, 0.0
  %v1037 = vpack.c.bf16 %v1030, %v1029
  %v1038 = vpack.c.bf16 %v1032, %v1031
  %v1039 = vpack.c.bf16 %v1034, %v1033
  %v1040 = vpack.c.bf16 %v1036, %v1035
  %s1041 = scalar_lea.vmem %s3, 64
  %v1042 = vld [vmem:[%s1041] sm:$0xf]
  %v1043 = vld [vmem:[%s1041 + $0x4] sm:$0xf]
  %v1044 = vld [vmem:[%s1041 + $0x8] sm:$0xf]
  %v1045 = vld [vmem:[%s1041 + $0xc] sm:$0xf]
  %v1050 = vunpack.c.l.b16 %v1042
  %v1051 = vunpack.c.l.b16 %v1043
  %v1052 = vunpack.c.l.b16 %v1044
  %v1053 = vunpack.c.l.b16 %v1045
  %v1054 = vpack.c.b16 %v1051, %v1050
  %v1055 = vpack.c.b16 %v1053, %v1052
  %v1059 = vsel %vm343, %v1037, 0
  %v1062 = vsel %vm343, %v1038, 0
  %v1065 = vsel %vm343, %v1039, 0
  %v1068 = vsel %vm343, %v1040, 0
  %1070 = vmatprep.subr.bf16.mxu0 0
  %1071 = vmatpush1.bf16.msra.mxu0 %v1054
  %1072 = vmatprep.subr.bf16.mxu0 0
  %1073 = vmatpush1.bf16.msra.mxu0 %v1055
  %1074 = vmatprep.subr.bf16.mxu0 0
  %1075 = vmatpush1.bf16.msra.mxu0 0
  %1076 = vmatprep.subr.bf16.mxu0 0
  %1077 = vmatpush1.bf16.msra.mxu0 0
  %1078 = vmatprep.subr.bf16.mxu0 0
  %1079 = vmatpush1.bf16.msra.mxu0 0
  %1080 = vmatprep.subr.bf16.mxu0 0
  %1081 = vmatpush1.bf16.msra.mxu0 0
  %1082 = vmatprep.subr.bf16.mxu0 0
  %1083 = vmatpush1.bf16.msra.mxu0 0
  %1084 = vmatprep.subr.bf16.mxu0 0
  %1085 = vmatpush1.bf16.msra.mxu0 0
  %1086 = vmatprep.subr.bf16.mxu0 0
  %1087 = vmatpush1.bf16.msra.mxu0 0
  %1088 = vmatprep.subr.bf16.mxu0 0
  %1089 = vmatpush1.bf16.msra.mxu0 0
  %1090 = vmatprep.subr.bf16.mxu0 0
  %1091 = vmatpush1.bf16.msra.mxu0 0
  %1092 = vmatprep.subr.bf16.mxu0 0
  %1093 = vmatpush1.bf16.msra.mxu0 0
  %1094 = vmatprep.subr.bf16.mxu0 0
  %1095 = vmatpush1.bf16.msra.mxu0 0
  %1096 = vmatprep.subr.bf16.mxu0 0
  %1097 = vmatpush1.bf16.msra.mxu0 0
  %1098 = vmatprep.subr.bf16.mxu0 0
  %1099 = vmatpush1.bf16.msra.mxu0 0
  %1100 = vmatprep.subr.bf16.mxu0 0
  %1101 = vmatpush1.bf16.msra.mxu0 0
  %1102 = vmatprep.mubr.bf16.mxu0 0
  %1103 = vmatmul.mubr.bf16.gmra.mrb[0].mxu0 %v1059
  %v1104 = vpop.f32.mrb[0].mxu0
  %v1105 = vadd.f32 0.0, %v1104
  %v1106 = vpop.f32.mrb[0].mxu0
  %v1107 = vpop.f32.mrb[0].mxu0
  %v1108 = vadd.f32 0.0, %v1107
  %v1109 = vpop.f32.mrb[0].mxu0
  %1110 = vmatprep.mubr.bf16.mxu0 0
  %1111 = vmatmul.mubr.bf16.gmra.mrb[0].mxu0 %v1062
  %v1112 = vpop.f32.mrb[0].mxu0
  %v1113 = vadd.f32 0.0, %v1112
  %v1114 = vpop.f32.mrb[0].mxu0
  %v1115 = vpop.f32.mrb[0].mxu0
  %v1116 = vadd.f32 0.0, %v1115
  %v1117 = vpop.f32.mrb[0].mxu0
  %1118 = vmatprep.mubr.bf16.mxu0 0
  %1119 = vmatmul.mubr.bf16.gmra.mrb[0].mxu0 %v1065
  %v1120 = vpop.f32.mrb[0].mxu0
  %v1121 = vadd.f32 0.0, %v1120
  %v1122 = vpop.f32.mrb[0].mxu0
  %v1123 = vpop.f32.mrb[0].mxu0
  %v1124 = vadd.f32 0.0, %v1123
  %v1125 = vpop.f32.mrb[0].mxu0
  %1126 = vmatprep.mubr.bf16.mxu0 0
  %1127 = vmatmul.mubr.bf16.gmra.mrb[0].mxu0 %v1068
  %v1128 = vpop.f32.mrb[0].mxu0
  %v1129 = vadd.f32 0.0, %v1128
  %v1130 = vpop.f32.mrb[0].mxu0
  %v1131 = vpop.f32.mrb[0].mxu0
  %v1132 = vadd.f32 0.0, %v1131
  %v1133 = vpop.f32.mrb[0].mxu0
  %1134 = vdwg.mxu0
  %v1135 = vadd.f32 %v924, %v1105
  %v1136 = vadd.f32 %v925, %v1108
  %v1137 = vadd.f32 %v926, %v1113
  %v1138 = vadd.f32 %v927, %v1116
  %v1139 = vadd.f32 %v928, %v1121
  %v1140 = vadd.f32 %v929, %v1124
  %v1141 = vadd.f32 %v930, %v1129
  %v1142 = vadd.f32 %v931, %v1132
  %v1143 = vld [vmem:[%s0 + $0xa0] sm:$0xf]
  %v1144 = vld [vmem:[%s0 + $0xa4] sm:$0xf]
  %v1145 = vld [vmem:[%s0 + $0xa8] sm:$0xf]
  %v1146 = vld [vmem:[%s0 + $0xac] sm:$0xf]
  %v1147 = vld [vmem:[%s0 + $0xb0] sm:$0xf]
  %v1148 = vld [vmem:[%s0 + $0xb4] sm:$0xf]
  %v1149 = vld [vmem:[%s0 + $0xb8] sm:$0xf]
  %v1150 = vld [vmem:[%s0 + $0xbc] sm:$0xf]
  %v1159 = vunpack.c.l.b16 %v1143
  %v1160 = vunpack.c.l.b16 %v1144
  %v1161 = vunpack.c.l.b16 %v1145
  %v1162 = vunpack.c.l.b16 %v1146
  %v1163 = vunpack.c.l.b16 %v1147
  %v1164 = vunpack.c.l.b16 %v1148
  %v1165 = vunpack.c.l.b16 %v1149
  %v1166 = vunpack.c.l.b16 %v1150
  %v1167 = vpack.c.b16 %v1160, %v1159
  %v1168 = vpack.c.b16 %v1162, %v1161
  %v1169 = vpack.c.b16 %v1164, %v1163
  %v1170 = vpack.c.b16 %v1166, %v1165
  %1175 = vmatprep.subr.bf16.mxu0 0
  %1176 = vmatpush1.bf16.msra.mxu0 %v120
  %1177 = vmatprep.subr.bf16.mxu0 0
  %1178 = vmatpush1.bf16.msra.mxu0 %v121
  %1179 = vmatprep.subr.bf16.mxu0 0
  %1180 = vmatpush1.bf16.msra.mxu0 %v122
  %1181 = vmatprep.subr.bf16.mxu0 0
  %1182 = vmatpush1.bf16.msra.mxu0 %v123
  %1183 = vmatprep.subr.bf16.mxu0 0
  %1184 = vmatpush1.bf16.msra.mxu0 %v124
  %1185 = vmatprep.subr.bf16.mxu0 0
  %1186 = vmatpush1.bf16.msra.mxu0 %v125
  %1187 = vmatprep.subr.bf16.mxu0 0
  %1188 = vmatpush1.bf16.msra.mxu0 %v126
  %1189 = vmatprep.subr.bf16.mxu0 0
  %1190 = vmatpush1.bf16.msra.mxu0 %v127
  %1191 = vmatprep.subr.bf16.mxu0 0
  %1192 = vmatpush1.bf16.msra.mxu0 0
  %1193 = vmatprep.subr.bf16.mxu0 0
  %1194 = vmatpush1.bf16.msra.mxu0 0
  %1195 = vmatprep.subr.bf16.mxu0 0
  %1196 = vmatpush1.bf16.msra.mxu0 0
  %1197 = vmatprep.subr.bf16.mxu0 0
  %1198 = vmatpush1.bf16.msra.mxu0 0
  %1199 = vmatprep.subr.bf16.mxu0 0
  %1200 = vmatpush1.bf16.msra.mxu0 0
  %1201 = vmatprep.subr.bf16.mxu0 0
  %1202 = vmatpush1.bf16.msra.mxu0 0
  %1203 = vmatprep.subr.bf16.mxu0 0
  %1204 = vmatpush1.bf16.msra.mxu0 0
  %1205 = vmatprep.subr.bf16.mxu0 0
  %1206 = vmatpush1.bf16.msra.mxu0 0
  %1207 = vmatprep.mubr.bf16.mxu0 0
  %1208 = vmatmul.mubr.bf16.gmra.mrb[0].mxu0 %v1167
  %v1209 = vpop.f32.mrb[0].mxu0
  %v1210 = vadd.f32 %v54, %v1209
  %v1211 = vpop.f32.mrb[0].mxu0
  %v1212 = vpop.f32.mrb[0].mxu0
  %v1213 = vadd.f32 %v54, %v1212
  %v1214 = vpop.f32.mrb[0].mxu0
  %1215 = vmatprep.mubr.bf16.mxu0 0
  %1216 = vmatmul.mubr.bf16.gmra.mrb[0].mxu0 %v1168
  %v1217 = vpop.f32.mrb[0].mxu0
  %v1218 = vadd.f32 %v54, %v1217
  %v1219 = vpop.f32.mrb[0].mxu0
  %v1220 = vpop.f32.mrb[0].mxu0
  %v1221 = vadd.f32 %v54, %v1220
  %v1222 = vpop.f32.mrb[0].mxu0
  %1223 = vmatprep.mubr.bf16.mxu0 0
  %1224 = vmatmul.mubr.bf16.gmra.mrb[0].mxu0 %v1169
  %v1225 = vpop.f32.mrb[0].mxu0
  %v1226 = vadd.f32 %v54, %v1225
  %v1227 = vpop.f32.mrb[0].mxu0
  %v1228 = vpop.f32.mrb[0].mxu0
  %v1229 = vadd.f32 %v54, %v1228
  %v1230 = vpop.f32.mrb[0].mxu0
  %1231 = vmatprep.mubr.bf16.mxu0 0
  %1232 = vmatmul.mubr.bf16.gmra.mrb[0].mxu0 %v1170
  %v1233 = vpop.f32.mrb[0].mxu0
  %v1234 = vadd.f32 %v54, %v1233
  %v1235 = vpop.f32.mrb[0].mxu0
  %v1236 = vpop.f32.mrb[0].mxu0
  %v1237 = vadd.f32 %v54, %v1236
  %v1238 = vpop.f32.mrb[0].mxu0
  %1239 = vdwg.mxu0
  %v1240 = vmax.f32 %v1210, 0.0
  %v1241 = vmax.f32 %v1213, 0.0
  %v1242 = vmax.f32 %v1218, 0.0
  %v1243 = vmax.f32 %v1221, 0.0
  %v1244 = vmax.f32 %v1226, 0.0
  %v1245 = vmax.f32 %v1229, 0.0
  %v1246 = vmax.f32 %v1234, 0.0
  %v1247 = vmax.f32 %v1237, 0.0
  %v1248 = vpack.c.bf16 %v1241, %v1240
  %v1249 = vpack.c.bf16 %v1243, %v1242
  %v1250 = vpack.c.bf16 %v1245, %v1244
  %v1251 = vpack.c.bf16 %v1247, %v1246
  %s1252 = scalar_lea.vmem %s3, 80
  %v1253 = vld [vmem:[%s1252] sm:$0xf]
  %v1254 = vld [vmem:[%s1252 + $0x4] sm:$0xf]
  %v1255 = vld [vmem:[%s1252 + $0x8] sm:$0xf]
  %v1256 = vld [vmem:[%s1252 + $0xc] sm:$0xf]
  %v1261 = vunpack.c.l.b16 %v1253
  %v1262 = vunpack.c.l.b16 %v1254
  %v1263 = vunpack.c.l.b16 %v1255
  %v1264 = vunpack.c.l.b16 %v1256
  %v1265 = vpack.c.b16 %v1262, %v1261
  %v1266 = vpack.c.b16 %v1264, %v1263
  %v1270 = vsel %vm343, %v1248, 0
  %v1273 = vsel %vm343, %v1249, 0
  %v1276 = vsel %vm343, %v1250, 0
  %v1279 = vsel %vm343, %v1251, 0
  %1281 = vmatprep.subr.bf16.mxu0 0
  %1282 = vmatpush1.bf16.msra.mxu0 %v1265
  %1283 = vmatprep.subr.bf16.mxu0 0
  %1284 = vmatpush1.bf16.msra.mxu0 %v1266
  %1285 = vmatprep.subr.bf16.mxu0 0
  %1286 = vmatpush1.bf16.msra.mxu0 0
  %1287 = vmatprep.subr.bf16.mxu0 0
  %1288 = vmatpush1.bf16.msra.mxu0 0
  %1289 = vmatprep.subr.bf16.mxu0 0
  %1290 = vmatpush1.bf16.msra.mxu0 0
  %1291 = vmatprep.subr.bf16.mxu0 0
  %1292 = vmatpush1.bf16.msra.mxu0 0
  %1293 = vmatprep.subr.bf16.mxu0 0
  %1294 = vmatpush1.bf16.msra.mxu0 0
  %1295 = vmatprep.subr.bf16.mxu0 0
  %1296 = vmatpush1.bf16.msra.mxu0 0
  %1297 = vmatprep.subr.bf16.mxu0 0
  %1298 = vmatpush1.bf16.msra.mxu0 0
  %1299 = vmatprep.subr.bf16.mxu0 0
  %1300 = vmatpush1.bf16.msra.mxu0 0
  %1301 = vmatprep.subr.bf16.mxu0 0
  %1302 = vmatpush1.bf16.msra.mxu0 0
  %1303 = vmatprep.subr.bf16.mxu0 0
  %1304 = vmatpush1.bf16.msra.mxu0 0
  %1305 = vmatprep.subr.bf16.mxu0 0
  %1306 = vmatpush1.bf16.msra.mxu0 0
  %1307 = vmatprep.subr.bf16.mxu0 0
  %1308 = vmatpush1.bf16.msra.mxu0 0
  %1309 = vmatprep.subr.bf16.mxu0 0
  %1310 = vmatpush1.bf16.msra.mxu0 0
  %1311 = vmatprep.subr.bf16.mxu0 0
  %1312 = vmatpush1.bf16.msra.mxu0 0
  %1313 = vmatprep.mubr.bf16.mxu0 0
  %1314 = vmatmul.mubr.bf16.gmra.mrb[0].mxu0 %v1270
  %v1315 = vpop.f32.mrb[0].mxu0
  %v1316 = vadd.f32 0.0, %v1315
  %v1317 = vpop.f32.mrb[0].mxu0
  %v1318 = vpop.f32.mrb[0].mxu0
  %v1319 = vadd.f32 0.0, %v1318
  %v1320 = vpop.f32.mrb[0].mxu0
  %1321 = vmatprep.mubr.bf16.mxu0 0
  %1322 = vmatmul.mubr.bf16.gmra.mrb[0].mxu0 %v1273
  %v1323 = vpop.f32.mrb[0].mxu0
  %v1324 = vadd.f32 0.0, %v1323
  %v1325 = vpop.f32.mrb[0].mxu0
  %v1326 = vpop.f32.mrb[0].mxu0
  %v1327 = vadd.f32 0.0, %v1326
  %v1328 = vpop.f32.mrb[0].mxu0
  %1329 = vmatprep.mubr.bf16.mxu0 0
  %1330 = vmatmul.mubr.bf16.gmra.mrb[0].mxu0 %v1276
  %v1331 = vpop.f32.mrb[0].mxu0
  %v1332 = vadd.f32 0.0, %v1331
  %v1333 = vpop.f32.mrb[0].mxu0
  %v1334 = vpop.f32.mrb[0].mxu0
  %v1335 = vadd.f32 0.0, %v1334
  %v1336 = vpop.f32.mrb[0].mxu0
  %1337 = vmatprep.mubr.bf16.mxu0 0
  %1338 = vmatmul.mubr.bf16.gmra.mrb[0].mxu0 %v1279
  %v1339 = vpop.f32.mrb[0].mxu0
  %v1340 = vadd.f32 0.0, %v1339
  %v1341 = vpop.f32.mrb[0].mxu0
  %v1342 = vpop.f32.mrb[0].mxu0
  %v1343 = vadd.f32 0.0, %v1342
  %v1344 = vpop.f32.mrb[0].mxu0
  %1345 = vdwg.mxu0
  %v1346 = vadd.f32 %v1135, %v1316
  %v1347 = vadd.f32 %v1136, %v1319
  %v1348 = vadd.f32 %v1137, %v1324
  %v1349 = vadd.f32 %v1138, %v1327
  %v1350 = vadd.f32 %v1139, %v1332
  %v1351 = vadd.f32 %v1140, %v1335
  %v1352 = vadd.f32 %v1141, %v1340
  %v1353 = vadd.f32 %v1142, %v1343
  %v1354 = vld [vmem:[%s0 + $0xc0] sm:$0xf]
  %v1355 = vld [vmem:[%s0 + $0xc4] sm:$0xf]
  %v1356 = vld [vmem:[%s0 + $0xc8] sm:$0xf]
  %v1357 = vld [vmem:[%s0 + $0xcc] sm:$0xf]
  %v1358 = vld [vmem:[%s0 + $0xd0] sm:$0xf]
  %v1359 = vld [vmem:[%s0 + $0xd4] sm:$0xf]
  %v1360 = vld [vmem:[%s0 + $0xd8] sm:$0xf]
  %v1361 = vld [vmem:[%s0 + $0xdc] sm:$0xf]
  %v1370 = vunpack.c.l.b16 %v1354
  %v1371 = vunpack.c.l.b16 %v1355
  %v1372 = vunpack.c.l.b16 %v1356
  %v1373 = vunpack.c.l.b16 %v1357
  %v1374 = vunpack.c.l.b16 %v1358
  %v1375 = vunpack.c.l.b16 %v1359
  %v1376 = vunpack.c.l.b16 %v1360
  %v1377 = vunpack.c.l.b16 %v1361
  %v1378 = vpack.c.b16 %v1371, %v1370
  %v1379 = vpack.c.b16 %v1373, %v1372
  %v1380 = vpack.c.b16 %v1375, %v1374
  %v1381 = vpack.c.b16 %v1377, %v1376
  %1386 = vmatprep.subr.bf16.mxu0 0
  %1387 = vmatpush1.bf16.msra.mxu0 %v120
  %1388 = vmatprep.subr.bf16.mxu0 0
  %1389 = vmatpush1.bf16.msra.mxu0 %v121
  %1390 = vmatprep.subr.bf16.mxu0 0
  %1391 = vmatpush1.bf16.msra.mxu0 %v122
  %1392 = vmatprep.subr.bf16.mxu0 0
  %1393 = vmatpush1.bf16.msra.mxu0 %v123
  %1394 = vmatprep.subr.bf16.mxu0 0
  %1395 = vmatpush1.bf16.msra.mxu0 %v124
  %1396 = vmatprep.subr.bf16.mxu0 0
  %1397 = vmatpush1.bf16.msra.mxu0 %v125
  %1398 = vmatprep.subr.bf16.mxu0 0
  %1399 = vmatpush1.bf16.msra.mxu0 %v126
  %1400 = vmatprep.subr.bf16.mxu0 0
  %1401 = vmatpush1.bf16.msra.mxu0 %v127
  %1402 = vmatprep.subr.bf16.mxu0 0
  %1403 = vmatpush1.bf16.msra.mxu0 0
  %1404 = vmatprep.subr.bf16.mxu0 0
  %1405 = vmatpush1.bf16.msra.mxu0 0
  %1406 = vmatprep.subr.bf16.mxu0 0
  %1407 = vmatpush1.bf16.msra.mxu0 0
  %1408 = vmatprep.subr.bf16.mxu0 0
  %1409 = vmatpush1.bf16.msra.mxu0 0
  %1410 = vmatprep.subr.bf16.mxu0 0
  %1411 = vmatpush1.bf16.msra.mxu0 0
  %1412 = vmatprep.subr.bf16.mxu0 0
  %1413 = vmatpush1.bf16.msra.mxu0 0
  %1414 = vmatprep.subr.bf16.mxu0 0
  %1415 = vmatpush1.bf16.msra.mxu0 0
  %1416 = vmatprep.subr.bf16.mxu0 0
  %1417 = vmatpush1.bf16.msra.mxu0 0
  %1418 = vmatprep.mubr.bf16.mxu0 0
  %1419 = vmatmul.mubr.bf16.gmra.mrb[0].mxu0 %v1378
  %v1420 = vpop.f32.mrb[0].mxu0
  %v1421 = vadd.f32 %v54, %v1420
  %v1422 = vpop.f32.mrb[0].mxu0
  %v1423 = vpop.f32.mrb[0].mxu0
  %v1424 = vadd.f32 %v54, %v1423
  %v1425 = vpop.f32.mrb[0].mxu0
  %1426 = vmatprep.mubr.bf16.mxu0 0
  %1427 = vmatmul.mubr.bf16.gmra.mrb[0].mxu0 %v1379
  %v1428 = vpop.f32.mrb[0].mxu0
  %v1429 = vadd.f32 %v54, %v1428
  %v1430 = vpop.f32.mrb[0].mxu0
  %v1431 = vpop.f32.mrb[0].mxu0
  %v1432 = vadd.f32 %v54, %v1431
  %v1433 = vpop.f32.mrb[0].mxu0
  %1434 = vmatprep.mubr.bf16.mxu0 0
  %1435 = vmatmul.mubr.bf16.gmra.mrb[0].mxu0 %v1380
  %v1436 = vpop.f32.mrb[0].mxu0
  %v1437 = vadd.f32 %v54, %v1436
  %v1438 = vpop.f32.mrb[0].mxu0
  %v1439 = vpop.f32.mrb[0].mxu0
  %v1440 = vadd.f32 %v54, %v1439
  %v1441 = vpop.f32.mrb[0].mxu0
  %1442 = vmatprep.mubr.bf16.mxu0 0
  %1443 = vmatmul.mubr.bf16.gmra.mrb[0].mxu0 %v1381
  %v1444 = vpop.f32.mrb[0].mxu0
  %v1445 = vadd.f32 %v54, %v1444
  %v1446 = vpop.f32.mrb[0].mxu0
  %v1447 = vpop.f32.mrb[0].mxu0
  %v1448 = vadd.f32 %v54, %v1447
  %v1449 = vpop.f32.mrb[0].mxu0
  %1450 = vdwg.mxu0
  %v1451 = vmax.f32 %v1421, 0.0
  %v1452 = vmax.f32 %v1424, 0.0
  %v1453 = vmax.f32 %v1429, 0.0
  %v1454 = vmax.f32 %v1432, 0.0
  %v1455 = vmax.f32 %v1437, 0.0
  %v1456 = vmax.f32 %v1440, 0.0
  %v1457 = vmax.f32 %v1445, 0.0
  %v1458 = vmax.f32 %v1448, 0.0
  %v1459 = vpack.c.bf16 %v1452, %v1451
  %v1460 = vpack.c.bf16 %v1454, %v1453
  %v1461 = vpack.c.bf16 %v1456, %v1455
  %v1462 = vpack.c.bf16 %v1458, %v1457
  %s1463 = scalar_lea.vmem %s3, 96
  %v1464 = vld [vmem:[%s1463] sm:$0xf]
  %v1465 = vld [vmem:[%s1463 + $0x4] sm:$0xf]
  %v1466 = vld [vmem:[%s1463 + $0x8] sm:$0xf]
  %v1467 = vld [vmem:[%s1463 + $0xc] sm:$0xf]
  %v1472 = vunpack.c.l.b16 %v1464
  %v1473 = vunpack.c.l.b16 %v1465
  %v1474 = vunpack.c.l.b16 %v1466
  %v1475 = vunpack.c.l.b16 %v1467
  %v1476 = vpack.c.b16 %v1473, %v1472
  %v1477 = vpack.c.b16 %v1475, %v1474
  %v1481 = vsel %vm343, %v1459, 0
  %v1484 = vsel %vm343, %v1460, 0
  %v1487 = vsel %vm343, %v1461, 0
  %v1490 = vsel %vm343, %v1462, 0
  %1492 = vmatprep.subr.bf16.mxu0 0
  %1493 = vmatpush1.bf16.msra.mxu0 %v1476
  %1494 = vmatprep.subr.bf16.mxu0 0
  %1495 = vmatpush1.bf16.msra.mxu0 %v1477
  %1496 = vmatprep.subr.bf16.mxu0 0
  %1497 = vmatpush1.bf16.msra.mxu0 0
  %1498 = vmatprep.subr.bf16.mxu0 0
  %1499 = vmatpush1.bf16.msra.mxu0 0
  %1500 = vmatprep.subr.bf16.mxu0 0
  %1501 = vmatpush1.bf16.msra.mxu0 0
  %1502 = vmatprep.subr.bf16.mxu0 0
  %1503 = vmatpush1.bf16.msra.mxu0 0
  %1504 = vmatprep.subr.bf16.mxu0 0
  %1505 = vmatpush1.bf16.msra.mxu0 0
  %1506 = vmatprep.subr.bf16.mxu0 0
  %1507 = vmatpush1.bf16.msra.mxu0 0
  %1508 = vmatprep.subr.bf16.mxu0 0
  %1509 = vmatpush1.bf16.msra.mxu0 0
  %1510 = vmatprep.subr.bf16.mxu0 0
  %1511 = vmatpush1.bf16.msra.mxu0 0
  %1512 = vmatprep.subr.bf16.mxu0 0
  %1513 = vmatpush1.bf16.msra.mxu0 0
  %1514 = vmatprep.subr.bf16.mxu0 0
  %1515 = vmatpush1.bf16.msra.mxu0 0
  %1516 = vmatprep.subr.bf16.mxu0 0
  %1517 = vmatpush1.bf16.msra.mxu0 0
  %1518 = vmatprep.subr.bf16.mxu0 0
  %1519 = vmatpush1.bf16.msra.mxu0 0
  %1520 = vmatprep.subr.bf16.mxu0 0
  %1521 = vmatpush1.bf16.msra.mxu0 0
  %1522 = vmatprep.subr.bf16.mxu0 0
  %1523 = vmatpush1.bf16.msra.mxu0 0
  %1524 = vmatprep.mubr.bf16.mxu0 0
  %1525 = vmatmul.mubr.bf16.gmra.mrb[0].mxu0 %v1481
  %v1526 = vpop.f32.mrb[0].mxu0
  %v1527 = vadd.f32 0.0, %v1526
  %v1528 = vpop.f32.mrb[0].mxu0
  %v1529 = vpop.f32.mrb[0].mxu0
  %v1530 = vadd.f32 0.0, %v1529
  %v1531 = vpop.f32.mrb[0].mxu0
  %1532 = vmatprep.mubr.bf16.mxu0 0
  %1533 = vmatmul.mubr.bf16.gmra.mrb[0].mxu0 %v1484
  %v1534 = vpop.f32.mrb[0].mxu0
  %v1535 = vadd.f32 0.0, %v1534
  %v1536 = vpop.f32.mrb[0].mxu0
  %v1537 = vpop.f32.mrb[0].mxu0
  %v1538 = vadd.f32 0.0, %v1537
  %v1539 = vpop.f32.mrb[0].mxu0
  %1540 = vmatprep.mubr.bf16.mxu0 0
  %1541 = vmatmul.mubr.bf16.gmra.mrb[0].mxu0 %v1487
  %v1542 = vpop.f32.mrb[0].mxu0
  %v1543 = vadd.f32 0.0, %v1542
  %v1544 = vpop.f32.mrb[0].mxu0
  %v1545 = vpop.f32.mrb[0].mxu0
  %v1546 = vadd.f32 0.0, %v1545
  %v1547 = vpop.f32.mrb[0].mxu0
  %1548 = vmatprep.mubr.bf16.mxu0 0
  %1549 = vmatmul.mubr.bf16.gmra.mrb[0].mxu0 %v1490
  %v1550 = vpop.f32.mrb[0].mxu0
  %v1551 = vadd.f32 0.0, %v1550
  %v1552 = vpop.f32.mrb[0].mxu0
  %v1553 = vpop.f32.mrb[0].mxu0
  %v1554 = vadd.f32 0.0, %v1553
  %v1555 = vpop.f32.mrb[0].mxu0
  %1556 = vdwg.mxu0
  %v1557 = vadd.f32 %v1346, %v1527
  %v1558 = vadd.f32 %v1347, %v1530
  %v1559 = vadd.f32 %v1348, %v1535
  %v1560 = vadd.f32 %v1349, %v1538
  %v1561 = vadd.f32 %v1350, %v1543
  %v1562 = vadd.f32 %v1351, %v1546
  %v1563 = vadd.f32 %v1352, %v1551
  %v1564 = vadd.f32 %v1353, %v1554
  %v1565 = vld [vmem:[%s0 + $0xe0] sm:$0xf]
  %v1566 = vld [vmem:[%s0 + $0xe4] sm:$0xf]
  %v1567 = vld [vmem:[%s0 + $0xe8] sm:$0xf]
  %v1568 = vld [vmem:[%s0 + $0xec] sm:$0xf]
  %v1569 = vld [vmem:[%s0 + $0xf0] sm:$0xf]
  %v1570 = vld [vmem:[%s0 + $0xf4] sm:$0xf]
  %v1571 = vld [vmem:[%s0 + $0xf8] sm:$0xf]
  %v1572 = vld [vmem:[%s0 + $0xfc] sm:$0xf]
  %v1581 = vunpack.c.l.b16 %v1565
  %v1582 = vunpack.c.l.b16 %v1566
  %v1583 = vunpack.c.l.b16 %v1567
  %v1584 = vunpack.c.l.b16 %v1568
  %v1585 = vunpack.c.l.b16 %v1569
  %v1586 = vunpack.c.l.b16 %v1570
  %v1587 = vunpack.c.l.b16 %v1571
  %v1588 = vunpack.c.l.b16 %v1572
  %v1589 = vpack.c.b16 %v1582, %v1581
  %v1590 = vpack.c.b16 %v1584, %v1583
  %v1591 = vpack.c.b16 %v1586, %v1585
  %v1592 = vpack.c.b16 %v1588, %v1587
  %1597 = vmatprep.subr.bf16.mxu0 0
  %1598 = vmatpush1.bf16.msra.mxu0 %v120
  %1599 = vmatprep.subr.bf16.mxu0 0
  %1600 = vmatpush1.bf16.msra.mxu0 %v121
  %1601 = vmatprep.subr.bf16.mxu0 0
  %1602 = vmatpush1.bf16.msra.mxu0 %v122
  %1603 = vmatprep.subr.bf16.mxu0 0
  %1604 = vmatpush1.bf16.msra.mxu0 %v123
  %1605 = vmatprep.subr.bf16.mxu0 0
  %1606 = vmatpush1.bf16.msra.mxu0 %v124
  %1607 = vmatprep.subr.bf16.mxu0 0
  %1608 = vmatpush1.bf16.msra.mxu0 %v125
  %1609 = vmatprep.subr.bf16.mxu0 0
  %1610 = vmatpush1.bf16.msra.mxu0 %v126
  %1611 = vmatprep.subr.bf16.mxu0 0
  %1612 = vmatpush1.bf16.msra.mxu0 %v127
  %1613 = vmatprep.subr.bf16.mxu0 0
  %1614 = vmatpush1.bf16.msra.mxu0 0
  %1615 = vmatprep.subr.bf16.mxu0 0
  %1616 = vmatpush1.bf16.msra.mxu0 0
  %1617 = vmatprep.subr.bf16.mxu0 0
  %1618 = vmatpush1.bf16.msra.mxu0 0
  %1619 = vmatprep.subr.bf16.mxu0 0
  %1620 = vmatpush1.bf16.msra.mxu0 0
  %1621 = vmatprep.subr.bf16.mxu0 0
  %1622 = vmatpush1.bf16.msra.mxu0 0
  %1623 = vmatprep.subr.bf16.mxu0 0
  %1624 = vmatpush1.bf16.msra.mxu0 0
  %1625 = vmatprep.subr.bf16.mxu0 0
  %1626 = vmatpush1.bf16.msra.mxu0 0
  %1627 = vmatprep.subr.bf16.mxu0 0
  %1628 = vmatpush1.bf16.msra.mxu0 0
  %1629 = vmatprep.mubr.bf16.mxu0 0
  %1630 = vmatmul.mubr.bf16.gmra.mrb[0].mxu0 %v1589
  %v1631 = vpop.f32.mrb[0].mxu0
  %v1632 = vadd.f32 %v54, %v1631
  %v1633 = vpop.f32.mrb[0].mxu0
  %v1634 = vpop.f32.mrb[0].mxu0
  %v1635 = vadd.f32 %v54, %v1634
  %v1636 = vpop.f32.mrb[0].mxu0
  %1637 = vmatprep.mubr.bf16.mxu0 0
  %1638 = vmatmul.mubr.bf16.gmra.mrb[0].mxu0 %v1590
  %v1639 = vpop.f32.mrb[0].mxu0
  %v1640 = vadd.f32 %v54, %v1639
  %v1641 = vpop.f32.mrb[0].mxu0
  %v1642 = vpop.f32.mrb[0].mxu0
  %v1643 = vadd.f32 %v54, %v1642
  %v1644 = vpop.f32.mrb[0].mxu0
  %1645 = vmatprep.mubr.bf16.mxu0 0
  %1646 = vmatmul.mubr.bf16.gmra.mrb[0].mxu0 %v1591
  %v1647 = vpop.f32.mrb[0].mxu0
  %v1648 = vadd.f32 %v54, %v1647
  %v1649 = vpop.f32.mrb[0].mxu0
  %v1650 = vpop.f32.mrb[0].mxu0
  %v1651 = vadd.f32 %v54, %v1650
  %v1652 = vpop.f32.mrb[0].mxu0
  %1653 = vmatprep.mubr.bf16.mxu0 0
  %1654 = vmatmul.mubr.bf16.gmra.mrb[0].mxu0 %v1592
  %v1655 = vpop.f32.mrb[0].mxu0
  %v1656 = vadd.f32 %v54, %v1655
  %v1657 = vpop.f32.mrb[0].mxu0
  %v1658 = vpop.f32.mrb[0].mxu0
  %v1659 = vadd.f32 %v54, %v1658
  %v1660 = vpop.f32.mrb[0].mxu0
  %1661 = vdwg.mxu0
  %v1662 = vmax.f32 %v1632, 0.0
  %v1663 = vmax.f32 %v1635, 0.0
  %v1664 = vmax.f32 %v1640, 0.0
  %v1665 = vmax.f32 %v1643, 0.0
  %v1666 = vmax.f32 %v1648, 0.0
  %v1667 = vmax.f32 %v1651, 0.0
  %v1668 = vmax.f32 %v1656, 0.0
  %v1669 = vmax.f32 %v1659, 0.0
  %v1670 = vpack.c.bf16 %v1663, %v1662
  %v1671 = vpack.c.bf16 %v1665, %v1664
  %v1672 = vpack.c.bf16 %v1667, %v1666
  %v1673 = vpack.c.bf16 %v1669, %v1668
  %s1674 = scalar_lea.vmem %s3, 112
  %v1675 = vld [vmem:[%s1674] sm:$0xf]
  %v1676 = vld [vmem:[%s1674 + $0x4] sm:$0xf]
  %v1677 = vld [vmem:[%s1674 + $0x8] sm:$0xf]
  %v1678 = vld [vmem:[%s1674 + $0xc] sm:$0xf]
  %v1683 = vunpack.c.l.b16 %v1675
  %v1684 = vunpack.c.l.b16 %v1676
  %v1685 = vunpack.c.l.b16 %v1677
  %v1686 = vunpack.c.l.b16 %v1678
  %v1687 = vpack.c.b16 %v1684, %v1683
  %v1688 = vpack.c.b16 %v1686, %v1685
  %v1692 = vsel %vm343, %v1670, 0
  %v1695 = vsel %vm343, %v1671, 0
  %v1698 = vsel %vm343, %v1672, 0
  %v1701 = vsel %vm343, %v1673, 0
  %1703 = vmatprep.subr.bf16.mxu0 0
  %1704 = vmatpush1.bf16.msra.mxu0 %v1687
  %1705 = vmatprep.subr.bf16.mxu0 0
  %1706 = vmatpush1.bf16.msra.mxu0 %v1688
  %1707 = vmatprep.subr.bf16.mxu0 0
  %1708 = vmatpush1.bf16.msra.mxu0 0
  %1709 = vmatprep.subr.bf16.mxu0 0
  %1710 = vmatpush1.bf16.msra.mxu0 0
  %1711 = vmatprep.subr.bf16.mxu0 0
  %1712 = vmatpush1.bf16.msra.mxu0 0
  %1713 = vmatprep.subr.bf16.mxu0 0
  %1714 = vmatpush1.bf16.msra.mxu0 0
  %1715 = vmatprep.subr.bf16.mxu0 0
  %1716 = vmatpush1.bf16.msra.mxu0 0
  %1717 = vmatprep.subr.bf16.mxu0 0
  %1718 = vmatpush1.bf16.msra.mxu0 0
  %1719 = vmatprep.subr.bf16.mxu0 0
  %1720 = vmatpush1.bf16.msra.mxu0 0
  %1721 = vmatprep.subr.bf16.mxu0 0
  %1722 = vmatpush1.bf16.msra.mxu0 0
  %1723 = vmatprep.subr.bf16.mxu0 0
  %1724 = vmatpush1.bf16.msra.mxu0 0
  %1725 = vmatprep.subr.bf16.mxu0 0
  %1726 = vmatpush1.bf16.msra.mxu0 0
  %1727 = vmatprep.subr.bf16.mxu0 0
  %1728 = vmatpush1.bf16.msra.mxu0 0
  %1729 = vmatprep.subr.bf16.mxu0 0
  %1730 = vmatpush1.bf16.msra.mxu0 0
  %1731 = vmatprep.subr.bf16.mxu0 0
  %1732 = vmatpush1.bf16.msra.mxu0 0
  %1733 = vmatprep.subr.bf16.mxu0 0
  %1734 = vmatpush1.bf16.msra.mxu0 0
  %1735 = vmatprep.mubr.bf16.mxu0 0
  %1736 = vmatmul.mubr.bf16.gmra.mrb[0].mxu0 %v1692
  %v1737 = vpop.f32.mrb[0].mxu0
  %v1738 = vadd.f32 0.0, %v1737
  %v1739 = vpop.f32.mrb[0].mxu0
  %v1740 = vpop.f32.mrb[0].mxu0
  %v1741 = vadd.f32 0.0, %v1740
  %v1742 = vpop.f32.mrb[0].mxu0
  %1743 = vmatprep.mubr.bf16.mxu0 0
  %1744 = vmatmul.mubr.bf16.gmra.mrb[0].mxu0 %v1695
  %v1745 = vpop.f32.mrb[0].mxu0
  %v1746 = vadd.f32 0.0, %v1745
  %v1747 = vpop.f32.mrb[0].mxu0
  %v1748 = vpop.f32.mrb[0].mxu0
  %v1749 = vadd.f32 0.0, %v1748
  %v1750 = vpop.f32.mrb[0].mxu0
  %1751 = vmatprep.mubr.bf16.mxu0 0
  %1752 = vmatmul.mubr.bf16.gmra.mrb[0].mxu0 %v1698
  %v1753 = vpop.f32.mrb[0].mxu0
  %v1754 = vadd.f32 0.0, %v1753
  %v1755 = vpop.f32.mrb[0].mxu0
  %v1756 = vpop.f32.mrb[0].mxu0
  %v1757 = vadd.f32 0.0, %v1756
  %v1758 = vpop.f32.mrb[0].mxu0
  %1759 = vmatprep.mubr.bf16.mxu0 0
  %1760 = vmatmul.mubr.bf16.gmra.mrb[0].mxu0 %v1701
  %v1761 = vpop.f32.mrb[0].mxu0
  %v1762 = vadd.f32 0.0, %v1761
  %v1763 = vpop.f32.mrb[0].mxu0
  %v1764 = vpop.f32.mrb[0].mxu0
  %v1765 = vadd.f32 0.0, %v1764
  %v1766 = vpop.f32.mrb[0].mxu0
  %1767 = vdwg.mxu0
  %v1768 = vadd.f32 %v1557, %v1738
  %v1769 = vadd.f32 %v1558, %v1741
  %v1770 = vadd.f32 %v1559, %v1746
  %v1771 = vadd.f32 %v1560, %v1749
  %v1772 = vadd.f32 %v1561, %v1754
  %v1773 = vadd.f32 %v1562, %v1757
  %v1774 = vadd.f32 %v1563, %v1762
  %v1775 = vadd.f32 %v1564, %v1765
  %v1776 = vld [vmem:[%s0 + $0x100] sm:$0xf]
  %v1777 = vld [vmem:[%s0 + $0x104] sm:$0xf]
  %v1778 = vld [vmem:[%s0 + $0x108] sm:$0xf]
  %v1779 = vld [vmem:[%s0 + $0x10c] sm:$0xf]
  %v1780 = vld [vmem:[%s0 + $0x110] sm:$0xf]
  %v1781 = vld [vmem:[%s0 + $0x114] sm:$0xf]
  %v1782 = vld [vmem:[%s0 + $0x118] sm:$0xf]
  %v1783 = vld [vmem:[%s0 + $0x11c] sm:$0xf]
  %v1792 = vunpack.c.l.b16 %v1776
  %v1793 = vunpack.c.l.b16 %v1777
  %v1794 = vunpack.c.l.b16 %v1778
  %v1795 = vunpack.c.l.b16 %v1779
  %v1796 = vunpack.c.l.b16 %v1780
  %v1797 = vunpack.c.l.b16 %v1781
  %v1798 = vunpack.c.l.b16 %v1782
  %v1799 = vunpack.c.l.b16 %v1783
  %v1800 = vpack.c.b16 %v1793, %v1792
  %v1801 = vpack.c.b16 %v1795, %v1794
  %v1802 = vpack.c.b16 %v1797, %v1796
  %v1803 = vpack.c.b16 %v1799, %v1798
  %1808 = vmatprep.subr.bf16.mxu0 0
  %1809 = vmatpush1.bf16.msra.mxu0 %v120
  %1810 = vmatprep.subr.bf16.mxu0 0
  %1811 = vmatpush1.bf16.msra.mxu0 %v121
  %1812 = vmatprep.subr.bf16.mxu0 0
  %1813 = vmatpush1.bf16.msra.mxu0 %v122
  %1814 = vmatprep.subr.bf16.mxu0 0
  %1815 = vmatpush1.bf16.msra.mxu0 %v123
  %1816 = vmatprep.subr.bf16.mxu0 0
  %1817 = vmatpush1.bf16.msra.mxu0 %v124
  %1818 = vmatprep.subr.bf16.mxu0 0
  %1819 = vmatpush1.bf16.msra.mxu0 %v125
  %1820 = vmatprep.subr.bf16.mxu0 0
  %1821 = vmatpush1.bf16.msra.mxu0 %v126
  %1822 = vmatprep.subr.bf16.mxu0 0
  %1823 = vmatpush1.bf16.msra.mxu0 %v127
  %1824 = vmatprep.subr.bf16.mxu0 0
  %1825 = vmatpush1.bf16.msra.mxu0 0
  %1826 = vmatprep.subr.bf16.mxu0 0
  %1827 = vmatpush1.bf16.msra.mxu0 0
  %1828 = vmatprep.subr.bf16.mxu0 0
  %1829 = vmatpush1.bf16.msra.mxu0 0
  %1830 = vmatprep.subr.bf16.mxu0 0
  %1831 = vmatpush1.bf16.msra.mxu0 0
  %1832 = vmatprep.subr.bf16.mxu0 0
  %1833 = vmatpush1.bf16.msra.mxu0 0
  %1834 = vmatprep.subr.bf16.mxu0 0
  %1835 = vmatpush1.bf16.msra.mxu0 0
  %1836 = vmatprep.subr.bf16.mxu0 0
  %1837 = vmatpush1.bf16.msra.mxu0 0
  %1838 = vmatprep.subr.bf16.mxu0 0
  %1839 = vmatpush1.bf16.msra.mxu0 0
  %1840 = vmatprep.mubr.bf16.mxu0 0
  %1841 = vmatmul.mubr.bf16.gmra.mrb[0].mxu0 %v1800
  %v1842 = vpop.f32.mrb[0].mxu0
  %v1843 = vadd.f32 %v54, %v1842
  %v1844 = vpop.f32.mrb[0].mxu0
  %v1845 = vpop.f32.mrb[0].mxu0
  %v1846 = vadd.f32 %v54, %v1845
  %v1847 = vpop.f32.mrb[0].mxu0
  %1848 = vmatprep.mubr.bf16.mxu0 0
  %1849 = vmatmul.mubr.bf16.gmra.mrb[0].mxu0 %v1801
  %v1850 = vpop.f32.mrb[0].mxu0
  %v1851 = vadd.f32 %v54, %v1850
  %v1852 = vpop.f32.mrb[0].mxu0
  %v1853 = vpop.f32.mrb[0].mxu0
  %v1854 = vadd.f32 %v54, %v1853
  %v1855 = vpop.f32.mrb[0].mxu0
  %1856 = vmatprep.mubr.bf16.mxu0 0
  %1857 = vmatmul.mubr.bf16.gmra.mrb[0].mxu0 %v1802
  %v1858 = vpop.f32.mrb[0].mxu0
  %v1859 = vadd.f32 %v54, %v1858
  %v1860 = vpop.f32.mrb[0].mxu0
  %v1861 = vpop.f32.mrb[0].mxu0
  %v1862 = vadd.f32 %v54, %v1861
  %v1863 = vpop.f32.mrb[0].mxu0
  %1864 = vmatprep.mubr.bf16.mxu0 0
  %1865 = vmatmul.mubr.bf16.gmra.mrb[0].mxu0 %v1803
  %v1866 = vpop.f32.mrb[0].mxu0
  %v1867 = vadd.f32 %v54, %v1866
  %v1868 = vpop.f32.mrb[0].mxu0
  %v1869 = vpop.f32.mrb[0].mxu0
  %v1870 = vadd.f32 %v54, %v1869
  %v1871 = vpop.f32.mrb[0].mxu0
  %1872 = vdwg.mxu0
  %v1873 = vmax.f32 %v1843, 0.0
  %v1874 = vmax.f32 %v1846, 0.0
  %v1875 = vmax.f32 %v1851, 0.0
  %v1876 = vmax.f32 %v1854, 0.0
  %v1877 = vmax.f32 %v1859, 0.0
  %v1878 = vmax.f32 %v1862, 0.0
  %v1879 = vmax.f32 %v1867, 0.0
  %v1880 = vmax.f32 %v1870, 0.0
  %v1881 = vpack.c.bf16 %v1874, %v1873
  %v1882 = vpack.c.bf16 %v1876, %v1875
  %v1883 = vpack.c.bf16 %v1878, %v1877
  %v1884 = vpack.c.bf16 %v1880, %v1879
  %s1885 = scalar_lea.vmem %s3, 128
  %v1886 = vld [vmem:[%s1885] sm:$0xf]
  %v1887 = vld [vmem:[%s1885 + $0x4] sm:$0xf]
  %v1888 = vld [vmem:[%s1885 + $0x8] sm:$0xf]
  %v1889 = vld [vmem:[%s1885 + $0xc] sm:$0xf]
  %v1894 = vunpack.c.l.b16 %v1886
  %v1895 = vunpack.c.l.b16 %v1887
  %v1896 = vunpack.c.l.b16 %v1888
  %v1897 = vunpack.c.l.b16 %v1889
  %v1898 = vpack.c.b16 %v1895, %v1894
  %v1899 = vpack.c.b16 %v1897, %v1896
  %v1903 = vsel %vm343, %v1881, 0
  %v1906 = vsel %vm343, %v1882, 0
  %v1909 = vsel %vm343, %v1883, 0
  %v1912 = vsel %vm343, %v1884, 0
  %1914 = vmatprep.subr.bf16.mxu0 0
  %1915 = vmatpush1.bf16.msra.mxu0 %v1898
  %1916 = vmatprep.subr.bf16.mxu0 0
  %1917 = vmatpush1.bf16.msra.mxu0 %v1899
  %1918 = vmatprep.subr.bf16.mxu0 0
  %1919 = vmatpush1.bf16.msra.mxu0 0
  %1920 = vmatprep.subr.bf16.mxu0 0
  %1921 = vmatpush1.bf16.msra.mxu0 0
  %1922 = vmatprep.subr.bf16.mxu0 0
  %1923 = vmatpush1.bf16.msra.mxu0 0
  %1924 = vmatprep.subr.bf16.mxu0 0
  %1925 = vmatpush1.bf16.msra.mxu0 0
  %1926 = vmatprep.subr.bf16.mxu0 0
  %1927 = vmatpush1.bf16.msra.mxu0 0
  %1928 = vmatprep.subr.bf16.mxu0 0
  %1929 = vmatpush1.bf16.msra.mxu0 0
  %1930 = vmatprep.subr.bf16.mxu0 0
  %1931 = vmatpush1.bf16.msra.mxu0 0
  %1932 = vmatprep.subr.bf16.mxu0 0
  %1933 = vmatpush1.bf16.msra.mxu0 0
  %1934 = vmatprep.subr.bf16.mxu0 0
  %1935 = vmatpush1.bf16.msra.mxu0 0
  %1936 = vmatprep.subr.bf16.mxu0 0
  %1937 = vmatpush1.bf16.msra.mxu0 0
  %1938 = vmatprep.subr.bf16.mxu0 0
  %1939 = vmatpush1.bf16.msra.mxu0 0
  %1940 = vmatprep.subr.bf16.mxu0 0
  %1941 = vmatpush1.bf16.msra.mxu0 0
  %1942 = vmatprep.subr.bf16.mxu0 0
  %1943 = vmatpush1.bf16.msra.mxu0 0
  %1944 = vmatprep.subr.bf16.mxu0 0
  %1945 = vmatpush1.bf16.msra.mxu0 0
  %1946 = vmatprep.mubr.bf16.mxu0 0
  %1947 = vmatmul.mubr.bf16.gmra.mrb[0].mxu0 %v1903
  %v1948 = vpop.f32.mrb[0].mxu0
  %v1949 = vadd.f32 0.0, %v1948
  %v1950 = vpop.f32.mrb[0].mxu0
  %v1951 = vpop.f32.mrb[0].mxu0
  %v1952 = vadd.f32 0.0, %v1951
  %v1953 = vpop.f32.mrb[0].mxu0
  %1954 = vmatprep.mubr.bf16.mxu0 0
  %1955 = vmatmul.mubr.bf16.gmra.mrb[0].mxu0 %v1906
  %v1956 = vpop.f32.mrb[0].mxu0
  %v1957 = vadd.f32 0.0, %v1956
  %v1958 = vpop.f32.mrb[0].mxu0
  %v1959 = vpop.f32.mrb[0].mxu0
  %v1960 = vadd.f32 0.0, %v1959
  %v1961 = vpop.f32.mrb[0].mxu0
  %1962 = vmatprep.mubr.bf16.mxu0 0
  %1963 = vmatmul.mubr.bf16.gmra.mrb[0].mxu0 %v1909
  %v1964 = vpop.f32.mrb[0].mxu0
  %v1965 = vadd.f32 0.0, %v1964
  %v1966 = vpop.f32.mrb[0].mxu0
  %v1967 = vpop.f32.mrb[0].mxu0
  %v1968 = vadd.f32 0.0, %v1967
  %v1969 = vpop.f32.mrb[0].mxu0
  %1970 = vmatprep.mubr.bf16.mxu0 0
  %1971 = vmatmul.mubr.bf16.gmra.mrb[0].mxu0 %v1912
  %v1972 = vpop.f32.mrb[0].mxu0
  %v1973 = vadd.f32 0.0, %v1972
  %v1974 = vpop.f32.mrb[0].mxu0
  %v1975 = vpop.f32.mrb[0].mxu0
  %v1976 = vadd.f32 0.0, %v1975
  %v1977 = vpop.f32.mrb[0].mxu0
  %1978 = vdwg.mxu0
  %v1979 = vadd.f32 %v1768, %v1949
  %v1980 = vadd.f32 %v1769, %v1952
  %v1981 = vadd.f32 %v1770, %v1957
  %v1982 = vadd.f32 %v1771, %v1960
  %v1983 = vadd.f32 %v1772, %v1965
  %v1984 = vadd.f32 %v1773, %v1968
  %v1985 = vadd.f32 %v1774, %v1973
  %v1986 = vadd.f32 %v1775, %v1976
  %v1987 = vld [vmem:[%s0 + $0x120] sm:$0xf]
  %v1988 = vld [vmem:[%s0 + $0x124] sm:$0xf]
  %v1989 = vld [vmem:[%s0 + $0x128] sm:$0xf]
  %v1990 = vld [vmem:[%s0 + $0x12c] sm:$0xf]
  %v1991 = vld [vmem:[%s0 + $0x130] sm:$0xf]
  %v1992 = vld [vmem:[%s0 + $0x134] sm:$0xf]
  %v1993 = vld [vmem:[%s0 + $0x138] sm:$0xf]
  %v1994 = vld [vmem:[%s0 + $0x13c] sm:$0xf]
  %v2003 = vunpack.c.l.b16 %v1987
  %v2004 = vunpack.c.l.b16 %v1988
  %v2005 = vunpack.c.l.b16 %v1989
  %v2006 = vunpack.c.l.b16 %v1990
  %v2007 = vunpack.c.l.b16 %v1991
  %v2008 = vunpack.c.l.b16 %v1992
  %v2009 = vunpack.c.l.b16 %v1993
  %v2010 = vunpack.c.l.b16 %v1994
  %v2011 = vpack.c.b16 %v2004, %v2003
  %v2012 = vpack.c.b16 %v2006, %v2005
  %v2013 = vpack.c.b16 %v2008, %v2007
  %v2014 = vpack.c.b16 %v2010, %v2009
  %2019 = vmatprep.subr.bf16.mxu0 0
  %2020 = vmatpush1.bf16.msra.mxu0 %v120
  %2021 = vmatprep.subr.bf16.mxu0 0
  %2022 = vmatpush1.bf16.msra.mxu0 %v121
  %2023 = vmatprep.subr.bf16.mxu0 0
  %2024 = vmatpush1.bf16.msra.mxu0 %v122
  %2025 = vmatprep.subr.bf16.mxu0 0
  %2026 = vmatpush1.bf16.msra.mxu0 %v123
  %2027 = vmatprep.subr.bf16.mxu0 0
  %2028 = vmatpush1.bf16.msra.mxu0 %v124
  %2029 = vmatprep.subr.bf16.mxu0 0
  %2030 = vmatpush1.bf16.msra.mxu0 %v125
  %2031 = vmatprep.subr.bf16.mxu0 0
  %2032 = vmatpush1.bf16.msra.mxu0 %v126
  %2033 = vmatprep.subr.bf16.mxu0 0
  %2034 = vmatpush1.bf16.msra.mxu0 %v127
  %2035 = vmatprep.subr.bf16.mxu0 0
  %2036 = vmatpush1.bf16.msra.mxu0 0
  %2037 = vmatprep.subr.bf16.mxu0 0
  %2038 = vmatpush1.bf16.msra.mxu0 0
  %2039 = vmatprep.subr.bf16.mxu0 0
  %2040 = vmatpush1.bf16.msra.mxu0 0
  %2041 = vmatprep.subr.bf16.mxu0 0
  %2042 = vmatpush1.bf16.msra.mxu0 0
  %2043 = vmatprep.subr.bf16.mxu0 0
  %2044 = vmatpush1.bf16.msra.mxu0 0
  %2045 = vmatprep.subr.bf16.mxu0 0
  %2046 = vmatpush1.bf16.msra.mxu0 0
  %2047 = vmatprep.subr.bf16.mxu0 0
  %2048 = vmatpush1.bf16.msra.mxu0 0
  %2049 = vmatprep.subr.bf16.mxu0 0
  %2050 = vmatpush1.bf16.msra.mxu0 0
  %2051 = vmatprep.mubr.bf16.mxu0 0
  %2052 = vmatmul.mubr.bf16.gmra.mrb[0].mxu0 %v2011
  %v2053 = vpop.f32.mrb[0].mxu0
  %v2054 = vadd.f32 %v54, %v2053
  %v2055 = vpop.f32.mrb[0].mxu0
  %v2056 = vpop.f32.mrb[0].mxu0
  %v2057 = vadd.f32 %v54, %v2056
  %v2058 = vpop.f32.mrb[0].mxu0
  %2059 = vmatprep.mubr.bf16.mxu0 0
  %2060 = vmatmul.mubr.bf16.gmra.mrb[0].mxu0 %v2012
  %v2061 = vpop.f32.mrb[0].mxu0
  %v2062 = vadd.f32 %v54, %v2061
  %v2063 = vpop.f32.mrb[0].mxu0
  %v2064 = vpop.f32.mrb[0].mxu0
  %v2065 = vadd.f32 %v54, %v2064
  %v2066 = vpop.f32.mrb[0].mxu0
  %2067 = vmatprep.mubr.bf16.mxu0 0
  %2068 = vmatmul.mubr.bf16.gmra.mrb[0].mxu0 %v2013
  %v2069 = vpop.f32.mrb[0].mxu0
  %v2070 = vadd.f32 %v54, %v2069
  %v2071 = vpop.f32.mrb[0].mxu0
  %v2072 = vpop.f32.mrb[0].mxu0
  %v2073 = vadd.f32 %v54, %v2072
  %v2074 = vpop.f32.mrb[0].mxu0
  %2075 = vmatprep.mubr.bf16.mxu0 0
  %2076 = vmatmul.mubr.bf16.gmra.mrb[0].mxu0 %v2014
  %v2077 = vpop.f32.mrb[0].mxu0
  %v2078 = vadd.f32 %v54, %v2077
  %v2079 = vpop.f32.mrb[0].mxu0
  %v2080 = vpop.f32.mrb[0].mxu0
  %v2081 = vadd.f32 %v54, %v2080
  %v2082 = vpop.f32.mrb[0].mxu0
  %2083 = vdwg.mxu0
  %v2084 = vmax.f32 %v2054, 0.0
  %v2085 = vmax.f32 %v2057, 0.0
  %v2086 = vmax.f32 %v2062, 0.0
  %v2087 = vmax.f32 %v2065, 0.0
  %v2088 = vmax.f32 %v2070, 0.0
  %v2089 = vmax.f32 %v2073, 0.0
  %v2090 = vmax.f32 %v2078, 0.0
  %v2091 = vmax.f32 %v2081, 0.0
  %v2092 = vpack.c.bf16 %v2085, %v2084
  %v2093 = vpack.c.bf16 %v2087, %v2086
  %v2094 = vpack.c.bf16 %v2089, %v2088
  %v2095 = vpack.c.bf16 %v2091, %v2090
  %s2096 = scalar_lea.vmem %s3, 144
  %v2097 = vld [vmem:[%s2096] sm:$0xf]
  %v2098 = vld [vmem:[%s2096 + $0x4] sm:$0xf]
  %v2099 = vld [vmem:[%s2096 + $0x8] sm:$0xf]
  %v2100 = vld [vmem:[%s2096 + $0xc] sm:$0xf]
  %v2105 = vunpack.c.l.b16 %v2097
  %v2106 = vunpack.c.l.b16 %v2098
  %v2107 = vunpack.c.l.b16 %v2099
  %v2108 = vunpack.c.l.b16 %v2100
  %v2109 = vpack.c.b16 %v2106, %v2105
  %v2110 = vpack.c.b16 %v2108, %v2107
  %v2114 = vsel %vm343, %v2092, 0
  %v2117 = vsel %vm343, %v2093, 0
  %v2120 = vsel %vm343, %v2094, 0
  %v2123 = vsel %vm343, %v2095, 0
  %2125 = vmatprep.subr.bf16.mxu0 0
  %2126 = vmatpush1.bf16.msra.mxu0 %v2109
  %2127 = vmatprep.subr.bf16.mxu0 0
  %2128 = vmatpush1.bf16.msra.mxu0 %v2110
  %2129 = vmatprep.subr.bf16.mxu0 0
  %2130 = vmatpush1.bf16.msra.mxu0 0
  %2131 = vmatprep.subr.bf16.mxu0 0
  %2132 = vmatpush1.bf16.msra.mxu0 0
  %2133 = vmatprep.subr.bf16.mxu0 0
  %2134 = vmatpush1.bf16.msra.mxu0 0
  %2135 = vmatprep.subr.bf16.mxu0 0
  %2136 = vmatpush1.bf16.msra.mxu0 0
  %2137 = vmatprep.subr.bf16.mxu0 0
  %2138 = vmatpush1.bf16.msra.mxu0 0
  %2139 = vmatprep.subr.bf16.mxu0 0
  %2140 = vmatpush1.bf16.msra.mxu0 0
  %2141 = vmatprep.subr.bf16.mxu0 0
  %2142 = vmatpush1.bf16.msra.mxu0 0
  %2143 = vmatprep.subr.bf16.mxu0 0
  %2144 = vmatpush1.bf16.msra.mxu0 0
  %2145 = vmatprep.subr.bf16.mxu0 0
  %2146 = vmatpush1.bf16.msra.mxu0 0
  %2147 = vmatprep.subr.bf16.mxu0 0
  %2148 = vmatpush1.bf16.msra.mxu0 0
  %2149 = vmatprep.subr.bf16.mxu0 0
  %2150 = vmatpush1.bf16.msra.mxu0 0
  %2151 = vmatprep.subr.bf16.mxu0 0
  %2152 = vmatpush1.bf16.msra.mxu0 0
  %2153 = vmatprep.subr.bf16.mxu0 0
  %2154 = vmatpush1.bf16.msra.mxu0 0
  %2155 = vmatprep.subr.bf16.mxu0 0
  %2156 = vmatpush1.bf16.msra.mxu0 0
  %2157 = vmatprep.mubr.bf16.mxu0 0
  %2158 = vmatmul.mubr.bf16.gmra.mrb[0].mxu0 %v2114
  %v2159 = vpop.f32.mrb[0].mxu0
  %v2160 = vadd.f32 0.0, %v2159
  %v2161 = vpop.f32.mrb[0].mxu0
  %v2162 = vpop.f32.mrb[0].mxu0
  %v2163 = vadd.f32 0.0, %v2162
  %v2164 = vpop.f32.mrb[0].mxu0
  %2165 = vmatprep.mubr.bf16.mxu0 0
  %2166 = vmatmul.mubr.bf16.gmra.mrb[0].mxu0 %v2117
  %v2167 = vpop.f32.mrb[0].mxu0
  %v2168 = vadd.f32 0.0, %v2167
  %v2169 = vpop.f32.mrb[0].mxu0
  %v2170 = vpop.f32.mrb[0].mxu0
  %v2171 = vadd.f32 0.0, %v2170
  %v2172 = vpop.f32.mrb[0].mxu0
  %2173 = vmatprep.mubr.bf16.mxu0 0
  %2174 = vmatmul.mubr.bf16.gmra.mrb[0].mxu0 %v2120
  %v2175 = vpop.f32.mrb[0].mxu0
  %v2176 = vadd.f32 0.0, %v2175
  %v2177 = vpop.f32.mrb[0].mxu0
  %v2178 = vpop.f32.mrb[0].mxu0
  %v2179 = vadd.f32 0.0, %v2178
  %v2180 = vpop.f32.mrb[0].mxu0
  %2181 = vmatprep.mubr.bf16.mxu0 0
  %2182 = vmatmul.mubr.bf16.gmra.mrb[0].mxu0 %v2123
  %v2183 = vpop.f32.mrb[0].mxu0
  %v2184 = vadd.f32 0.0, %v2183
  %v2185 = vpop.f32.mrb[0].mxu0
  %v2186 = vpop.f32.mrb[0].mxu0
  %v2187 = vadd.f32 0.0, %v2186
  %v2188 = vpop.f32.mrb[0].mxu0
  %2189 = vdwg.mxu0
  %v2190 = vadd.f32 %v1979, %v2160
  %v2191 = vadd.f32 %v1980, %v2163
  %v2192 = vadd.f32 %v1981, %v2168
  %v2193 = vadd.f32 %v1982, %v2171
  %v2194 = vadd.f32 %v1983, %v2176
  %v2195 = vadd.f32 %v1984, %v2179
  %v2196 = vadd.f32 %v1985, %v2184
  %v2197 = vadd.f32 %v1986, %v2187
  %v2198 = vld [vmem:[%s0 + $0x140] sm:$0xf]
  %v2199 = vld [vmem:[%s0 + $0x144] sm:$0xf]
  %v2200 = vld [vmem:[%s0 + $0x148] sm:$0xf]
  %v2201 = vld [vmem:[%s0 + $0x14c] sm:$0xf]
  %v2202 = vld [vmem:[%s0 + $0x150] sm:$0xf]
  %v2203 = vld [vmem:[%s0 + $0x154] sm:$0xf]
  %v2204 = vld [vmem:[%s0 + $0x158] sm:$0xf]
  %v2205 = vld [vmem:[%s0 + $0x15c] sm:$0xf]
  %v2214 = vunpack.c.l.b16 %v2198
  %v2215 = vunpack.c.l.b16 %v2199
  %v2216 = vunpack.c.l.b16 %v2200
  %v2217 = vunpack.c.l.b16 %v2201
  %v2218 = vunpack.c.l.b16 %v2202
  %v2219 = vunpack.c.l.b16 %v2203
  %v2220 = vunpack.c.l.b16 %v2204
  %v2221 = vunpack.c.l.b16 %v2205
  %v2222 = vpack.c.b16 %v2215, %v2214
  %v2223 = vpack.c.b16 %v2217, %v2216
  %v2224 = vpack.c.b16 %v2219, %v2218
  %v2225 = vpack.c.b16 %v2221, %v2220
  %2230 = vmatprep.subr.bf16.mxu0 0
  %2231 = vmatpush1.bf16.msra.mxu0 %v120
  %2232 = vmatprep.subr.bf16.mxu0 0
  %2233 = vmatpush1.bf16.msra.mxu0 %v121
  %2234 = vmatprep.subr.bf16.mxu0 0
  %2235 = vmatpush1.bf16.msra.mxu0 %v122
  %2236 = vmatprep.subr.bf16.mxu0 0
  %2237 = vmatpush1.bf16.msra.mxu0 %v123
  %2238 = vmatprep.subr.bf16.mxu0 0
  %2239 = vmatpush1.bf16.msra.mxu0 %v124
  %2240 = vmatprep.subr.bf16.mxu0 0
  %2241 = vmatpush1.bf16.msra.mxu0 %v125
  %2242 = vmatprep.subr.bf16.mxu0 0
  %2243 = vmatpush1.bf16.msra.mxu0 %v126
  %2244 = vmatprep.subr.bf16.mxu0 0
  %2245 = vmatpush1.bf16.msra.mxu0 %v127
  %2246 = vmatprep.subr.bf16.mxu0 0
  %2247 = vmatpush1.bf16.msra.mxu0 0
  %2248 = vmatprep.subr.bf16.mxu0 0
  %2249 = vmatpush1.bf16.msra.mxu0 0
  %2250 = vmatprep.subr.bf16.mxu0 0
  %2251 = vmatpush1.bf16.msra.mxu0 0
  %2252 = vmatprep.subr.bf16.mxu0 0
  %2253 = vmatpush1.bf16.msra.mxu0 0
  %2254 = vmatprep.subr.bf16.mxu0 0
  %2255 = vmatpush1.bf16.msra.mxu0 0
  %2256 = vmatprep.subr.bf16.mxu0 0
  %2257 = vmatpush1.bf16.msra.mxu0 0
  %2258 = vmatprep.subr.bf16.mxu0 0
  %2259 = vmatpush1.bf16.msra.mxu0 0
  %2260 = vmatprep.subr.bf16.mxu0 0
  %2261 = vmatpush1.bf16.msra.mxu0 0
  %2262 = vmatprep.mubr.bf16.mxu0 0
  %2263 = vmatmul.mubr.bf16.gmra.mrb[0].mxu0 %v2222
  %v2264 = vpop.f32.mrb[0].mxu0
  %v2265 = vadd.f32 %v54, %v2264
  %v2266 = vpop.f32.mrb[0].mxu0
  %v2267 = vpop.f32.mrb[0].mxu0
  %v2268 = vadd.f32 %v54, %v2267
  %v2269 = vpop.f32.mrb[0].mxu0
  %2270 = vmatprep.mubr.bf16.mxu0 0
  %2271 = vmatmul.mubr.bf16.gmra.mrb[0].mxu0 %v2223
  %v2272 = vpop.f32.mrb[0].mxu0
  %v2273 = vadd.f32 %v54, %v2272
  %v2274 = vpop.f32.mrb[0].mxu0
  %v2275 = vpop.f32.mrb[0].mxu0
  %v2276 = vadd.f32 %v54, %v2275
  %v2277 = vpop.f32.mrb[0].mxu0
  %2278 = vmatprep.mubr.bf16.mxu0 0
  %2279 = vmatmul.mubr.bf16.gmra.mrb[0].mxu0 %v2224
  %v2280 = vpop.f32.mrb[0].mxu0
  %v2281 = vadd.f32 %v54, %v2280
  %v2282 = vpop.f32.mrb[0].mxu0
  %v2283 = vpop.f32.mrb[0].mxu0
  %v2284 = vadd.f32 %v54, %v2283
  %v2285 = vpop.f32.mrb[0].mxu0
  %2286 = vmatprep.mubr.bf16.mxu0 0
  %2287 = vmatmul.mubr.bf16.gmra.mrb[0].mxu0 %v2225
  %v2288 = vpop.f32.mrb[0].mxu0
  %v2289 = vadd.f32 %v54, %v2288
  %v2290 = vpop.f32.mrb[0].mxu0
  %v2291 = vpop.f32.mrb[0].mxu0
  %v2292 = vadd.f32 %v54, %v2291
  %v2293 = vpop.f32.mrb[0].mxu0
  %2294 = vdwg.mxu0
  %v2295 = vmax.f32 %v2265, 0.0
  %v2296 = vmax.f32 %v2268, 0.0
  %v2297 = vmax.f32 %v2273, 0.0
  %v2298 = vmax.f32 %v2276, 0.0
  %v2299 = vmax.f32 %v2281, 0.0
  %v2300 = vmax.f32 %v2284, 0.0
  %v2301 = vmax.f32 %v2289, 0.0
  %v2302 = vmax.f32 %v2292, 0.0
  %v2303 = vpack.c.bf16 %v2296, %v2295
  %v2304 = vpack.c.bf16 %v2298, %v2297
  %v2305 = vpack.c.bf16 %v2300, %v2299
  %v2306 = vpack.c.bf16 %v2302, %v2301
  %s2307 = scalar_lea.vmem %s3, 160
  %v2308 = vld [vmem:[%s2307] sm:$0xf]
  %v2309 = vld [vmem:[%s2307 + $0x4] sm:$0xf]
  %v2310 = vld [vmem:[%s2307 + $0x8] sm:$0xf]
  %v2311 = vld [vmem:[%s2307 + $0xc] sm:$0xf]
  %v2316 = vunpack.c.l.b16 %v2308
  %v2317 = vunpack.c.l.b16 %v2309
  %v2318 = vunpack.c.l.b16 %v2310
  %v2319 = vunpack.c.l.b16 %v2311
  %v2320 = vpack.c.b16 %v2317, %v2316
  %v2321 = vpack.c.b16 %v2319, %v2318
  %v2325 = vsel %vm343, %v2303, 0
  %v2328 = vsel %vm343, %v2304, 0
  %v2331 = vsel %vm343, %v2305, 0
  %v2334 = vsel %vm343, %v2306, 0
  %2336 = vmatprep.subr.bf16.mxu0 0
  %2337 = vmatpush1.bf16.msra.mxu0 %v2320
  %2338 = vmatprep.subr.bf16.mxu0 0
  %2339 = vmatpush1.bf16.msra.mxu0 %v2321
  %2340 = vmatprep.subr.bf16.mxu0 0
  %2341 = vmatpush1.bf16.msra.mxu0 0
  %2342 = vmatprep.subr.bf16.mxu0 0
  %2343 = vmatpush1.bf16.msra.mxu0 0
  %2344 = vmatprep.subr.bf16.mxu0 0
  %2345 = vmatpush1.bf16.msra.mxu0 0
  %2346 = vmatprep.subr.bf16.mxu0 0
  %2347 = vmatpush1.bf16.msra.mxu0 0
  %2348 = vmatprep.subr.bf16.mxu0 0
  %2349 = vmatpush1.bf16.msra.mxu0 0
  %2350 = vmatprep.subr.bf16.mxu0 0
  %2351 = vmatpush1.bf16.msra.mxu0 0
  %2352 = vmatprep.subr.bf16.mxu0 0
  %2353 = vmatpush1.bf16.msra.mxu0 0
  %2354 = vmatprep.subr.bf16.mxu0 0
  %2355 = vmatpush1.bf16.msra.mxu0 0
  %2356 = vmatprep.subr.bf16.mxu0 0
  %2357 = vmatpush1.bf16.msra.mxu0 0
  %2358 = vmatprep.subr.bf16.mxu0 0
  %2359 = vmatpush1.bf16.msra.mxu0 0
  %2360 = vmatprep.subr.bf16.mxu0 0
  %2361 = vmatpush1.bf16.msra.mxu0 0
  %2362 = vmatprep.subr.bf16.mxu0 0
  %2363 = vmatpush1.bf16.msra.mxu0 0
  %2364 = vmatprep.subr.bf16.mxu0 0
  %2365 = vmatpush1.bf16.msra.mxu0 0
  %2366 = vmatprep.subr.bf16.mxu0 0
  %2367 = vmatpush1.bf16.msra.mxu0 0
  %2368 = vmatprep.mubr.bf16.mxu0 0
  %2369 = vmatmul.mubr.bf16.gmra.mrb[0].mxu0 %v2325
  %v2370 = vpop.f32.mrb[0].mxu0
  %v2371 = vadd.f32 0.0, %v2370
  %v2372 = vpop.f32.mrb[0].mxu0
  %v2373 = vpop.f32.mrb[0].mxu0
  %v2374 = vadd.f32 0.0, %v2373
  %v2375 = vpop.f32.mrb[0].mxu0
  %2376 = vmatprep.mubr.bf16.mxu0 0
  %2377 = vmatmul.mubr.bf16.gmra.mrb[0].mxu0 %v2328
  %v2378 = vpop.f32.mrb[0].mxu0
  %v2379 = vadd.f32 0.0, %v2378
  %v2380 = vpop.f32.mrb[0].mxu0
  %v2381 = vpop.f32.mrb[0].mxu0
  %v2382 = vadd.f32 0.0, %v2381
  %v2383 = vpop.f32.mrb[0].mxu0
  %2384 = vmatprep.mubr.bf16.mxu0 0
  %2385 = vmatmul.mubr.bf16.gmra.mrb[0].mxu0 %v2331
  %v2386 = vpop.f32.mrb[0].mxu0
  %v2387 = vadd.f32 0.0, %v2386
  %v2388 = vpop.f32.mrb[0].mxu0
  %v2389 = vpop.f32.mrb[0].mxu0
  %v2390 = vadd.f32 0.0, %v2389
  %v2391 = vpop.f32.mrb[0].mxu0
  %2392 = vmatprep.mubr.bf16.mxu0 0
  %2393 = vmatmul.mubr.bf16.gmra.mrb[0].mxu0 %v2334
  %v2394 = vpop.f32.mrb[0].mxu0
  %v2395 = vadd.f32 0.0, %v2394
  %v2396 = vpop.f32.mrb[0].mxu0
  %v2397 = vpop.f32.mrb[0].mxu0
  %v2398 = vadd.f32 0.0, %v2397
  %v2399 = vpop.f32.mrb[0].mxu0
  %2400 = vdwg.mxu0
  %v2401 = vadd.f32 %v2190, %v2371
  %v2402 = vadd.f32 %v2191, %v2374
  %v2403 = vadd.f32 %v2192, %v2379
  %v2404 = vadd.f32 %v2193, %v2382
  %v2405 = vadd.f32 %v2194, %v2387
  %v2406 = vadd.f32 %v2195, %v2390
  %v2407 = vadd.f32 %v2196, %v2395
  %v2408 = vadd.f32 %v2197, %v2398
  %v2409 = vld [vmem:[%s0 + $0x160] sm:$0xf]
  %v2410 = vld [vmem:[%s0 + $0x164] sm:$0xf]
  %v2411 = vld [vmem:[%s0 + $0x168] sm:$0xf]
  %v2412 = vld [vmem:[%s0 + $0x16c] sm:$0xf]
  %v2413 = vld [vmem:[%s0 + $0x170] sm:$0xf]
  %v2414 = vld [vmem:[%s0 + $0x174] sm:$0xf]
  %v2415 = vld [vmem:[%s0 + $0x178] sm:$0xf]
  %v2416 = vld [vmem:[%s0 + $0x17c] sm:$0xf]
  %v2425 = vunpack.c.l.b16 %v2409
  %v2426 = vunpack.c.l.b16 %v2410
  %v2427 = vunpack.c.l.b16 %v2411
  %v2428 = vunpack.c.l.b16 %v2412
  %v2429 = vunpack.c.l.b16 %v2413
  %v2430 = vunpack.c.l.b16 %v2414
  %v2431 = vunpack.c.l.b16 %v2415
  %v2432 = vunpack.c.l.b16 %v2416
  %v2433 = vpack.c.b16 %v2426, %v2425
  %v2434 = vpack.c.b16 %v2428, %v2427
  %v2435 = vpack.c.b16 %v2430, %v2429
  %v2436 = vpack.c.b16 %v2432, %v2431
  %2441 = vmatprep.subr.bf16.mxu0 0
  %2442 = vmatpush1.bf16.msra.mxu0 %v120
  %2443 = vmatprep.subr.bf16.mxu0 0
  %2444 = vmatpush1.bf16.msra.mxu0 %v121
  %2445 = vmatprep.subr.bf16.mxu0 0
  %2446 = vmatpush1.bf16.msra.mxu0 %v122
  %2447 = vmatprep.subr.bf16.mxu0 0
  %2448 = vmatpush1.bf16.msra.mxu0 %v123
  %2449 = vmatprep.subr.bf16.mxu0 0
  %2450 = vmatpush1.bf16.msra.mxu0 %v124
  %2451 = vmatprep.subr.bf16.mxu0 0
  %2452 = vmatpush1.bf16.msra.mxu0 %v125
  %2453 = vmatprep.subr.bf16.mxu0 0
  %2454 = vmatpush1.bf16.msra.mxu0 %v126
  %2455 = vmatprep.subr.bf16.mxu0 0
  %2456 = vmatpush1.bf16.msra.mxu0 %v127
  %2457 = vmatprep.subr.bf16.mxu0 0
  %2458 = vmatpush1.bf16.msra.mxu0 0
  %2459 = vmatprep.subr.bf16.mxu0 0
  %2460 = vmatpush1.bf16.msra.mxu0 0
  %2461 = vmatprep.subr.bf16.mxu0 0
  %2462 = vmatpush1.bf16.msra.mxu0 0
  %2463 = vmatprep.subr.bf16.mxu0 0
  %2464 = vmatpush1.bf16.msra.mxu0 0
  %2465 = vmatprep.subr.bf16.mxu0 0
  %2466 = vmatpush1.bf16.msra.mxu0 0
  %2467 = vmatprep.subr.bf16.mxu0 0
  %2468 = vmatpush1.bf16.msra.mxu0 0
  %2469 = vmatprep.subr.bf16.mxu0 0
  %2470 = vmatpush1.bf16.msra.mxu0 0
  %2471 = vmatprep.subr.bf16.mxu0 0
  %2472 = vmatpush1.bf16.msra.mxu0 0
  %2473 = vmatprep.mubr.bf16.mxu0 0
  %2474 = vmatmul.mubr.bf16.gmra.mrb[0].mxu0 %v2433
  %v2475 = vpop.f32.mrb[0].mxu0
  %v2476 = vadd.f32 %v54, %v2475
  %v2477 = vpop.f32.mrb[0].mxu0
  %v2478 = vpop.f32.mrb[0].mxu0
  %v2479 = vadd.f32 %v54, %v2478
  %v2480 = vpop.f32.mrb[0].mxu0
  %2481 = vmatprep.mubr.bf16.mxu0 0
  %2482 = vmatmul.mubr.bf16.gmra.mrb[0].mxu0 %v2434
  %v2483 = vpop.f32.mrb[0].mxu0
  %v2484 = vadd.f32 %v54, %v2483
  %v2485 = vpop.f32.mrb[0].mxu0
  %v2486 = vpop.f32.mrb[0].mxu0
  %v2487 = vadd.f32 %v54, %v2486
  %v2488 = vpop.f32.mrb[0].mxu0
  %2489 = vmatprep.mubr.bf16.mxu0 0
  %2490 = vmatmul.mubr.bf16.gmra.mrb[0].mxu0 %v2435
  %v2491 = vpop.f32.mrb[0].mxu0
  %v2492 = vadd.f32 %v54, %v2491
  %v2493 = vpop.f32.mrb[0].mxu0
  %v2494 = vpop.f32.mrb[0].mxu0
  %v2495 = vadd.f32 %v54, %v2494
  %v2496 = vpop.f32.mrb[0].mxu0
  %2497 = vmatprep.mubr.bf16.mxu0 0
  %2498 = vmatmul.mubr.bf16.gmra.mrb[0].mxu0 %v2436
  %v2499 = vpop.f32.mrb[0].mxu0
  %v2500 = vadd.f32 %v54, %v2499
  %v2501 = vpop.f32.mrb[0].mxu0
  %v2502 = vpop.f32.mrb[0].mxu0
  %v2503 = vadd.f32 %v54, %v2502
  %v2504 = vpop.f32.mrb[0].mxu0
  %2505 = vdwg.mxu0
  %v2506 = vmax.f32 %v2476, 0.0
  %v2507 = vmax.f32 %v2479, 0.0
  %v2508 = vmax.f32 %v2484, 0.0
  %v2509 = vmax.f32 %v2487, 0.0
  %v2510 = vmax.f32 %v2492, 0.0
  %v2511 = vmax.f32 %v2495, 0.0
  %v2512 = vmax.f32 %v2500, 0.0
  %v2513 = vmax.f32 %v2503, 0.0
  %v2514 = vpack.c.bf16 %v2507, %v2506
  %v2515 = vpack.c.bf16 %v2509, %v2508
  %v2516 = vpack.c.bf16 %v2511, %v2510
  %v2517 = vpack.c.bf16 %v2513, %v2512
  %s2518 = scalar_lea.vmem %s3, 176
  %v2519 = vld [vmem:[%s2518] sm:$0xf]
  %v2520 = vld [vmem:[%s2518 + $0x4] sm:$0xf]
  %v2521 = vld [vmem:[%s2518 + $0x8] sm:$0xf]
  %v2522 = vld [vmem:[%s2518 + $0xc] sm:$0xf]
  %v2527 = vunpack.c.l.b16 %v2519
  %v2528 = vunpack.c.l.b16 %v2520
  %v2529 = vunpack.c.l.b16 %v2521
  %v2530 = vunpack.c.l.b16 %v2522
  %v2531 = vpack.c.b16 %v2528, %v2527
  %v2532 = vpack.c.b16 %v2530, %v2529
  %v2536 = vsel %vm343, %v2514, 0
  %v2539 = vsel %vm343, %v2515, 0
  %v2542 = vsel %vm343, %v2516, 0
  %v2545 = vsel %vm343, %v2517, 0
  %2547 = vmatprep.subr.bf16.mxu0 0
  %2548 = vmatpush1.bf16.msra.mxu0 %v2531
  %2549 = vmatprep.subr.bf16.mxu0 0
  %2550 = vmatpush1.bf16.msra.mxu0 %v2532
  %2551 = vmatprep.subr.bf16.mxu0 0
  %2552 = vmatpush1.bf16.msra.mxu0 0
  %2553 = vmatprep.subr.bf16.mxu0 0
  %2554 = vmatpush1.bf16.msra.mxu0 0
  %2555 = vmatprep.subr.bf16.mxu0 0
  %2556 = vmatpush1.bf16.msra.mxu0 0
  %2557 = vmatprep.subr.bf16.mxu0 0
  %2558 = vmatpush1.bf16.msra.mxu0 0
  %2559 = vmatprep.subr.bf16.mxu0 0
  %2560 = vmatpush1.bf16.msra.mxu0 0
  %2561 = vmatprep.subr.bf16.mxu0 0
  %2562 = vmatpush1.bf16.msra.mxu0 0
  %2563 = vmatprep.subr.bf16.mxu0 0
  %2564 = vmatpush1.bf16.msra.mxu0 0
  %2565 = vmatprep.subr.bf16.mxu0 0
  %2566 = vmatpush1.bf16.msra.mxu0 0
  %2567 = vmatprep.subr.bf16.mxu0 0
  %2568 = vmatpush1.bf16.msra.mxu0 0
  %2569 = vmatprep.subr.bf16.mxu0 0
  %2570 = vmatpush1.bf16.msra.mxu0 0
  %2571 = vmatprep.subr.bf16.mxu0 0
  %2572 = vmatpush1.bf16.msra.mxu0 0
  %2573 = vmatprep.subr.bf16.mxu0 0
  %2574 = vmatpush1.bf16.msra.mxu0 0
  %2575 = vmatprep.subr.bf16.mxu0 0
  %2576 = vmatpush1.bf16.msra.mxu0 0
  %2577 = vmatprep.subr.bf16.mxu0 0
  %2578 = vmatpush1.bf16.msra.mxu0 0
  %2579 = vmatprep.mubr.bf16.mxu0 0
  %2580 = vmatmul.mubr.bf16.gmra.mrb[0].mxu0 %v2536
  %v2581 = vpop.f32.mrb[0].mxu0
  %v2582 = vadd.f32 0.0, %v2581
  %v2583 = vpop.f32.mrb[0].mxu0
  %v2584 = vpop.f32.mrb[0].mxu0
  %v2585 = vadd.f32 0.0, %v2584
  %v2586 = vpop.f32.mrb[0].mxu0
  %2587 = vmatprep.mubr.bf16.mxu0 0
  %2588 = vmatmul.mubr.bf16.gmra.mrb[0].mxu0 %v2539
  %v2589 = vpop.f32.mrb[0].mxu0
  %v2590 = vadd.f32 0.0, %v2589
  %v2591 = vpop.f32.mrb[0].mxu0
  %v2592 = vpop.f32.mrb[0].mxu0
  %v2593 = vadd.f32 0.0, %v2592
  %v2594 = vpop.f32.mrb[0].mxu0
  %2595 = vmatprep.mubr.bf16.mxu0 0
  %2596 = vmatmul.mubr.bf16.gmra.mrb[0].mxu0 %v2542
  %v2597 = vpop.f32.mrb[0].mxu0
  %v2598 = vadd.f32 0.0, %v2597
  %v2599 = vpop.f32.mrb[0].mxu0
  %v2600 = vpop.f32.mrb[0].mxu0
  %v2601 = vadd.f32 0.0, %v2600
  %v2602 = vpop.f32.mrb[0].mxu0
  %2603 = vmatprep.mubr.bf16.mxu0 0
  %2604 = vmatmul.mubr.bf16.gmra.mrb[0].mxu0 %v2545
  %v2605 = vpop.f32.mrb[0].mxu0
  %v2606 = vadd.f32 0.0, %v2605
  %v2607 = vpop.f32.mrb[0].mxu0
  %v2608 = vpop.f32.mrb[0].mxu0
  %v2609 = vadd.f32 0.0, %v2608
  %v2610 = vpop.f32.mrb[0].mxu0
  %2611 = vdwg.mxu0
  %v2612 = vadd.f32 %v2401, %v2582
  %v2613 = vadd.f32 %v2402, %v2585
  %v2614 = vadd.f32 %v2403, %v2590
  %v2615 = vadd.f32 %v2404, %v2593
  %v2616 = vadd.f32 %v2405, %v2598
  %v2617 = vadd.f32 %v2406, %v2601
  %v2618 = vadd.f32 %v2407, %v2606
  %v2619 = vadd.f32 %v2408, %v2609
  %v2620 = vld [vmem:[%s0 + $0x180] sm:$0xf]
  %v2621 = vld [vmem:[%s0 + $0x184] sm:$0xf]
  %v2622 = vld [vmem:[%s0 + $0x188] sm:$0xf]
  %v2623 = vld [vmem:[%s0 + $0x18c] sm:$0xf]
  %v2624 = vld [vmem:[%s0 + $0x190] sm:$0xf]
  %v2625 = vld [vmem:[%s0 + $0x194] sm:$0xf]
  %v2626 = vld [vmem:[%s0 + $0x198] sm:$0xf]
  %v2627 = vld [vmem:[%s0 + $0x19c] sm:$0xf]
  %v2636 = vunpack.c.l.b16 %v2620
  %v2637 = vunpack.c.l.b16 %v2621
  %v2638 = vunpack.c.l.b16 %v2622
  %v2639 = vunpack.c.l.b16 %v2623
  %v2640 = vunpack.c.l.b16 %v2624
  %v2641 = vunpack.c.l.b16 %v2625
  %v2642 = vunpack.c.l.b16 %v2626
  %v2643 = vunpack.c.l.b16 %v2627
  %v2644 = vpack.c.b16 %v2637, %v2636
  %v2645 = vpack.c.b16 %v2639, %v2638
  %v2646 = vpack.c.b16 %v2641, %v2640
  %v2647 = vpack.c.b16 %v2643, %v2642
  %2652 = vmatprep.subr.bf16.mxu0 0
  %2653 = vmatpush1.bf16.msra.mxu0 %v120
  %2654 = vmatprep.subr.bf16.mxu0 0
  %2655 = vmatpush1.bf16.msra.mxu0 %v121
  %2656 = vmatprep.subr.bf16.mxu0 0
  %2657 = vmatpush1.bf16.msra.mxu0 %v122
  %2658 = vmatprep.subr.bf16.mxu0 0
  %2659 = vmatpush1.bf16.msra.mxu0 %v123
  %2660 = vmatprep.subr.bf16.mxu0 0
  %2661 = vmatpush1.bf16.msra.mxu0 %v124
  %2662 = vmatprep.subr.bf16.mxu0 0
  %2663 = vmatpush1.bf16.msra.mxu0 %v125
  %2664 = vmatprep.subr.bf16.mxu0 0
  %2665 = vmatpush1.bf16.msra.mxu0 %v126
  %2666 = vmatprep.subr.bf16.mxu0 0
  %2667 = vmatpush1.bf16.msra.mxu0 %v127
  %2668 = vmatprep.subr.bf16.mxu0 0
  %2669 = vmatpush1.bf16.msra.mxu0 0
  %2670 = vmatprep.subr.bf16.mxu0 0
  %2671 = vmatpush1.bf16.msra.mxu0 0
  %2672 = vmatprep.subr.bf16.mxu0 0
  %2673 = vmatpush1.bf16.msra.mxu0 0
  %2674 = vmatprep.subr.bf16.mxu0 0
  %2675 = vmatpush1.bf16.msra.mxu0 0
  %2676 = vmatprep.subr.bf16.mxu0 0
  %2677 = vmatpush1.bf16.msra.mxu0 0
  %2678 = vmatprep.subr.bf16.mxu0 0
  %2679 = vmatpush1.bf16.msra.mxu0 0
  %2680 = vmatprep.subr.bf16.mxu0 0
  %2681 = vmatpush1.bf16.msra.mxu0 0
  %2682 = vmatprep.subr.bf16.mxu0 0
  %2683 = vmatpush1.bf16.msra.mxu0 0
  %2684 = vmatprep.mubr.bf16.mxu0 0
  %2685 = vmatmul.mubr.bf16.gmra.mrb[0].mxu0 %v2644
  %v2686 = vpop.f32.mrb[0].mxu0
  %v2687 = vadd.f32 %v54, %v2686
  %v2688 = vpop.f32.mrb[0].mxu0
  %v2689 = vpop.f32.mrb[0].mxu0
  %v2690 = vadd.f32 %v54, %v2689
  %v2691 = vpop.f32.mrb[0].mxu0
  %2692 = vmatprep.mubr.bf16.mxu0 0
  %2693 = vmatmul.mubr.bf16.gmra.mrb[0].mxu0 %v2645
  %v2694 = vpop.f32.mrb[0].mxu0
  %v2695 = vadd.f32 %v54, %v2694
  %v2696 = vpop.f32.mrb[0].mxu0
  %v2697 = vpop.f32.mrb[0].mxu0
  %v2698 = vadd.f32 %v54, %v2697
  %v2699 = vpop.f32.mrb[0].mxu0
  %2700 = vmatprep.mubr.bf16.mxu0 0
  %2701 = vmatmul.mubr.bf16.gmra.mrb[0].mxu0 %v2646
  %v2702 = vpop.f32.mrb[0].mxu0
  %v2703 = vadd.f32 %v54, %v2702
  %v2704 = vpop.f32.mrb[0].mxu0
  %v2705 = vpop.f32.mrb[0].mxu0
  %v2706 = vadd.f32 %v54, %v2705
  %v2707 = vpop.f32.mrb[0].mxu0
  %2708 = vmatprep.mubr.bf16.mxu0 0
  %2709 = vmatmul.mubr.bf16.gmra.mrb[0].mxu0 %v2647
  %v2710 = vpop.f32.mrb[0].mxu0
  %v2711 = vadd.f32 %v54, %v2710
  %v2712 = vpop.f32.mrb[0].mxu0
  %v2713 = vpop.f32.mrb[0].mxu0
  %v2714 = vadd.f32 %v54, %v2713
  %v2715 = vpop.f32.mrb[0].mxu0
  %2716 = vdwg.mxu0
  %v2717 = vmax.f32 %v2687, 0.0
  %v2718 = vmax.f32 %v2690, 0.0
  %v2719 = vmax.f32 %v2695, 0.0
  %v2720 = vmax.f32 %v2698, 0.0
  %v2721 = vmax.f32 %v2703, 0.0
  %v2722 = vmax.f32 %v2706, 0.0
  %v2723 = vmax.f32 %v2711, 0.0
  %v2724 = vmax.f32 %v2714, 0.0
  %v2725 = vpack.c.bf16 %v2718, %v2717
  %v2726 = vpack.c.bf16 %v2720, %v2719
  %v2727 = vpack.c.bf16 %v2722, %v2721
  %v2728 = vpack.c.bf16 %v2724, %v2723
  %s2729 = scalar_lea.vmem %s3, 192
  %v2730 = vld [vmem:[%s2729] sm:$0xf]
  %v2731 = vld [vmem:[%s2729 + $0x4] sm:$0xf]
  %v2732 = vld [vmem:[%s2729 + $0x8] sm:$0xf]
  %v2733 = vld [vmem:[%s2729 + $0xc] sm:$0xf]
  %v2738 = vunpack.c.l.b16 %v2730
  %v2739 = vunpack.c.l.b16 %v2731
  %v2740 = vunpack.c.l.b16 %v2732
  %v2741 = vunpack.c.l.b16 %v2733
  %v2742 = vpack.c.b16 %v2739, %v2738
  %v2743 = vpack.c.b16 %v2741, %v2740
  %v2747 = vsel %vm343, %v2725, 0
  %v2750 = vsel %vm343, %v2726, 0
  %v2753 = vsel %vm343, %v2727, 0
  %v2756 = vsel %vm343, %v2728, 0
  %2758 = vmatprep.subr.bf16.mxu0 0
  %2759 = vmatpush1.bf16.msra.mxu0 %v2742
  %2760 = vmatprep.subr.bf16.mxu0 0
  %2761 = vmatpush1.bf16.msra.mxu0 %v2743
  %2762 = vmatprep.subr.bf16.mxu0 0
  %2763 = vmatpush1.bf16.msra.mxu0 0
  %2764 = vmatprep.subr.bf16.mxu0 0
  %2765 = vmatpush1.bf16.msra.mxu0 0
  %2766 = vmatprep.subr.bf16.mxu0 0
  %2767 = vmatpush1.bf16.msra.mxu0 0
  %2768 = vmatprep.subr.bf16.mxu0 0
  %2769 = vmatpush1.bf16.msra.mxu0 0
  %2770 = vmatprep.subr.bf16.mxu0 0
  %2771 = vmatpush1.bf16.msra.mxu0 0
  %2772 = vmatprep.subr.bf16.mxu0 0
  %2773 = vmatpush1.bf16.msra.mxu0 0
  %2774 = vmatprep.subr.bf16.mxu0 0
  %2775 = vmatpush1.bf16.msra.mxu0 0
  %2776 = vmatprep.subr.bf16.mxu0 0
  %2777 = vmatpush1.bf16.msra.mxu0 0
  %2778 = vmatprep.subr.bf16.mxu0 0
  %2779 = vmatpush1.bf16.msra.mxu0 0
  %2780 = vmatprep.subr.bf16.mxu0 0
  %2781 = vmatpush1.bf16.msra.mxu0 0
  %2782 = vmatprep.subr.bf16.mxu0 0
  %2783 = vmatpush1.bf16.msra.mxu0 0
  %2784 = vmatprep.subr.bf16.mxu0 0
  %2785 = vmatpush1.bf16.msra.mxu0 0
  %2786 = vmatprep.subr.bf16.mxu0 0
  %2787 = vmatpush1.bf16.msra.mxu0 0
  %2788 = vmatprep.subr.bf16.mxu0 0
  %2789 = vmatpush1.bf16.msra.mxu0 0
  %2790 = vmatprep.mubr.bf16.mxu0 0
  %2791 = vmatmul.mubr.bf16.gmra.mrb[0].mxu0 %v2747
  %v2792 = vpop.f32.mrb[0].mxu0
  %v2793 = vadd.f32 0.0, %v2792
  %v2794 = vpop.f32.mrb[0].mxu0
  %v2795 = vpop.f32.mrb[0].mxu0
  %v2796 = vadd.f32 0.0, %v2795
  %v2797 = vpop.f32.mrb[0].mxu0
  %2798 = vmatprep.mubr.bf16.mxu0 0
  %2799 = vmatmul.mubr.bf16.gmra.mrb[0].mxu0 %v2750
  %v2800 = vpop.f32.mrb[0].mxu0
  %v2801 = vadd.f32 0.0, %v2800
  %v2802 = vpop.f32.mrb[0].mxu0
  %v2803 = vpop.f32.mrb[0].mxu0
  %v2804 = vadd.f32 0.0, %v2803
  %v2805 = vpop.f32.mrb[0].mxu0
  %2806 = vmatprep.mubr.bf16.mxu0 0
  %2807 = vmatmul.mubr.bf16.gmra.mrb[0].mxu0 %v2753
  %v2808 = vpop.f32.mrb[0].mxu0
  %v2809 = vadd.f32 0.0, %v2808
  %v2810 = vpop.f32.mrb[0].mxu0
  %v2811 = vpop.f32.mrb[0].mxu0
  %v2812 = vadd.f32 0.0, %v2811
  %v2813 = vpop.f32.mrb[0].mxu0
  %2814 = vmatprep.mubr.bf16.mxu0 0
  %2815 = vmatmul.mubr.bf16.gmra.mrb[0].mxu0 %v2756
  %v2816 = vpop.f32.mrb[0].mxu0
  %v2817 = vadd.f32 0.0, %v2816
  %v2818 = vpop.f32.mrb[0].mxu0
  %v2819 = vpop.f32.mrb[0].mxu0
  %v2820 = vadd.f32 0.0, %v2819
  %v2821 = vpop.f32.mrb[0].mxu0
  %2822 = vdwg.mxu0
  %v2823 = vadd.f32 %v2612, %v2793
  %v2824 = vadd.f32 %v2613, %v2796
  %v2825 = vadd.f32 %v2614, %v2801
  %v2826 = vadd.f32 %v2615, %v2804
  %v2827 = vadd.f32 %v2616, %v2809
  %v2828 = vadd.f32 %v2617, %v2812
  %v2829 = vadd.f32 %v2618, %v2817
  %v2830 = vadd.f32 %v2619, %v2820
  %v2831 = vld [vmem:[%s0 + $0x1a0] sm:$0xf]
  %v2832 = vld [vmem:[%s0 + $0x1a4] sm:$0xf]
  %v2833 = vld [vmem:[%s0 + $0x1a8] sm:$0xf]
  %v2834 = vld [vmem:[%s0 + $0x1ac] sm:$0xf]
  %v2835 = vld [vmem:[%s0 + $0x1b0] sm:$0xf]
  %v2836 = vld [vmem:[%s0 + $0x1b4] sm:$0xf]
  %v2837 = vld [vmem:[%s0 + $0x1b8] sm:$0xf]
  %v2838 = vld [vmem:[%s0 + $0x1bc] sm:$0xf]
  %v2847 = vunpack.c.l.b16 %v2831
  %v2848 = vunpack.c.l.b16 %v2832
  %v2849 = vunpack.c.l.b16 %v2833
  %v2850 = vunpack.c.l.b16 %v2834
  %v2851 = vunpack.c.l.b16 %v2835
  %v2852 = vunpack.c.l.b16 %v2836
  %v2853 = vunpack.c.l.b16 %v2837
  %v2854 = vunpack.c.l.b16 %v2838
  %v2855 = vpack.c.b16 %v2848, %v2847
  %v2856 = vpack.c.b16 %v2850, %v2849
  %v2857 = vpack.c.b16 %v2852, %v2851
  %v2858 = vpack.c.b16 %v2854, %v2853
  %2863 = vmatprep.subr.bf16.mxu0 0
  %2864 = vmatpush1.bf16.msra.mxu0 %v120
  %2865 = vmatprep.subr.bf16.mxu0 0
  %2866 = vmatpush1.bf16.msra.mxu0 %v121
  %2867 = vmatprep.subr.bf16.mxu0 0
  %2868 = vmatpush1.bf16.msra.mxu0 %v122
  %2869 = vmatprep.subr.bf16.mxu0 0
  %2870 = vmatpush1.bf16.msra.mxu0 %v123
  %2871 = vmatprep.subr.bf16.mxu0 0
  %2872 = vmatpush1.bf16.msra.mxu0 %v124
  %2873 = vmatprep.subr.bf16.mxu0 0
  %2874 = vmatpush1.bf16.msra.mxu0 %v125
  %2875 = vmatprep.subr.bf16.mxu0 0
  %2876 = vmatpush1.bf16.msra.mxu0 %v126
  %2877 = vmatprep.subr.bf16.mxu0 0
  %2878 = vmatpush1.bf16.msra.mxu0 %v127
  %2879 = vmatprep.subr.bf16.mxu0 0
  %2880 = vmatpush1.bf16.msra.mxu0 0
  %2881 = vmatprep.subr.bf16.mxu0 0
  %2882 = vmatpush1.bf16.msra.mxu0 0
  %2883 = vmatprep.subr.bf16.mxu0 0
  %2884 = vmatpush1.bf16.msra.mxu0 0
  %2885 = vmatprep.subr.bf16.mxu0 0
  %2886 = vmatpush1.bf16.msra.mxu0 0
  %2887 = vmatprep.subr.bf16.mxu0 0
  %2888 = vmatpush1.bf16.msra.mxu0 0
  %2889 = vmatprep.subr.bf16.mxu0 0
  %2890 = vmatpush1.bf16.msra.mxu0 0
  %2891 = vmatprep.subr.bf16.mxu0 0
  %2892 = vmatpush1.bf16.msra.mxu0 0
  %2893 = vmatprep.subr.bf16.mxu0 0
  %2894 = vmatpush1.bf16.msra.mxu0 0
  %2895 = vmatprep.mubr.bf16.mxu0 0
  %2896 = vmatmul.mubr.bf16.gmra.mrb[0].mxu0 %v2855
  %v2897 = vpop.f32.mrb[0].mxu0
  %v2898 = vadd.f32 %v54, %v2897
  %v2899 = vpop.f32.mrb[0].mxu0
  %v2900 = vpop.f32.mrb[0].mxu0
  %v2901 = vadd.f32 %v54, %v2900
  %v2902 = vpop.f32.mrb[0].mxu0
  %2903 = vmatprep.mubr.bf16.mxu0 0
  %2904 = vmatmul.mubr.bf16.gmra.mrb[0].mxu0 %v2856
  %v2905 = vpop.f32.mrb[0].mxu0
  %v2906 = vadd.f32 %v54, %v2905
  %v2907 = vpop.f32.mrb[0].mxu0
  %v2908 = vpop.f32.mrb[0].mxu0
  %v2909 = vadd.f32 %v54, %v2908
  %v2910 = vpop.f32.mrb[0].mxu0
  %2911 = vmatprep.mubr.bf16.mxu0 0
  %2912 = vmatmul.mubr.bf16.gmra.mrb[0].mxu0 %v2857
  %v2913 = vpop.f32.mrb[0].mxu0
  %v2914 = vadd.f32 %v54, %v2913
  %v2915 = vpop.f32.mrb[0].mxu0
  %v2916 = vpop.f32.mrb[0].mxu0
  %v2917 = vadd.f32 %v54, %v2916
  %v2918 = vpop.f32.mrb[0].mxu0
  %2919 = vmatprep.mubr.bf16.mxu0 0
  %2920 = vmatmul.mubr.bf16.gmra.mrb[0].mxu0 %v2858
  %v2921 = vpop.f32.mrb[0].mxu0
  %v2922 = vadd.f32 %v54, %v2921
  %v2923 = vpop.f32.mrb[0].mxu0
  %v2924 = vpop.f32.mrb[0].mxu0
  %v2925 = vadd.f32 %v54, %v2924
  %v2926 = vpop.f32.mrb[0].mxu0
  %2927 = vdwg.mxu0
  %v2928 = vmax.f32 %v2898, 0.0
  %v2929 = vmax.f32 %v2901, 0.0
  %v2930 = vmax.f32 %v2906, 0.0
  %v2931 = vmax.f32 %v2909, 0.0
  %v2932 = vmax.f32 %v2914, 0.0
  %v2933 = vmax.f32 %v2917, 0.0
  %v2934 = vmax.f32 %v2922, 0.0
  %v2935 = vmax.f32 %v2925, 0.0
  %v2936 = vpack.c.bf16 %v2929, %v2928
  %v2937 = vpack.c.bf16 %v2931, %v2930
  %v2938 = vpack.c.bf16 %v2933, %v2932
  %v2939 = vpack.c.bf16 %v2935, %v2934
  %s2940 = scalar_lea.vmem %s3, 208
  %v2941 = vld [vmem:[%s2940] sm:$0xf]
  %v2942 = vld [vmem:[%s2940 + $0x4] sm:$0xf]
  %v2943 = vld [vmem:[%s2940 + $0x8] sm:$0xf]
  %v2944 = vld [vmem:[%s2940 + $0xc] sm:$0xf]
  %v2949 = vunpack.c.l.b16 %v2941
  %v2950 = vunpack.c.l.b16 %v2942
  %v2951 = vunpack.c.l.b16 %v2943
  %v2952 = vunpack.c.l.b16 %v2944
  %v2953 = vpack.c.b16 %v2950, %v2949
  %v2954 = vpack.c.b16 %v2952, %v2951
  %v2958 = vsel %vm343, %v2936, 0
  %v2961 = vsel %vm343, %v2937, 0
  %v2964 = vsel %vm343, %v2938, 0
  %v2967 = vsel %vm343, %v2939, 0
  %2969 = vmatprep.subr.bf16.mxu0 0
  %2970 = vmatpush1.bf16.msra.mxu0 %v2953
  %2971 = vmatprep.subr.bf16.mxu0 0
  %2972 = vmatpush1.bf16.msra.mxu0 %v2954
  %2973 = vmatprep.subr.bf16.mxu0 0
  %2974 = vmatpush1.bf16.msra.mxu0 0
  %2975 = vmatprep.subr.bf16.mxu0 0
  %2976 = vmatpush1.bf16.msra.mxu0 0
  %2977 = vmatprep.subr.bf16.mxu0 0
  %2978 = vmatpush1.bf16.msra.mxu0 0
  %2979 = vmatprep.subr.bf16.mxu0 0
  %2980 = vmatpush1.bf16.msra.mxu0 0
  %2981 = vmatprep.subr.bf16.mxu0 0
  %2982 = vmatpush1.bf16.msra.mxu0 0
  %2983 = vmatprep.subr.bf16.mxu0 0
  %2984 = vmatpush1.bf16.msra.mxu0 0
  %2985 = vmatprep.subr.bf16.mxu0 0
  %2986 = vmatpush1.bf16.msra.mxu0 0
  %2987 = vmatprep.subr.bf16.mxu0 0
  %2988 = vmatpush1.bf16.msra.mxu0 0
  %2989 = vmatprep.subr.bf16.mxu0 0
  %2990 = vmatpush1.bf16.msra.mxu0 0
  %2991 = vmatprep.subr.bf16.mxu0 0
  %2992 = vmatpush1.bf16.msra.mxu0 0
  %2993 = vmatprep.subr.bf16.mxu0 0
  %2994 = vmatpush1.bf16.msra.mxu0 0
  %2995 = vmatprep.subr.bf16.mxu0 0
  %2996 = vmatpush1.bf16.msra.mxu0 0
  %2997 = vmatprep.subr.bf16.mxu0 0
  %2998 = vmatpush1.bf16.msra.mxu0 0
  %2999 = vmatprep.subr.bf16.mxu0 0
  %3000 = vmatpush1.bf16.msra.mxu0 0
  %3001 = vmatprep.mubr.bf16.mxu0 0
  %3002 = vmatmul.mubr.bf16.gmra.mrb[0].mxu0 %v2958
  %v3003 = vpop.f32.mrb[0].mxu0
  %v3004 = vadd.f32 0.0, %v3003
  %v3005 = vpop.f32.mrb[0].mxu0
  %v3006 = vpop.f32.mrb[0].mxu0
  %v3007 = vadd.f32 0.0, %v3006
  %v3008 = vpop.f32.mrb[0].mxu0
  %3009 = vmatprep.mubr.bf16.mxu0 0
  %3010 = vmatmul.mubr.bf16.gmra.mrb[0].mxu0 %v2961
  %v3011 = vpop.f32.mrb[0].mxu0
  %v3012 = vadd.f32 0.0, %v3011
  %v3013 = vpop.f32.mrb[0].mxu0
  %v3014 = vpop.f32.mrb[0].mxu0
  %v3015 = vadd.f32 0.0, %v3014
  %v3016 = vpop.f32.mrb[0].mxu0
  %3017 = vmatprep.mubr.bf16.mxu0 0
  %3018 = vmatmul.mubr.bf16.gmra.mrb[0].mxu0 %v2964
  %v3019 = vpop.f32.mrb[0].mxu0
  %v3020 = vadd.f32 0.0, %v3019
  %v3021 = vpop.f32.mrb[0].mxu0
  %v3022 = vpop.f32.mrb[0].mxu0
  %v3023 = vadd.f32 0.0, %v3022
  %v3024 = vpop.f32.mrb[0].mxu0
  %3025 = vmatprep.mubr.bf16.mxu0 0
  %3026 = vmatmul.mubr.bf16.gmra.mrb[0].mxu0 %v2967
  %v3027 = vpop.f32.mrb[0].mxu0
  %v3028 = vadd.f32 0.0, %v3027
  %v3029 = vpop.f32.mrb[0].mxu0
  %v3030 = vpop.f32.mrb[0].mxu0
  %v3031 = vadd.f32 0.0, %v3030
  %v3032 = vpop.f32.mrb[0].mxu0
  %3033 = vdwg.mxu0
  %v3034 = vadd.f32 %v2823, %v3004
  %v3035 = vadd.f32 %v2824, %v3007
  %v3036 = vadd.f32 %v2825, %v3012
  %v3037 = vadd.f32 %v2826, %v3015
  %v3038 = vadd.f32 %v2827, %v3020
  %v3039 = vadd.f32 %v2828, %v3023
  %v3040 = vadd.f32 %v2829, %v3028
  %v3041 = vadd.f32 %v2830, %v3031
  %v3042 = vld [vmem:[%s0 + $0x1c0] sm:$0xf]
  %v3043 = vld [vmem:[%s0 + $0x1c4] sm:$0xf]
  %v3044 = vld [vmem:[%s0 + $0x1c8] sm:$0xf]
  %v3045 = vld [vmem:[%s0 + $0x1cc] sm:$0xf]
  %v3046 = vld [vmem:[%s0 + $0x1d0] sm:$0xf]
  %v3047 = vld [vmem:[%s0 + $0x1d4] sm:$0xf]
  %v3048 = vld [vmem:[%s0 + $0x1d8] sm:$0xf]
  %v3049 = vld [vmem:[%s0 + $0x1dc] sm:$0xf]
  %v3058 = vunpack.c.l.b16 %v3042
  %v3059 = vunpack.c.l.b16 %v3043
  %v3060 = vunpack.c.l.b16 %v3044
  %v3061 = vunpack.c.l.b16 %v3045
  %v3062 = vunpack.c.l.b16 %v3046
  %v3063 = vunpack.c.l.b16 %v3047
  %v3064 = vunpack.c.l.b16 %v3048
  %v3065 = vunpack.c.l.b16 %v3049
  %v3066 = vpack.c.b16 %v3059, %v3058
  %v3067 = vpack.c.b16 %v3061, %v3060
  %v3068 = vpack.c.b16 %v3063, %v3062
  %v3069 = vpack.c.b16 %v3065, %v3064
  %3074 = vmatprep.subr.bf16.mxu0 0
  %3075 = vmatpush1.bf16.msra.mxu0 %v120
  %3076 = vmatprep.subr.bf16.mxu0 0
  %3077 = vmatpush1.bf16.msra.mxu0 %v121
  %3078 = vmatprep.subr.bf16.mxu0 0
  %3079 = vmatpush1.bf16.msra.mxu0 %v122
  %3080 = vmatprep.subr.bf16.mxu0 0
  %3081 = vmatpush1.bf16.msra.mxu0 %v123
  %3082 = vmatprep.subr.bf16.mxu0 0
  %3083 = vmatpush1.bf16.msra.mxu0 %v124
  %3084 = vmatprep.subr.bf16.mxu0 0
  %3085 = vmatpush1.bf16.msra.mxu0 %v125
  %3086 = vmatprep.subr.bf16.mxu0 0
  %3087 = vmatpush1.bf16.msra.mxu0 %v126
  %3088 = vmatprep.subr.bf16.mxu0 0
  %3089 = vmatpush1.bf16.msra.mxu0 %v127
  %3090 = vmatprep.subr.bf16.mxu0 0
  %3091 = vmatpush1.bf16.msra.mxu0 0
  %3092 = vmatprep.subr.bf16.mxu0 0
  %3093 = vmatpush1.bf16.msra.mxu0 0
  %3094 = vmatprep.subr.bf16.mxu0 0
  %3095 = vmatpush1.bf16.msra.mxu0 0
  %3096 = vmatprep.subr.bf16.mxu0 0
  %3097 = vmatpush1.bf16.msra.mxu0 0
  %3098 = vmatprep.subr.bf16.mxu0 0
  %3099 = vmatpush1.bf16.msra.mxu0 0
  %3100 = vmatprep.subr.bf16.mxu0 0
  %3101 = vmatpush1.bf16.msra.mxu0 0
  %3102 = vmatprep.subr.bf16.mxu0 0
  %3103 = vmatpush1.bf16.msra.mxu0 0
  %3104 = vmatprep.subr.bf16.mxu0 0
  %3105 = vmatpush1.bf16.msra.mxu0 0
  %3106 = vmatprep.mubr.bf16.mxu0 0
  %3107 = vmatmul.mubr.bf16.gmra.mrb[0].mxu0 %v3066
  %v3108 = vpop.f32.mrb[0].mxu0
  %v3109 = vadd.f32 %v54, %v3108
  %v3110 = vpop.f32.mrb[0].mxu0
  %v3111 = vpop.f32.mrb[0].mxu0
  %v3112 = vadd.f32 %v54, %v3111
  %v3113 = vpop.f32.mrb[0].mxu0
  %3114 = vmatprep.mubr.bf16.mxu0 0
  %3115 = vmatmul.mubr.bf16.gmra.mrb[0].mxu0 %v3067
  %v3116 = vpop.f32.mrb[0].mxu0
  %v3117 = vadd.f32 %v54, %v3116
  %v3118 = vpop.f32.mrb[0].mxu0
  %v3119 = vpop.f32.mrb[0].mxu0
  %v3120 = vadd.f32 %v54, %v3119
  %v3121 = vpop.f32.mrb[0].mxu0
  %3122 = vmatprep.mubr.bf16.mxu0 0
  %3123 = vmatmul.mubr.bf16.gmra.mrb[0].mxu0 %v3068
  %v3124 = vpop.f32.mrb[0].mxu0
  %v3125 = vadd.f32 %v54, %v3124
  %v3126 = vpop.f32.mrb[0].mxu0
  %v3127 = vpop.f32.mrb[0].mxu0
  %v3128 = vadd.f32 %v54, %v3127
  %v3129 = vpop.f32.mrb[0].mxu0
  %3130 = vmatprep.mubr.bf16.mxu0 0
  %3131 = vmatmul.mubr.bf16.gmra.mrb[0].mxu0 %v3069
  %v3132 = vpop.f32.mrb[0].mxu0
  %v3133 = vadd.f32 %v54, %v3132
  %v3134 = vpop.f32.mrb[0].mxu0
  %v3135 = vpop.f32.mrb[0].mxu0
  %v3136 = vadd.f32 %v54, %v3135
  %v3137 = vpop.f32.mrb[0].mxu0
  %3138 = vdwg.mxu0
  %v3139 = vmax.f32 %v3109, 0.0
  %v3140 = vmax.f32 %v3112, 0.0
  %v3141 = vmax.f32 %v3117, 0.0
  %v3142 = vmax.f32 %v3120, 0.0
  %v3143 = vmax.f32 %v3125, 0.0
  %v3144 = vmax.f32 %v3128, 0.0
  %v3145 = vmax.f32 %v3133, 0.0
  %v3146 = vmax.f32 %v3136, 0.0
  %v3147 = vpack.c.bf16 %v3140, %v3139
  %v3148 = vpack.c.bf16 %v3142, %v3141
  %v3149 = vpack.c.bf16 %v3144, %v3143
  %v3150 = vpack.c.bf16 %v3146, %v3145
  %s3151 = scalar_lea.vmem %s3, 224
  %v3152 = vld [vmem:[%s3151] sm:$0xf]
  %v3153 = vld [vmem:[%s3151 + $0x4] sm:$0xf]
  %v3154 = vld [vmem:[%s3151 + $0x8] sm:$0xf]
  %v3155 = vld [vmem:[%s3151 + $0xc] sm:$0xf]
  %v3160 = vunpack.c.l.b16 %v3152
  %v3161 = vunpack.c.l.b16 %v3153
  %v3162 = vunpack.c.l.b16 %v3154
  %v3163 = vunpack.c.l.b16 %v3155
  %v3164 = vpack.c.b16 %v3161, %v3160
  %v3165 = vpack.c.b16 %v3163, %v3162
  %v3169 = vsel %vm343, %v3147, 0
  %v3172 = vsel %vm343, %v3148, 0
  %v3175 = vsel %vm343, %v3149, 0
  %v3178 = vsel %vm343, %v3150, 0
  %3180 = vmatprep.subr.bf16.mxu0 0
  %3181 = vmatpush1.bf16.msra.mxu0 %v3164
  %3182 = vmatprep.subr.bf16.mxu0 0
  %3183 = vmatpush1.bf16.msra.mxu0 %v3165
  %3184 = vmatprep.subr.bf16.mxu0 0
  %3185 = vmatpush1.bf16.msra.mxu0 0
  %3186 = vmatprep.subr.bf16.mxu0 0
  %3187 = vmatpush1.bf16.msra.mxu0 0
  %3188 = vmatprep.subr.bf16.mxu0 0
  %3189 = vmatpush1.bf16.msra.mxu0 0
  %3190 = vmatprep.subr.bf16.mxu0 0
  %3191 = vmatpush1.bf16.msra.mxu0 0
  %3192 = vmatprep.subr.bf16.mxu0 0
  %3193 = vmatpush1.bf16.msra.mxu0 0
  %3194 = vmatprep.subr.bf16.mxu0 0
  %3195 = vmatpush1.bf16.msra.mxu0 0
  %3196 = vmatprep.subr.bf16.mxu0 0
  %3197 = vmatpush1.bf16.msra.mxu0 0
  %3198 = vmatprep.subr.bf16.mxu0 0
  %3199 = vmatpush1.bf16.msra.mxu0 0
  %3200 = vmatprep.subr.bf16.mxu0 0
  %3201 = vmatpush1.bf16.msra.mxu0 0
  %3202 = vmatprep.subr.bf16.mxu0 0
  %3203 = vmatpush1.bf16.msra.mxu0 0
  %3204 = vmatprep.subr.bf16.mxu0 0
  %3205 = vmatpush1.bf16.msra.mxu0 0
  %3206 = vmatprep.subr.bf16.mxu0 0
  %3207 = vmatpush1.bf16.msra.mxu0 0
  %3208 = vmatprep.subr.bf16.mxu0 0
  %3209 = vmatpush1.bf16.msra.mxu0 0
  %3210 = vmatprep.subr.bf16.mxu0 0
  %3211 = vmatpush1.bf16.msra.mxu0 0
  %3212 = vmatprep.mubr.bf16.mxu0 0
  %3213 = vmatmul.mubr.bf16.gmra.mrb[0].mxu0 %v3169
  %v3214 = vpop.f32.mrb[0].mxu0
  %v3215 = vadd.f32 0.0, %v3214
  %v3216 = vpop.f32.mrb[0].mxu0
  %v3217 = vpop.f32.mrb[0].mxu0
  %v3218 = vadd.f32 0.0, %v3217
  %v3219 = vpop.f32.mrb[0].mxu0
  %3220 = vmatprep.mubr.bf16.mxu0 0
  %3221 = vmatmul.mubr.bf16.gmra.mrb[0].mxu0 %v3172
  %v3222 = vpop.f32.mrb[0].mxu0
  %v3223 = vadd.f32 0.0, %v3222
  %v3224 = vpop.f32.mrb[0].mxu0
  %v3225 = vpop.f32.mrb[0].mxu0
  %v3226 = vadd.f32 0.0, %v3225
  %v3227 = vpop.f32.mrb[0].mxu0
  %3228 = vmatprep.mubr.bf16.mxu0 0
  %3229 = vmatmul.mubr.bf16.gmra.mrb[0].mxu0 %v3175
  %v3230 = vpop.f32.mrb[0].mxu0
  %v3231 = vadd.f32 0.0, %v3230
  %v3232 = vpop.f32.mrb[0].mxu0
  %v3233 = vpop.f32.mrb[0].mxu0
  %v3234 = vadd.f32 0.0, %v3233
  %v3235 = vpop.f32.mrb[0].mxu0
  %3236 = vmatprep.mubr.bf16.mxu0 0
  %3237 = vmatmul.mubr.bf16.gmra.mrb[0].mxu0 %v3178
  %v3238 = vpop.f32.mrb[0].mxu0
  %v3239 = vadd.f32 0.0, %v3238
  %v3240 = vpop.f32.mrb[0].mxu0
  %v3241 = vpop.f32.mrb[0].mxu0
  %v3242 = vadd.f32 0.0, %v3241
  %v3243 = vpop.f32.mrb[0].mxu0
  %3244 = vdwg.mxu0
  %v3245 = vadd.f32 %v3034, %v3215
  %v3246 = vadd.f32 %v3035, %v3218
  %v3247 = vadd.f32 %v3036, %v3223
  %v3248 = vadd.f32 %v3037, %v3226
  %v3249 = vadd.f32 %v3038, %v3231
  %v3250 = vadd.f32 %v3039, %v3234
  %v3251 = vadd.f32 %v3040, %v3239
  %v3252 = vadd.f32 %v3041, %v3242
  %v3253 = vld [vmem:[%s0 + $0x1e0] sm:$0xf]
  %v3254 = vld [vmem:[%s0 + $0x1e4] sm:$0xf]
  %v3255 = vld [vmem:[%s0 + $0x1e8] sm:$0xf]
  %v3256 = vld [vmem:[%s0 + $0x1ec] sm:$0xf]
  %v3257 = vld [vmem:[%s0 + $0x1f0] sm:$0xf]
  %v3258 = vld [vmem:[%s0 + $0x1f4] sm:$0xf]
  %v3259 = vld [vmem:[%s0 + $0x1f8] sm:$0xf]
  %v3260 = vld [vmem:[%s0 + $0x1fc] sm:$0xf]
  %v3269 = vunpack.c.l.b16 %v3253
  %v3270 = vunpack.c.l.b16 %v3254
  %v3271 = vunpack.c.l.b16 %v3255
  %v3272 = vunpack.c.l.b16 %v3256
  %v3273 = vunpack.c.l.b16 %v3257
  %v3274 = vunpack.c.l.b16 %v3258
  %v3275 = vunpack.c.l.b16 %v3259
  %v3276 = vunpack.c.l.b16 %v3260
  %v3277 = vpack.c.b16 %v3270, %v3269
  %v3278 = vpack.c.b16 %v3272, %v3271
  %v3279 = vpack.c.b16 %v3274, %v3273
  %v3280 = vpack.c.b16 %v3276, %v3275
  %3285 = vmatprep.subr.bf16.mxu0 0
  %3286 = vmatpush1.bf16.msra.mxu0 %v120
  %3287 = vmatprep.subr.bf16.mxu0 0
  %3288 = vmatpush1.bf16.msra.mxu0 %v121
  %3289 = vmatprep.subr.bf16.mxu0 0
  %3290 = vmatpush1.bf16.msra.mxu0 %v122
  %3291 = vmatprep.subr.bf16.mxu0 0
  %3292 = vmatpush1.bf16.msra.mxu0 %v123
  %3293 = vmatprep.subr.bf16.mxu0 0
  %3294 = vmatpush1.bf16.msra.mxu0 %v124
  %3295 = vmatprep.subr.bf16.mxu0 0
  %3296 = vmatpush1.bf16.msra.mxu0 %v125
  %3297 = vmatprep.subr.bf16.mxu0 0
  %3298 = vmatpush1.bf16.msra.mxu0 %v126
  %3299 = vmatprep.subr.bf16.mxu0 0
  %3300 = vmatpush1.bf16.msra.mxu0 %v127
  %3301 = vmatprep.subr.bf16.mxu0 0
  %3302 = vmatpush1.bf16.msra.mxu0 0
  %3303 = vmatprep.subr.bf16.mxu0 0
  %3304 = vmatpush1.bf16.msra.mxu0 0
  %3305 = vmatprep.subr.bf16.mxu0 0
  %3306 = vmatpush1.bf16.msra.mxu0 0
  %3307 = vmatprep.subr.bf16.mxu0 0
  %3308 = vmatpush1.bf16.msra.mxu0 0
  %3309 = vmatprep.subr.bf16.mxu0 0
  %3310 = vmatpush1.bf16.msra.mxu0 0
  %3311 = vmatprep.subr.bf16.mxu0 0
  %3312 = vmatpush1.bf16.msra.mxu0 0
  %3313 = vmatprep.subr.bf16.mxu0 0
  %3314 = vmatpush1.bf16.msra.mxu0 0
  %3315 = vmatprep.subr.bf16.mxu0 0
  %3316 = vmatpush1.bf16.msra.mxu0 0
  %3317 = vmatprep.mubr.bf16.mxu0 0
  %3318 = vmatmul.mubr.bf16.gmra.mrb[0].mxu0 %v3277
  %v3319 = vpop.f32.mrb[0].mxu0
  %v3320 = vadd.f32 %v54, %v3319
  %v3321 = vpop.f32.mrb[0].mxu0
  %v3322 = vpop.f32.mrb[0].mxu0
  %v3323 = vadd.f32 %v54, %v3322
  %v3324 = vpop.f32.mrb[0].mxu0
  %3325 = vmatprep.mubr.bf16.mxu0 0
  %3326 = vmatmul.mubr.bf16.gmra.mrb[0].mxu0 %v3278
  %v3327 = vpop.f32.mrb[0].mxu0
  %v3328 = vadd.f32 %v54, %v3327
  %v3329 = vpop.f32.mrb[0].mxu0
  %v3330 = vpop.f32.mrb[0].mxu0
  %v3331 = vadd.f32 %v54, %v3330
  %v3332 = vpop.f32.mrb[0].mxu0
  %3333 = vmatprep.mubr.bf16.mxu0 0
  %3334 = vmatmul.mubr.bf16.gmra.mrb[0].mxu0 %v3279
  %v3335 = vpop.f32.mrb[0].mxu0
  %v3336 = vadd.f32 %v54, %v3335
  %v3337 = vpop.f32.mrb[0].mxu0
  %v3338 = vpop.f32.mrb[0].mxu0
  %v3339 = vadd.f32 %v54, %v3338
  %v3340 = vpop.f32.mrb[0].mxu0
  %3341 = vmatprep.mubr.bf16.mxu0 0
  %3342 = vmatmul.mubr.bf16.gmra.mrb[0].mxu0 %v3280
  %v3343 = vpop.f32.mrb[0].mxu0
  %v3344 = vadd.f32 %v54, %v3343
  %v3345 = vpop.f32.mrb[0].mxu0
  %v3346 = vpop.f32.mrb[0].mxu0
  %v3347 = vadd.f32 %v54, %v3346
  %v3348 = vpop.f32.mrb[0].mxu0
  %3349 = vdwg.mxu0
  %v3350 = vmax.f32 %v3320, 0.0
  %v3351 = vmax.f32 %v3323, 0.0
  %v3352 = vmax.f32 %v3328, 0.0
  %v3353 = vmax.f32 %v3331, 0.0
  %v3354 = vmax.f32 %v3336, 0.0
  %v3355 = vmax.f32 %v3339, 0.0
  %v3356 = vmax.f32 %v3344, 0.0
  %v3357 = vmax.f32 %v3347, 0.0
  %v3358 = vpack.c.bf16 %v3351, %v3350
  %v3359 = vpack.c.bf16 %v3353, %v3352
  %v3360 = vpack.c.bf16 %v3355, %v3354
  %v3361 = vpack.c.bf16 %v3357, %v3356
  %s3362 = scalar_lea.vmem %s3, 240
  %v3363 = vld [vmem:[%s3362] sm:$0xf]
  %v3364 = vld [vmem:[%s3362 + $0x4] sm:$0xf]
  %v3365 = vld [vmem:[%s3362 + $0x8] sm:$0xf]
  %v3366 = vld [vmem:[%s3362 + $0xc] sm:$0xf]
  %v3371 = vunpack.c.l.b16 %v3363
  %v3372 = vunpack.c.l.b16 %v3364
  %v3373 = vunpack.c.l.b16 %v3365
  %v3374 = vunpack.c.l.b16 %v3366
  %v3375 = vpack.c.b16 %v3372, %v3371
  %v3376 = vpack.c.b16 %v3374, %v3373
  %v3380 = vsel %vm343, %v3358, 0
  %v3383 = vsel %vm343, %v3359, 0
  %v3386 = vsel %vm343, %v3360, 0
  %v3389 = vsel %vm343, %v3361, 0
  %3391 = vmatprep.subr.bf16.mxu0 0
  %3392 = vmatpush1.bf16.msra.mxu0 %v3375
  %3393 = vmatprep.subr.bf16.mxu0 0
  %3394 = vmatpush1.bf16.msra.mxu0 %v3376
  %3395 = vmatprep.subr.bf16.mxu0 0
  %3396 = vmatpush1.bf16.msra.mxu0 0
  %3397 = vmatprep.subr.bf16.mxu0 0
  %3398 = vmatpush1.bf16.msra.mxu0 0
  %3399 = vmatprep.subr.bf16.mxu0 0
  %3400 = vmatpush1.bf16.msra.mxu0 0
  %3401 = vmatprep.subr.bf16.mxu0 0
  %3402 = vmatpush1.bf16.msra.mxu0 0
  %3403 = vmatprep.subr.bf16.mxu0 0
  %3404 = vmatpush1.bf16.msra.mxu0 0
  %3405 = vmatprep.subr.bf16.mxu0 0
  %3406 = vmatpush1.bf16.msra.mxu0 0
  %3407 = vmatprep.subr.bf16.mxu0 0
  %3408 = vmatpush1.bf16.msra.mxu0 0
  %3409 = vmatprep.subr.bf16.mxu0 0
  %3410 = vmatpush1.bf16.msra.mxu0 0
  %3411 = vmatprep.subr.bf16.mxu0 0
  %3412 = vmatpush1.bf16.msra.mxu0 0
  %3413 = vmatprep.subr.bf16.mxu0 0
  %3414 = vmatpush1.bf16.msra.mxu0 0
  %3415 = vmatprep.subr.bf16.mxu0 0
  %3416 = vmatpush1.bf16.msra.mxu0 0
  %3417 = vmatprep.subr.bf16.mxu0 0
  %3418 = vmatpush1.bf16.msra.mxu0 0
  %3419 = vmatprep.subr.bf16.mxu0 0
  %3420 = vmatpush1.bf16.msra.mxu0 0
  %3421 = vmatprep.subr.bf16.mxu0 0
  %3422 = vmatpush1.bf16.msra.mxu0 0
  %3423 = vmatprep.mubr.bf16.mxu0 0
  %3424 = vmatmul.mubr.bf16.gmra.mrb[0].mxu0 %v3380
  %v3425 = vpop.f32.mrb[0].mxu0
  %v3426 = vadd.f32 0.0, %v3425
  %v3427 = vpop.f32.mrb[0].mxu0
  %v3428 = vpop.f32.mrb[0].mxu0
  %v3429 = vadd.f32 0.0, %v3428
  %v3430 = vpop.f32.mrb[0].mxu0
  %3431 = vmatprep.mubr.bf16.mxu0 0
  %3432 = vmatmul.mubr.bf16.gmra.mrb[0].mxu0 %v3383
  %v3433 = vpop.f32.mrb[0].mxu0
  %v3434 = vadd.f32 0.0, %v3433
  %v3435 = vpop.f32.mrb[0].mxu0
  %v3436 = vpop.f32.mrb[0].mxu0
  %v3437 = vadd.f32 0.0, %v3436
  %v3438 = vpop.f32.mrb[0].mxu0
  %3439 = vmatprep.mubr.bf16.mxu0 0
  %3440 = vmatmul.mubr.bf16.gmra.mrb[0].mxu0 %v3386
  %v3441 = vpop.f32.mrb[0].mxu0
  %v3442 = vadd.f32 0.0, %v3441
  %v3443 = vpop.f32.mrb[0].mxu0
  %v3444 = vpop.f32.mrb[0].mxu0
  %v3445 = vadd.f32 0.0, %v3444
  %v3446 = vpop.f32.mrb[0].mxu0
  %3447 = vmatprep.mubr.bf16.mxu0 0
  %3448 = vmatmul.mubr.bf16.gmra.mrb[0].mxu0 %v3389
  %v3449 = vpop.f32.mrb[0].mxu0
  %v3450 = vadd.f32 0.0, %v3449
  %v3451 = vpop.f32.mrb[0].mxu0
  %v3452 = vpop.f32.mrb[0].mxu0
  %v3453 = vadd.f32 0.0, %v3452
  %v3454 = vpop.f32.mrb[0].mxu0
  %3455 = vdwg.mxu0
  %v3456 = vadd.f32 %v3245, %v3426
  %v3457 = vadd.f32 %v3246, %v3429
  %v3458 = vadd.f32 %v3247, %v3434
  %v3459 = vadd.f32 %v3248, %v3437
  %v3460 = vadd.f32 %v3249, %v3442
  %v3461 = vadd.f32 %v3250, %v3445
  %v3462 = vadd.f32 %v3251, %v3450
  %v3463 = vadd.f32 %v3252, %v3453
  %v3464 = vld [vmem:[%s0 + $0x200] sm:$0xf]
  %v3465 = vld [vmem:[%s0 + $0x204] sm:$0xf]
  %v3466 = vld [vmem:[%s0 + $0x208] sm:$0xf]
  %v3467 = vld [vmem:[%s0 + $0x20c] sm:$0xf]
  %v3468 = vld [vmem:[%s0 + $0x210] sm:$0xf]
  %v3469 = vld [vmem:[%s0 + $0x214] sm:$0xf]
  %v3470 = vld [vmem:[%s0 + $0x218] sm:$0xf]
  %v3471 = vld [vmem:[%s0 + $0x21c] sm:$0xf]
  %v3480 = vunpack.c.l.b16 %v3464
  %v3481 = vunpack.c.l.b16 %v3465
  %v3482 = vunpack.c.l.b16 %v3466
  %v3483 = vunpack.c.l.b16 %v3467
  %v3484 = vunpack.c.l.b16 %v3468
  %v3485 = vunpack.c.l.b16 %v3469
  %v3486 = vunpack.c.l.b16 %v3470
  %v3487 = vunpack.c.l.b16 %v3471
  %v3488 = vpack.c.b16 %v3481, %v3480
  %v3489 = vpack.c.b16 %v3483, %v3482
  %v3490 = vpack.c.b16 %v3485, %v3484
  %v3491 = vpack.c.b16 %v3487, %v3486
  %3496 = vmatprep.subr.bf16.mxu0 0
  %3497 = vmatpush1.bf16.msra.mxu0 %v120
  %3498 = vmatprep.subr.bf16.mxu0 0
  %3499 = vmatpush1.bf16.msra.mxu0 %v121
  %3500 = vmatprep.subr.bf16.mxu0 0
  %3501 = vmatpush1.bf16.msra.mxu0 %v122
  %3502 = vmatprep.subr.bf16.mxu0 0
  %3503 = vmatpush1.bf16.msra.mxu0 %v123
  %3504 = vmatprep.subr.bf16.mxu0 0
  %3505 = vmatpush1.bf16.msra.mxu0 %v124
  %3506 = vmatprep.subr.bf16.mxu0 0
  %3507 = vmatpush1.bf16.msra.mxu0 %v125
  %3508 = vmatprep.subr.bf16.mxu0 0
  %3509 = vmatpush1.bf16.msra.mxu0 %v126
  %3510 = vmatprep.subr.bf16.mxu0 0
  %3511 = vmatpush1.bf16.msra.mxu0 %v127
  %3512 = vmatprep.subr.bf16.mxu0 0
  %3513 = vmatpush1.bf16.msra.mxu0 0
  %3514 = vmatprep.subr.bf16.mxu0 0
  %3515 = vmatpush1.bf16.msra.mxu0 0
  %3516 = vmatprep.subr.bf16.mxu0 0
  %3517 = vmatpush1.bf16.msra.mxu0 0
  %3518 = vmatprep.subr.bf16.mxu0 0
  %3519 = vmatpush1.bf16.msra.mxu0 0
  %3520 = vmatprep.subr.bf16.mxu0 0
  %3521 = vmatpush1.bf16.msra.mxu0 0
  %3522 = vmatprep.subr.bf16.mxu0 0
  %3523 = vmatpush1.bf16.msra.mxu0 0
  %3524 = vmatprep.subr.bf16.mxu0 0
  %3525 = vmatpush1.bf16.msra.mxu0 0
  %3526 = vmatprep.subr.bf16.mxu0 0
  %3527 = vmatpush1.bf16.msra.mxu0 0
  %3528 = vmatprep.mubr.bf16.mxu0 0
  %3529 = vmatmul.mubr.bf16.gmra.mrb[0].mxu0 %v3488
  %v3530 = vpop.f32.mrb[0].mxu0
  %v3531 = vadd.f32 %v54, %v3530
  %v3532 = vpop.f32.mrb[0].mxu0
  %v3533 = vpop.f32.mrb[0].mxu0
  %v3534 = vadd.f32 %v54, %v3533
  %v3535 = vpop.f32.mrb[0].mxu0
  %3536 = vmatprep.mubr.bf16.mxu0 0
  %3537 = vmatmul.mubr.bf16.gmra.mrb[0].mxu0 %v3489
  %v3538 = vpop.f32.mrb[0].mxu0
  %v3539 = vadd.f32 %v54, %v3538
  %v3540 = vpop.f32.mrb[0].mxu0
  %v3541 = vpop.f32.mrb[0].mxu0
  %v3542 = vadd.f32 %v54, %v3541
  %v3543 = vpop.f32.mrb[0].mxu0
  %3544 = vmatprep.mubr.bf16.mxu0 0
  %3545 = vmatmul.mubr.bf16.gmra.mrb[0].mxu0 %v3490
  %v3546 = vpop.f32.mrb[0].mxu0
  %v3547 = vadd.f32 %v54, %v3546
  %v3548 = vpop.f32.mrb[0].mxu0
  %v3549 = vpop.f32.mrb[0].mxu0
  %v3550 = vadd.f32 %v54, %v3549
  %v3551 = vpop.f32.mrb[0].mxu0
  %3552 = vmatprep.mubr.bf16.mxu0 0
  %3553 = vmatmul.mubr.bf16.gmra.mrb[0].mxu0 %v3491
  %v3554 = vpop.f32.mrb[0].mxu0
  %v3555 = vadd.f32 %v54, %v3554
  %v3556 = vpop.f32.mrb[0].mxu0
  %v3557 = vpop.f32.mrb[0].mxu0
  %v3558 = vadd.f32 %v54, %v3557
  %v3559 = vpop.f32.mrb[0].mxu0
  %3560 = vdwg.mxu0
  %v3561 = vmax.f32 %v3531, 0.0
  %v3562 = vmax.f32 %v3534, 0.0
  %v3563 = vmax.f32 %v3539, 0.0
  %v3564 = vmax.f32 %v3542, 0.0
  %v3565 = vmax.f32 %v3547, 0.0
  %v3566 = vmax.f32 %v3550, 0.0
  %v3567 = vmax.f32 %v3555, 0.0
  %v3568 = vmax.f32 %v3558, 0.0
  %v3569 = vpack.c.bf16 %v3562, %v3561
  %v3570 = vpack.c.bf16 %v3564, %v3563
  %v3571 = vpack.c.bf16 %v3566, %v3565
  %v3572 = vpack.c.bf16 %v3568, %v3567
  %s3573 = scalar_lea.vmem %s3, 256
  %v3574 = vld [vmem:[%s3573] sm:$0xf]
  %v3575 = vld [vmem:[%s3573 + $0x4] sm:$0xf]
  %v3576 = vld [vmem:[%s3573 + $0x8] sm:$0xf]
  %v3577 = vld [vmem:[%s3573 + $0xc] sm:$0xf]
  %v3582 = vunpack.c.l.b16 %v3574
  %v3583 = vunpack.c.l.b16 %v3575
  %v3584 = vunpack.c.l.b16 %v3576
  %v3585 = vunpack.c.l.b16 %v3577
  %v3586 = vpack.c.b16 %v3583, %v3582
  %v3587 = vpack.c.b16 %v3585, %v3584
  %v3591 = vsel %vm343, %v3569, 0
  %v3594 = vsel %vm343, %v3570, 0
  %v3597 = vsel %vm343, %v3571, 0
  %v3600 = vsel %vm343, %v3572, 0
  %3602 = vmatprep.subr.bf16.mxu0 0
  %3603 = vmatpush1.bf16.msra.mxu0 %v3586
  %3604 = vmatprep.subr.bf16.mxu0 0
  %3605 = vmatpush1.bf16.msra.mxu0 %v3587
  %3606 = vmatprep.subr.bf16.mxu0 0
  %3607 = vmatpush1.bf16.msra.mxu0 0
  %3608 = vmatprep.subr.bf16.mxu0 0
  %3609 = vmatpush1.bf16.msra.mxu0 0
  %3610 = vmatprep.subr.bf16.mxu0 0
  %3611 = vmatpush1.bf16.msra.mxu0 0
  %3612 = vmatprep.subr.bf16.mxu0 0
  %3613 = vmatpush1.bf16.msra.mxu0 0
  %3614 = vmatprep.subr.bf16.mxu0 0
  %3615 = vmatpush1.bf16.msra.mxu0 0
  %3616 = vmatprep.subr.bf16.mxu0 0
  %3617 = vmatpush1.bf16.msra.mxu0 0
  %3618 = vmatprep.subr.bf16.mxu0 0
  %3619 = vmatpush1.bf16.msra.mxu0 0
  %3620 = vmatprep.subr.bf16.mxu0 0
  %3621 = vmatpush1.bf16.msra.mxu0 0
  %3622 = vmatprep.subr.bf16.mxu0 0
  %3623 = vmatpush1.bf16.msra.mxu0 0
  %3624 = vmatprep.subr.bf16.mxu0 0
  %3625 = vmatpush1.bf16.msra.mxu0 0
  %3626 = vmatprep.subr.bf16.mxu0 0
  %3627 = vmatpush1.bf16.msra.mxu0 0
  %3628 = vmatprep.subr.bf16.mxu0 0
  %3629 = vmatpush1.bf16.msra.mxu0 0
  %3630 = vmatprep.subr.bf16.mxu0 0
  %3631 = vmatpush1.bf16.msra.mxu0 0
  %3632 = vmatprep.subr.bf16.mxu0 0
  %3633 = vmatpush1.bf16.msra.mxu0 0
  %3634 = vmatprep.mubr.bf16.mxu0 0
  %3635 = vmatmul.mubr.bf16.gmra.mrb[0].mxu0 %v3591
  %v3636 = vpop.f32.mrb[0].mxu0
  %v3637 = vadd.f32 0.0, %v3636
  %v3638 = vpop.f32.mrb[0].mxu0
  %v3639 = vpop.f32.mrb[0].mxu0
  %v3640 = vadd.f32 0.0, %v3639
  %v3641 = vpop.f32.mrb[0].mxu0
  %3642 = vmatprep.mubr.bf16.mxu0 0
  %3643 = vmatmul.mubr.bf16.gmra.mrb[0].mxu0 %v3594
  %v3644 = vpop.f32.mrb[0].mxu0
  %v3645 = vadd.f32 0.0, %v3644
  %v3646 = vpop.f32.mrb[0].mxu0
  %v3647 = vpop.f32.mrb[0].mxu0
  %v3648 = vadd.f32 0.0, %v3647
  %v3649 = vpop.f32.mrb[0].mxu0
  %3650 = vmatprep.mubr.bf16.mxu0 0
  %3651 = vmatmul.mubr.bf16.gmra.mrb[0].mxu0 %v3597
  %v3652 = vpop.f32.mrb[0].mxu0
  %v3653 = vadd.f32 0.0, %v3652
  %v3654 = vpop.f32.mrb[0].mxu0
  %v3655 = vpop.f32.mrb[0].mxu0
  %v3656 = vadd.f32 0.0, %v3655
  %v3657 = vpop.f32.mrb[0].mxu0
  %3658 = vmatprep.mubr.bf16.mxu0 0
  %3659 = vmatmul.mubr.bf16.gmra.mrb[0].mxu0 %v3600
  %v3660 = vpop.f32.mrb[0].mxu0
  %v3661 = vadd.f32 0.0, %v3660
  %v3662 = vpop.f32.mrb[0].mxu0
  %v3663 = vpop.f32.mrb[0].mxu0
  %v3664 = vadd.f32 0.0, %v3663
  %v3665 = vpop.f32.mrb[0].mxu0
  %3666 = vdwg.mxu0
  %v3667 = vadd.f32 %v3456, %v3637
  %v3668 = vadd.f32 %v3457, %v3640
  %v3669 = vadd.f32 %v3458, %v3645
  %v3670 = vadd.f32 %v3459, %v3648
  %v3671 = vadd.f32 %v3460, %v3653
  %v3672 = vadd.f32 %v3461, %v3656
  %v3673 = vadd.f32 %v3462, %v3661
  %v3674 = vadd.f32 %v3463, %v3664
  %v3675 = vld [vmem:[%s0 + $0x220] sm:$0xf]
  %v3676 = vld [vmem:[%s0 + $0x224] sm:$0xf]
  %v3677 = vld [vmem:[%s0 + $0x228] sm:$0xf]
  %v3678 = vld [vmem:[%s0 + $0x22c] sm:$0xf]
  %v3679 = vld [vmem:[%s0 + $0x230] sm:$0xf]
  %v3680 = vld [vmem:[%s0 + $0x234] sm:$0xf]
  %v3681 = vld [vmem:[%s0 + $0x238] sm:$0xf]
  %v3682 = vld [vmem:[%s0 + $0x23c] sm:$0xf]
  %v3691 = vunpack.c.l.b16 %v3675
  %v3692 = vunpack.c.l.b16 %v3676
  %v3693 = vunpack.c.l.b16 %v3677
  %v3694 = vunpack.c.l.b16 %v3678
  %v3695 = vunpack.c.l.b16 %v3679
  %v3696 = vunpack.c.l.b16 %v3680
  %v3697 = vunpack.c.l.b16 %v3681
  %v3698 = vunpack.c.l.b16 %v3682
  %v3699 = vpack.c.b16 %v3692, %v3691
  %v3700 = vpack.c.b16 %v3694, %v3693
  %v3701 = vpack.c.b16 %v3696, %v3695
  %v3702 = vpack.c.b16 %v3698, %v3697
  %3707 = vmatprep.subr.bf16.mxu0 0
  %3708 = vmatpush1.bf16.msra.mxu0 %v120
  %3709 = vmatprep.subr.bf16.mxu0 0
  %3710 = vmatpush1.bf16.msra.mxu0 %v121
  %3711 = vmatprep.subr.bf16.mxu0 0
  %3712 = vmatpush1.bf16.msra.mxu0 %v122
  %3713 = vmatprep.subr.bf16.mxu0 0
  %3714 = vmatpush1.bf16.msra.mxu0 %v123
  %3715 = vmatprep.subr.bf16.mxu0 0
  %3716 = vmatpush1.bf16.msra.mxu0 %v124
  %3717 = vmatprep.subr.bf16.mxu0 0
  %3718 = vmatpush1.bf16.msra.mxu0 %v125
  %3719 = vmatprep.subr.bf16.mxu0 0
  %3720 = vmatpush1.bf16.msra.mxu0 %v126
  %3721 = vmatprep.subr.bf16.mxu0 0
  %3722 = vmatpush1.bf16.msra.mxu0 %v127
  %3723 = vmatprep.subr.bf16.mxu0 0
  %3724 = vmatpush1.bf16.msra.mxu0 0
  %3725 = vmatprep.subr.bf16.mxu0 0
  %3726 = vmatpush1.bf16.msra.mxu0 0
  %3727 = vmatprep.subr.bf16.mxu0 0
  %3728 = vmatpush1.bf16.msra.mxu0 0
  %3729 = vmatprep.subr.bf16.mxu0 0
  %3730 = vmatpush1.bf16.msra.mxu0 0
  %3731 = vmatprep.subr.bf16.mxu0 0
  %3732 = vmatpush1.bf16.msra.mxu0 0
  %3733 = vmatprep.subr.bf16.mxu0 0
  %3734 = vmatpush1.bf16.msra.mxu0 0
  %3735 = vmatprep.subr.bf16.mxu0 0
  %3736 = vmatpush1.bf16.msra.mxu0 0
  %3737 = vmatprep.subr.bf16.mxu0 0
  %3738 = vmatpush1.bf16.msra.mxu0 0
  %3739 = vmatprep.mubr.bf16.mxu0 0
  %3740 = vmatmul.mubr.bf16.gmra.mrb[0].mxu0 %v3699
  %v3741 = vpop.f32.mrb[0].mxu0
  %v3742 = vadd.f32 %v54, %v3741
  %v3743 = vpop.f32.mrb[0].mxu0
  %v3744 = vpop.f32.mrb[0].mxu0
  %v3745 = vadd.f32 %v54, %v3744
  %v3746 = vpop.f32.mrb[0].mxu0
  %3747 = vmatprep.mubr.bf16.mxu0 0
  %3748 = vmatmul.mubr.bf16.gmra.mrb[0].mxu0 %v3700
  %v3749 = vpop.f32.mrb[0].mxu0
  %v3750 = vadd.f32 %v54, %v3749
  %v3751 = vpop.f32.mrb[0].mxu0
  %v3752 = vpop.f32.mrb[0].mxu0
  %v3753 = vadd.f32 %v54, %v3752
  %v3754 = vpop.f32.mrb[0].mxu0
  %3755 = vmatprep.mubr.bf16.mxu0 0
  %3756 = vmatmul.mubr.bf16.gmra.mrb[0].mxu0 %v3701
  %v3757 = vpop.f32.mrb[0].mxu0
  %v3758 = vadd.f32 %v54, %v3757
  %v3759 = vpop.f32.mrb[0].mxu0
  %v3760 = vpop.f32.mrb[0].mxu0
  %v3761 = vadd.f32 %v54, %v3760
  %v3762 = vpop.f32.mrb[0].mxu0
  %3763 = vmatprep.mubr.bf16.mxu0 0
  %3764 = vmatmul.mubr.bf16.gmra.mrb[0].mxu0 %v3702
  %v3765 = vpop.f32.mrb[0].mxu0
  %v3766 = vadd.f32 %v54, %v3765
  %v3767 = vpop.f32.mrb[0].mxu0
  %v3768 = vpop.f32.mrb[0].mxu0
  %v3769 = vadd.f32 %v54, %v3768
  %v3770 = vpop.f32.mrb[0].mxu0
  %3771 = vdwg.mxu0
  %v3772 = vmax.f32 %v3742, 0.0
  %v3773 = vmax.f32 %v3745, 0.0
  %v3774 = vmax.f32 %v3750, 0.0
  %v3775 = vmax.f32 %v3753, 0.0
  %v3776 = vmax.f32 %v3758, 0.0
  %v3777 = vmax.f32 %v3761, 0.0
  %v3778 = vmax.f32 %v3766, 0.0
  %v3779 = vmax.f32 %v3769, 0.0
  %v3780 = vpack.c.bf16 %v3773, %v3772
  %v3781 = vpack.c.bf16 %v3775, %v3774
  %v3782 = vpack.c.bf16 %v3777, %v3776
  %v3783 = vpack.c.bf16 %v3779, %v3778
  %s3784 = scalar_lea.vmem %s3, 272
  %v3785 = vld [vmem:[%s3784] sm:$0xf]
  %v3786 = vld [vmem:[%s3784 + $0x4] sm:$0xf]
  %v3787 = vld [vmem:[%s3784 + $0x8] sm:$0xf]
  %v3788 = vld [vmem:[%s3784 + $0xc] sm:$0xf]
  %v3793 = vunpack.c.l.b16 %v3785
  %v3794 = vunpack.c.l.b16 %v3786
  %v3795 = vunpack.c.l.b16 %v3787
  %v3796 = vunpack.c.l.b16 %v3788
  %v3797 = vpack.c.b16 %v3794, %v3793
  %v3798 = vpack.c.b16 %v3796, %v3795
  %v3802 = vsel %vm343, %v3780, 0
  %v3805 = vsel %vm343, %v3781, 0
  %v3808 = vsel %vm343, %v3782, 0
  %v3811 = vsel %vm343, %v3783, 0
  %3813 = vmatprep.subr.bf16.mxu0 0
  %3814 = vmatpush1.bf16.msra.mxu0 %v3797
  %3815 = vmatprep.subr.bf16.mxu0 0
  %3816 = vmatpush1.bf16.msra.mxu0 %v3798
  %3817 = vmatprep.subr.bf16.mxu0 0
  %3818 = vmatpush1.bf16.msra.mxu0 0
  %3819 = vmatprep.subr.bf16.mxu0 0
  %3820 = vmatpush1.bf16.msra.mxu0 0
  %3821 = vmatprep.subr.bf16.mxu0 0
  %3822 = vmatpush1.bf16.msra.mxu0 0
  %3823 = vmatprep.subr.bf16.mxu0 0
  %3824 = vmatpush1.bf16.msra.mxu0 0
  %3825 = vmatprep.subr.bf16.mxu0 0
  %3826 = vmatpush1.bf16.msra.mxu0 0
  %3827 = vmatprep.subr.bf16.mxu0 0
  %3828 = vmatpush1.bf16.msra.mxu0 0
  %3829 = vmatprep.subr.bf16.mxu0 0
  %3830 = vmatpush1.bf16.msra.mxu0 0
  %3831 = vmatprep.subr.bf16.mxu0 0
  %3832 = vmatpush1.bf16.msra.mxu0 0
  %3833 = vmatprep.subr.bf16.mxu0 0
  %3834 = vmatpush1.bf16.msra.mxu0 0
  %3835 = vmatprep.subr.bf16.mxu0 0
  %3836 = vmatpush1.bf16.msra.mxu0 0
  %3837 = vmatprep.subr.bf16.mxu0 0
  %3838 = vmatpush1.bf16.msra.mxu0 0
  %3839 = vmatprep.subr.bf16.mxu0 0
  %3840 = vmatpush1.bf16.msra.mxu0 0
  %3841 = vmatprep.subr.bf16.mxu0 0
  %3842 = vmatpush1.bf16.msra.mxu0 0
  %3843 = vmatprep.subr.bf16.mxu0 0
  %3844 = vmatpush1.bf16.msra.mxu0 0
  %3845 = vmatprep.mubr.bf16.mxu0 0
  %3846 = vmatmul.mubr.bf16.gmra.mrb[0].mxu0 %v3802
  %v3847 = vpop.f32.mrb[0].mxu0
  %v3848 = vadd.f32 0.0, %v3847
  %v3849 = vpop.f32.mrb[0].mxu0
  %v3850 = vpop.f32.mrb[0].mxu0
  %v3851 = vadd.f32 0.0, %v3850
  %v3852 = vpop.f32.mrb[0].mxu0
  %3853 = vmatprep.mubr.bf16.mxu0 0
  %3854 = vmatmul.mubr.bf16.gmra.mrb[0].mxu0 %v3805
  %v3855 = vpop.f32.mrb[0].mxu0
  %v3856 = vadd.f32 0.0, %v3855
  %v3857 = vpop.f32.mrb[0].mxu0
  %v3858 = vpop.f32.mrb[0].mxu0
  %v3859 = vadd.f32 0.0, %v3858
  %v3860 = vpop.f32.mrb[0].mxu0
  %3861 = vmatprep.mubr.bf16.mxu0 0
  %3862 = vmatmul.mubr.bf16.gmra.mrb[0].mxu0 %v3808
  %v3863 = vpop.f32.mrb[0].mxu0
  %v3864 = vadd.f32 0.0, %v3863
  %v3865 = vpop.f32.mrb[0].mxu0
  %v3866 = vpop.f32.mrb[0].mxu0
  %v3867 = vadd.f32 0.0, %v3866
  %v3868 = vpop.f32.mrb[0].mxu0
  %3869 = vmatprep.mubr.bf16.mxu0 0
  %3870 = vmatmul.mubr.bf16.gmra.mrb[0].mxu0 %v3811
  %v3871 = vpop.f32.mrb[0].mxu0
  %v3872 = vadd.f32 0.0, %v3871
  %v3873 = vpop.f32.mrb[0].mxu0
  %v3874 = vpop.f32.mrb[0].mxu0
  %v3875 = vadd.f32 0.0, %v3874
  %v3876 = vpop.f32.mrb[0].mxu0
  %3877 = vdwg.mxu0
  %v3878 = vadd.f32 %v3667, %v3848
  %v3879 = vadd.f32 %v3668, %v3851
  %v3880 = vadd.f32 %v3669, %v3856
  %v3881 = vadd.f32 %v3670, %v3859
  %v3882 = vadd.f32 %v3671, %v3864
  %v3883 = vadd.f32 %v3672, %v3867
  %v3884 = vadd.f32 %v3673, %v3872
  %v3885 = vadd.f32 %v3674, %v3875
  %v3886 = vld [vmem:[%s0 + $0x240] sm:$0xf]
  %v3887 = vld [vmem:[%s0 + $0x244] sm:$0xf]
  %v3888 = vld [vmem:[%s0 + $0x248] sm:$0xf]
  %v3889 = vld [vmem:[%s0 + $0x24c] sm:$0xf]
  %v3890 = vld [vmem:[%s0 + $0x250] sm:$0xf]
  %v3891 = vld [vmem:[%s0 + $0x254] sm:$0xf]
  %v3892 = vld [vmem:[%s0 + $0x258] sm:$0xf]
  %v3893 = vld [vmem:[%s0 + $0x25c] sm:$0xf]
  %v3902 = vunpack.c.l.b16 %v3886
  %v3903 = vunpack.c.l.b16 %v3887
  %v3904 = vunpack.c.l.b16 %v3888
  %v3905 = vunpack.c.l.b16 %v3889
  %v3906 = vunpack.c.l.b16 %v3890
  %v3907 = vunpack.c.l.b16 %v3891
  %v3908 = vunpack.c.l.b16 %v3892
  %v3909 = vunpack.c.l.b16 %v3893
  %v3910 = vpack.c.b16 %v3903, %v3902
  %v3911 = vpack.c.b16 %v3905, %v3904
  %v3912 = vpack.c.b16 %v3907, %v3906
  %v3913 = vpack.c.b16 %v3909, %v3908
  %3918 = vmatprep.subr.bf16.mxu0 0
  %3919 = vmatpush1.bf16.msra.mxu0 %v120
  %3920 = vmatprep.subr.bf16.mxu0 0
  %3921 = vmatpush1.bf16.msra.mxu0 %v121
  %3922 = vmatprep.subr.bf16.mxu0 0
  %3923 = vmatpush1.bf16.msra.mxu0 %v122
  %3924 = vmatprep.subr.bf16.mxu0 0
  %3925 = vmatpush1.bf16.msra.mxu0 %v123
  %3926 = vmatprep.subr.bf16.mxu0 0
  %3927 = vmatpush1.bf16.msra.mxu0 %v124
  %3928 = vmatprep.subr.bf16.mxu0 0
  %3929 = vmatpush1.bf16.msra.mxu0 %v125
  %3930 = vmatprep.subr.bf16.mxu0 0
  %3931 = vmatpush1.bf16.msra.mxu0 %v126
  %3932 = vmatprep.subr.bf16.mxu0 0
  %3933 = vmatpush1.bf16.msra.mxu0 %v127
  %3934 = vmatprep.subr.bf16.mxu0 0
  %3935 = vmatpush1.bf16.msra.mxu0 0
  %3936 = vmatprep.subr.bf16.mxu0 0
  %3937 = vmatpush1.bf16.msra.mxu0 0
  %3938 = vmatprep.subr.bf16.mxu0 0
  %3939 = vmatpush1.bf16.msra.mxu0 0
  %3940 = vmatprep.subr.bf16.mxu0 0
  %3941 = vmatpush1.bf16.msra.mxu0 0
  %3942 = vmatprep.subr.bf16.mxu0 0
  %3943 = vmatpush1.bf16.msra.mxu0 0
  %3944 = vmatprep.subr.bf16.mxu0 0
  %3945 = vmatpush1.bf16.msra.mxu0 0
  %3946 = vmatprep.subr.bf16.mxu0 0
  %3947 = vmatpush1.bf16.msra.mxu0 0
  %3948 = vmatprep.subr.bf16.mxu0 0
  %3949 = vmatpush1.bf16.msra.mxu0 0
  %3950 = vmatprep.mubr.bf16.mxu0 0
  %3951 = vmatmul.mubr.bf16.gmra.mrb[0].mxu0 %v3910
  %v3952 = vpop.f32.mrb[0].mxu0
  %v3953 = vadd.f32 %v54, %v3952
  %v3954 = vpop.f32.mrb[0].mxu0
  %v3955 = vpop.f32.mrb[0].mxu0
  %v3956 = vadd.f32 %v54, %v3955
  %v3957 = vpop.f32.mrb[0].mxu0
  %3958 = vmatprep.mubr.bf16.mxu0 0
  %3959 = vmatmul.mubr.bf16.gmra.mrb[0].mxu0 %v3911
  %v3960 = vpop.f32.mrb[0].mxu0
  %v3961 = vadd.f32 %v54, %v3960
  %v3962 = vpop.f32.mrb[0].mxu0
  %v3963 = vpop.f32.mrb[0].mxu0
  %v3964 = vadd.f32 %v54, %v3963
  %v3965 = vpop.f32.mrb[0].mxu0
  %3966 = vmatprep.mubr.bf16.mxu0 0
  %3967 = vmatmul.mubr.bf16.gmra.mrb[0].mxu0 %v3912
  %v3968 = vpop.f32.mrb[0].mxu0
  %v3969 = vadd.f32 %v54, %v3968
  %v3970 = vpop.f32.mrb[0].mxu0
  %v3971 = vpop.f32.mrb[0].mxu0
  %v3972 = vadd.f32 %v54, %v3971
  %v3973 = vpop.f32.mrb[0].mxu0
  %3974 = vmatprep.mubr.bf16.mxu0 0
  %3975 = vmatmul.mubr.bf16.gmra.mrb[0].mxu0 %v3913
  %v3976 = vpop.f32.mrb[0].mxu0
  %v3977 = vadd.f32 %v54, %v3976
  %v3978 = vpop.f32.mrb[0].mxu0
  %v3979 = vpop.f32.mrb[0].mxu0
  %v3980 = vadd.f32 %v54, %v3979
  %v3981 = vpop.f32.mrb[0].mxu0
  %3982 = vdwg.mxu0
  %v3983 = vmax.f32 %v3953, 0.0
  %v3984 = vmax.f32 %v3956, 0.0
  %v3985 = vmax.f32 %v3961, 0.0
  %v3986 = vmax.f32 %v3964, 0.0
  %v3987 = vmax.f32 %v3969, 0.0
  %v3988 = vmax.f32 %v3972, 0.0
  %v3989 = vmax.f32 %v3977, 0.0
  %v3990 = vmax.f32 %v3980, 0.0
  %v3991 = vpack.c.bf16 %v3984, %v3983
  %v3992 = vpack.c.bf16 %v3986, %v3985
  %v3993 = vpack.c.bf16 %v3988, %v3987
  %v3994 = vpack.c.bf16 %v3990, %v3989
  %s3995 = scalar_lea.vmem %s3, 288
  %v3996 = vld [vmem:[%s3995] sm:$0xf]
  %v3997 = vld [vmem:[%s3995 + $0x4] sm:$0xf]
  %v3998 = vld [vmem:[%s3995 + $0x8] sm:$0xf]
  %v3999 = vld [vmem:[%s3995 + $0xc] sm:$0xf]
  %v4004 = vunpack.c.l.b16 %v3996
  %v4005 = vunpack.c.l.b16 %v3997
  %v4006 = vunpack.c.l.b16 %v3998
  %v4007 = vunpack.c.l.b16 %v3999
  %v4008 = vpack.c.b16 %v4005, %v4004
  %v4009 = vpack.c.b16 %v4007, %v4006
  %v4013 = vsel %vm343, %v3991, 0
  %v4016 = vsel %vm343, %v3992, 0
  %v4019 = vsel %vm343, %v3993, 0
  %v4022 = vsel %vm343, %v3994, 0
  %4024 = vmatprep.subr.bf16.mxu0 0
  %4025 = vmatpush1.bf16.msra.mxu0 %v4008
  %4026 = vmatprep.subr.bf16.mxu0 0
  %4027 = vmatpush1.bf16.msra.mxu0 %v4009
  %4028 = vmatprep.subr.bf16.mxu0 0
  %4029 = vmatpush1.bf16.msra.mxu0 0
  %4030 = vmatprep.subr.bf16.mxu0 0
  %4031 = vmatpush1.bf16.msra.mxu0 0
  %4032 = vmatprep.subr.bf16.mxu0 0
  %4033 = vmatpush1.bf16.msra.mxu0 0
  %4034 = vmatprep.subr.bf16.mxu0 0
  %4035 = vmatpush1.bf16.msra.mxu0 0
  %4036 = vmatprep.subr.bf16.mxu0 0
  %4037 = vmatpush1.bf16.msra.mxu0 0
  %4038 = vmatprep.subr.bf16.mxu0 0
  %4039 = vmatpush1.bf16.msra.mxu0 0
  %4040 = vmatprep.subr.bf16.mxu0 0
  %4041 = vmatpush1.bf16.msra.mxu0 0
  %4042 = vmatprep.subr.bf16.mxu0 0
  %4043 = vmatpush1.bf16.msra.mxu0 0
  %4044 = vmatprep.subr.bf16.mxu0 0
  %4045 = vmatpush1.bf16.msra.mxu0 0
  %4046 = vmatprep.subr.bf16.mxu0 0
  %4047 = vmatpush1.bf16.msra.mxu0 0
  %4048 = vmatprep.subr.bf16.mxu0 0
  %4049 = vmatpush1.bf16.msra.mxu0 0
  %4050 = vmatprep.subr.bf16.mxu0 0
  %4051 = vmatpush1.bf16.msra.mxu0 0
  %4052 = vmatprep.subr.bf16.mxu0 0
  %4053 = vmatpush1.bf16.msra.mxu0 0
  %4054 = vmatprep.subr.bf16.mxu0 0
  %4055 = vmatpush1.bf16.msra.mxu0 0
  %4056 = vmatprep.mubr.bf16.mxu0 0
  %4057 = vmatmul.mubr.bf16.gmra.mrb[0].mxu0 %v4013
  %v4058 = vpop.f32.mrb[0].mxu0
  %v4059 = vadd.f32 0.0, %v4058
  %v4060 = vpop.f32.mrb[0].mxu0
  %v4061 = vpop.f32.mrb[0].mxu0
  %v4062 = vadd.f32 0.0, %v4061
  %v4063 = vpop.f32.mrb[0].mxu0
  %4064 = vmatprep.mubr.bf16.mxu0 0
  %4065 = vmatmul.mubr.bf16.gmra.mrb[0].mxu0 %v4016
  %v4066 = vpop.f32.mrb[0].mxu0
  %v4067 = vadd.f32 0.0, %v4066
  %v4068 = vpop.f32.mrb[0].mxu0
  %v4069 = vpop.f32.mrb[0].mxu0
  %v4070 = vadd.f32 0.0, %v4069
  %v4071 = vpop.f32.mrb[0].mxu0
  %4072 = vmatprep.mubr.bf16.mxu0 0
  %4073 = vmatmul.mubr.bf16.gmra.mrb[0].mxu0 %v4019
  %v4074 = vpop.f32.mrb[0].mxu0
  %v4075 = vadd.f32 0.0, %v4074
  %v4076 = vpop.f32.mrb[0].mxu0
  %v4077 = vpop.f32.mrb[0].mxu0
  %v4078 = vadd.f32 0.0, %v4077
  %v4079 = vpop.f32.mrb[0].mxu0
  %4080 = vmatprep.mubr.bf16.mxu0 0
  %4081 = vmatmul.mubr.bf16.gmra.mrb[0].mxu0 %v4022
  %v4082 = vpop.f32.mrb[0].mxu0
  %v4083 = vadd.f32 0.0, %v4082
  %v4084 = vpop.f32.mrb[0].mxu0
  %v4085 = vpop.f32.mrb[0].mxu0
  %v4086 = vadd.f32 0.0, %v4085
  %v4087 = vpop.f32.mrb[0].mxu0
  %4088 = vdwg.mxu0
  %v4089 = vadd.f32 %v3878, %v4059
  %v4090 = vadd.f32 %v3879, %v4062
  %v4091 = vadd.f32 %v3880, %v4067
  %v4092 = vadd.f32 %v3881, %v4070
  %v4093 = vadd.f32 %v3882, %v4075
  %v4094 = vadd.f32 %v3883, %v4078
  %v4095 = vadd.f32 %v3884, %v4083
  %v4096 = vadd.f32 %v3885, %v4086
  %v4097 = vld [vmem:[%s0 + $0x260] sm:$0xf]
  %v4098 = vld [vmem:[%s0 + $0x264] sm:$0xf]
  %v4099 = vld [vmem:[%s0 + $0x268] sm:$0xf]
  %v4100 = vld [vmem:[%s0 + $0x26c] sm:$0xf]
  %v4101 = vld [vmem:[%s0 + $0x270] sm:$0xf]
  %v4102 = vld [vmem:[%s0 + $0x274] sm:$0xf]
  %v4103 = vld [vmem:[%s0 + $0x278] sm:$0xf]
  %v4104 = vld [vmem:[%s0 + $0x27c] sm:$0xf]
  %v4113 = vunpack.c.l.b16 %v4097
  %v4114 = vunpack.c.l.b16 %v4098
  %v4115 = vunpack.c.l.b16 %v4099
  %v4116 = vunpack.c.l.b16 %v4100
  %v4117 = vunpack.c.l.b16 %v4101
  %v4118 = vunpack.c.l.b16 %v4102
  %v4119 = vunpack.c.l.b16 %v4103
  %v4120 = vunpack.c.l.b16 %v4104
  %v4121 = vpack.c.b16 %v4114, %v4113
  %v4122 = vpack.c.b16 %v4116, %v4115
  %v4123 = vpack.c.b16 %v4118, %v4117
  %v4124 = vpack.c.b16 %v4120, %v4119
  %4129 = vmatprep.subr.bf16.mxu0 0
  %4130 = vmatpush1.bf16.msra.mxu0 %v120
  %4131 = vmatprep.subr.bf16.mxu0 0
  %4132 = vmatpush1.bf16.msra.mxu0 %v121
  %4133 = vmatprep.subr.bf16.mxu0 0
  %4134 = vmatpush1.bf16.msra.mxu0 %v122
  %4135 = vmatprep.subr.bf16.mxu0 0
  %4136 = vmatpush1.bf16.msra.mxu0 %v123
  %4137 = vmatprep.subr.bf16.mxu0 0
  %4138 = vmatpush1.bf16.msra.mxu0 %v124
  %4139 = vmatprep.subr.bf16.mxu0 0
  %4140 = vmatpush1.bf16.msra.mxu0 %v125
  %4141 = vmatprep.subr.bf16.mxu0 0
  %4142 = vmatpush1.bf16.msra.mxu0 %v126
  %4143 = vmatprep.subr.bf16.mxu0 0
  %4144 = vmatpush1.bf16.msra.mxu0 %v127
  %4145 = vmatprep.subr.bf16.mxu0 0
  %4146 = vmatpush1.bf16.msra.mxu0 0
  %4147 = vmatprep.subr.bf16.mxu0 0
  %4148 = vmatpush1.bf16.msra.mxu0 0
  %4149 = vmatprep.subr.bf16.mxu0 0
  %4150 = vmatpush1.bf16.msra.mxu0 0
  %4151 = vmatprep.subr.bf16.mxu0 0
  %4152 = vmatpush1.bf16.msra.mxu0 0
  %4153 = vmatprep.subr.bf16.mxu0 0
  %4154 = vmatpush1.bf16.msra.mxu0 0
  %4155 = vmatprep.subr.bf16.mxu0 0
  %4156 = vmatpush1.bf16.msra.mxu0 0
  %4157 = vmatprep.subr.bf16.mxu0 0
  %4158 = vmatpush1.bf16.msra.mxu0 0
  %4159 = vmatprep.subr.bf16.mxu0 0
  %4160 = vmatpush1.bf16.msra.mxu0 0
  %4161 = vmatprep.mubr.bf16.mxu0 0
  %4162 = vmatmul.mubr.bf16.gmra.mrb[0].mxu0 %v4121
  %v4163 = vpop.f32.mrb[0].mxu0
  %v4164 = vadd.f32 %v54, %v4163
  %v4165 = vpop.f32.mrb[0].mxu0
  %v4166 = vpop.f32.mrb[0].mxu0
  %v4167 = vadd.f32 %v54, %v4166
  %v4168 = vpop.f32.mrb[0].mxu0
  %4169 = vmatprep.mubr.bf16.mxu0 0
  %4170 = vmatmul.mubr.bf16.gmra.mrb[0].mxu0 %v4122
  %v4171 = vpop.f32.mrb[0].mxu0
  %v4172 = vadd.f32 %v54, %v4171
  %v4173 = vpop.f32.mrb[0].mxu0
  %v4174 = vpop.f32.mrb[0].mxu0
  %v4175 = vadd.f32 %v54, %v4174
  %v4176 = vpop.f32.mrb[0].mxu0
  %4177 = vmatprep.mubr.bf16.mxu0 0
  %4178 = vmatmul.mubr.bf16.gmra.mrb[0].mxu0 %v4123
  %v4179 = vpop.f32.mrb[0].mxu0
  %v4180 = vadd.f32 %v54, %v4179
  %v4181 = vpop.f32.mrb[0].mxu0
  %v4182 = vpop.f32.mrb[0].mxu0
  %v4183 = vadd.f32 %v54, %v4182
  %v4184 = vpop.f32.mrb[0].mxu0
  %4185 = vmatprep.mubr.bf16.mxu0 0
  %4186 = vmatmul.mubr.bf16.gmra.mrb[0].mxu0 %v4124
  %v4187 = vpop.f32.mrb[0].mxu0
  %v4188 = vadd.f32 %v54, %v4187
  %v4189 = vpop.f32.mrb[0].mxu0
  %v4190 = vpop.f32.mrb[0].mxu0
  %v4191 = vadd.f32 %v54, %v4190
  %v4192 = vpop.f32.mrb[0].mxu0
  %4193 = vdwg.mxu0
  %v4194 = vmax.f32 %v4164, 0.0
  %v4195 = vmax.f32 %v4167, 0.0
  %v4196 = vmax.f32 %v4172, 0.0
  %v4197 = vmax.f32 %v4175, 0.0
  %v4198 = vmax.f32 %v4180, 0.0
  %v4199 = vmax.f32 %v4183, 0.0
  %v4200 = vmax.f32 %v4188, 0.0
  %v4201 = vmax.f32 %v4191, 0.0
  %v4202 = vpack.c.bf16 %v4195, %v4194
  %v4203 = vpack.c.bf16 %v4197, %v4196
  %v4204 = vpack.c.bf16 %v4199, %v4198
  %v4205 = vpack.c.bf16 %v4201, %v4200
  %s4206 = scalar_lea.vmem %s3, 304
  %v4207 = vld [vmem:[%s4206] sm:$0xf]
  %v4208 = vld [vmem:[%s4206 + $0x4] sm:$0xf]
  %v4209 = vld [vmem:[%s4206 + $0x8] sm:$0xf]
  %v4210 = vld [vmem:[%s4206 + $0xc] sm:$0xf]
  %v4215 = vunpack.c.l.b16 %v4207
  %v4216 = vunpack.c.l.b16 %v4208
  %v4217 = vunpack.c.l.b16 %v4209
  %v4218 = vunpack.c.l.b16 %v4210
  %v4219 = vpack.c.b16 %v4216, %v4215
  %v4220 = vpack.c.b16 %v4218, %v4217
  %v4224 = vsel %vm343, %v4202, 0
  %v4227 = vsel %vm343, %v4203, 0
  %v4230 = vsel %vm343, %v4204, 0
  %v4233 = vsel %vm343, %v4205, 0
  %4235 = vmatprep.subr.bf16.mxu0 0
  %4236 = vmatpush1.bf16.msra.mxu0 %v4219
  %4237 = vmatprep.subr.bf16.mxu0 0
  %4238 = vmatpush1.bf16.msra.mxu0 %v4220
  %4239 = vmatprep.subr.bf16.mxu0 0
  %4240 = vmatpush1.bf16.msra.mxu0 0
  %4241 = vmatprep.subr.bf16.mxu0 0
  %4242 = vmatpush1.bf16.msra.mxu0 0
  %4243 = vmatprep.subr.bf16.mxu0 0
  %4244 = vmatpush1.bf16.msra.mxu0 0
  %4245 = vmatprep.subr.bf16.mxu0 0
  %4246 = vmatpush1.bf16.msra.mxu0 0
  %4247 = vmatprep.subr.bf16.mxu0 0
  %4248 = vmatpush1.bf16.msra.mxu0 0
  %4249 = vmatprep.subr.bf16.mxu0 0
  %4250 = vmatpush1.bf16.msra.mxu0 0
  %4251 = vmatprep.subr.bf16.mxu0 0
  %4252 = vmatpush1.bf16.msra.mxu0 0
  %4253 = vmatprep.subr.bf16.mxu0 0
  %4254 = vmatpush1.bf16.msra.mxu0 0
  %4255 = vmatprep.subr.bf16.mxu0 0
  %4256 = vmatpush1.bf16.msra.mxu0 0
  %4257 = vmatprep.subr.bf16.mxu0 0
  %4258 = vmatpush1.bf16.msra.mxu0 0
  %4259 = vmatprep.subr.bf16.mxu0 0
  %4260 = vmatpush1.bf16.msra.mxu0 0
  %4261 = vmatprep.subr.bf16.mxu0 0
  %4262 = vmatpush1.bf16.msra.mxu0 0
  %4263 = vmatprep.subr.bf16.mxu0 0
  %4264 = vmatpush1.bf16.msra.mxu0 0
  %4265 = vmatprep.subr.bf16.mxu0 0
  %4266 = vmatpush1.bf16.msra.mxu0 0
  %4267 = vmatprep.mubr.bf16.mxu0 0
  %4268 = vmatmul.mubr.bf16.gmra.mrb[0].mxu0 %v4224
  %v4269 = vpop.f32.mrb[0].mxu0
  %v4270 = vadd.f32 0.0, %v4269
  %v4271 = vpop.f32.mrb[0].mxu0
  %v4272 = vpop.f32.mrb[0].mxu0
  %v4273 = vadd.f32 0.0, %v4272
  %v4274 = vpop.f32.mrb[0].mxu0
  %4275 = vmatprep.mubr.bf16.mxu0 0
  %4276 = vmatmul.mubr.bf16.gmra.mrb[0].mxu0 %v4227
  %v4277 = vpop.f32.mrb[0].mxu0
  %v4278 = vadd.f32 0.0, %v4277
  %v4279 = vpop.f32.mrb[0].mxu0
  %v4280 = vpop.f32.mrb[0].mxu0
  %v4281 = vadd.f32 0.0, %v4280
  %v4282 = vpop.f32.mrb[0].mxu0
  %4283 = vmatprep.mubr.bf16.mxu0 0
  %4284 = vmatmul.mubr.bf16.gmra.mrb[0].mxu0 %v4230
  %v4285 = vpop.f32.mrb[0].mxu0
  %v4286 = vadd.f32 0.0, %v4285
  %v4287 = vpop.f32.mrb[0].mxu0
  %v4288 = vpop.f32.mrb[0].mxu0
  %v4289 = vadd.f32 0.0, %v4288
  %v4290 = vpop.f32.mrb[0].mxu0
  %4291 = vmatprep.mubr.bf16.mxu0 0
  %4292 = vmatmul.mubr.bf16.gmra.mrb[0].mxu0 %v4233
  %v4293 = vpop.f32.mrb[0].mxu0
  %v4294 = vadd.f32 0.0, %v4293
  %v4295 = vpop.f32.mrb[0].mxu0
  %v4296 = vpop.f32.mrb[0].mxu0
  %v4297 = vadd.f32 0.0, %v4296
  %v4298 = vpop.f32.mrb[0].mxu0
  %4299 = vdwg.mxu0
  %v4300 = vadd.f32 %v4089, %v4270
  %v4301 = vadd.f32 %v4090, %v4273
  %v4302 = vadd.f32 %v4091, %v4278
  %v4303 = vadd.f32 %v4092, %v4281
  %v4304 = vadd.f32 %v4093, %v4286
  %v4305 = vadd.f32 %v4094, %v4289
  %v4306 = vadd.f32 %v4095, %v4294
  %v4307 = vadd.f32 %v4096, %v4297
  %v4308 = vld [vmem:[%s0 + $0x280] sm:$0xf]
  %v4309 = vld [vmem:[%s0 + $0x284] sm:$0xf]
  %v4310 = vld [vmem:[%s0 + $0x288] sm:$0xf]
  %v4311 = vld [vmem:[%s0 + $0x28c] sm:$0xf]
  %v4312 = vld [vmem:[%s0 + $0x290] sm:$0xf]
  %v4313 = vld [vmem:[%s0 + $0x294] sm:$0xf]
  %v4314 = vld [vmem:[%s0 + $0x298] sm:$0xf]
  %v4315 = vld [vmem:[%s0 + $0x29c] sm:$0xf]
  %v4324 = vunpack.c.l.b16 %v4308
  %v4325 = vunpack.c.l.b16 %v4309
  %v4326 = vunpack.c.l.b16 %v4310
  %v4327 = vunpack.c.l.b16 %v4311
  %v4328 = vunpack.c.l.b16 %v4312
  %v4329 = vunpack.c.l.b16 %v4313
  %v4330 = vunpack.c.l.b16 %v4314
  %v4331 = vunpack.c.l.b16 %v4315
  %v4332 = vpack.c.b16 %v4325, %v4324
  %v4333 = vpack.c.b16 %v4327, %v4326
  %v4334 = vpack.c.b16 %v4329, %v4328
  %v4335 = vpack.c.b16 %v4331, %v4330
  %4340 = vmatprep.subr.bf16.mxu0 0
  %4341 = vmatpush1.bf16.msra.mxu0 %v120
  %4342 = vmatprep.subr.bf16.mxu0 0
  %4343 = vmatpush1.bf16.msra.mxu0 %v121
  %4344 = vmatprep.subr.bf16.mxu0 0
  %4345 = vmatpush1.bf16.msra.mxu0 %v122
  %4346 = vmatprep.subr.bf16.mxu0 0
  %4347 = vmatpush1.bf16.msra.mxu0 %v123
  %4348 = vmatprep.subr.bf16.mxu0 0
  %4349 = vmatpush1.bf16.msra.mxu0 %v124
  %4350 = vmatprep.subr.bf16.mxu0 0
  %4351 = vmatpush1.bf16.msra.mxu0 %v125
  %4352 = vmatprep.subr.bf16.mxu0 0
  %4353 = vmatpush1.bf16.msra.mxu0 %v126
  %4354 = vmatprep.subr.bf16.mxu0 0
  %4355 = vmatpush1.bf16.msra.mxu0 %v127
  %4356 = vmatprep.subr.bf16.mxu0 0
  %4357 = vmatpush1.bf16.msra.mxu0 0
  %4358 = vmatprep.subr.bf16.mxu0 0
  %4359 = vmatpush1.bf16.msra.mxu0 0
  %4360 = vmatprep.subr.bf16.mxu0 0
  %4361 = vmatpush1.bf16.msra.mxu0 0
  %4362 = vmatprep.subr.bf16.mxu0 0
  %4363 = vmatpush1.bf16.msra.mxu0 0
  %4364 = vmatprep.subr.bf16.mxu0 0
  %4365 = vmatpush1.bf16.msra.mxu0 0
  %4366 = vmatprep.subr.bf16.mxu0 0
  %4367 = vmatpush1.bf16.msra.mxu0 0
  %4368 = vmatprep.subr.bf16.mxu0 0
  %4369 = vmatpush1.bf16.msra.mxu0 0
  %4370 = vmatprep.subr.bf16.mxu0 0
  %4371 = vmatpush1.bf16.msra.mxu0 0
  %4372 = vmatprep.mubr.bf16.mxu0 0
  %4373 = vmatmul.mubr.bf16.gmra.mrb[0].mxu0 %v4332
  %v4374 = vpop.f32.mrb[0].mxu0
  %v4375 = vadd.f32 %v54, %v4374
  %v4376 = vpop.f32.mrb[0].mxu0
  %v4377 = vpop.f32.mrb[0].mxu0
  %v4378 = vadd.f32 %v54, %v4377
  %v4379 = vpop.f32.mrb[0].mxu0
  %4380 = vmatprep.mubr.bf16.mxu0 0
  %4381 = vmatmul.mubr.bf16.gmra.mrb[0].mxu0 %v4333
  %v4382 = vpop.f32.mrb[0].mxu0
  %v4383 = vadd.f32 %v54, %v4382
  %v4384 = vpop.f32.mrb[0].mxu0
  %v4385 = vpop.f32.mrb[0].mxu0
  %v4386 = vadd.f32 %v54, %v4385
  %v4387 = vpop.f32.mrb[0].mxu0
  %4388 = vmatprep.mubr.bf16.mxu0 0
  %4389 = vmatmul.mubr.bf16.gmra.mrb[0].mxu0 %v4334
  %v4390 = vpop.f32.mrb[0].mxu0
  %v4391 = vadd.f32 %v54, %v4390
  %v4392 = vpop.f32.mrb[0].mxu0
  %v4393 = vpop.f32.mrb[0].mxu0
  %v4394 = vadd.f32 %v54, %v4393
  %v4395 = vpop.f32.mrb[0].mxu0
  %4396 = vmatprep.mubr.bf16.mxu0 0
  %4397 = vmatmul.mubr.bf16.gmra.mrb[0].mxu0 %v4335
  %v4398 = vpop.f32.mrb[0].mxu0
  %v4399 = vadd.f32 %v54, %v4398
  %v4400 = vpop.f32.mrb[0].mxu0
  %v4401 = vpop.f32.mrb[0].mxu0
  %v4402 = vadd.f32 %v54, %v4401
  %v4403 = vpop.f32.mrb[0].mxu0
  %4404 = vdwg.mxu0
  %v4405 = vmax.f32 %v4375, 0.0
  %v4406 = vmax.f32 %v4378, 0.0
  %v4407 = vmax.f32 %v4383, 0.0
  %v4408 = vmax.f32 %v4386, 0.0
  %v4409 = vmax.f32 %v4391, 0.0
  %v4410 = vmax.f32 %v4394, 0.0
  %v4411 = vmax.f32 %v4399, 0.0
  %v4412 = vmax.f32 %v4402, 0.0
  %v4413 = vpack.c.bf16 %v4406, %v4405
  %v4414 = vpack.c.bf16 %v4408, %v4407
  %v4415 = vpack.c.bf16 %v4410, %v4409
  %v4416 = vpack.c.bf16 %v4412, %v4411
  %s4417 = scalar_lea.vmem %s3, 320
  %v4418 = vld [vmem:[%s4417] sm:$0xf]
  %v4419 = vld [vmem:[%s4417 + $0x4] sm:$0xf]
  %v4420 = vld [vmem:[%s4417 + $0x8] sm:$0xf]
  %v4421 = vld [vmem:[%s4417 + $0xc] sm:$0xf]
  %v4426 = vunpack.c.l.b16 %v4418
  %v4427 = vunpack.c.l.b16 %v4419
  %v4428 = vunpack.c.l.b16 %v4420
  %v4429 = vunpack.c.l.b16 %v4421
  %v4430 = vpack.c.b16 %v4427, %v4426
  %v4431 = vpack.c.b16 %v4429, %v4428
  %v4435 = vsel %vm343, %v4413, 0
  %v4438 = vsel %vm343, %v4414, 0
  %v4441 = vsel %vm343, %v4415, 0
  %v4444 = vsel %vm343, %v4416, 0
  %4446 = vmatprep.subr.bf16.mxu0 0
  %4447 = vmatpush1.bf16.msra.mxu0 %v4430
  %4448 = vmatprep.subr.bf16.mxu0 0
  %4449 = vmatpush1.bf16.msra.mxu0 %v4431
  %4450 = vmatprep.subr.bf16.mxu0 0
  %4451 = vmatpush1.bf16.msra.mxu0 0
  %4452 = vmatprep.subr.bf16.mxu0 0
  %4453 = vmatpush1.bf16.msra.mxu0 0
  %4454 = vmatprep.subr.bf16.mxu0 0
  %4455 = vmatpush1.bf16.msra.mxu0 0
  %4456 = vmatprep.subr.bf16.mxu0 0
  %4457 = vmatpush1.bf16.msra.mxu0 0
  %4458 = vmatprep.subr.bf16.mxu0 0
  %4459 = vmatpush1.bf16.msra.mxu0 0
  %4460 = vmatprep.subr.bf16.mxu0 0
  %4461 = vmatpush1.bf16.msra.mxu0 0
  %4462 = vmatprep.subr.bf16.mxu0 0
  %4463 = vmatpush1.bf16.msra.mxu0 0
  %4464 = vmatprep.subr.bf16.mxu0 0
  %4465 = vmatpush1.bf16.msra.mxu0 0
  %4466 = vmatprep.subr.bf16.mxu0 0
  %4467 = vmatpush1.bf16.msra.mxu0 0
  %4468 = vmatprep.subr.bf16.mxu0 0
  %4469 = vmatpush1.bf16.msra.mxu0 0
  %4470 = vmatprep.subr.bf16.mxu0 0
  %4471 = vmatpush1.bf16.msra.mxu0 0
  %4472 = vmatprep.subr.bf16.mxu0 0
  %4473 = vmatpush1.bf16.msra.mxu0 0
  %4474 = vmatprep.subr.bf16.mxu0 0
  %4475 = vmatpush1.bf16.msra.mxu0 0
  %4476 = vmatprep.subr.bf16.mxu0 0
  %4477 = vmatpush1.bf16.msra.mxu0 0
  %4478 = vmatprep.mubr.bf16.mxu0 0
  %4479 = vmatmul.mubr.bf16.gmra.mrb[0].mxu0 %v4435
  %v4480 = vpop.f32.mrb[0].mxu0
  %v4481 = vadd.f32 0.0, %v4480
  %v4482 = vpop.f32.mrb[0].mxu0
  %v4483 = vpop.f32.mrb[0].mxu0
  %v4484 = vadd.f32 0.0, %v4483
  %v4485 = vpop.f32.mrb[0].mxu0
  %4486 = vmatprep.mubr.bf16.mxu0 0
  %4487 = vmatmul.mubr.bf16.gmra.mrb[0].mxu0 %v4438
  %v4488 = vpop.f32.mrb[0].mxu0
  %v4489 = vadd.f32 0.0, %v4488
  %v4490 = vpop.f32.mrb[0].mxu0
  %v4491 = vpop.f32.mrb[0].mxu0
  %v4492 = vadd.f32 0.0, %v4491
  %v4493 = vpop.f32.mrb[0].mxu0
  %4494 = vmatprep.mubr.bf16.mxu0 0
  %4495 = vmatmul.mubr.bf16.gmra.mrb[0].mxu0 %v4441
  %v4496 = vpop.f32.mrb[0].mxu0
  %v4497 = vadd.f32 0.0, %v4496
  %v4498 = vpop.f32.mrb[0].mxu0
  %v4499 = vpop.f32.mrb[0].mxu0
  %v4500 = vadd.f32 0.0, %v4499
  %v4501 = vpop.f32.mrb[0].mxu0
  %4502 = vmatprep.mubr.bf16.mxu0 0
  %4503 = vmatmul.mubr.bf16.gmra.mrb[0].mxu0 %v4444
  %v4504 = vpop.f32.mrb[0].mxu0
  %v4505 = vadd.f32 0.0, %v4504
  %v4506 = vpop.f32.mrb[0].mxu0
  %v4507 = vpop.f32.mrb[0].mxu0
  %v4508 = vadd.f32 0.0, %v4507
  %v4509 = vpop.f32.mrb[0].mxu0
  %4510 = vdwg.mxu0
  %v4511 = vadd.f32 %v4300, %v4481
  %v4512 = vadd.f32 %v4301, %v4484
  %v4513 = vadd.f32 %v4302, %v4489
  %v4514 = vadd.f32 %v4303, %v4492
  %v4515 = vadd.f32 %v4304, %v4497
  %v4516 = vadd.f32 %v4305, %v4500
  %v4517 = vadd.f32 %v4306, %v4505
  %v4518 = vadd.f32 %v4307, %v4508
  %v4519 = vld [vmem:[%s0 + $0x2a0] sm:$0xf]
  %v4520 = vld [vmem:[%s0 + $0x2a4] sm:$0xf]
  %v4521 = vld [vmem:[%s0 + $0x2a8] sm:$0xf]
  %v4522 = vld [vmem:[%s0 + $0x2ac] sm:$0xf]
  %v4523 = vld [vmem:[%s0 + $0x2b0] sm:$0xf]
  %v4524 = vld [vmem:[%s0 + $0x2b4] sm:$0xf]
  %v4525 = vld [vmem:[%s0 + $0x2b8] sm:$0xf]
  %v4526 = vld [vmem:[%s0 + $0x2bc] sm:$0xf]
  %v4535 = vunpack.c.l.b16 %v4519
  %v4536 = vunpack.c.l.b16 %v4520
  %v4537 = vunpack.c.l.b16 %v4521
  %v4538 = vunpack.c.l.b16 %v4522
  %v4539 = vunpack.c.l.b16 %v4523
  %v4540 = vunpack.c.l.b16 %v4524
  %v4541 = vunpack.c.l.b16 %v4525
  %v4542 = vunpack.c.l.b16 %v4526
  %v4543 = vpack.c.b16 %v4536, %v4535
  %v4544 = vpack.c.b16 %v4538, %v4537
  %v4545 = vpack.c.b16 %v4540, %v4539
  %v4546 = vpack.c.b16 %v4542, %v4541
  %4551 = vmatprep.subr.bf16.mxu0 0
  %4552 = vmatpush1.bf16.msra.mxu0 %v120
  %4553 = vmatprep.subr.bf16.mxu0 0
  %4554 = vmatpush1.bf16.msra.mxu0 %v121
  %4555 = vmatprep.subr.bf16.mxu0 0
  %4556 = vmatpush1.bf16.msra.mxu0 %v122
  %4557 = vmatprep.subr.bf16.mxu0 0
  %4558 = vmatpush1.bf16.msra.mxu0 %v123
  %4559 = vmatprep.subr.bf16.mxu0 0
  %4560 = vmatpush1.bf16.msra.mxu0 %v124
  %4561 = vmatprep.subr.bf16.mxu0 0
  %4562 = vmatpush1.bf16.msra.mxu0 %v125
  %4563 = vmatprep.subr.bf16.mxu0 0
  %4564 = vmatpush1.bf16.msra.mxu0 %v126
  %4565 = vmatprep.subr.bf16.mxu0 0
  %4566 = vmatpush1.bf16.msra.mxu0 %v127
  %4567 = vmatprep.subr.bf16.mxu0 0
  %4568 = vmatpush1.bf16.msra.mxu0 0
  %4569 = vmatprep.subr.bf16.mxu0 0
  %4570 = vmatpush1.bf16.msra.mxu0 0
  %4571 = vmatprep.subr.bf16.mxu0 0
  %4572 = vmatpush1.bf16.msra.mxu0 0
  %4573 = vmatprep.subr.bf16.mxu0 0
  %4574 = vmatpush1.bf16.msra.mxu0 0
  %4575 = vmatprep.subr.bf16.mxu0 0
  %4576 = vmatpush1.bf16.msra.mxu0 0
  %4577 = vmatprep.subr.bf16.mxu0 0
  %4578 = vmatpush1.bf16.msra.mxu0 0
  %4579 = vmatprep.subr.bf16.mxu0 0
  %4580 = vmatpush1.bf16.msra.mxu0 0
  %4581 = vmatprep.subr.bf16.mxu0 0
  %4582 = vmatpush1.bf16.msra.mxu0 0
  %4583 = vmatprep.mubr.bf16.mxu0 0
  %4584 = vmatmul.mubr.bf16.gmra.mrb[0].mxu0 %v4543
  %v4585 = vpop.f32.mrb[0].mxu0
  %v4586 = vadd.f32 %v54, %v4585
  %v4587 = vpop.f32.mrb[0].mxu0
  %v4588 = vpop.f32.mrb[0].mxu0
  %v4589 = vadd.f32 %v54, %v4588
  %v4590 = vpop.f32.mrb[0].mxu0
  %4591 = vmatprep.mubr.bf16.mxu0 0
  %4592 = vmatmul.mubr.bf16.gmra.mrb[0].mxu0 %v4544
  %v4593 = vpop.f32.mrb[0].mxu0
  %v4594 = vadd.f32 %v54, %v4593
  %v4595 = vpop.f32.mrb[0].mxu0
  %v4596 = vpop.f32.mrb[0].mxu0
  %v4597 = vadd.f32 %v54, %v4596
  %v4598 = vpop.f32.mrb[0].mxu0
  %4599 = vmatprep.mubr.bf16.mxu0 0
  %4600 = vmatmul.mubr.bf16.gmra.mrb[0].mxu0 %v4545
  %v4601 = vpop.f32.mrb[0].mxu0
  %v4602 = vadd.f32 %v54, %v4601
  %v4603 = vpop.f32.mrb[0].mxu0
  %v4604 = vpop.f32.mrb[0].mxu0
  %v4605 = vadd.f32 %v54, %v4604
  %v4606 = vpop.f32.mrb[0].mxu0
  %4607 = vmatprep.mubr.bf16.mxu0 0
  %4608 = vmatmul.mubr.bf16.gmra.mrb[0].mxu0 %v4546
  %v4609 = vpop.f32.mrb[0].mxu0
  %v4610 = vadd.f32 %v54, %v4609
  %v4611 = vpop.f32.mrb[0].mxu0
  %v4612 = vpop.f32.mrb[0].mxu0
  %v4613 = vadd.f32 %v54, %v4612
  %v4614 = vpop.f32.mrb[0].mxu0
  %4615 = vdwg.mxu0
  %v4616 = vmax.f32 %v4586, 0.0
  %v4617 = vmax.f32 %v4589, 0.0
  %v4618 = vmax.f32 %v4594, 0.0
  %v4619 = vmax.f32 %v4597, 0.0
  %v4620 = vmax.f32 %v4602, 0.0
  %v4621 = vmax.f32 %v4605, 0.0
  %v4622 = vmax.f32 %v4610, 0.0
  %v4623 = vmax.f32 %v4613, 0.0
  %v4624 = vpack.c.bf16 %v4617, %v4616
  %v4625 = vpack.c.bf16 %v4619, %v4618
  %v4626 = vpack.c.bf16 %v4621, %v4620
  %v4627 = vpack.c.bf16 %v4623, %v4622
  %s4628 = scalar_lea.vmem %s3, 336
  %v4629 = vld [vmem:[%s4628] sm:$0xf]
  %v4630 = vld [vmem:[%s4628 + $0x4] sm:$0xf]
  %v4631 = vld [vmem:[%s4628 + $0x8] sm:$0xf]
  %v4632 = vld [vmem:[%s4628 + $0xc] sm:$0xf]
  %v4637 = vunpack.c.l.b16 %v4629
  %v4638 = vunpack.c.l.b16 %v4630
  %v4639 = vunpack.c.l.b16 %v4631
  %v4640 = vunpack.c.l.b16 %v4632
  %v4641 = vpack.c.b16 %v4638, %v4637
  %v4642 = vpack.c.b16 %v4640, %v4639
  %v4646 = vsel %vm343, %v4624, 0
  %v4649 = vsel %vm343, %v4625, 0
  %v4652 = vsel %vm343, %v4626, 0
  %v4655 = vsel %vm343, %v4627, 0
  %4657 = vmatprep.subr.bf16.mxu0 0
  %4658 = vmatpush1.bf16.msra.mxu0 %v4641
  %4659 = vmatprep.subr.bf16.mxu0 0
  %4660 = vmatpush1.bf16.msra.mxu0 %v4642
  %4661 = vmatprep.subr.bf16.mxu0 0
  %4662 = vmatpush1.bf16.msra.mxu0 0
  %4663 = vmatprep.subr.bf16.mxu0 0
  %4664 = vmatpush1.bf16.msra.mxu0 0
  %4665 = vmatprep.subr.bf16.mxu0 0
  %4666 = vmatpush1.bf16.msra.mxu0 0
  %4667 = vmatprep.subr.bf16.mxu0 0
  %4668 = vmatpush1.bf16.msra.mxu0 0
  %4669 = vmatprep.subr.bf16.mxu0 0
  %4670 = vmatpush1.bf16.msra.mxu0 0
  %4671 = vmatprep.subr.bf16.mxu0 0
  %4672 = vmatpush1.bf16.msra.mxu0 0
  %4673 = vmatprep.subr.bf16.mxu0 0
  %4674 = vmatpush1.bf16.msra.mxu0 0
  %4675 = vmatprep.subr.bf16.mxu0 0
  %4676 = vmatpush1.bf16.msra.mxu0 0
  %4677 = vmatprep.subr.bf16.mxu0 0
  %4678 = vmatpush1.bf16.msra.mxu0 0
  %4679 = vmatprep.subr.bf16.mxu0 0
  %4680 = vmatpush1.bf16.msra.mxu0 0
  %4681 = vmatprep.subr.bf16.mxu0 0
  %4682 = vmatpush1.bf16.msra.mxu0 0
  %4683 = vmatprep.subr.bf16.mxu0 0
  %4684 = vmatpush1.bf16.msra.mxu0 0
  %4685 = vmatprep.subr.bf16.mxu0 0
  %4686 = vmatpush1.bf16.msra.mxu0 0
  %4687 = vmatprep.subr.bf16.mxu0 0
  %4688 = vmatpush1.bf16.msra.mxu0 0
  %4689 = vmatprep.mubr.bf16.mxu0 0
  %4690 = vmatmul.mubr.bf16.gmra.mrb[0].mxu0 %v4646
  %v4691 = vpop.f32.mrb[0].mxu0
  %v4692 = vadd.f32 0.0, %v4691
  %v4693 = vpop.f32.mrb[0].mxu0
  %v4694 = vpop.f32.mrb[0].mxu0
  %v4695 = vadd.f32 0.0, %v4694
  %v4696 = vpop.f32.mrb[0].mxu0
  %4697 = vmatprep.mubr.bf16.mxu0 0
  %4698 = vmatmul.mubr.bf16.gmra.mrb[0].mxu0 %v4649
  %v4699 = vpop.f32.mrb[0].mxu0
  %v4700 = vadd.f32 0.0, %v4699
  %v4701 = vpop.f32.mrb[0].mxu0
  %v4702 = vpop.f32.mrb[0].mxu0
  %v4703 = vadd.f32 0.0, %v4702
  %v4704 = vpop.f32.mrb[0].mxu0
  %4705 = vmatprep.mubr.bf16.mxu0 0
  %4706 = vmatmul.mubr.bf16.gmra.mrb[0].mxu0 %v4652
  %v4707 = vpop.f32.mrb[0].mxu0
  %v4708 = vadd.f32 0.0, %v4707
  %v4709 = vpop.f32.mrb[0].mxu0
  %v4710 = vpop.f32.mrb[0].mxu0
  %v4711 = vadd.f32 0.0, %v4710
  %v4712 = vpop.f32.mrb[0].mxu0
  %4713 = vmatprep.mubr.bf16.mxu0 0
  %4714 = vmatmul.mubr.bf16.gmra.mrb[0].mxu0 %v4655
  %v4715 = vpop.f32.mrb[0].mxu0
  %v4716 = vadd.f32 0.0, %v4715
  %v4717 = vpop.f32.mrb[0].mxu0
  %v4718 = vpop.f32.mrb[0].mxu0
  %v4719 = vadd.f32 0.0, %v4718
  %v4720 = vpop.f32.mrb[0].mxu0
  %4721 = vdwg.mxu0
  %v4722 = vadd.f32 %v4511, %v4692
  %v4723 = vadd.f32 %v4512, %v4695
  %v4724 = vadd.f32 %v4513, %v4700
  %v4725 = vadd.f32 %v4514, %v4703
  %v4726 = vadd.f32 %v4515, %v4708
  %v4727 = vadd.f32 %v4516, %v4711
  %v4728 = vadd.f32 %v4517, %v4716
  %v4729 = vadd.f32 %v4518, %v4719
  %v4730 = vld [vmem:[%s0 + $0x2c0] sm:$0xf]
  %v4731 = vld [vmem:[%s0 + $0x2c4] sm:$0xf]
  %v4732 = vld [vmem:[%s0 + $0x2c8] sm:$0xf]
  %v4733 = vld [vmem:[%s0 + $0x2cc] sm:$0xf]
  %v4734 = vld [vmem:[%s0 + $0x2d0] sm:$0xf]
  %v4735 = vld [vmem:[%s0 + $0x2d4] sm:$0xf]
  %v4736 = vld [vmem:[%s0 + $0x2d8] sm:$0xf]
  %v4737 = vld [vmem:[%s0 + $0x2dc] sm:$0xf]
  %v4746 = vunpack.c.l.b16 %v4730
  %v4747 = vunpack.c.l.b16 %v4731
  %v4748 = vunpack.c.l.b16 %v4732
  %v4749 = vunpack.c.l.b16 %v4733
  %v4750 = vunpack.c.l.b16 %v4734
  %v4751 = vunpack.c.l.b16 %v4735
  %v4752 = vunpack.c.l.b16 %v4736
  %v4753 = vunpack.c.l.b16 %v4737
  %v4754 = vpack.c.b16 %v4747, %v4746
  %v4755 = vpack.c.b16 %v4749, %v4748
  %v4756 = vpack.c.b16 %v4751, %v4750
  %v4757 = vpack.c.b16 %v4753, %v4752
  %4762 = vmatprep.subr.bf16.mxu0 0
  %4763 = vmatpush1.bf16.msra.mxu0 %v120
  %4764 = vmatprep.subr.bf16.mxu0 0
  %4765 = vmatpush1.bf16.msra.mxu0 %v121
  %4766 = vmatprep.subr.bf16.mxu0 0
  %4767 = vmatpush1.bf16.msra.mxu0 %v122
  %4768 = vmatprep.subr.bf16.mxu0 0
  %4769 = vmatpush1.bf16.msra.mxu0 %v123
  %4770 = vmatprep.subr.bf16.mxu0 0
  %4771 = vmatpush1.bf16.msra.mxu0 %v124
  %4772 = vmatprep.subr.bf16.mxu0 0
  %4773 = vmatpush1.bf16.msra.mxu0 %v125
  %4774 = vmatprep.subr.bf16.mxu0 0
  %4775 = vmatpush1.bf16.msra.mxu0 %v126
  %4776 = vmatprep.subr.bf16.mxu0 0
  %4777 = vmatpush1.bf16.msra.mxu0 %v127
  %4778 = vmatprep.subr.bf16.mxu0 0
  %4779 = vmatpush1.bf16.msra.mxu0 0
  %4780 = vmatprep.subr.bf16.mxu0 0
  %4781 = vmatpush1.bf16.msra.mxu0 0
  %4782 = vmatprep.subr.bf16.mxu0 0
  %4783 = vmatpush1.bf16.msra.mxu0 0
  %4784 = vmatprep.subr.bf16.mxu0 0
  %4785 = vmatpush1.bf16.msra.mxu0 0
  %4786 = vmatprep.subr.bf16.mxu0 0
  %4787 = vmatpush1.bf16.msra.mxu0 0
  %4788 = vmatprep.subr.bf16.mxu0 0
  %4789 = vmatpush1.bf16.msra.mxu0 0
  %4790 = vmatprep.subr.bf16.mxu0 0
  %4791 = vmatpush1.bf16.msra.mxu0 0
  %4792 = vmatprep.subr.bf16.mxu0 0
  %4793 = vmatpush1.bf16.msra.mxu0 0
  %4794 = vmatprep.mubr.bf16.mxu0 0
  %4795 = vmatmul.mubr.bf16.gmra.mrb[0].mxu0 %v4754
  %v4796 = vpop.f32.mrb[0].mxu0
  %v4797 = vadd.f32 %v54, %v4796
  %v4798 = vpop.f32.mrb[0].mxu0
  %v4799 = vpop.f32.mrb[0].mxu0
  %v4800 = vadd.f32 %v54, %v4799
  %v4801 = vpop.f32.mrb[0].mxu0
  %4802 = vmatprep.mubr.bf16.mxu0 0
  %4803 = vmatmul.mubr.bf16.gmra.mrb[0].mxu0 %v4755
  %v4804 = vpop.f32.mrb[0].mxu0
  %v4805 = vadd.f32 %v54, %v4804
  %v4806 = vpop.f32.mrb[0].mxu0
  %v4807 = vpop.f32.mrb[0].mxu0
  %v4808 = vadd.f32 %v54, %v4807
  %v4809 = vpop.f32.mrb[0].mxu0
  %4810 = vmatprep.mubr.bf16.mxu0 0
  %4811 = vmatmul.mubr.bf16.gmra.mrb[0].mxu0 %v4756
  %v4812 = vpop.f32.mrb[0].mxu0
  %v4813 = vadd.f32 %v54, %v4812
  %v4814 = vpop.f32.mrb[0].mxu0
  %v4815 = vpop.f32.mrb[0].mxu0
  %v4816 = vadd.f32 %v54, %v4815
  %v4817 = vpop.f32.mrb[0].mxu0
  %4818 = vmatprep.mubr.bf16.mxu0 0
  %4819 = vmatmul.mubr.bf16.gmra.mrb[0].mxu0 %v4757
  %v4820 = vpop.f32.mrb[0].mxu0
  %v4821 = vadd.f32 %v54, %v4820
  %v4822 = vpop.f32.mrb[0].mxu0
  %v4823 = vpop.f32.mrb[0].mxu0
  %v4824 = vadd.f32 %v54, %v4823
  %v4825 = vpop.f32.mrb[0].mxu0
  %4826 = vdwg.mxu0
  %v4827 = vmax.f32 %v4797, 0.0
  %v4828 = vmax.f32 %v4800, 0.0
  %v4829 = vmax.f32 %v4805, 0.0
  %v4830 = vmax.f32 %v4808, 0.0
  %v4831 = vmax.f32 %v4813, 0.0
  %v4832 = vmax.f32 %v4816, 0.0
  %v4833 = vmax.f32 %v4821, 0.0
  %v4834 = vmax.f32 %v4824, 0.0
  %v4835 = vpack.c.bf16 %v4828, %v4827
  %v4836 = vpack.c.bf16 %v4830, %v4829
  %v4837 = vpack.c.bf16 %v4832, %v4831
  %v4838 = vpack.c.bf16 %v4834, %v4833
  %s4839 = scalar_lea.vmem %s3, 352
  %v4840 = vld [vmem:[%s4839] sm:$0xf]
  %v4841 = vld [vmem:[%s4839 + $0x4] sm:$0xf]
  %v4842 = vld [vmem:[%s4839 + $0x8] sm:$0xf]
  %v4843 = vld [vmem:[%s4839 + $0xc] sm:$0xf]
  %v4848 = vunpack.c.l.b16 %v4840
  %v4849 = vunpack.c.l.b16 %v4841
  %v4850 = vunpack.c.l.b16 %v4842
  %v4851 = vunpack.c.l.b16 %v4843
  %v4852 = vpack.c.b16 %v4849, %v4848
  %v4853 = vpack.c.b16 %v4851, %v4850
  %v4857 = vsel %vm343, %v4835, 0
  %v4860 = vsel %vm343, %v4836, 0
  %v4863 = vsel %vm343, %v4837, 0
  %v4866 = vsel %vm343, %v4838, 0
  %4868 = vmatprep.subr.bf16.mxu0 0
  %4869 = vmatpush1.bf16.msra.mxu0 %v4852
  %4870 = vmatprep.subr.bf16.mxu0 0
  %4871 = vmatpush1.bf16.msra.mxu0 %v4853
  %4872 = vmatprep.subr.bf16.mxu0 0
  %4873 = vmatpush1.bf16.msra.mxu0 0
  %4874 = vmatprep.subr.bf16.mxu0 0
  %4875 = vmatpush1.bf16.msra.mxu0 0
  %4876 = vmatprep.subr.bf16.mxu0 0
  %4877 = vmatpush1.bf16.msra.mxu0 0
  %4878 = vmatprep.subr.bf16.mxu0 0
  %4879 = vmatpush1.bf16.msra.mxu0 0
  %4880 = vmatprep.subr.bf16.mxu0 0
  %4881 = vmatpush1.bf16.msra.mxu0 0
  %4882 = vmatprep.subr.bf16.mxu0 0
  %4883 = vmatpush1.bf16.msra.mxu0 0
  %4884 = vmatprep.subr.bf16.mxu0 0
  %4885 = vmatpush1.bf16.msra.mxu0 0
  %4886 = vmatprep.subr.bf16.mxu0 0
  %4887 = vmatpush1.bf16.msra.mxu0 0
  %4888 = vmatprep.subr.bf16.mxu0 0
  %4889 = vmatpush1.bf16.msra.mxu0 0
  %4890 = vmatprep.subr.bf16.mxu0 0
  %4891 = vmatpush1.bf16.msra.mxu0 0
  %4892 = vmatprep.subr.bf16.mxu0 0
  %4893 = vmatpush1.bf16.msra.mxu0 0
  %4894 = vmatprep.subr.bf16.mxu0 0
  %4895 = vmatpush1.bf16.msra.mxu0 0
  %4896 = vmatprep.subr.bf16.mxu0 0
  %4897 = vmatpush1.bf16.msra.mxu0 0
  %4898 = vmatprep.subr.bf16.mxu0 0
  %4899 = vmatpush1.bf16.msra.mxu0 0
  %4900 = vmatprep.mubr.bf16.mxu0 0
  %4901 = vmatmul.mubr.bf16.gmra.mrb[0].mxu0 %v4857
  %v4902 = vpop.f32.mrb[0].mxu0
  %v4903 = vadd.f32 0.0, %v4902
  %v4904 = vpop.f32.mrb[0].mxu0
  %v4905 = vpop.f32.mrb[0].mxu0
  %v4906 = vadd.f32 0.0, %v4905
  %v4907 = vpop.f32.mrb[0].mxu0
  %4908 = vmatprep.mubr.bf16.mxu0 0
  %4909 = vmatmul.mubr.bf16.gmra.mrb[0].mxu0 %v4860
  %v4910 = vpop.f32.mrb[0].mxu0
  %v4911 = vadd.f32 0.0, %v4910
  %v4912 = vpop.f32.mrb[0].mxu0
  %v4913 = vpop.f32.mrb[0].mxu0
  %v4914 = vadd.f32 0.0, %v4913
  %v4915 = vpop.f32.mrb[0].mxu0
  %4916 = vmatprep.mubr.bf16.mxu0 0
  %4917 = vmatmul.mubr.bf16.gmra.mrb[0].mxu0 %v4863
  %v4918 = vpop.f32.mrb[0].mxu0
  %v4919 = vadd.f32 0.0, %v4918
  %v4920 = vpop.f32.mrb[0].mxu0
  %v4921 = vpop.f32.mrb[0].mxu0
  %v4922 = vadd.f32 0.0, %v4921
  %v4923 = vpop.f32.mrb[0].mxu0
  %4924 = vmatprep.mubr.bf16.mxu0 0
  %4925 = vmatmul.mubr.bf16.gmra.mrb[0].mxu0 %v4866
  %v4926 = vpop.f32.mrb[0].mxu0
  %v4927 = vadd.f32 0.0, %v4926
  %v4928 = vpop.f32.mrb[0].mxu0
  %v4929 = vpop.f32.mrb[0].mxu0
  %v4930 = vadd.f32 0.0, %v4929
  %v4931 = vpop.f32.mrb[0].mxu0
  %4932 = vdwg.mxu0
  %v4933 = vadd.f32 %v4722, %v4903
  %v4934 = vadd.f32 %v4723, %v4906
  %v4935 = vadd.f32 %v4724, %v4911
  %v4936 = vadd.f32 %v4725, %v4914
  %v4937 = vadd.f32 %v4726, %v4919
  %v4938 = vadd.f32 %v4727, %v4922
  %v4939 = vadd.f32 %v4728, %v4927
  %v4940 = vadd.f32 %v4729, %v4930
  %v4941 = vld [vmem:[%s0 + $0x2e0] sm:$0xf]
  %v4942 = vld [vmem:[%s0 + $0x2e4] sm:$0xf]
  %v4943 = vld [vmem:[%s0 + $0x2e8] sm:$0xf]
  %v4944 = vld [vmem:[%s0 + $0x2ec] sm:$0xf]
  %v4945 = vld [vmem:[%s0 + $0x2f0] sm:$0xf]
  %v4946 = vld [vmem:[%s0 + $0x2f4] sm:$0xf]
  %v4947 = vld [vmem:[%s0 + $0x2f8] sm:$0xf]
  %v4948 = vld [vmem:[%s0 + $0x2fc] sm:$0xf]
  %v4957 = vunpack.c.l.b16 %v4941
  %v4958 = vunpack.c.l.b16 %v4942
  %v4959 = vunpack.c.l.b16 %v4943
  %v4960 = vunpack.c.l.b16 %v4944
  %v4961 = vunpack.c.l.b16 %v4945
  %v4962 = vunpack.c.l.b16 %v4946
  %v4963 = vunpack.c.l.b16 %v4947
  %v4964 = vunpack.c.l.b16 %v4948
  %v4965 = vpack.c.b16 %v4958, %v4957
  %v4966 = vpack.c.b16 %v4960, %v4959
  %v4967 = vpack.c.b16 %v4962, %v4961
  %v4968 = vpack.c.b16 %v4964, %v4963
  %4973 = vmatprep.subr.bf16.mxu0 0
  %4974 = vmatpush1.bf16.msra.mxu0 %v120
  %4975 = vmatprep.subr.bf16.mxu0 0
  %4976 = vmatpush1.bf16.msra.mxu0 %v121
  %4977 = vmatprep.subr.bf16.mxu0 0
  %4978 = vmatpush1.bf16.msra.mxu0 %v122
  %4979 = vmatprep.subr.bf16.mxu0 0
  %4980 = vmatpush1.bf16.msra.mxu0 %v123
  %4981 = vmatprep.subr.bf16.mxu0 0
  %4982 = vmatpush1.bf16.msra.mxu0 %v124
  %4983 = vmatprep.subr.bf16.mxu0 0
  %4984 = vmatpush1.bf16.msra.mxu0 %v125
  %4985 = vmatprep.subr.bf16.mxu0 0
  %4986 = vmatpush1.bf16.msra.mxu0 %v126
  %4987 = vmatprep.subr.bf16.mxu0 0
  %4988 = vmatpush1.bf16.msra.mxu0 %v127
  %4989 = vmatprep.subr.bf16.mxu0 0
  %4990 = vmatpush1.bf16.msra.mxu0 0
  %4991 = vmatprep.subr.bf16.mxu0 0
  %4992 = vmatpush1.bf16.msra.mxu0 0
  %4993 = vmatprep.subr.bf16.mxu0 0
  %4994 = vmatpush1.bf16.msra.mxu0 0
  %4995 = vmatprep.subr.bf16.mxu0 0
  %4996 = vmatpush1.bf16.msra.mxu0 0
  %4997 = vmatprep.subr.bf16.mxu0 0
  %4998 = vmatpush1.bf16.msra.mxu0 0
  %4999 = vmatprep.subr.bf16.mxu0 0
  %5000 = vmatpush1.bf16.msra.mxu0 0
  %5001 = vmatprep.subr.bf16.mxu0 0
  %5002 = vmatpush1.bf16.msra.mxu0 0
  %5003 = vmatprep.subr.bf16.mxu0 0
  %5004 = vmatpush1.bf16.msra.mxu0 0
  %5005 = vmatprep.mubr.bf16.mxu0 0
  %5006 = vmatmul.mubr.bf16.gmra.mrb[0].mxu0 %v4965
  %v5007 = vpop.f32.mrb[0].mxu0
  %v5008 = vadd.f32 %v54, %v5007
  %v5009 = vpop.f32.mrb[0].mxu0
  %v5010 = vpop.f32.mrb[0].mxu0
  %v5011 = vadd.f32 %v54, %v5010
  %v5012 = vpop.f32.mrb[0].mxu0
  %5013 = vmatprep.mubr.bf16.mxu0 0
  %5014 = vmatmul.mubr.bf16.gmra.mrb[0].mxu0 %v4966
  %v5015 = vpop.f32.mrb[0].mxu0
  %v5016 = vadd.f32 %v54, %v5015
  %v5017 = vpop.f32.mrb[0].mxu0
  %v5018 = vpop.f32.mrb[0].mxu0
  %v5019 = vadd.f32 %v54, %v5018
  %v5020 = vpop.f32.mrb[0].mxu0
  %5021 = vmatprep.mubr.bf16.mxu0 0
  %5022 = vmatmul.mubr.bf16.gmra.mrb[0].mxu0 %v4967
  %v5023 = vpop.f32.mrb[0].mxu0
  %v5024 = vadd.f32 %v54, %v5023
  %v5025 = vpop.f32.mrb[0].mxu0
  %v5026 = vpop.f32.mrb[0].mxu0
  %v5027 = vadd.f32 %v54, %v5026
  %v5028 = vpop.f32.mrb[0].mxu0
  %5029 = vmatprep.mubr.bf16.mxu0 0
  %5030 = vmatmul.mubr.bf16.gmra.mrb[0].mxu0 %v4968
  %v5031 = vpop.f32.mrb[0].mxu0
  %v5032 = vadd.f32 %v54, %v5031
  %v5033 = vpop.f32.mrb[0].mxu0
  %v5034 = vpop.f32.mrb[0].mxu0
  %v5035 = vadd.f32 %v54, %v5034
  %v5036 = vpop.f32.mrb[0].mxu0
  %5037 = vdwg.mxu0
  %v5038 = vmax.f32 %v5008, 0.0
  %v5039 = vmax.f32 %v5011, 0.0
  %v5040 = vmax.f32 %v5016, 0.0
  %v5041 = vmax.f32 %v5019, 0.0
  %v5042 = vmax.f32 %v5024, 0.0
  %v5043 = vmax.f32 %v5027, 0.0
  %v5044 = vmax.f32 %v5032, 0.0
  %v5045 = vmax.f32 %v5035, 0.0
  %v5046 = vpack.c.bf16 %v5039, %v5038
  %v5047 = vpack.c.bf16 %v5041, %v5040
  %v5048 = vpack.c.bf16 %v5043, %v5042
  %v5049 = vpack.c.bf16 %v5045, %v5044
  %s5050 = scalar_lea.vmem %s3, 368
  %v5051 = vld [vmem:[%s5050] sm:$0xf]
  %v5052 = vld [vmem:[%s5050 + $0x4] sm:$0xf]
  %v5053 = vld [vmem:[%s5050 + $0x8] sm:$0xf]
  %v5054 = vld [vmem:[%s5050 + $0xc] sm:$0xf]
  %v5059 = vunpack.c.l.b16 %v5051
  %v5060 = vunpack.c.l.b16 %v5052
  %v5061 = vunpack.c.l.b16 %v5053
  %v5062 = vunpack.c.l.b16 %v5054
  %v5063 = vpack.c.b16 %v5060, %v5059
  %v5064 = vpack.c.b16 %v5062, %v5061
  %v5068 = vsel %vm343, %v5046, 0
  %v5071 = vsel %vm343, %v5047, 0
  %v5074 = vsel %vm343, %v5048, 0
  %v5077 = vsel %vm343, %v5049, 0
  %5079 = vmatprep.subr.bf16.mxu0 0
  %5080 = vmatpush1.bf16.msra.mxu0 %v5063
  %5081 = vmatprep.subr.bf16.mxu0 0
  %5082 = vmatpush1.bf16.msra.mxu0 %v5064
  %5083 = vmatprep.subr.bf16.mxu0 0
  %5084 = vmatpush1.bf16.msra.mxu0 0
  %5085 = vmatprep.subr.bf16.mxu0 0
  %5086 = vmatpush1.bf16.msra.mxu0 0
  %5087 = vmatprep.subr.bf16.mxu0 0
  %5088 = vmatpush1.bf16.msra.mxu0 0
  %5089 = vmatprep.subr.bf16.mxu0 0
  %5090 = vmatpush1.bf16.msra.mxu0 0
  %5091 = vmatprep.subr.bf16.mxu0 0
  %5092 = vmatpush1.bf16.msra.mxu0 0
  %5093 = vmatprep.subr.bf16.mxu0 0
  %5094 = vmatpush1.bf16.msra.mxu0 0
  %5095 = vmatprep.subr.bf16.mxu0 0
  %5096 = vmatpush1.bf16.msra.mxu0 0
  %5097 = vmatprep.subr.bf16.mxu0 0
  %5098 = vmatpush1.bf16.msra.mxu0 0
  %5099 = vmatprep.subr.bf16.mxu0 0
  %5100 = vmatpush1.bf16.msra.mxu0 0
  %5101 = vmatprep.subr.bf16.mxu0 0
  %5102 = vmatpush1.bf16.msra.mxu0 0
  %5103 = vmatprep.subr.bf16.mxu0 0
  %5104 = vmatpush1.bf16.msra.mxu0 0
  %5105 = vmatprep.subr.bf16.mxu0 0
  %5106 = vmatpush1.bf16.msra.mxu0 0
  %5107 = vmatprep.subr.bf16.mxu0 0
  %5108 = vmatpush1.bf16.msra.mxu0 0
  %5109 = vmatprep.subr.bf16.mxu0 0
  %5110 = vmatpush1.bf16.msra.mxu0 0
  %5111 = vmatprep.mubr.bf16.mxu0 0
  %5112 = vmatmul.mubr.bf16.gmra.mrb[0].mxu0 %v5068
  %v5113 = vpop.f32.mrb[0].mxu0
  %v5114 = vadd.f32 0.0, %v5113
  %v5115 = vpop.f32.mrb[0].mxu0
  %v5116 = vpop.f32.mrb[0].mxu0
  %v5117 = vadd.f32 0.0, %v5116
  %v5118 = vpop.f32.mrb[0].mxu0
  %5119 = vmatprep.mubr.bf16.mxu0 0
  %5120 = vmatmul.mubr.bf16.gmra.mrb[0].mxu0 %v5071
  %v5121 = vpop.f32.mrb[0].mxu0
  %v5122 = vadd.f32 0.0, %v5121
  %v5123 = vpop.f32.mrb[0].mxu0
  %v5124 = vpop.f32.mrb[0].mxu0
  %v5125 = vadd.f32 0.0, %v5124
  %v5126 = vpop.f32.mrb[0].mxu0
  %5127 = vmatprep.mubr.bf16.mxu0 0
  %5128 = vmatmul.mubr.bf16.gmra.mrb[0].mxu0 %v5074
  %v5129 = vpop.f32.mrb[0].mxu0
  %v5130 = vadd.f32 0.0, %v5129
  %v5131 = vpop.f32.mrb[0].mxu0
  %v5132 = vpop.f32.mrb[0].mxu0
  %v5133 = vadd.f32 0.0, %v5132
  %v5134 = vpop.f32.mrb[0].mxu0
  %5135 = vmatprep.mubr.bf16.mxu0 0
  %5136 = vmatmul.mubr.bf16.gmra.mrb[0].mxu0 %v5077
  %v5137 = vpop.f32.mrb[0].mxu0
  %v5138 = vadd.f32 0.0, %v5137
  %v5139 = vpop.f32.mrb[0].mxu0
  %v5140 = vpop.f32.mrb[0].mxu0
  %v5141 = vadd.f32 0.0, %v5140
  %v5142 = vpop.f32.mrb[0].mxu0
  %5143 = vdwg.mxu0
  %v5144 = vadd.f32 %v4933, %v5114
  %v5145 = vadd.f32 %v4934, %v5117
  %v5146 = vadd.f32 %v4935, %v5122
  %v5147 = vadd.f32 %v4936, %v5125
  %v5148 = vadd.f32 %v4937, %v5130
  %v5149 = vadd.f32 %v4938, %v5133
  %v5150 = vadd.f32 %v4939, %v5138
  %v5151 = vadd.f32 %v4940, %v5141
  %v5152 = vld [vmem:[%s0 + $0x300] sm:$0xf]
  %v5153 = vld [vmem:[%s0 + $0x304] sm:$0xf]
  %v5154 = vld [vmem:[%s0 + $0x308] sm:$0xf]
  %v5155 = vld [vmem:[%s0 + $0x30c] sm:$0xf]
  %v5156 = vld [vmem:[%s0 + $0x310] sm:$0xf]
  %v5157 = vld [vmem:[%s0 + $0x314] sm:$0xf]
  %v5158 = vld [vmem:[%s0 + $0x318] sm:$0xf]
  %v5159 = vld [vmem:[%s0 + $0x31c] sm:$0xf]
  %v5168 = vunpack.c.l.b16 %v5152
  %v5169 = vunpack.c.l.b16 %v5153
  %v5170 = vunpack.c.l.b16 %v5154
  %v5171 = vunpack.c.l.b16 %v5155
  %v5172 = vunpack.c.l.b16 %v5156
  %v5173 = vunpack.c.l.b16 %v5157
  %v5174 = vunpack.c.l.b16 %v5158
  %v5175 = vunpack.c.l.b16 %v5159
  %v5176 = vpack.c.b16 %v5169, %v5168
  %v5177 = vpack.c.b16 %v5171, %v5170
  %v5178 = vpack.c.b16 %v5173, %v5172
  %v5179 = vpack.c.b16 %v5175, %v5174
  %5184 = vmatprep.subr.bf16.mxu0 0
  %5185 = vmatpush1.bf16.msra.mxu0 %v120
  %5186 = vmatprep.subr.bf16.mxu0 0
  %5187 = vmatpush1.bf16.msra.mxu0 %v121
  %5188 = vmatprep.subr.bf16.mxu0 0
  %5189 = vmatpush1.bf16.msra.mxu0 %v122
  %5190 = vmatprep.subr.bf16.mxu0 0
  %5191 = vmatpush1.bf16.msra.mxu0 %v123
  %5192 = vmatprep.subr.bf16.mxu0 0
  %5193 = vmatpush1.bf16.msra.mxu0 %v124
  %5194 = vmatprep.subr.bf16.mxu0 0
  %5195 = vmatpush1.bf16.msra.mxu0 %v125
  %5196 = vmatprep.subr.bf16.mxu0 0
  %5197 = vmatpush1.bf16.msra.mxu0 %v126
  %5198 = vmatprep.subr.bf16.mxu0 0
  %5199 = vmatpush1.bf16.msra.mxu0 %v127
  %5200 = vmatprep.subr.bf16.mxu0 0
  %5201 = vmatpush1.bf16.msra.mxu0 0
  %5202 = vmatprep.subr.bf16.mxu0 0
  %5203 = vmatpush1.bf16.msra.mxu0 0
  %5204 = vmatprep.subr.bf16.mxu0 0
  %5205 = vmatpush1.bf16.msra.mxu0 0
  %5206 = vmatprep.subr.bf16.mxu0 0
  %5207 = vmatpush1.bf16.msra.mxu0 0
  %5208 = vmatprep.subr.bf16.mxu0 0
  %5209 = vmatpush1.bf16.msra.mxu0 0
  %5210 = vmatprep.subr.bf16.mxu0 0
  %5211 = vmatpush1.bf16.msra.mxu0 0
  %5212 = vmatprep.subr.bf16.mxu0 0
  %5213 = vmatpush1.bf16.msra.mxu0 0
  %5214 = vmatprep.subr.bf16.mxu0 0
  %5215 = vmatpush1.bf16.msra.mxu0 0
  %5216 = vmatprep.mubr.bf16.mxu0 0
  %5217 = vmatmul.mubr.bf16.gmra.mrb[0].mxu0 %v5176
  %v5218 = vpop.f32.mrb[0].mxu0
  %v5219 = vadd.f32 %v54, %v5218
  %v5220 = vpop.f32.mrb[0].mxu0
  %v5221 = vpop.f32.mrb[0].mxu0
  %v5222 = vadd.f32 %v54, %v5221
  %v5223 = vpop.f32.mrb[0].mxu0
  %5224 = vmatprep.mubr.bf16.mxu0 0
  %5225 = vmatmul.mubr.bf16.gmra.mrb[0].mxu0 %v5177
  %v5226 = vpop.f32.mrb[0].mxu0
  %v5227 = vadd.f32 %v54, %v5226
  %v5228 = vpop.f32.mrb[0].mxu0
  %v5229 = vpop.f32.mrb[0].mxu0
  %v5230 = vadd.f32 %v54, %v5229
  %v5231 = vpop.f32.mrb[0].mxu0
  %5232 = vmatprep.mubr.bf16.mxu0 0
  %5233 = vmatmul.mubr.bf16.gmra.mrb[0].mxu0 %v5178
  %v5234 = vpop.f32.mrb[0].mxu0
  %v5235 = vadd.f32 %v54, %v5234
  %v5236 = vpop.f32.mrb[0].mxu0
  %v5237 = vpop.f32.mrb[0].mxu0
  %v5238 = vadd.f32 %v54, %v5237
  %v5239 = vpop.f32.mrb[0].mxu0
  %5240 = vmatprep.mubr.bf16.mxu0 0
  %5241 = vmatmul.mubr.bf16.gmra.mrb[0].mxu0 %v5179
  %v5242 = vpop.f32.mrb[0].mxu0
  %v5243 = vadd.f32 %v54, %v5242
  %v5244 = vpop.f32.mrb[0].mxu0
  %v5245 = vpop.f32.mrb[0].mxu0
  %v5246 = vadd.f32 %v54, %v5245
  %v5247 = vpop.f32.mrb[0].mxu0
  %5248 = vdwg.mxu0
  %v5249 = vmax.f32 %v5219, 0.0
  %v5250 = vmax.f32 %v5222, 0.0
  %v5251 = vmax.f32 %v5227, 0.0
  %v5252 = vmax.f32 %v5230, 0.0
  %v5253 = vmax.f32 %v5235, 0.0
  %v5254 = vmax.f32 %v5238, 0.0
  %v5255 = vmax.f32 %v5243, 0.0
  %v5256 = vmax.f32 %v5246, 0.0
  %v5257 = vpack.c.bf16 %v5250, %v5249
  %v5258 = vpack.c.bf16 %v5252, %v5251
  %v5259 = vpack.c.bf16 %v5254, %v5253
  %v5260 = vpack.c.bf16 %v5256, %v5255
  %s5261 = scalar_lea.vmem %s3, 384
  %v5262 = vld [vmem:[%s5261] sm:$0xf]
  %v5263 = vld [vmem:[%s5261 + $0x4] sm:$0xf]
  %v5264 = vld [vmem:[%s5261 + $0x8] sm:$0xf]
  %v5265 = vld [vmem:[%s5261 + $0xc] sm:$0xf]
  %v5270 = vunpack.c.l.b16 %v5262
  %v5271 = vunpack.c.l.b16 %v5263
  %v5272 = vunpack.c.l.b16 %v5264
  %v5273 = vunpack.c.l.b16 %v5265
  %v5274 = vpack.c.b16 %v5271, %v5270
  %v5275 = vpack.c.b16 %v5273, %v5272
  %v5279 = vsel %vm343, %v5257, 0
  %v5282 = vsel %vm343, %v5258, 0
  %v5285 = vsel %vm343, %v5259, 0
  %v5288 = vsel %vm343, %v5260, 0
  %5290 = vmatprep.subr.bf16.mxu0 0
  %5291 = vmatpush1.bf16.msra.mxu0 %v5274
  %5292 = vmatprep.subr.bf16.mxu0 0
  %5293 = vmatpush1.bf16.msra.mxu0 %v5275
  %5294 = vmatprep.subr.bf16.mxu0 0
  %5295 = vmatpush1.bf16.msra.mxu0 0
  %5296 = vmatprep.subr.bf16.mxu0 0
  %5297 = vmatpush1.bf16.msra.mxu0 0
  %5298 = vmatprep.subr.bf16.mxu0 0
  %5299 = vmatpush1.bf16.msra.mxu0 0
  %5300 = vmatprep.subr.bf16.mxu0 0
  %5301 = vmatpush1.bf16.msra.mxu0 0
  %5302 = vmatprep.subr.bf16.mxu0 0
  %5303 = vmatpush1.bf16.msra.mxu0 0
  %5304 = vmatprep.subr.bf16.mxu0 0
  %5305 = vmatpush1.bf16.msra.mxu0 0
  %5306 = vmatprep.subr.bf16.mxu0 0
  %5307 = vmatpush1.bf16.msra.mxu0 0
  %5308 = vmatprep.subr.bf16.mxu0 0
  %5309 = vmatpush1.bf16.msra.mxu0 0
  %5310 = vmatprep.subr.bf16.mxu0 0
  %5311 = vmatpush1.bf16.msra.mxu0 0
  %5312 = vmatprep.subr.bf16.mxu0 0
  %5313 = vmatpush1.bf16.msra.mxu0 0
  %5314 = vmatprep.subr.bf16.mxu0 0
  %5315 = vmatpush1.bf16.msra.mxu0 0
  %5316 = vmatprep.subr.bf16.mxu0 0
  %5317 = vmatpush1.bf16.msra.mxu0 0
  %5318 = vmatprep.subr.bf16.mxu0 0
  %5319 = vmatpush1.bf16.msra.mxu0 0
  %5320 = vmatprep.subr.bf16.mxu0 0
  %5321 = vmatpush1.bf16.msra.mxu0 0
  %5322 = vmatprep.mubr.bf16.mxu0 0
  %5323 = vmatmul.mubr.bf16.gmra.mrb[0].mxu0 %v5279
  %v5324 = vpop.f32.mrb[0].mxu0
  %v5325 = vadd.f32 0.0, %v5324
  %v5326 = vpop.f32.mrb[0].mxu0
  %v5327 = vpop.f32.mrb[0].mxu0
  %v5328 = vadd.f32 0.0, %v5327
  %v5329 = vpop.f32.mrb[0].mxu0
  %5330 = vmatprep.mubr.bf16.mxu0 0
  %5331 = vmatmul.mubr.bf16.gmra.mrb[0].mxu0 %v5282
  %v5332 = vpop.f32.mrb[0].mxu0
  %v5333 = vadd.f32 0.0, %v5332
  %v5334 = vpop.f32.mrb[0].mxu0
  %v5335 = vpop.f32.mrb[0].mxu0
  %v5336 = vadd.f32 0.0, %v5335
  %v5337 = vpop.f32.mrb[0].mxu0
  %5338 = vmatprep.mubr.bf16.mxu0 0
  %5339 = vmatmul.mubr.bf16.gmra.mrb[0].mxu0 %v5285
  %v5340 = vpop.f32.mrb[0].mxu0
  %v5341 = vadd.f32 0.0, %v5340
  %v5342 = vpop.f32.mrb[0].mxu0
  %v5343 = vpop.f32.mrb[0].mxu0
  %v5344 = vadd.f32 0.0, %v5343
  %v5345 = vpop.f32.mrb[0].mxu0
  %5346 = vmatprep.mubr.bf16.mxu0 0
  %5347 = vmatmul.mubr.bf16.gmra.mrb[0].mxu0 %v5288
  %v5348 = vpop.f32.mrb[0].mxu0
  %v5349 = vadd.f32 0.0, %v5348
  %v5350 = vpop.f32.mrb[0].mxu0
  %v5351 = vpop.f32.mrb[0].mxu0
  %v5352 = vadd.f32 0.0, %v5351
  %v5353 = vpop.f32.mrb[0].mxu0
  %5354 = vdwg.mxu0
  %v5355 = vadd.f32 %v5144, %v5325
  %v5356 = vadd.f32 %v5145, %v5328
  %v5357 = vadd.f32 %v5146, %v5333
  %v5358 = vadd.f32 %v5147, %v5336
  %v5359 = vadd.f32 %v5148, %v5341
  %v5360 = vadd.f32 %v5149, %v5344
  %v5361 = vadd.f32 %v5150, %v5349
  %v5362 = vadd.f32 %v5151, %v5352
  %v5363 = vld [vmem:[%s0 + $0x320] sm:$0xf]
  %v5364 = vld [vmem:[%s0 + $0x324] sm:$0xf]
  %v5365 = vld [vmem:[%s0 + $0x328] sm:$0xf]
  %v5366 = vld [vmem:[%s0 + $0x32c] sm:$0xf]
  %v5367 = vld [vmem:[%s0 + $0x330] sm:$0xf]
  %v5368 = vld [vmem:[%s0 + $0x334] sm:$0xf]
  %v5369 = vld [vmem:[%s0 + $0x338] sm:$0xf]
  %v5370 = vld [vmem:[%s0 + $0x33c] sm:$0xf]
  %v5379 = vunpack.c.l.b16 %v5363
  %v5380 = vunpack.c.l.b16 %v5364
  %v5381 = vunpack.c.l.b16 %v5365
  %v5382 = vunpack.c.l.b16 %v5366
  %v5383 = vunpack.c.l.b16 %v5367
  %v5384 = vunpack.c.l.b16 %v5368
  %v5385 = vunpack.c.l.b16 %v5369
  %v5386 = vunpack.c.l.b16 %v5370
  %v5387 = vpack.c.b16 %v5380, %v5379
  %v5388 = vpack.c.b16 %v5382, %v5381
  %v5389 = vpack.c.b16 %v5384, %v5383
  %v5390 = vpack.c.b16 %v5386, %v5385
  %5395 = vmatprep.subr.bf16.mxu0 0
  %5396 = vmatpush1.bf16.msra.mxu0 %v120
  %5397 = vmatprep.subr.bf16.mxu0 0
  %5398 = vmatpush1.bf16.msra.mxu0 %v121
  %5399 = vmatprep.subr.bf16.mxu0 0
  %5400 = vmatpush1.bf16.msra.mxu0 %v122
  %5401 = vmatprep.subr.bf16.mxu0 0
  %5402 = vmatpush1.bf16.msra.mxu0 %v123
  %5403 = vmatprep.subr.bf16.mxu0 0
  %5404 = vmatpush1.bf16.msra.mxu0 %v124
  %5405 = vmatprep.subr.bf16.mxu0 0
  %5406 = vmatpush1.bf16.msra.mxu0 %v125
  %5407 = vmatprep.subr.bf16.mxu0 0
  %5408 = vmatpush1.bf16.msra.mxu0 %v126
  %5409 = vmatprep.subr.bf16.mxu0 0
  %5410 = vmatpush1.bf16.msra.mxu0 %v127
  %5411 = vmatprep.subr.bf16.mxu0 0
  %5412 = vmatpush1.bf16.msra.mxu0 0
  %5413 = vmatprep.subr.bf16.mxu0 0
  %5414 = vmatpush1.bf16.msra.mxu0 0
  %5415 = vmatprep.subr.bf16.mxu0 0
  %5416 = vmatpush1.bf16.msra.mxu0 0
  %5417 = vmatprep.subr.bf16.mxu0 0
  %5418 = vmatpush1.bf16.msra.mxu0 0
  %5419 = vmatprep.subr.bf16.mxu0 0
  %5420 = vmatpush1.bf16.msra.mxu0 0
  %5421 = vmatprep.subr.bf16.mxu0 0
  %5422 = vmatpush1.bf16.msra.mxu0 0
  %5423 = vmatprep.subr.bf16.mxu0 0
  %5424 = vmatpush1.bf16.msra.mxu0 0
  %5425 = vmatprep.subr.bf16.mxu0 0
  %5426 = vmatpush1.bf16.msra.mxu0 0
  %5427 = vmatprep.mubr.bf16.mxu0 0
  %5428 = vmatmul.mubr.bf16.gmra.mrb[0].mxu0 %v5387
  %v5429 = vpop.f32.mrb[0].mxu0
  %v5430 = vadd.f32 %v54, %v5429
  %v5431 = vpop.f32.mrb[0].mxu0
  %v5432 = vpop.f32.mrb[0].mxu0
  %v5433 = vadd.f32 %v54, %v5432
  %v5434 = vpop.f32.mrb[0].mxu0
  %5435 = vmatprep.mubr.bf16.mxu0 0
  %5436 = vmatmul.mubr.bf16.gmra.mrb[0].mxu0 %v5388
  %v5437 = vpop.f32.mrb[0].mxu0
  %v5438 = vadd.f32 %v54, %v5437
  %v5439 = vpop.f32.mrb[0].mxu0
  %v5440 = vpop.f32.mrb[0].mxu0
  %v5441 = vadd.f32 %v54, %v5440
  %v5442 = vpop.f32.mrb[0].mxu0
  %5443 = vmatprep.mubr.bf16.mxu0 0
  %5444 = vmatmul.mubr.bf16.gmra.mrb[0].mxu0 %v5389
  %v5445 = vpop.f32.mrb[0].mxu0
  %v5446 = vadd.f32 %v54, %v5445
  %v5447 = vpop.f32.mrb[0].mxu0
  %v5448 = vpop.f32.mrb[0].mxu0
  %v5449 = vadd.f32 %v54, %v5448
  %v5450 = vpop.f32.mrb[0].mxu0
  %5451 = vmatprep.mubr.bf16.mxu0 0
  %5452 = vmatmul.mubr.bf16.gmra.mrb[0].mxu0 %v5390
  %v5453 = vpop.f32.mrb[0].mxu0
  %v5454 = vadd.f32 %v54, %v5453
  %v5455 = vpop.f32.mrb[0].mxu0
  %v5456 = vpop.f32.mrb[0].mxu0
  %v5457 = vadd.f32 %v54, %v5456
  %v5458 = vpop.f32.mrb[0].mxu0
  %5459 = vdwg.mxu0
  %v5460 = vmax.f32 %v5430, 0.0
  %v5461 = vmax.f32 %v5433, 0.0
  %v5462 = vmax.f32 %v5438, 0.0
  %v5463 = vmax.f32 %v5441, 0.0
  %v5464 = vmax.f32 %v5446, 0.0
  %v5465 = vmax.f32 %v5449, 0.0
  %v5466 = vmax.f32 %v5454, 0.0
  %v5467 = vmax.f32 %v5457, 0.0
  %v5468 = vpack.c.bf16 %v5461, %v5460
  %v5469 = vpack.c.bf16 %v5463, %v5462
  %v5470 = vpack.c.bf16 %v5465, %v5464
  %v5471 = vpack.c.bf16 %v5467, %v5466
  %s5472 = scalar_lea.vmem %s3, 400
  %v5473 = vld [vmem:[%s5472] sm:$0xf]
  %v5474 = vld [vmem:[%s5472 + $0x4] sm:$0xf]
  %v5475 = vld [vmem:[%s5472 + $0x8] sm:$0xf]
  %v5476 = vld [vmem:[%s5472 + $0xc] sm:$0xf]
  %v5481 = vunpack.c.l.b16 %v5473
  %v5482 = vunpack.c.l.b16 %v5474
  %v5483 = vunpack.c.l.b16 %v5475
  %v5484 = vunpack.c.l.b16 %v5476
  %v5485 = vpack.c.b16 %v5482, %v5481
  %v5486 = vpack.c.b16 %v5484, %v5483
  %v5490 = vsel %vm343, %v5468, 0
  %v5493 = vsel %vm343, %v5469, 0
  %v5496 = vsel %vm343, %v5470, 0
  %v5499 = vsel %vm343, %v5471, 0
  %5501 = vmatprep.subr.bf16.mxu0 0
  %5502 = vmatpush1.bf16.msra.mxu0 %v5485
  %5503 = vmatprep.subr.bf16.mxu0 0
  %5504 = vmatpush1.bf16.msra.mxu0 %v5486
  %5505 = vmatprep.subr.bf16.mxu0 0
  %5506 = vmatpush1.bf16.msra.mxu0 0
  %5507 = vmatprep.subr.bf16.mxu0 0
  %5508 = vmatpush1.bf16.msra.mxu0 0
  %5509 = vmatprep.subr.bf16.mxu0 0
  %5510 = vmatpush1.bf16.msra.mxu0 0
  %5511 = vmatprep.subr.bf16.mxu0 0
  %5512 = vmatpush1.bf16.msra.mxu0 0
  %5513 = vmatprep.subr.bf16.mxu0 0
  %5514 = vmatpush1.bf16.msra.mxu0 0
  %5515 = vmatprep.subr.bf16.mxu0 0
  %5516 = vmatpush1.bf16.msra.mxu0 0
  %5517 = vmatprep.subr.bf16.mxu0 0
  %5518 = vmatpush1.bf16.msra.mxu0 0
  %5519 = vmatprep.subr.bf16.mxu0 0
  %5520 = vmatpush1.bf16.msra.mxu0 0
  %5521 = vmatprep.subr.bf16.mxu0 0
  %5522 = vmatpush1.bf16.msra.mxu0 0
  %5523 = vmatprep.subr.bf16.mxu0 0
  %5524 = vmatpush1.bf16.msra.mxu0 0
  %5525 = vmatprep.subr.bf16.mxu0 0
  %5526 = vmatpush1.bf16.msra.mxu0 0
  %5527 = vmatprep.subr.bf16.mxu0 0
  %5528 = vmatpush1.bf16.msra.mxu0 0
  %5529 = vmatprep.subr.bf16.mxu0 0
  %5530 = vmatpush1.bf16.msra.mxu0 0
  %5531 = vmatprep.subr.bf16.mxu0 0
  %5532 = vmatpush1.bf16.msra.mxu0 0
  %5533 = vmatprep.mubr.bf16.mxu0 0
  %5534 = vmatmul.mubr.bf16.gmra.mrb[0].mxu0 %v5490
  %v5535 = vpop.f32.mrb[0].mxu0
  %v5536 = vadd.f32 0.0, %v5535
  %v5537 = vpop.f32.mrb[0].mxu0
  %v5538 = vpop.f32.mrb[0].mxu0
  %v5539 = vadd.f32 0.0, %v5538
  %v5540 = vpop.f32.mrb[0].mxu0
  %5541 = vmatprep.mubr.bf16.mxu0 0
  %5542 = vmatmul.mubr.bf16.gmra.mrb[0].mxu0 %v5493
  %v5543 = vpop.f32.mrb[0].mxu0
  %v5544 = vadd.f32 0.0, %v5543
  %v5545 = vpop.f32.mrb[0].mxu0
  %v5546 = vpop.f32.mrb[0].mxu0
  %v5547 = vadd.f32 0.0, %v5546
  %v5548 = vpop.f32.mrb[0].mxu0
  %5549 = vmatprep.mubr.bf16.mxu0 0
  %5550 = vmatmul.mubr.bf16.gmra.mrb[0].mxu0 %v5496
  %v5551 = vpop.f32.mrb[0].mxu0
  %v5552 = vadd.f32 0.0, %v5551
  %v5553 = vpop.f32.mrb[0].mxu0
  %v5554 = vpop.f32.mrb[0].mxu0
  %v5555 = vadd.f32 0.0, %v5554
  %v5556 = vpop.f32.mrb[0].mxu0
  %5557 = vmatprep.mubr.bf16.mxu0 0
  %5558 = vmatmul.mubr.bf16.gmra.mrb[0].mxu0 %v5499
  %v5559 = vpop.f32.mrb[0].mxu0
  %v5560 = vadd.f32 0.0, %v5559
  %v5561 = vpop.f32.mrb[0].mxu0
  %v5562 = vpop.f32.mrb[0].mxu0
  %v5563 = vadd.f32 0.0, %v5562
  %v5564 = vpop.f32.mrb[0].mxu0
  %5565 = vdwg.mxu0
  %v5566 = vadd.f32 %v5355, %v5536
  %v5567 = vadd.f32 %v5356, %v5539
  %v5568 = vadd.f32 %v5357, %v5544
  %v5569 = vadd.f32 %v5358, %v5547
  %v5570 = vadd.f32 %v5359, %v5552
  %v5571 = vadd.f32 %v5360, %v5555
  %v5572 = vadd.f32 %v5361, %v5560
  %v5573 = vadd.f32 %v5362, %v5563
  %v5574 = vld [vmem:[%s0 + $0x340] sm:$0xf]
  %v5575 = vld [vmem:[%s0 + $0x344] sm:$0xf]
  %v5576 = vld [vmem:[%s0 + $0x348] sm:$0xf]
  %v5577 = vld [vmem:[%s0 + $0x34c] sm:$0xf]
  %v5578 = vld [vmem:[%s0 + $0x350] sm:$0xf]
  %v5579 = vld [vmem:[%s0 + $0x354] sm:$0xf]
  %v5580 = vld [vmem:[%s0 + $0x358] sm:$0xf]
  %v5581 = vld [vmem:[%s0 + $0x35c] sm:$0xf]
  %v5590 = vunpack.c.l.b16 %v5574
  %v5591 = vunpack.c.l.b16 %v5575
  %v5592 = vunpack.c.l.b16 %v5576
  %v5593 = vunpack.c.l.b16 %v5577
  %v5594 = vunpack.c.l.b16 %v5578
  %v5595 = vunpack.c.l.b16 %v5579
  %v5596 = vunpack.c.l.b16 %v5580
  %v5597 = vunpack.c.l.b16 %v5581
  %v5598 = vpack.c.b16 %v5591, %v5590
  %v5599 = vpack.c.b16 %v5593, %v5592
  %v5600 = vpack.c.b16 %v5595, %v5594
  %v5601 = vpack.c.b16 %v5597, %v5596
  %5606 = vmatprep.subr.bf16.mxu0 0
  %5607 = vmatpush1.bf16.msra.mxu0 %v120
  %5608 = vmatprep.subr.bf16.mxu0 0
  %5609 = vmatpush1.bf16.msra.mxu0 %v121
  %5610 = vmatprep.subr.bf16.mxu0 0
  %5611 = vmatpush1.bf16.msra.mxu0 %v122
  %5612 = vmatprep.subr.bf16.mxu0 0
  %5613 = vmatpush1.bf16.msra.mxu0 %v123
  %5614 = vmatprep.subr.bf16.mxu0 0
  %5615 = vmatpush1.bf16.msra.mxu0 %v124
  %5616 = vmatprep.subr.bf16.mxu0 0
  %5617 = vmatpush1.bf16.msra.mxu0 %v125
  %5618 = vmatprep.subr.bf16.mxu0 0
  %5619 = vmatpush1.bf16.msra.mxu0 %v126
  %5620 = vmatprep.subr.bf16.mxu0 0
  %5621 = vmatpush1.bf16.msra.mxu0 %v127
  %5622 = vmatprep.subr.bf16.mxu0 0
  %5623 = vmatpush1.bf16.msra.mxu0 0
  %5624 = vmatprep.subr.bf16.mxu0 0
  %5625 = vmatpush1.bf16.msra.mxu0 0
  %5626 = vmatprep.subr.bf16.mxu0 0
  %5627 = vmatpush1.bf16.msra.mxu0 0
  %5628 = vmatprep.subr.bf16.mxu0 0
  %5629 = vmatpush1.bf16.msra.mxu0 0
  %5630 = vmatprep.subr.bf16.mxu0 0
  %5631 = vmatpush1.bf16.msra.mxu0 0
  %5632 = vmatprep.subr.bf16.mxu0 0
  %5633 = vmatpush1.bf16.msra.mxu0 0
  %5634 = vmatprep.subr.bf16.mxu0 0
  %5635 = vmatpush1.bf16.msra.mxu0 0
  %5636 = vmatprep.subr.bf16.mxu0 0
  %5637 = vmatpush1.bf16.msra.mxu0 0
  %5638 = vmatprep.mubr.bf16.mxu0 0
  %5639 = vmatmul.mubr.bf16.gmra.mrb[0].mxu0 %v5598
  %v5640 = vpop.f32.mrb[0].mxu0
  %v5641 = vadd.f32 %v54, %v5640
  %v5642 = vpop.f32.mrb[0].mxu0
  %v5643 = vpop.f32.mrb[0].mxu0
  %v5644 = vadd.f32 %v54, %v5643
  %v5645 = vpop.f32.mrb[0].mxu0
  %5646 = vmatprep.mubr.bf16.mxu0 0
  %5647 = vmatmul.mubr.bf16.gmra.mrb[0].mxu0 %v5599
  %v5648 = vpop.f32.mrb[0].mxu0
  %v5649 = vadd.f32 %v54, %v5648
  %v5650 = vpop.f32.mrb[0].mxu0
  %v5651 = vpop.f32.mrb[0].mxu0
  %v5652 = vadd.f32 %v54, %v5651
  %v5653 = vpop.f32.mrb[0].mxu0
  %5654 = vmatprep.mubr.bf16.mxu0 0
  %5655 = vmatmul.mubr.bf16.gmra.mrb[0].mxu0 %v5600
  %v5656 = vpop.f32.mrb[0].mxu0
  %v5657 = vadd.f32 %v54, %v5656
  %v5658 = vpop.f32.mrb[0].mxu0
  %v5659 = vpop.f32.mrb[0].mxu0
  %v5660 = vadd.f32 %v54, %v5659
  %v5661 = vpop.f32.mrb[0].mxu0
  %5662 = vmatprep.mubr.bf16.mxu0 0
  %5663 = vmatmul.mubr.bf16.gmra.mrb[0].mxu0 %v5601
  %v5664 = vpop.f32.mrb[0].mxu0
  %v5665 = vadd.f32 %v54, %v5664
  %v5666 = vpop.f32.mrb[0].mxu0
  %v5667 = vpop.f32.mrb[0].mxu0
  %v5668 = vadd.f32 %v54, %v5667
  %v5669 = vpop.f32.mrb[0].mxu0
  %5670 = vdwg.mxu0
  %v5671 = vmax.f32 %v5641, 0.0
  %v5672 = vmax.f32 %v5644, 0.0
  %v5673 = vmax.f32 %v5649, 0.0
  %v5674 = vmax.f32 %v5652, 0.0
  %v5675 = vmax.f32 %v5657, 0.0
  %v5676 = vmax.f32 %v5660, 0.0
  %v5677 = vmax.f32 %v5665, 0.0
  %v5678 = vmax.f32 %v5668, 0.0
  %v5679 = vpack.c.bf16 %v5672, %v5671
  %v5680 = vpack.c.bf16 %v5674, %v5673
  %v5681 = vpack.c.bf16 %v5676, %v5675
  %v5682 = vpack.c.bf16 %v5678, %v5677
  %s5683 = scalar_lea.vmem %s3, 416
  %v5684 = vld [vmem:[%s5683] sm:$0xf]
  %v5685 = vld [vmem:[%s5683 + $0x4] sm:$0xf]
  %v5686 = vld [vmem:[%s5683 + $0x8] sm:$0xf]
  %v5687 = vld [vmem:[%s5683 + $0xc] sm:$0xf]
  %v5692 = vunpack.c.l.b16 %v5684
  %v5693 = vunpack.c.l.b16 %v5685
  %v5694 = vunpack.c.l.b16 %v5686
  %v5695 = vunpack.c.l.b16 %v5687
  %v5696 = vpack.c.b16 %v5693, %v5692
  %v5697 = vpack.c.b16 %v5695, %v5694
  %v5701 = vsel %vm343, %v5679, 0
  %v5704 = vsel %vm343, %v5680, 0
  %v5707 = vsel %vm343, %v5681, 0
  %v5710 = vsel %vm343, %v5682, 0
  %5712 = vmatprep.subr.bf16.mxu0 0
  %5713 = vmatpush1.bf16.msra.mxu0 %v5696
  %5714 = vmatprep.subr.bf16.mxu0 0
  %5715 = vmatpush1.bf16.msra.mxu0 %v5697
  %5716 = vmatprep.subr.bf16.mxu0 0
  %5717 = vmatpush1.bf16.msra.mxu0 0
  %5718 = vmatprep.subr.bf16.mxu0 0
  %5719 = vmatpush1.bf16.msra.mxu0 0
  %5720 = vmatprep.subr.bf16.mxu0 0
  %5721 = vmatpush1.bf16.msra.mxu0 0
  %5722 = vmatprep.subr.bf16.mxu0 0
  %5723 = vmatpush1.bf16.msra.mxu0 0
  %5724 = vmatprep.subr.bf16.mxu0 0
  %5725 = vmatpush1.bf16.msra.mxu0 0
  %5726 = vmatprep.subr.bf16.mxu0 0
  %5727 = vmatpush1.bf16.msra.mxu0 0
  %5728 = vmatprep.subr.bf16.mxu0 0
  %5729 = vmatpush1.bf16.msra.mxu0 0
  %5730 = vmatprep.subr.bf16.mxu0 0
  %5731 = vmatpush1.bf16.msra.mxu0 0
  %5732 = vmatprep.subr.bf16.mxu0 0
  %5733 = vmatpush1.bf16.msra.mxu0 0
  %5734 = vmatprep.subr.bf16.mxu0 0
  %5735 = vmatpush1.bf16.msra.mxu0 0
  %5736 = vmatprep.subr.bf16.mxu0 0
  %5737 = vmatpush1.bf16.msra.mxu0 0
  %5738 = vmatprep.subr.bf16.mxu0 0
  %5739 = vmatpush1.bf16.msra.mxu0 0
  %5740 = vmatprep.subr.bf16.mxu0 0
  %5741 = vmatpush1.bf16.msra.mxu0 0
  %5742 = vmatprep.subr.bf16.mxu0 0
  %5743 = vmatpush1.bf16.msra.mxu0 0
  %5744 = vmatprep.mubr.bf16.mxu0 0
  %5745 = vmatmul.mubr.bf16.gmra.mrb[0].mxu0 %v5701
  %v5746 = vpop.f32.mrb[0].mxu0
  %v5747 = vadd.f32 0.0, %v5746
  %v5748 = vpop.f32.mrb[0].mxu0
  %v5749 = vpop.f32.mrb[0].mxu0
  %v5750 = vadd.f32 0.0, %v5749
  %v5751 = vpop.f32.mrb[0].mxu0
  %5752 = vmatprep.mubr.bf16.mxu0 0
  %5753 = vmatmul.mubr.bf16.gmra.mrb[0].mxu0 %v5704
  %v5754 = vpop.f32.mrb[0].mxu0
  %v5755 = vadd.f32 0.0, %v5754
  %v5756 = vpop.f32.mrb[0].mxu0
  %v5757 = vpop.f32.mrb[0].mxu0
  %v5758 = vadd.f32 0.0, %v5757
  %v5759 = vpop.f32.mrb[0].mxu0
  %5760 = vmatprep.mubr.bf16.mxu0 0
  %5761 = vmatmul.mubr.bf16.gmra.mrb[0].mxu0 %v5707
  %v5762 = vpop.f32.mrb[0].mxu0
  %v5763 = vadd.f32 0.0, %v5762
  %v5764 = vpop.f32.mrb[0].mxu0
  %v5765 = vpop.f32.mrb[0].mxu0
  %v5766 = vadd.f32 0.0, %v5765
  %v5767 = vpop.f32.mrb[0].mxu0
  %5768 = vmatprep.mubr.bf16.mxu0 0
  %5769 = vmatmul.mubr.bf16.gmra.mrb[0].mxu0 %v5710
  %v5770 = vpop.f32.mrb[0].mxu0
  %v5771 = vadd.f32 0.0, %v5770
  %v5772 = vpop.f32.mrb[0].mxu0
  %v5773 = vpop.f32.mrb[0].mxu0
  %v5774 = vadd.f32 0.0, %v5773
  %v5775 = vpop.f32.mrb[0].mxu0
  %5776 = vdwg.mxu0
  %v5777 = vadd.f32 %v5566, %v5747
  %v5778 = vadd.f32 %v5567, %v5750
  %v5779 = vadd.f32 %v5568, %v5755
  %v5780 = vadd.f32 %v5569, %v5758
  %v5781 = vadd.f32 %v5570, %v5763
  %v5782 = vadd.f32 %v5571, %v5766
  %v5783 = vadd.f32 %v5572, %v5771
  %v5784 = vadd.f32 %v5573, %v5774
  %v5785 = vld [vmem:[%s4] sm:$0x1]
  %v5787 = vlaneseq
  %v5788 = vshrl.u32 %v5787, 7
  %v5789 = vsub.s32 0, %v5788
  %v5790 = vrot.slane %v5785, %v5789
  %v5792 = vadd.f32 %v5777, %v5790
  %v5793 = vadd.f32 %v5778, %v5790
  %v5794 = vadd.f32 %v5779, %v5790
  %v5795 = vadd.f32 %v5780, %v5790
  %v5796 = vadd.f32 %v5781, %v5790
  %v5797 = vadd.f32 %v5782, %v5790
  %v5798 = vadd.f32 %v5783, %v5790
  %v5799 = vadd.f32 %v5784, %v5790
  %v5800 = vmax.f32 %v5792, 0.0
  %v5801 = vmax.f32 %v5793, 0.0
  %v5802 = vmax.f32 %v5794, 0.0
  %v5803 = vmax.f32 %v5795, 0.0
  %v5804 = vmax.f32 %v5796, 0.0
  %v5805 = vmax.f32 %v5797, 0.0
  %v5806 = vmax.f32 %v5798, 0.0
  %v5807 = vmax.f32 %v5799, 0.0
  %v5808 = vpack.c.bf16 %v5800, %v5800
  %v5809 = vld [vmem:[%s5] sm:$0xf]
  %v5810 = vld [vmem:[%s5 + $0x4] sm:$0xf]
  %v5811 = vld [vmem:[%s5 + $0x8] sm:$0xf]
  %v5812 = vld [vmem:[%s5 + $0xc] sm:$0xf]
  %v5813 = vld [vmem:[%s5 + $0x10] sm:$0xf]
  %v5814 = vld [vmem:[%s5 + $0x14] sm:$0xf]
  %v5815 = vpack.c.bf16 %v5801, %v5801
  %s5816 = scalar_lea.vmem %s5, 24
  %v5817 = vld [vmem:[%s5816] sm:$0xf]
  %v5818 = vld [vmem:[%s5816 + $0x4] sm:$0xf]
  %v5819 = vld [vmem:[%s5816 + $0x8] sm:$0xf]
  %v5820 = vld [vmem:[%s5816 + $0xc] sm:$0xf]
  %v5821 = vld [vmem:[%s5816 + $0x10] sm:$0xf]
  %v5822 = vld [vmem:[%s5816 + $0x14] sm:$0xf]
  %v5829 = vunpack.c.l.b16 %v5817
  %v5830 = vunpack.c.l.b16 %v5818
  %v5831 = vunpack.c.l.b16 %v5819
  %v5832 = vunpack.c.l.b16 %v5820
  %v5833 = vunpack.c.l.b16 %v5821
  %v5834 = vunpack.c.l.b16 %v5822
  %v5835 = vpack.c.b16 %v5830, %v5829
  %v5836 = vpack.c.b16 %v5832, %v5831
  %v5837 = vpack.c.b16 %v5834, %v5833
  %vm5841 = vcmask 392192
  %v5843 = vsel %vm5841, %v5815, 0
  %5845 = vmatprep.subr.bf16.mxu0 0
  %5846 = vmatpush1.bf16.msra.mxu0 %v5835
  %5847 = vmatprep.subr.bf16.mxu0 0
  %5848 = vmatpush1.bf16.msra.mxu0 %v5836
  %5849 = vmatprep.subr.bf16.mxu0 0
  %5850 = vmatpush1.bf16.msra.mxu0 %v5837
  %5851 = vmatprep.subr.bf16.mxu0 0
  %5852 = vmatpush1.bf16.msra.mxu0 0
  %5853 = vmatprep.subr.bf16.mxu0 0
  %5854 = vmatpush1.bf16.msra.mxu0 0
  %5855 = vmatprep.subr.bf16.mxu0 0
  %5856 = vmatpush1.bf16.msra.mxu0 0
  %5857 = vmatprep.subr.bf16.mxu0 0
  %5858 = vmatpush1.bf16.msra.mxu0 0
  %5859 = vmatprep.subr.bf16.mxu0 0
  %5860 = vmatpush1.bf16.msra.mxu0 0
  %5861 = vmatprep.subr.bf16.mxu0 0
  %5862 = vmatpush1.bf16.msra.mxu0 0
  %5863 = vmatprep.subr.bf16.mxu0 0
  %5864 = vmatpush1.bf16.msra.mxu0 0
  %5865 = vmatprep.subr.bf16.mxu0 0
  %5866 = vmatpush1.bf16.msra.mxu0 0
  %5867 = vmatprep.subr.bf16.mxu0 0
  %5868 = vmatpush1.bf16.msra.mxu0 0
  %5869 = vmatprep.subr.bf16.mxu0 0
  %5870 = vmatpush1.bf16.msra.mxu0 0
  %5871 = vmatprep.subr.bf16.mxu0 0
  %5872 = vmatpush1.bf16.msra.mxu0 0
  %5873 = vmatprep.subr.bf16.mxu0 0
  %5874 = vmatpush1.bf16.msra.mxu0 0
  %5875 = vmatprep.subr.bf16.mxu0 0
  %5876 = vmatpush1.bf16.msra.mxu0 0
  %5877 = vmatprep.mubr.bf16.mxu0 0
  %5878 = vmatmul.mubr.bf16.gmra.mrb[0].mxu0 %v5843
  %v5879 = vpop.f32.mrb[0].mxu0
  %v5880 = vadd.f32 0.0, %v5879
  %v5881 = vpop.f32.mrb[0].mxu0
  %v5882 = vpop.f32.mrb[0].mxu0
  %v5883 = vpop.f32.mrb[0].mxu0
  %5884 = vdwg.mxu0
  %v5891 = vunpack.c.l.b16 %v5809
  %v5892 = vunpack.c.l.b16 %v5810
  %v5893 = vunpack.c.l.b16 %v5811
  %v5894 = vunpack.c.l.b16 %v5812
  %v5895 = vunpack.c.l.b16 %v5813
  %v5896 = vunpack.c.l.b16 %v5814
  %v5897 = vpack.c.b16 %v5892, %v5891
  %v5898 = vpack.c.b16 %v5894, %v5893
  %v5899 = vpack.c.b16 %v5896, %v5895
  %v5904 = vsel %vm5841, %v5808, 0
  %5906 = vmatprep.subr.bf16.mxu0 0
  %5907 = vmatpush1.bf16.msra.mxu0 %v5897
  %5908 = vmatprep.subr.bf16.mxu0 0
  %5909 = vmatpush1.bf16.msra.mxu0 %v5898
  %5910 = vmatprep.subr.bf16.mxu0 0
  %5911 = vmatpush1.bf16.msra.mxu0 %v5899
  %5912 = vmatprep.subr.bf16.mxu0 0
  %5913 = vmatpush1.bf16.msra.mxu0 0
  %5914 = vmatprep.subr.bf16.mxu0 0
  %5915 = vmatpush1.bf16.msra.mxu0 0
  %5916 = vmatprep.subr.bf16.mxu0 0
  %5917 = vmatpush1.bf16.msra.mxu0 0
  %5918 = vmatprep.subr.bf16.mxu0 0
  %5919 = vmatpush1.bf16.msra.mxu0 0
  %5920 = vmatprep.subr.bf16.mxu0 0
  %5921 = vmatpush1.bf16.msra.mxu0 0
  %5922 = vmatprep.subr.bf16.mxu0 0
  %5923 = vmatpush1.bf16.msra.mxu0 0
  %5924 = vmatprep.subr.bf16.mxu0 0
  %5925 = vmatpush1.bf16.msra.mxu0 0
  %5926 = vmatprep.subr.bf16.mxu0 0
  %5927 = vmatpush1.bf16.msra.mxu0 0
  %5928 = vmatprep.subr.bf16.mxu0 0
  %5929 = vmatpush1.bf16.msra.mxu0 0
  %5930 = vmatprep.subr.bf16.mxu0 0
  %5931 = vmatpush1.bf16.msra.mxu0 0
  %5932 = vmatprep.subr.bf16.mxu0 0
  %5933 = vmatpush1.bf16.msra.mxu0 0
  %5934 = vmatprep.subr.bf16.mxu0 0
  %5935 = vmatpush1.bf16.msra.mxu0 0
  %5936 = vmatprep.subr.bf16.mxu0 0
  %5937 = vmatpush1.bf16.msra.mxu0 0
  %5938 = vmatprep.mubr.bf16.mxu0 0
  %5939 = vmatmul.mubr.bf16.gmra.mrb[0].mxu0 %v5904
  %v5940 = vpop.f32.mrb[0].mxu0
  %v5941 = vadd.f32 %v5880, %v5940
  %v5942 = vpop.f32.mrb[0].mxu0
  %v5943 = vpop.f32.mrb[0].mxu0
  %v5944 = vpop.f32.mrb[0].mxu0
  %5945 = vdwg.mxu0
  %v5946 = vpack.c.bf16 %v5802, %v5802
  %s5947 = scalar_lea.vmem %s5, 48
  %v5948 = vld [vmem:[%s5947] sm:$0xf]
  %v5949 = vld [vmem:[%s5947 + $0x4] sm:$0xf]
  %v5950 = vld [vmem:[%s5947 + $0x8] sm:$0xf]
  %v5951 = vld [vmem:[%s5947 + $0xc] sm:$0xf]
  %v5952 = vld [vmem:[%s5947 + $0x10] sm:$0xf]
  %v5953 = vld [vmem:[%s5947 + $0x14] sm:$0xf]
  %v5960 = vunpack.c.l.b16 %v5948
  %v5961 = vunpack.c.l.b16 %v5949
  %v5962 = vunpack.c.l.b16 %v5950
  %v5963 = vunpack.c.l.b16 %v5951
  %v5964 = vunpack.c.l.b16 %v5952
  %v5965 = vunpack.c.l.b16 %v5953
  %v5966 = vpack.c.b16 %v5961, %v5960
  %v5967 = vpack.c.b16 %v5963, %v5962
  %v5968 = vpack.c.b16 %v5965, %v5964
  %v5973 = vsel %vm5841, %v5946, 0
  %5975 = vmatprep.subr.bf16.mxu0 0
  %5976 = vmatpush1.bf16.msra.mxu0 %v5966
  %5977 = vmatprep.subr.bf16.mxu0 0
  %5978 = vmatpush1.bf16.msra.mxu0 %v5967
  %5979 = vmatprep.subr.bf16.mxu0 0
  %5980 = vmatpush1.bf16.msra.mxu0 %v5968
  %5981 = vmatprep.subr.bf16.mxu0 0
  %5982 = vmatpush1.bf16.msra.mxu0 0
  %5983 = vmatprep.subr.bf16.mxu0 0
  %5984 = vmatpush1.bf16.msra.mxu0 0
  %5985 = vmatprep.subr.bf16.mxu0 0
  %5986 = vmatpush1.bf16.msra.mxu0 0
  %5987 = vmatprep.subr.bf16.mxu0 0
  %5988 = vmatpush1.bf16.msra.mxu0 0
  %5989 = vmatprep.subr.bf16.mxu0 0
  %5990 = vmatpush1.bf16.msra.mxu0 0
  %5991 = vmatprep.subr.bf16.mxu0 0
  %5992 = vmatpush1.bf16.msra.mxu0 0
  %5993 = vmatprep.subr.bf16.mxu0 0
  %5994 = vmatpush1.bf16.msra.mxu0 0
  %5995 = vmatprep.subr.bf16.mxu0 0
  %5996 = vmatpush1.bf16.msra.mxu0 0
  %5997 = vmatprep.subr.bf16.mxu0 0
  %5998 = vmatpush1.bf16.msra.mxu0 0
  %5999 = vmatprep.subr.bf16.mxu0 0
  %6000 = vmatpush1.bf16.msra.mxu0 0
  %6001 = vmatprep.subr.bf16.mxu0 0
  %6002 = vmatpush1.bf16.msra.mxu0 0
  %6003 = vmatprep.subr.bf16.mxu0 0
  %6004 = vmatpush1.bf16.msra.mxu0 0
  %6005 = vmatprep.subr.bf16.mxu0 0
  %6006 = vmatpush1.bf16.msra.mxu0 0
  %6007 = vmatprep.mubr.bf16.mxu0 0
  %6008 = vmatmul.mubr.bf16.gmra.mrb[0].mxu0 %v5973
  %v6009 = vpop.f32.mrb[0].mxu0
  %v6010 = vadd.f32 0.0, %v6009
  %v6011 = vpop.f32.mrb[0].mxu0
  %v6012 = vpop.f32.mrb[0].mxu0
  %v6013 = vpop.f32.mrb[0].mxu0
  %6014 = vdwg.mxu0
  %v6015 = vadd.f32 %v5941, %v6010
  %v6016 = vpack.c.bf16 %v5803, %v5803
  %s6017 = scalar_lea.vmem %s5, 72
  %v6018 = vld [vmem:[%s6017] sm:$0xf]
  %v6019 = vld [vmem:[%s6017 + $0x4] sm:$0xf]
  %v6020 = vld [vmem:[%s6017 + $0x8] sm:$0xf]
  %v6021 = vld [vmem:[%s6017 + $0xc] sm:$0xf]
  %v6022 = vld [vmem:[%s6017 + $0x10] sm:$0xf]
  %v6023 = vld [vmem:[%s6017 + $0x14] sm:$0xf]
  %v6030 = vunpack.c.l.b16 %v6018
  %v6031 = vunpack.c.l.b16 %v6019
  %v6032 = vunpack.c.l.b16 %v6020
  %v6033 = vunpack.c.l.b16 %v6021
  %v6034 = vunpack.c.l.b16 %v6022
  %v6035 = vunpack.c.l.b16 %v6023
  %v6036 = vpack.c.b16 %v6031, %v6030
  %v6037 = vpack.c.b16 %v6033, %v6032
  %v6038 = vpack.c.b16 %v6035, %v6034
  %v6043 = vsel %vm5841, %v6016, 0
  %6045 = vmatprep.subr.bf16.mxu0 0
  %6046 = vmatpush1.bf16.msra.mxu0 %v6036
  %6047 = vmatprep.subr.bf16.mxu0 0
  %6048 = vmatpush1.bf16.msra.mxu0 %v6037
  %6049 = vmatprep.subr.bf16.mxu0 0
  %6050 = vmatpush1.bf16.msra.mxu0 %v6038
  %6051 = vmatprep.subr.bf16.mxu0 0
  %6052 = vmatpush1.bf16.msra.mxu0 0
  %6053 = vmatprep.subr.bf16.mxu0 0
  %6054 = vmatpush1.bf16.msra.mxu0 0
  %6055 = vmatprep.subr.bf16.mxu0 0
  %6056 = vmatpush1.bf16.msra.mxu0 0
  %6057 = vmatprep.subr.bf16.mxu0 0
  %6058 = vmatpush1.bf16.msra.mxu0 0
  %6059 = vmatprep.subr.bf16.mxu0 0
  %6060 = vmatpush1.bf16.msra.mxu0 0
  %6061 = vmatprep.subr.bf16.mxu0 0
  %6062 = vmatpush1.bf16.msra.mxu0 0
  %6063 = vmatprep.subr.bf16.mxu0 0
  %6064 = vmatpush1.bf16.msra.mxu0 0
  %6065 = vmatprep.subr.bf16.mxu0 0
  %6066 = vmatpush1.bf16.msra.mxu0 0
  %6067 = vmatprep.subr.bf16.mxu0 0
  %6068 = vmatpush1.bf16.msra.mxu0 0
  %6069 = vmatprep.subr.bf16.mxu0 0
  %6070 = vmatpush1.bf16.msra.mxu0 0
  %6071 = vmatprep.subr.bf16.mxu0 0
  %6072 = vmatpush1.bf16.msra.mxu0 0
  %6073 = vmatprep.subr.bf16.mxu0 0
  %6074 = vmatpush1.bf16.msra.mxu0 0
  %6075 = vmatprep.subr.bf16.mxu0 0
  %6076 = vmatpush1.bf16.msra.mxu0 0
  %6077 = vmatprep.mubr.bf16.mxu0 0
  %6078 = vmatmul.mubr.bf16.gmra.mrb[0].mxu0 %v6043
  %v6079 = vpop.f32.mrb[0].mxu0
  %v6080 = vadd.f32 0.0, %v6079
  %v6081 = vpop.f32.mrb[0].mxu0
  %v6082 = vpop.f32.mrb[0].mxu0
  %v6083 = vpop.f32.mrb[0].mxu0
  %6084 = vdwg.mxu0
  %v6085 = vadd.f32 %v6015, %v6080
  %v6086 = vpack.c.bf16 %v5804, %v5804
  %s6087 = scalar_lea.vmem %s5, 96
  %v6088 = vld [vmem:[%s6087] sm:$0xf]
  %v6089 = vld [vmem:[%s6087 + $0x4] sm:$0xf]
  %v6090 = vld [vmem:[%s6087 + $0x8] sm:$0xf]
  %v6091 = vld [vmem:[%s6087 + $0xc] sm:$0xf]
  %v6092 = vld [vmem:[%s6087 + $0x10] sm:$0xf]
  %v6093 = vld [vmem:[%s6087 + $0x14] sm:$0xf]
  %v6100 = vunpack.c.l.b16 %v6088
  %v6101 = vunpack.c.l.b16 %v6089
  %v6102 = vunpack.c.l.b16 %v6090
  %v6103 = vunpack.c.l.b16 %v6091
  %v6104 = vunpack.c.l.b16 %v6092
  %v6105 = vunpack.c.l.b16 %v6093
  %v6106 = vpack.c.b16 %v6101, %v6100
  %v6107 = vpack.c.b16 %v6103, %v6102
  %v6108 = vpack.c.b16 %v6105, %v6104
  %v6113 = vsel %vm5841, %v6086, 0
  %6115 = vmatprep.subr.bf16.mxu0 0
  %6116 = vmatpush1.bf16.msra.mxu0 %v6106
  %6117 = vmatprep.subr.bf16.mxu0 0
  %6118 = vmatpush1.bf16.msra.mxu0 %v6107
  %6119 = vmatprep.subr.bf16.mxu0 0
  %6120 = vmatpush1.bf16.msra.mxu0 %v6108
  %6121 = vmatprep.subr.bf16.mxu0 0
  %6122 = vmatpush1.bf16.msra.mxu0 0
  %6123 = vmatprep.subr.bf16.mxu0 0
  %6124 = vmatpush1.bf16.msra.mxu0 0
  %6125 = vmatprep.subr.bf16.mxu0 0
  %6126 = vmatpush1.bf16.msra.mxu0 0
  %6127 = vmatprep.subr.bf16.mxu0 0
  %6128 = vmatpush1.bf16.msra.mxu0 0
  %6129 = vmatprep.subr.bf16.mxu0 0
  %6130 = vmatpush1.bf16.msra.mxu0 0
  %6131 = vmatprep.subr.bf16.mxu0 0
  %6132 = vmatpush1.bf16.msra.mxu0 0
  %6133 = vmatprep.subr.bf16.mxu0 0
  %6134 = vmatpush1.bf16.msra.mxu0 0
  %6135 = vmatprep.subr.bf16.mxu0 0
  %6136 = vmatpush1.bf16.msra.mxu0 0
  %6137 = vmatprep.subr.bf16.mxu0 0
  %6138 = vmatpush1.bf16.msra.mxu0 0
  %6139 = vmatprep.subr.bf16.mxu0 0
  %6140 = vmatpush1.bf16.msra.mxu0 0
  %6141 = vmatprep.subr.bf16.mxu0 0
  %6142 = vmatpush1.bf16.msra.mxu0 0
  %6143 = vmatprep.subr.bf16.mxu0 0
  %6144 = vmatpush1.bf16.msra.mxu0 0
  %6145 = vmatprep.subr.bf16.mxu0 0
  %6146 = vmatpush1.bf16.msra.mxu0 0
  %6147 = vmatprep.mubr.bf16.mxu0 0
  %6148 = vmatmul.mubr.bf16.gmra.mrb[0].mxu0 %v6113
  %v6149 = vpop.f32.mrb[0].mxu0
  %v6150 = vadd.f32 0.0, %v6149
  %v6151 = vpop.f32.mrb[0].mxu0
  %v6152 = vpop.f32.mrb[0].mxu0
  %v6153 = vpop.f32.mrb[0].mxu0
  %6154 = vdwg.mxu0
  %v6155 = vadd.f32 %v6085, %v6150
  %v6156 = vpack.c.bf16 %v5805, %v5805
  %s6157 = scalar_lea.vmem %s5, 120
  %v6158 = vld [vmem:[%s6157] sm:$0xf]
  %v6159 = vld [vmem:[%s6157 + $0x4] sm:$0xf]
  %v6160 = vld [vmem:[%s6157 + $0x8] sm:$0xf]
  %v6161 = vld [vmem:[%s6157 + $0xc] sm:$0xf]
  %v6162 = vld [vmem:[%s6157 + $0x10] sm:$0xf]
  %v6163 = vld [vmem:[%s6157 + $0x14] sm:$0xf]
  %v6170 = vunpack.c.l.b16 %v6158
  %v6171 = vunpack.c.l.b16 %v6159
  %v6172 = vunpack.c.l.b16 %v6160
  %v6173 = vunpack.c.l.b16 %v6161
  %v6174 = vunpack.c.l.b16 %v6162
  %v6175 = vunpack.c.l.b16 %v6163
  %v6176 = vpack.c.b16 %v6171, %v6170
  %v6177 = vpack.c.b16 %v6173, %v6172
  %v6178 = vpack.c.b16 %v6175, %v6174
  %v6183 = vsel %vm5841, %v6156, 0
  %6185 = vmatprep.subr.bf16.mxu0 0
  %6186 = vmatpush1.bf16.msra.mxu0 %v6176
  %6187 = vmatprep.subr.bf16.mxu0 0
  %6188 = vmatpush1.bf16.msra.mxu0 %v6177
  %6189 = vmatprep.subr.bf16.mxu0 0
  %6190 = vmatpush1.bf16.msra.mxu0 %v6178
  %6191 = vmatprep.subr.bf16.mxu0 0
  %6192 = vmatpush1.bf16.msra.mxu0 0
  %6193 = vmatprep.subr.bf16.mxu0 0
  %6194 = vmatpush1.bf16.msra.mxu0 0
  %6195 = vmatprep.subr.bf16.mxu0 0
  %6196 = vmatpush1.bf16.msra.mxu0 0
  %6197 = vmatprep.subr.bf16.mxu0 0
  %6198 = vmatpush1.bf16.msra.mxu0 0
  %6199 = vmatprep.subr.bf16.mxu0 0
  %6200 = vmatpush1.bf16.msra.mxu0 0
  %6201 = vmatprep.subr.bf16.mxu0 0
  %6202 = vmatpush1.bf16.msra.mxu0 0
  %6203 = vmatprep.subr.bf16.mxu0 0
  %6204 = vmatpush1.bf16.msra.mxu0 0
  %6205 = vmatprep.subr.bf16.mxu0 0
  %6206 = vmatpush1.bf16.msra.mxu0 0
  %6207 = vmatprep.subr.bf16.mxu0 0
  %6208 = vmatpush1.bf16.msra.mxu0 0
  %6209 = vmatprep.subr.bf16.mxu0 0
  %6210 = vmatpush1.bf16.msra.mxu0 0
  %6211 = vmatprep.subr.bf16.mxu0 0
  %6212 = vmatpush1.bf16.msra.mxu0 0
  %6213 = vmatprep.subr.bf16.mxu0 0
  %6214 = vmatpush1.bf16.msra.mxu0 0
  %6215 = vmatprep.subr.bf16.mxu0 0
  %6216 = vmatpush1.bf16.msra.mxu0 0
  %6217 = vmatprep.mubr.bf16.mxu0 0
  %6218 = vmatmul.mubr.bf16.gmra.mrb[0].mxu0 %v6183
  %v6219 = vpop.f32.mrb[0].mxu0
  %v6220 = vadd.f32 0.0, %v6219
  %v6221 = vpop.f32.mrb[0].mxu0
  %v6222 = vpop.f32.mrb[0].mxu0
  %v6223 = vpop.f32.mrb[0].mxu0
  %6224 = vdwg.mxu0
  %v6225 = vadd.f32 %v6155, %v6220
  %v6226 = vpack.c.bf16 %v5806, %v5806
  %s6227 = scalar_lea.vmem %s5, 144
  %v6228 = vld [vmem:[%s6227] sm:$0xf]
  %v6229 = vld [vmem:[%s6227 + $0x4] sm:$0xf]
  %v6230 = vld [vmem:[%s6227 + $0x8] sm:$0xf]
  %v6231 = vld [vmem:[%s6227 + $0xc] sm:$0xf]
  %v6232 = vld [vmem:[%s6227 + $0x10] sm:$0xf]
  %v6233 = vld [vmem:[%s6227 + $0x14] sm:$0xf]
  %v6240 = vunpack.c.l.b16 %v6228
  %v6241 = vunpack.c.l.b16 %v6229
  %v6242 = vunpack.c.l.b16 %v6230
  %v6243 = vunpack.c.l.b16 %v6231
  %v6244 = vunpack.c.l.b16 %v6232
  %v6245 = vunpack.c.l.b16 %v6233
  %v6246 = vpack.c.b16 %v6241, %v6240
  %v6247 = vpack.c.b16 %v6243, %v6242
  %v6248 = vpack.c.b16 %v6245, %v6244
  %v6253 = vsel %vm5841, %v6226, 0
  %6255 = vmatprep.subr.bf16.mxu0 0
  %6256 = vmatpush1.bf16.msra.mxu0 %v6246
  %6257 = vmatprep.subr.bf16.mxu0 0
  %6258 = vmatpush1.bf16.msra.mxu0 %v6247
  %6259 = vmatprep.subr.bf16.mxu0 0
  %6260 = vmatpush1.bf16.msra.mxu0 %v6248
  %6261 = vmatprep.subr.bf16.mxu0 0
  %6262 = vmatpush1.bf16.msra.mxu0 0
  %6263 = vmatprep.subr.bf16.mxu0 0
  %6264 = vmatpush1.bf16.msra.mxu0 0
  %6265 = vmatprep.subr.bf16.mxu0 0
  %6266 = vmatpush1.bf16.msra.mxu0 0
  %6267 = vmatprep.subr.bf16.mxu0 0
  %6268 = vmatpush1.bf16.msra.mxu0 0
  %6269 = vmatprep.subr.bf16.mxu0 0
  %6270 = vmatpush1.bf16.msra.mxu0 0
  %6271 = vmatprep.subr.bf16.mxu0 0
  %6272 = vmatpush1.bf16.msra.mxu0 0
  %6273 = vmatprep.subr.bf16.mxu0 0
  %6274 = vmatpush1.bf16.msra.mxu0 0
  %6275 = vmatprep.subr.bf16.mxu0 0
  %6276 = vmatpush1.bf16.msra.mxu0 0
  %6277 = vmatprep.subr.bf16.mxu0 0
  %6278 = vmatpush1.bf16.msra.mxu0 0
  %6279 = vmatprep.subr.bf16.mxu0 0
  %6280 = vmatpush1.bf16.msra.mxu0 0
  %6281 = vmatprep.subr.bf16.mxu0 0
  %6282 = vmatpush1.bf16.msra.mxu0 0
  %6283 = vmatprep.subr.bf16.mxu0 0
  %6284 = vmatpush1.bf16.msra.mxu0 0
  %6285 = vmatprep.subr.bf16.mxu0 0
  %6286 = vmatpush1.bf16.msra.mxu0 0
  %6287 = vmatprep.mubr.bf16.mxu0 0
  %6288 = vmatmul.mubr.bf16.gmra.mrb[0].mxu0 %v6253
  %v6289 = vpop.f32.mrb[0].mxu0
  %v6290 = vadd.f32 0.0, %v6289
  %v6291 = vpop.f32.mrb[0].mxu0
  %v6292 = vpop.f32.mrb[0].mxu0
  %v6293 = vpop.f32.mrb[0].mxu0
  %6294 = vdwg.mxu0
  %v6295 = vadd.f32 %v6225, %v6290
  %v6296 = vpack.c.bf16 %v5807, %v5807
  %s6297 = scalar_lea.vmem %s5, 168
  %v6298 = vld [vmem:[%s6297] sm:$0xf]
  %v6299 = vld [vmem:[%s6297 + $0x4] sm:$0xf]
  %v6300 = vld [vmem:[%s6297 + $0x8] sm:$0xf]
  %v6301 = vld [vmem:[%s6297 + $0xc] sm:$0xf]
  %v6302 = vld [vmem:[%s6297 + $0x10] sm:$0xf]
  %v6303 = vld [vmem:[%s6297 + $0x14] sm:$0xf]
  %v6310 = vunpack.c.l.b16 %v6298
  %v6311 = vunpack.c.l.b16 %v6299
  %v6312 = vunpack.c.l.b16 %v6300
  %v6313 = vunpack.c.l.b16 %v6301
  %v6314 = vunpack.c.l.b16 %v6302
  %v6315 = vunpack.c.l.b16 %v6303
  %v6316 = vpack.c.b16 %v6311, %v6310
  %v6317 = vpack.c.b16 %v6313, %v6312
  %v6318 = vpack.c.b16 %v6315, %v6314
  %v6323 = vsel %vm5841, %v6296, 0
  %6325 = vmatprep.subr.bf16.mxu0 0
  %6326 = vmatpush1.bf16.msra.mxu0 %v6316
  %6327 = vmatprep.subr.bf16.mxu0 0
  %6328 = vmatpush1.bf16.msra.mxu0 %v6317
  %6329 = vmatprep.subr.bf16.mxu0 0
  %6330 = vmatpush1.bf16.msra.mxu0 %v6318
  %6331 = vmatprep.subr.bf16.mxu0 0
  %6332 = vmatpush1.bf16.msra.mxu0 0
  %6333 = vmatprep.subr.bf16.mxu0 0
  %6334 = vmatpush1.bf16.msra.mxu0 0
  %6335 = vmatprep.subr.bf16.mxu0 0
  %6336 = vmatpush1.bf16.msra.mxu0 0
  %6337 = vmatprep.subr.bf16.mxu0 0
  %6338 = vmatpush1.bf16.msra.mxu0 0
  %6339 = vmatprep.subr.bf16.mxu0 0
  %6340 = vmatpush1.bf16.msra.mxu0 0
  %6341 = vmatprep.subr.bf16.mxu0 0
  %6342 = vmatpush1.bf16.msra.mxu0 0
  %6343 = vmatprep.subr.bf16.mxu0 0
  %6344 = vmatpush1.bf16.msra.mxu0 0
  %6345 = vmatprep.subr.bf16.mxu0 0
  %6346 = vmatpush1.bf16.msra.mxu0 0
  %6347 = vmatprep.subr.bf16.mxu0 0
  %6348 = vmatpush1.bf16.msra.mxu0 0
  %6349 = vmatprep.subr.bf16.mxu0 0
  %6350 = vmatpush1.bf16.msra.mxu0 0
  %6351 = vmatprep.subr.bf16.mxu0 0
  %6352 = vmatpush1.bf16.msra.mxu0 0
  %6353 = vmatprep.subr.bf16.mxu0 0
  %6354 = vmatpush1.bf16.msra.mxu0 0
  %6355 = vmatprep.subr.bf16.mxu0 0
  %6356 = vmatpush1.bf16.msra.mxu0 0
  %6357 = vmatprep.mubr.bf16.mxu0 0
  %6358 = vmatmul.mubr.bf16.gmra.mrb[0].mxu0 %v6323
  %v6359 = vpop.f32.mrb[0].mxu0
  %v6360 = vadd.f32 0.0, %v6359
  %v6361 = vpop.f32.mrb[0].mxu0
  %v6362 = vpop.f32.mrb[0].mxu0
  %v6363 = vpop.f32.mrb[0].mxu0
  %6364 = vdwg.mxu0
  %v6365 = vadd.f32 %v6295, %v6360
  %v6366 = vld [vmem:[%s6] sm:$0x1]
  %v6368 = vlaneseq
  %v6369 = vshrl.u32 %v6368, 7
  %v6370 = vsub.s32 0, %v6369
  %v6371 = vrot.slane %v6366, %v6370
  %v6373 = vadd.f32 %v6365, %v6371
  %v6374 = vmax.f32 %v6373, 0.0
  %v6375 = vpack.c.bf16 %v6374, %v6374
  %v6376 = vld [vmem:[%s7] sm:$0xf]
  %v6377 = vld [vmem:[%s7 + $0x4] sm:$0xf]
  %v6378 = vld [vmem:[%s7 + $0x8] sm:$0xf]
  %v6379 = vld [vmem:[%s7 + $0xc] sm:$0xf]
  %v6380 = vld [vmem:[%s8] sm:$0x1]
  %v6382 = vlaneseq
  %v6383 = vshrl.u32 %v6382, 7
  %v6384 = vsub.s32 0, %v6383
  %v6385 = vrot.slane %v6380, %v6384
  %v6391 = vunpack.c.l.b16 %v6376
  %v6392 = vunpack.c.l.b16 %v6377
  %v6393 = vunpack.c.l.b16 %v6378
  %v6394 = vunpack.c.l.b16 %v6379
  %v6395 = vpack.c.b16 %v6392, %v6391
  %v6396 = vpack.c.b16 %v6394, %v6393
  %v6400 = vsel %vm343, %v6375, 0
  %6402 = vmatprep.subr.bf16.mxu0 0
  %6403 = vmatpush1.bf16.msra.mxu0 %v6395
  %6404 = vmatprep.subr.bf16.mxu0 0
  %6405 = vmatpush1.bf16.msra.mxu0 %v6396
  %6406 = vmatprep.subr.bf16.mxu0 0
  %6407 = vmatpush1.bf16.msra.mxu0 0
  %6408 = vmatprep.subr.bf16.mxu0 0
  %6409 = vmatpush1.bf16.msra.mxu0 0
  %6410 = vmatprep.subr.bf16.mxu0 0
  %6411 = vmatpush1.bf16.msra.mxu0 0
  %6412 = vmatprep.subr.bf16.mxu0 0
  %6413 = vmatpush1.bf16.msra.mxu0 0
  %6414 = vmatprep.subr.bf16.mxu0 0
  %6415 = vmatpush1.bf16.msra.mxu0 0
  %6416 = vmatprep.subr.bf16.mxu0 0
  %6417 = vmatpush1.bf16.msra.mxu0 0
  %6418 = vmatprep.subr.bf16.mxu0 0
  %6419 = vmatpush1.bf16.msra.mxu0 0
  %6420 = vmatprep.subr.bf16.mxu0 0
  %6421 = vmatpush1.bf16.msra.mxu0 0
  %6422 = vmatprep.subr.bf16.mxu0 0
  %6423 = vmatpush1.bf16.msra.mxu0 0
  %6424 = vmatprep.subr.bf16.mxu0 0
  %6425 = vmatpush1.bf16.msra.mxu0 0
  %6426 = vmatprep.subr.bf16.mxu0 0
  %6427 = vmatpush1.bf16.msra.mxu0 0
  %6428 = vmatprep.subr.bf16.mxu0 0
  %6429 = vmatpush1.bf16.msra.mxu0 0
  %6430 = vmatprep.subr.bf16.mxu0 0
  %6431 = vmatpush1.bf16.msra.mxu0 0
  %6432 = vmatprep.subr.bf16.mxu0 0
  %6433 = vmatpush1.bf16.msra.mxu0 0
  %6434 = vmatprep.mubr.bf16.mxu0 0
  %6435 = vmatmul.mubr.bf16.gmra.mrb[0].mxu0 %v6400
  %v6436 = vpop.f32.mrb[0].mxu0
  %v6437 = vadd.f32 %v6385, %v6436
  %v6438 = vpop.f32.mrb[0].mxu0
  %v6439 = vpop.f32.mrb[0].mxu0
  %v6440 = vpop.f32.mrb[0].mxu0
  %6441 = vdwg.mxu0
  %v6442 = vmax.f32 %v6437, 0.0
  %6443 = vst [vmem:[%s9] sm:$0xff] %v6442
  // Predicated region
  $region38: #{cnn3d_forward.1} parent=0 // pred_check
    _
  $region39: #{cnn3d_forward.1} parent=0 // pred_check_branch
    %6445 = sbr.rel (0) target = $region41
  $region40: #{cnn3d_forward.1} parent=0 // pred_region
    _
  $region41: #{cnn3d_forward.1} parent=0 // pred_fallthru
    _
  // Predicated region
  $region42: #{cnn3d_forward.1} parent=0 // pred_check
    _
  $region43: #{cnn3d_forward.1} parent=0 // pred_check_branch
    %6447 = sbr.rel (0) target = $region45
  $region44: #{cnn3d_forward.1} parent=0 // pred_region
    _
  $region45: #{cnn3d_forward.1} parent=0 // pred_fallthru
    _

</llo_original>
